<compile_context>
chip_gen: v7x
topology: tpu7x:2x2x1
jax: 0.10.0
libtpu: 0.0.40
codegen_flags: <defaults>
</compile_context>

<pallas_src>
import math
from functools import partial

import jax
import jax.numpy as jnp
from jax import lax
from jax.experimental import pallas as pl
from jax.experimental.pallas import tpu as pltpu


def _pick_band_rows(H, W, C):
    """Largest divisor of H whose (Hb, W, C) f32 accumulator is ~<=16 vregs."""
    vregs_per_row = -(-W // 8) * -(-C // 128)          # ceil(W/8)*ceil(C/128)
    budget = max(1, 16 // max(1, vregs_per_row))
    hb = 1
    for cand in range(1, H + 1):
        if H % cand == 0 and cand <= budget:
            hb = cand
    return hb


# ----------------------------------------------------------------------------
# Fused kernel: dwconv(KxK) + BN -> LayerNorm -> Linear -> GELU -> Linear
#               -> layer scale -> residual.  One image (NHWC) per grid step.
# ----------------------------------------------------------------------------
def _slak_block_kernel(x_ref, dw_ref, bns_ref, bnb_ref, lnw_ref, lnb_ref,
                       w1_ref, b1_ref, w2_ref, b2_ref, gamma_ref,
                       o_ref, xp_ref, xn_ref, *, H, W, C, K, Hb, Lp, eps):
    # x_ref   : (1, H, W, C)            NHWC input block (one image)
    # dw_ref  : (K, K, C)               depthwise conv weights
    # bns/bnb : (1, C)                  fused BN scale / shift (eval stats)
    # lnw/lnb : (1, C)                  LayerNorm weight / bias
    # w1/w2   : (C, 4C) / (4C, C)       bf16 MLP weights; b1/b2 f32 biases
    # gamma   : (1, C)                  layer scale
    # o_ref   : (1, H*W, C)             output block (flat rows, NHWC order)
    # xp_ref  : (H+2p, Lp+W+p, C) f32   padded conv input (left pad Lp aligned)
    # xn_ref  : (H*W, C) bf16           LayerNorm output (MXU lhs)
    pad = K // 2
    HW = H * W
    Wp = Lp + W + pad
    f32 = jnp.float32

    # ---- padded conv input in VMEM -----------------------------------------
    # Interior copy is sublane-aligned (W offset Lp is a multiple of 8) ->
    # plain aligned vst.  Only the halo strips are re-zeroed (small; interior
    # is fully overwritten every step).
    xp_ref[pad:pad + H, Lp:Lp + W, :] = x_ref[0].astype(f32)
    xp_ref[0:pad, :, :] = jnp.zeros((pad, Wp, C), f32)
    xp_ref[pad + H:pad + H + pad, :, :] = jnp.zeros((pad, Wp, C), f32)
    xp_ref[pad:pad + H, 0:Lp, :] = jnp.zeros((H, Lp, C), f32)
    xp_ref[pad:pad + H, Lp + W:Lp + W + pad, :] = jnp.zeros((H, pad, C), f32)

    # Small per-channel vectors and depthwise weights, loaded once.
    w = dw_ref[...].astype(f32)                     # (K, K, C)
    bns = bns_ref[...]
    bnb = bnb_ref[...]
    lnw = lnw_ref[...]
    lnb = lnb_ref[...]

    # ---- depthwise KxK conv + BN + LayerNorm, banded over H (no spills) ----
    n_bands = H // Hb

    def band_body(b, carry):
        row0 = pl.multiple_of(b * Hb, Hb)
        acc = jnp.zeros((Hb, W, C), f32)
        for kh in range(K):                          # 49 taps, exact windows
            for kw in range(K):
                win = xp_ref[pl.ds(row0 + kh, Hb),
                             pl.ds(Lp - pad + kw, W), :]
                acc = acc + win * w[kh, kw]
        # fused eval-mode BN; reshape (Hb,W,C)->(Hb*W,C) is layout-preserving
        # when W % 8 == 0 (real SLaK W=14/7 would add a relayout copy here).
        y = acc.reshape(Hb * W, C) * bns + bnb
        # LayerNorm over channels (eps=1e-6, biased variance, f32).
        u = jnp.mean(y, axis=-1, keepdims=True)
        yc = y - u
        var = jnp.mean(yc * yc, axis=-1, keepdims=True)
        xn = yc * lax.rsqrt(var + eps) * lnw + lnb
        start = pl.multiple_of(row0 * W, Hb * W)
        xn_ref[pl.ds(start, Hb * W), :] = xn.astype(xn_ref.dtype)
        return carry

    lax.fori_loop(0, n_bands, band_body, 0)

    # ---- MLP: Linear -> tanh-GELU (EUP) -> Linear (bf16 MXU, f32 acc) ------
    h = jnp.dot(xn_ref[...], w1_ref[...],
                preferred_element_type=f32) + b1_ref[...]
    # TODO(synk): PyTorch nn.GELU() is the exact erf form; the tanh form used
    # here (EUP-friendly) differs by <~1e-3 per element.
    h2 = h * h
    inner = (0.7978845608028654 * h) * (1.0 + 0.044715 * h2)
    h = 0.5 * h * (1.0 + jnp.tanh(inner))
    z = jnp.dot(h.astype(jnp.bfloat16), w2_ref[...],
                preferred_element_type=f32) + b2_ref[...]
    z = z * gamma_ref[...]                           # layer scale

    # ---- residual add (input block already resident in VMEM) ---------------
    res = x_ref[0].astype(f32).reshape(HW, C)
    o_ref[0] = (res + z).astype(o_ref.dtype)


def slak_block_nhwc(x_nhwc, params, K=7, eps=1e-6):
    """Fused SLaK block, NHWC in / NHWC out (preferred entry point)."""
    N, H, W, C = x_nhwc.shape
    pad = K // 2
    Lp = ((pad + 7) // 8) * 8            # left W-pad rounded up -> aligned store
    Hb = _pick_band_rows(H, W, C)
    hidden = params["w1"].shape[1]
    kernel = partial(_slak_block_kernel,
                     H=H, W=W, C=C, K=K, Hb=Hb, Lp=Lp, eps=eps)
    out_flat = pl.pallas_call(
        kernel,
        out_shape=jax.ShapeDtypeStruct((N, H * W, C), x_nhwc.dtype),
        grid=(N,),
        in_specs=[
            pl.BlockSpec((1, H, W, C), lambda n: (n, 0, 0, 0)),   # x
            pl.BlockSpec((K, K, C), lambda n: (0, 0, 0)),         # dw weights
            pl.BlockSpec((1, C), lambda n: (0, 0)),               # bn scale
            pl.BlockSpec((1, C), lambda n: (0, 0)),               # bn shift
            pl.BlockSpec((1, C), lambda n: (0, 0)),               # ln weight
            pl.BlockSpec((1, C), lambda n: (0, 0)),               # ln bias
            pl.BlockSpec((C, hidden), lambda n: (0, 0)),          # w1 (bf16)
            pl.BlockSpec((1, hidden), lambda n: (0, 0)),          # b1
            pl.BlockSpec((hidden, C), lambda n: (0, 0)),          # w2 (bf16)
            pl.BlockSpec((1, C), lambda n: (0, 0)),               # b2
            pl.BlockSpec((1, C), lambda n: (0, 0)),               # gamma
        ],
        out_specs=pl.BlockSpec((1, H * W, C), lambda n: (n, 0, 0)),
        scratch_shapes=[
            pltpu.VMEM((H + 2 * pad, Lp + W + pad, C), jnp.float32),  # padded x
            pltpu.VMEM((H * W, C), jnp.bfloat16),                     # LN output
        ],
        # "parallel" image axis: feeds both v7x TensorCores when per-chip
        # batch >= 2 (harmless on v5e/v6e).  VMEM footprint ~3 MiB/step here;
        # set vmem_limit_bytes explicitly when scaling to SLaK stage shapes.
        compiler_params=pltpu.CompilerParams(
            dimension_semantics=("parallel",)),
    )(x_nhwc, params["dw_w"], params["bn_scale"], params["bn_shift"],
      params["ln_w"], params["ln_b"], params["w1"], params["b1"],
      params["w2"], params["b2"], params["gamma_ls"])
    return out_flat.reshape(N, H, W, C)


def slak_block(x_nchw, params, K=7):
    """NCHW in / NCHW out, matching the PyTorch module interface.

    Note: in a full network keep activations NHWC and call slak_block_nhwc
    directly; the transposes here are an extra HBM pass per block.
    """
    x = jnp.transpose(x_nchw, (0, 2, 3, 1))                   # NCHW -> NHWC
    out = slak_block_nhwc(x, params, K=K)
    return jnp.transpose(out, (0, 3, 1, 2))                   # NHWC -> NCHW


# ----------------------------------------------------------------------------
# Pure-JAX reference for validation (exact-GELU, PyTorch semantics)
# ----------------------------------------------------------------------------
def slak_block_reference(x_nchw, params, K=7):
    x = jnp.transpose(x_nchw, (0, 2, 3, 1))
    C = x.shape[-1]
    w = params["dw_w"].reshape(K, K, 1, C)
    y = lax.conv_general_dilated(
        x, w, window_strides=(1, 1), padding="SAME",
        dimension_numbers=("NHWC", "HWIO", "NHWC"),
        feature_group_count=C)
    y = y * params["bn_scale"] + params["bn_shift"]
    u = y.mean(-1, keepdims=True)
    var = ((y - u) ** 2).mean(-1, keepdims=True)
    yn = (y - u) / jnp.sqrt(var + 1e-6) * params["ln_w"] + params["ln_b"]
    h = yn @ params["w1"].astype(jnp.float32) + params["b1"]
    h = jax.nn.gelu(h, approximate=False)
    o = h @ params["w2"].astype(jnp.float32) + params["b2"]
    o = o * params["gamma_ls"]
    return jnp.transpose(x + o, (0, 3, 1, 2))


def make_params(key, dim, K=7, layer_scale_init_value=1e-6, bn_eps=1e-5):
    ks = jax.random.split(key, 10)
    hidden = 4 * dim
    dw_w = jax.random.normal(ks[0], (K, K, dim), jnp.float32) * 0.1
    bn_gamma = 1.0 + 0.1 * jax.random.normal(ks[1], (dim,), jnp.float32)
    bn_beta = 0.1 * jax.random.normal(ks[2], (dim,), jnp.float32)
    bn_mean = 0.1 * jax.random.normal(ks[3], (dim,), jnp.float32)
    bn_var = jnp.abs(jax.random.normal(ks[4], (dim,), jnp.float32)) + 0.5
    bn_scale = bn_gamma / jnp.sqrt(bn_var + bn_eps)
    bn_shift = bn_beta - bn_mean * bn_scale
    w1 = (jax.random.normal(ks[7], (dim, hidden), jnp.float32)
          * (1.0 / math.sqrt(dim))).astype(jnp.bfloat16)       # bf16 MXU weights
    w2 = (jax.random.normal(ks[9], (hidden, dim), jnp.float32)
          * (1.0 / math.sqrt(hidden))).astype(jnp.bfloat16)
    return {
        "dw_w": dw_w,
        "bn_scale": bn_scale.reshape(1, dim),
        "bn_shift": bn_shift.reshape(1, dim),
        "ln_w": (1.0 + 0.05 * jax.random.normal(ks[5], (dim,))).reshape(1, dim),
        "ln_b": (0.05 * jax.random.normal(ks[6], (dim,))).reshape(1, dim),
        "w1": w1,
        "b1": (0.02 * jax.random.normal(ks[8], (hidden,))).reshape(1, hidden),
        "w2": w2,
        "b2": jnp.zeros((1, dim), jnp.float32),
        "gamma_ls": jnp.full((1, dim), layer_scale_init_value, jnp.float32),
    }


if __name__ == "__main__":
    # dim=128 keeps every (..., C) op and the output store lane-dense
    # (C multiple of 128, per review); shapes stay small.
    N, C, H, W = 2, 128, 16, 16
    K = 7
    key = jax.random.PRNGKey(0)
    kx, kp = jax.random.split(key)
    x = jax.random.normal(kx, (N, C, H, W), jnp.float32)
    # gamma (layer scale) is a learned parameter; the module's *init* is 1e-6,
    # but we test with 0.1 so the check actually exercises the conv/LN/MLP
    # path instead of being residual-dominated.
    params = make_params(kp, C, K=K, layer_scale_init_value=0.1)

    out = jax.block_until_ready(slak_block(x, params, K=K))
    ref = jax.block_until_ready(slak_block_reference(x, params, K=K))

    assert out.shape == (N, C, H, W), out.shape
    # bf16 MXU activations (f32 accumulate) + tanh-GELU vs exact-erf reference
    # => tolerance looser than pure-f32.
    err = float(jnp.max(jnp.abs(out - ref)))
    assert jnp.allclose(out, ref, atol=2e-2, rtol=2e-2), err
    print("KERNEL_OK")
</pallas_src>

<mosaic_0001>
module attributes {stable_mosaic.version = 11 : i64} {
  func.func @_slak_block_kernel(%arg0: i32, %arg1: memref<1x16x16x128xf32, #tpu.memory_space<vmem>>, %arg2: memref<7x7x128xf32, #tpu.memory_space<vmem>>, %arg3: memref<1x128xf32, #tpu.memory_space<vmem>>, %arg4: memref<1x128xf32, #tpu.memory_space<vmem>>, %arg5: memref<1x128xf32, #tpu.memory_space<vmem>>, %arg6: memref<1x128xf32, #tpu.memory_space<vmem>>, %arg7: memref<128x512xbf16, #tpu.memory_space<vmem>>, %arg8: memref<1x512xf32, #tpu.memory_space<vmem>>, %arg9: memref<512x128xbf16, #tpu.memory_space<vmem>>, %arg10: memref<1x128xf32, #tpu.memory_space<vmem>>, %arg11: memref<1x128xf32, #tpu.memory_space<vmem>>, %arg12: memref<1x256x128xf32, #tpu.memory_space<vmem>>, %arg13: memref<22x27x128xf32, #tpu.memory_space<vmem>>, %arg14: memref<256x128xbf16, #tpu.memory_space<vmem>>) attributes {dimension_semantics = [#tpu.dimension_semantics<parallel>], iteration_bounds = array<i64: 2>, scalar_prefetch = 0 : i64, scratch_operands = 2 : i64, tpu.core_type = #tpu.core_type<tc>, window_params = [{transform_indices = @transform_0, window_bounds = array<i64: 1, 16, 16, 128>}, {pipeline_mode = #tpu.pipeline_mode<synchronous>, transform_indices = @transform_1, window_bounds = array<i64: 7, 7, 128>}, {pipeline_mode = #tpu.pipeline_mode<synchronous>, transform_indices = @transform_2, window_bounds = array<i64: 1, 128>}, {pipeline_mode = #tpu.pipeline_mode<synchronous>, transform_indices = @transform_3, window_bounds = array<i64: 1, 128>}, {pipeline_mode = #tpu.pipeline_mode<synchronous>, transform_indices = @transform_4, window_bounds = array<i64: 1, 128>}, {pipeline_mode = #tpu.pipeline_mode<synchronous>, transform_indices = @transform_5, window_bounds = array<i64: 1, 128>}, {pipeline_mode = #tpu.pipeline_mode<synchronous>, transform_indices = @transform_6, window_bounds = array<i64: 128, 512>}, {pipeline_mode = #tpu.pipeline_mode<synchronous>, transform_indices = @transform_7, window_bounds = array<i64: 1, 512>}, {pipeline_mode = #tpu.pipeline_mode<synchronous>, transform_indices = @transform_8, window_bounds = array<i64: 512, 128>}, {pipeline_mode = #tpu.pipeline_mode<synchronous>, transform_indices = @transform_9, window_bounds = array<i64: 1, 128>}, {pipeline_mode = #tpu.pipeline_mode<synchronous>, transform_indices = @transform_10, window_bounds = array<i64: 1, 128>}, {transform_indices = @transform_11, window_bounds = array<i64: 1, 256, 128>}]} {
    %c0 = arith.constant 0 : index
    %c0_0 = arith.constant 0 : index
    %c0_1 = arith.constant 0 : index
    %c0_2 = arith.constant 0 : index
    %0 = vector.load %arg1[%c0, %c0_0, %c0_1, %c0_2] : memref<1x16x16x128xf32, #tpu.memory_space<vmem>>, vector<1x16x16x128xf32>
    %1 = vector.shape_cast %0 : vector<1x16x16x128xf32> to vector<16x16x128xf32>
    %c3 = arith.constant 3 : index
    %c8 = arith.constant 8 : index
    %c0_3 = arith.constant 0 : index
    %2 = vector.load %arg13[%c3, %c8, %c0_3] : memref<22x27x128xf32, #tpu.memory_space<vmem>>, vector<16x16x128xf32>
    tpu.vector_store %arg13[%c3, %c8, %c0_3], %1 {strides = array<i32>} : memref<22x27x128xf32, #tpu.memory_space<vmem>>, vector<16x16x128xf32>,
    %cst = arith.constant 0.000000e+00 : f32
    %3 = vector.broadcast %cst : f32 to vector<3x27x128xf32>
    %c0_4 = arith.constant 0 : index
    %c0_5 = arith.constant 0 : index
    %c0_6 = arith.constant 0 : index
    %4 = vector.load %arg13[%c0_4, %c0_5, %c0_6] : memref<22x27x128xf32, #tpu.memory_space<vmem>>, vector<3x27x128xf32>
    tpu.vector_store %arg13[%c0_4, %c0_5, %c0_6], %3 {strides = array<i32>} : memref<22x27x128xf32, #tpu.memory_space<vmem>>, vector<3x27x128xf32>,
    %cst_7 = arith.constant 0.000000e+00 : f32
    %5 = vector.broadcast %cst_7 : f32 to vector<3x27x128xf32>
    %c19 = arith.constant 19 : index
    %c0_8 = arith.constant 0 : index
    %c0_9 = arith.constant 0 : index
    %6 = vector.load %arg13[%c19, %c0_8, %c0_9] : memref<22x27x128xf32, #tpu.memory_space<vmem>>, vector<3x27x128xf32>
    tpu.vector_store %arg13[%c19, %c0_8, %c0_9], %5 {strides = array<i32>} : memref<22x27x128xf32, #tpu.memory_space<vmem>>, vector<3x27x128xf32>,
    %cst_10 = arith.constant 0.000000e+00 : f32
    %7 = vector.broadcast %cst_10 : f32 to vector<16x8x128xf32>
    %c3_11 = arith.constant 3 : index
    %c0_12 = arith.constant 0 : index
    %c0_13 = arith.constant 0 : index
    %8 = vector.load %arg13[%c3_11, %c0_12, %c0_13] : memref<22x27x128xf32, #tpu.memory_space<vmem>>, vector<16x8x128xf32>
    tpu.vector_store %arg13[%c3_11, %c0_12, %c0_13], %7 {strides = array<i32>} : memref<22x27x128xf32, #tpu.memory_space<vmem>>, vector<16x8x128xf32>,
    %cst_14 = arith.constant 0.000000e+00 : f32
    %9 = vector.broadcast %cst_14 : f32 to vector<16x3x128xf32>
    %c3_15 = arith.constant 3 : index
    %c24 = arith.constant 24 : index
    %c0_16 = arith.constant 0 : index
    %10 = vector.load %arg13[%c3_15, %c24, %c0_16] : memref<22x27x128xf32, #tpu.memory_space<vmem>>, vector<16x3x128xf32>
    tpu.vector_store %arg13[%c3_15, %c24, %c0_16], %9 {strides = array<i32>} : memref<22x27x128xf32, #tpu.memory_space<vmem>>, vector<16x3x128xf32>,
    %c0_17 = arith.constant 0 : index
    %c0_18 = arith.constant 0 : index
    %c0_19 = arith.constant 0 : index
    %11 = vector.load %arg2[%c0_17, %c0_18, %c0_19] : memref<7x7x128xf32, #tpu.memory_space<vmem>>, vector<7x7x128xf32>
    %c0_20 = arith.constant 0 : index
    %c0_21 = arith.constant 0 : index
    %12 = vector.load %arg3[%c0_20, %c0_21] : memref<1x128xf32, #tpu.memory_space<vmem>>, vector<1x128xf32>
    %c0_22 = arith.constant 0 : index
    %c0_23 = arith.constant 0 : index
    %13 = vector.load %arg4[%c0_22, %c0_23] : memref<1x128xf32, #tpu.memory_space<vmem>>, vector<1x128xf32>
    %c0_24 = arith.constant 0 : index
    %c0_25 = arith.constant 0 : index
    %14 = vector.load %arg5[%c0_24, %c0_25] : memref<1x128xf32, #tpu.memory_space<vmem>>, vector<1x128xf32>
    %c0_26 = arith.constant 0 : index
    %c0_27 = arith.constant 0 : index
    %15 = vector.load %arg6[%c0_26, %c0_27] : memref<1x128xf32, #tpu.memory_space<vmem>>, vector<1x128xf32>
    %c0_i32 = arith.constant 0 : i32
    %c2_i32 = arith.constant 2 : i32
    %16 = arith.addi %c0_i32, %c2_i32 : i32
    %c1_i32 = arith.constant 1 : i32
    scf.for %arg15 = %c0_i32 to %16 step %c1_i32  : i32 {
      %c8_i32 = arith.constant 8 : i32
      %53 = arith.muli %arg15, %c8_i32 : i32
      %54 = tpu.assume_multiple %53, 8 : i32
      %cst_55 = arith.constant 0.000000e+00 : f32
      %55 = vector.broadcast %cst_55 : f32 to vector<8x16x128xf32>
      %c0_i32_56 = arith.constant 0 : i32
      %56 = arith.addi %54, %c0_i32_56 : i32
      %57 = arith.index_cast %56 : i32 to index
      %c5 = arith.constant 5 : index
      %c0_57 = arith.constant 0 : index
      %58 = vector.load %arg13[%57, %c5, %c0_57] : memref<22x27x128xf32, #tpu.memory_space<vmem>>, vector<8x16x128xf32>
      %59 = vector.extract_strided_slice %11 {offsets = [0, 0, 0], sizes = [1, 1, 128], strides = [1, 1, 1]} : vector<7x7x128xf32> to vector<1x1x128xf32>
      %60 = vector.shape_cast %59 : vector<1x1x128xf32> to vector<128xf32>
      %61 = vector.shape_cast %60 : vector<128xf32> to vector<1x1x128xf32>
      %62 = vector.broadcast %61 : vector<1x1x128xf32> to vector<8x16x128xf32>
      %63 = arith.mulf %58, %62 : vector<8x16x128xf32>
      %64 = arith.addf %55, %63 : vector<8x16x128xf32>
      %c0_i32_58 = arith.constant 0 : i32
      %65 = arith.addi %54, %c0_i32_58 : i32
      %66 = arith.index_cast %65 : i32 to index
      %c6 = arith.constant 6 : index
      %c0_59 = arith.constant 0 : index
      %67 = vector.load %arg13[%66, %c6, %c0_59] : memref<22x27x128xf32, #tpu.memory_space<vmem>>, vector<8x16x128xf32>
      %68 = vector.extract_strided_slice %11 {offsets = [0, 1, 0], sizes = [1, 1, 128], strides = [1, 1, 1]} : vector<7x7x128xf32> to vector<1x1x128xf32>
      %69 = vector.shape_cast %68 : vector<1x1x128xf32> to vector<128xf32>
      %70 = vector.shape_cast %69 : vector<128xf32> to vector<1x1x128xf32>
      %71 = vector.broadcast %70 : vector<1x1x128xf32> to vector<8x16x128xf32>
      %72 = arith.mulf %67, %71 : vector<8x16x128xf32>
      %73 = arith.addf %64, %72 : vector<8x16x128xf32>
      %c0_i32_60 = arith.constant 0 : i32
      %74 = arith.addi %54, %c0_i32_60 : i32
      %75 = arith.index_cast %74 : i32 to index
      %c7 = arith.constant 7 : index
      %c0_61 = arith.constant 0 : index
      %76 = vector.load %arg13[%75, %c7, %c0_61] : memref<22x27x128xf32, #tpu.memory_space<vmem>>, vector<8x16x128xf32>
      %77 = vector.extract_strided_slice %11 {offsets = [0, 2, 0], sizes = [1, 1, 128], strides = [1, 1, 1]} : vector<7x7x128xf32> to vector<1x1x128xf32>
      %78 = vector.shape_cast %77 : vector<1x1x128xf32> to vector<128xf32>
      %79 = vector.shape_cast %78 : vector<128xf32> to vector<1x1x128xf32>
      %80 = vector.broadcast %79 : vector<1x1x128xf32> to vector<8x16x128xf32>
      %81 = arith.mulf %76, %80 : vector<8x16x128xf32>
      %82 = arith.addf %73, %81 : vector<8x16x128xf32>
      %c0_i32_62 = arith.constant 0 : i32
      %83 = arith.addi %54, %c0_i32_62 : i32
      %84 = arith.index_cast %83 : i32 to index
      %c8_63 = arith.constant 8 : index
      %c0_64 = arith.constant 0 : index
      %85 = vector.load %arg13[%84, %c8_63, %c0_64] : memref<22x27x128xf32, #tpu.memory_space<vmem>>, vector<8x16x128xf32>
      %86 = vector.extract_strided_slice %11 {offsets = [0, 3, 0], sizes = [1, 1, 128], strides = [1, 1, 1]} : vector<7x7x128xf32> to vector<1x1x128xf32>
      %87 = vector.shape_cast %86 : vector<1x1x128xf32> to vector<128xf32>
      %88 = vector.shape_cast %87 : vector<128xf32> to vector<1x1x128xf32>
      %89 = vector.broadcast %88 : vector<1x1x128xf32> to vector<8x16x128xf32>
      %90 = arith.mulf %85, %89 : vector<8x16x128xf32>
      %91 = arith.addf %82, %90 : vector<8x16x128xf32>
      %c0_i32_65 = arith.constant 0 : i32
      %92 = arith.addi %54, %c0_i32_65 : i32
      %93 = arith.index_cast %92 : i32 to index
      %c9 = arith.constant 9 : index
      %c0_66 = arith.constant 0 : index
      %94 = vector.load %arg13[%93, %c9, %c0_66] : memref<22x27x128xf32, #tpu.memory_space<vmem>>, vector<8x16x128xf32>
      %95 = vector.extract_strided_slice %11 {offsets = [0, 4, 0], sizes = [1, 1, 128], strides = [1, 1, 1]} : vector<7x7x128xf32> to vector<1x1x128xf32>
      %96 = vector.shape_cast %95 : vector<1x1x128xf32> to vector<128xf32>
      %97 = vector.shape_cast %96 : vector<128xf32> to vector<1x1x128xf32>
      %98 = vector.broadcast %97 : vector<1x1x128xf32> to vector<8x16x128xf32>
      %99 = arith.mulf %94, %98 : vector<8x16x128xf32>
      %100 = arith.addf %91, %99 : vector<8x16x128xf32>
      %c0_i32_67 = arith.constant 0 : i32
      %101 = arith.addi %54, %c0_i32_67 : i32
      %102 = arith.index_cast %101 : i32 to index
      %c10 = arith.constant 10 : index
      %c0_68 = arith.constant 0 : index
      %103 = vector.load %arg13[%102, %c10, %c0_68] : memref<22x27x128xf32, #tpu.memory_space<vmem>>, vector<8x16x128xf32>
      %104 = vector.extract_strided_slice %11 {offsets = [0, 5, 0], sizes = [1, 1, 128], strides = [1, 1, 1]} : vector<7x7x128xf32> to vector<1x1x128xf32>
      %105 = vector.shape_cast %104 : vector<1x1x128xf32> to vector<128xf32>
      %106 = vector.shape_cast %105 : vector<128xf32> to vector<1x1x128xf32>
      %107 = vector.broadcast %106 : vector<1x1x128xf32> to vector<8x16x128xf32>
      %108 = arith.mulf %103, %107 : vector<8x16x128xf32>
      %109 = arith.addf %100, %108 : vector<8x16x128xf32>
      %c0_i32_69 = arith.constant 0 : i32
      %110 = arith.addi %54, %c0_i32_69 : i32
      %111 = arith.index_cast %110 : i32 to index
      %c11 = arith.constant 11 : index
      %c0_70 = arith.constant 0 : index
      %112 = vector.load %arg13[%111, %c11, %c0_70] : memref<22x27x128xf32, #tpu.memory_space<vmem>>, vector<8x16x128xf32>
      %113 = vector.extract_strided_slice %11 {offsets = [0, 6, 0], sizes = [1, 1, 128], strides = [1, 1, 1]} : vector<7x7x128xf32> to vector<1x1x128xf32>
      %114 = vector.shape_cast %113 : vector<1x1x128xf32> to vector<128xf32>
      %115 = vector.shape_cast %114 : vector<128xf32> to vector<1x1x128xf32>
      %116 = vector.broadcast %115 : vector<1x1x128xf32> to vector<8x16x128xf32>
      %117 = arith.mulf %112, %116 : vector<8x16x128xf32>
      %118 = arith.addf %109, %117 : vector<8x16x128xf32>
      %c1_i32_71 = arith.constant 1 : i32
      %119 = arith.addi %54, %c1_i32_71 : i32
      %120 = arith.index_cast %119 : i32 to index
      %c5_72 = arith.constant 5 : index
      %c0_73 = arith.constant 0 : index
      %121 = vector.load %arg13[%120, %c5_72, %c0_73] : memref<22x27x128xf32, #tpu.memory_space<vmem>>, vector<8x16x128xf32>
      %122 = vector.extract_strided_slice %11 {offsets = [1, 0, 0], sizes = [1, 1, 128], strides = [1, 1, 1]} : vector<7x7x128xf32> to vector<1x1x128xf32>
      %123 = vector.shape_cast %122 : vector<1x1x128xf32> to vector<128xf32>
      %124 = vector.shape_cast %123 : vector<128xf32> to vector<1x1x128xf32>
      %125 = vector.broadcast %124 : vector<1x1x128xf32> to vector<8x16x128xf32>
      %126 = arith.mulf %121, %125 : vector<8x16x128xf32>
      %127 = arith.addf %118, %126 : vector<8x16x128xf32>
      %c1_i32_74 = arith.constant 1 : i32
      %128 = arith.addi %54, %c1_i32_74 : i32
      %129 = arith.index_cast %128 : i32 to index
      %c6_75 = arith.constant 6 : index
      %c0_76 = arith.constant 0 : index
      %130 = vector.load %arg13[%129, %c6_75, %c0_76] : memref<22x27x128xf32, #tpu.memory_space<vmem>>, vector<8x16x128xf32>
      %131 = vector.extract_strided_slice %11 {offsets = [1, 1, 0], sizes = [1, 1, 128], strides = [1, 1, 1]} : vector<7x7x128xf32> to vector<1x1x128xf32>
      %132 = vector.shape_cast %131 : vector<1x1x128xf32> to vector<128xf32>
      %133 = vector.shape_cast %132 : vector<128xf32> to vector<1x1x128xf32>
      %134 = vector.broadcast %133 : vector<1x1x128xf32> to vector<8x16x128xf32>
      %135 = arith.mulf %130, %134 : vector<8x16x128xf32>
      %136 = arith.addf %127, %135 : vector<8x16x128xf32>
      %c1_i32_77 = arith.constant 1 : i32
      %137 = arith.addi %54, %c1_i32_77 : i32
      %138 = arith.index_cast %137 : i32 to index
      %c7_78 = arith.constant 7 : index
      %c0_79 = arith.constant 0 : index
      %139 = vector.load %arg13[%138, %c7_78, %c0_79] : memref<22x27x128xf32, #tpu.memory_space<vmem>>, vector<8x16x128xf32>
      %140 = vector.extract_strided_slice %11 {offsets = [1, 2, 0], sizes = [1, 1, 128], strides = [1, 1, 1]} : vector<7x7x128xf32> to vector<1x1x128xf32>
      %141 = vector.shape_cast %140 : vector<1x1x128xf32> to vector<128xf32>
      %142 = vector.shape_cast %141 : vector<128xf32> to vector<1x1x128xf32>
      %143 = vector.broadcast %142 : vector<1x1x128xf32> to vector<8x16x128xf32>
      %144 = arith.mulf %139, %143 : vector<8x16x128xf32>
      %145 = arith.addf %136, %144 : vector<8x16x128xf32>
      %c1_i32_80 = arith.constant 1 : i32
      %146 = arith.addi %54, %c1_i32_80 : i32
      %147 = arith.index_cast %146 : i32 to index
      %c8_81 = arith.constant 8 : index
      %c0_82 = arith.constant 0 : index
      %148 = vector.load %arg13[%147, %c8_81, %c0_82] : memref<22x27x128xf32, #tpu.memory_space<vmem>>, vector<8x16x128xf32>
      %149 = vector.extract_strided_slice %11 {offsets = [1, 3, 0], sizes = [1, 1, 128], strides = [1, 1, 1]} : vector<7x7x128xf32> to vector<1x1x128xf32>
      %150 = vector.shape_cast %149 : vector<1x1x128xf32> to vector<128xf32>
      %151 = vector.shape_cast %150 : vector<128xf32> to vector<1x1x128xf32>
      %152 = vector.broadcast %151 : vector<1x1x128xf32> to vector<8x16x128xf32>
      %153 = arith.mulf %148, %152 : vector<8x16x128xf32>
      %154 = arith.addf %145, %153 : vector<8x16x128xf32>
      %c1_i32_83 = arith.constant 1 : i32
      %155 = arith.addi %54, %c1_i32_83 : i32
      %156 = arith.index_cast %155 : i32 to index
      %c9_84 = arith.constant 9 : index
      %c0_85 = arith.constant 0 : index
      %157 = vector.load %arg13[%156, %c9_84, %c0_85] : memref<22x27x128xf32, #tpu.memory_space<vmem>>, vector<8x16x128xf32>
      %158 = vector.extract_strided_slice %11 {offsets = [1, 4, 0], sizes = [1, 1, 128], strides = [1, 1, 1]} : vector<7x7x128xf32> to vector<1x1x128xf32>
      %159 = vector.shape_cast %158 : vector<1x1x128xf32> to vector<128xf32>
      %160 = vector.shape_cast %159 : vector<128xf32> to vector<1x1x128xf32>
      %161 = vector.broadcast %160 : vector<1x1x128xf32> to vector<8x16x128xf32>
      %162 = arith.mulf %157, %161 : vector<8x16x128xf32>
      %163 = arith.addf %154, %162 : vector<8x16x128xf32>
      %c1_i32_86 = arith.constant 1 : i32
      %164 = arith.addi %54, %c1_i32_86 : i32
      %165 = arith.index_cast %164 : i32 to index
      %c10_87 = arith.constant 10 : index
      %c0_88 = arith.constant 0 : index
      %166 = vector.load %arg13[%165, %c10_87, %c0_88] : memref<22x27x128xf32, #tpu.memory_space<vmem>>, vector<8x16x128xf32>
      %167 = vector.extract_strided_slice %11 {offsets = [1, 5, 0], sizes = [1, 1, 128], strides = [1, 1, 1]} : vector<7x7x128xf32> to vector<1x1x128xf32>
      %168 = vector.shape_cast %167 : vector<1x1x128xf32> to vector<128xf32>
      %169 = vector.shape_cast %168 : vector<128xf32> to vector<1x1x128xf32>
      %170 = vector.broadcast %169 : vector<1x1x128xf32> to vector<8x16x128xf32>
      %171 = arith.mulf %166, %170 : vector<8x16x128xf32>
      %172 = arith.addf %163, %171 : vector<8x16x128xf32>
      %c1_i32_89 = arith.constant 1 : i32
      %173 = arith.addi %54, %c1_i32_89 : i32
      %174 = arith.index_cast %173 : i32 to index
      %c11_90 = arith.constant 11 : index
      %c0_91 = arith.constant 0 : index
      %175 = vector.load %arg13[%174, %c11_90, %c0_91] : memref<22x27x128xf32, #tpu.memory_space<vmem>>, vector<8x16x128xf32>
      %176 = vector.extract_strided_slice %11 {offsets = [1, 6, 0], sizes = [1, 1, 128], strides = [1, 1, 1]} : vector<7x7x128xf32> to vector<1x1x128xf32>
      %177 = vector.shape_cast %176 : vector<1x1x128xf32> to vector<128xf32>
      %178 = vector.shape_cast %177 : vector<128xf32> to vector<1x1x128xf32>
      %179 = vector.broadcast %178 : vector<1x1x128xf32> to vector<8x16x128xf32>
      %180 = arith.mulf %175, %179 : vector<8x16x128xf32>
      %181 = arith.addf %172, %180 : vector<8x16x128xf32>
      %c2_i32_92 = arith.constant 2 : i32
      %182 = arith.addi %54, %c2_i32_92 : i32
      %183 = arith.index_cast %182 : i32 to index
      %c5_93 = arith.constant 5 : index
      %c0_94 = arith.constant 0 : index
      %184 = vector.load %arg13[%183, %c5_93, %c0_94] : memref<22x27x128xf32, #tpu.memory_space<vmem>>, vector<8x16x128xf32>
      %185 = vector.extract_strided_slice %11 {offsets = [2, 0, 0], sizes = [1, 1, 128], strides = [1, 1, 1]} : vector<7x7x128xf32> to vector<1x1x128xf32>
      %186 = vector.shape_cast %185 : vector<1x1x128xf32> to vector<128xf32>
      %187 = vector.shape_cast %186 : vector<128xf32> to vector<1x1x128xf32>
      %188 = vector.broadcast %187 : vector<1x1x128xf32> to vector<8x16x128xf32>
      %189 = arith.mulf %184, %188 : vector<8x16x128xf32>
      %190 = arith.addf %181, %189 : vector<8x16x128xf32>
      %c2_i32_95 = arith.constant 2 : i32
      %191 = arith.addi %54, %c2_i32_95 : i32
      %192 = arith.index_cast %191 : i32 to index
      %c6_96 = arith.constant 6 : index
      %c0_97 = arith.constant 0 : index
      %193 = vector.load %arg13[%192, %c6_96, %c0_97] : memref<22x27x128xf32, #tpu.memory_space<vmem>>, vector<8x16x128xf32>
      %194 = vector.extract_strided_slice %11 {offsets = [2, 1, 0], sizes = [1, 1, 128], strides = [1, 1, 1]} : vector<7x7x128xf32> to vector<1x1x128xf32>
      %195 = vector.shape_cast %194 : vector<1x1x128xf32> to vector<128xf32>
      %196 = vector.shape_cast %195 : vector<128xf32> to vector<1x1x128xf32>
      %197 = vector.broadcast %196 : vector<1x1x128xf32> to vector<8x16x128xf32>
      %198 = arith.mulf %193, %197 : vector<8x16x128xf32>
      %199 = arith.addf %190, %198 : vector<8x16x128xf32>
      %c2_i32_98 = arith.constant 2 : i32
      %200 = arith.addi %54, %c2_i32_98 : i32
      %201 = arith.index_cast %200 : i32 to index
      %c7_99 = arith.constant 7 : index
      %c0_100 = arith.constant 0 : index
      %202 = vector.load %arg13[%201, %c7_99, %c0_100] : memref<22x27x128xf32, #tpu.memory_space<vmem>>, vector<8x16x128xf32>
      %203 = vector.extract_strided_slice %11 {offsets = [2, 2, 0], sizes = [1, 1, 128], strides = [1, 1, 1]} : vector<7x7x128xf32> to vector<1x1x128xf32>
      %204 = vector.shape_cast %203 : vector<1x1x128xf32> to vector<128xf32>
      %205 = vector.shape_cast %204 : vector<128xf32> to vector<1x1x128xf32>
      %206 = vector.broadcast %205 : vector<1x1x128xf32> to vector<8x16x128xf32>
      %207 = arith.mulf %202, %206 : vector<8x16x128xf32>
      %208 = arith.addf %199, %207 : vector<8x16x128xf32>
      %c2_i32_101 = arith.constant 2 : i32
      %209 = arith.addi %54, %c2_i32_101 : i32
      %210 = arith.index_cast %209 : i32 to index
      %c8_102 = arith.constant 8 : index
      %c0_103 = arith.constant 0 : index
      %211 = vector.load %arg13[%210, %c8_102, %c0_103] : memref<22x27x128xf32, #tpu.memory_space<vmem>>, vector<8x16x128xf32>
      %212 = vector.extract_strided_slice %11 {offsets = [2, 3, 0], sizes = [1, 1, 128], strides = [1, 1, 1]} : vector<7x7x128xf32> to vector<1x1x128xf32>
      %213 = vector.shape_cast %212 : vector<1x1x128xf32> to vector<128xf32>
      %214 = vector.shape_cast %213 : vector<128xf32> to vector<1x1x128xf32>
      %215 = vector.broadcast %214 : vector<1x1x128xf32> to vector<8x16x128xf32>
      %216 = arith.mulf %211, %215 : vector<8x16x128xf32>
      %217 = arith.addf %208, %216 : vector<8x16x128xf32>
      %c2_i32_104 = arith.constant 2 : i32
      %218 = arith.addi %54, %c2_i32_104 : i32
      %219 = arith.index_cast %218 : i32 to index
      %c9_105 = arith.constant 9 : index
      %c0_106 = arith.constant 0 : index
      %220 = vector.load %arg13[%219, %c9_105, %c0_106] : memref<22x27x128xf32, #tpu.memory_space<vmem>>, vector<8x16x128xf32>
      %221 = vector.extract_strided_slice %11 {offsets = [2, 4, 0], sizes = [1, 1, 128], strides = [1, 1, 1]} : vector<7x7x128xf32> to vector<1x1x128xf32>
      %222 = vector.shape_cast %221 : vector<1x1x128xf32> to vector<128xf32>
      %223 = vector.shape_cast %222 : vector<128xf32> to vector<1x1x128xf32>
      %224 = vector.broadcast %223 : vector<1x1x128xf32> to vector<8x16x128xf32>
      %225 = arith.mulf %220, %224 : vector<8x16x128xf32>
      %226 = arith.addf %217, %225 : vector<8x16x128xf32>
      %c2_i32_107 = arith.constant 2 : i32
      %227 = arith.addi %54, %c2_i32_107 : i32
      %228 = arith.index_cast %227 : i32 to index
      %c10_108 = arith.constant 10 : index
      %c0_109 = arith.constant 0 : index
      %229 = vector.load %arg13[%228, %c10_108, %c0_109] : memref<22x27x128xf32, #tpu.memory_space<vmem>>, vector<8x16x128xf32>
      %230 = vector.extract_strided_slice %11 {offsets = [2, 5, 0], sizes = [1, 1, 128], strides = [1, 1, 1]} : vector<7x7x128xf32> to vector<1x1x128xf32>
      %231 = vector.shape_cast %230 : vector<1x1x128xf32> to vector<128xf32>
      %232 = vector.shape_cast %231 : vector<128xf32> to vector<1x1x128xf32>
      %233 = vector.broadcast %232 : vector<1x1x128xf32> to vector<8x16x128xf32>
      %234 = arith.mulf %229, %233 : vector<8x16x128xf32>
      %235 = arith.addf %226, %234 : vector<8x16x128xf32>
      %c2_i32_110 = arith.constant 2 : i32
      %236 = arith.addi %54, %c2_i32_110 : i32
      %237 = arith.index_cast %236 : i32 to index
      %c11_111 = arith.constant 11 : index
      %c0_112 = arith.constant 0 : index
      %238 = vector.load %arg13[%237, %c11_111, %c0_112] : memref<22x27x128xf32, #tpu.memory_space<vmem>>, vector<8x16x128xf32>
      %239 = vector.extract_strided_slice %11 {offsets = [2, 6, 0], sizes = [1, 1, 128], strides = [1, 1, 1]} : vector<7x7x128xf32> to vector<1x1x128xf32>
      %240 = vector.shape_cast %239 : vector<1x1x128xf32> to vector<128xf32>
      %241 = vector.shape_cast %240 : vector<128xf32> to vector<1x1x128xf32>
      %242 = vector.broadcast %241 : vector<1x1x128xf32> to vector<8x16x128xf32>
      %243 = arith.mulf %238, %242 : vector<8x16x128xf32>
      %244 = arith.addf %235, %243 : vector<8x16x128xf32>
      %c3_i32 = arith.constant 3 : i32
      %245 = arith.addi %54, %c3_i32 : i32
      %246 = arith.index_cast %245 : i32 to index
      %c5_113 = arith.constant 5 : index
      %c0_114 = arith.constant 0 : index
      %247 = vector.load %arg13[%246, %c5_113, %c0_114] : memref<22x27x128xf32, #tpu.memory_space<vmem>>, vector<8x16x128xf32>
      %248 = vector.extract_strided_slice %11 {offsets = [3, 0, 0], sizes = [1, 1, 128], strides = [1, 1, 1]} : vector<7x7x128xf32> to vector<1x1x128xf32>
      %249 = vector.shape_cast %248 : vector<1x1x128xf32> to vector<128xf32>
      %250 = vector.shape_cast %249 : vector<128xf32> to vector<1x1x128xf32>
      %251 = vector.broadcast %250 : vector<1x1x128xf32> to vector<8x16x128xf32>
      %252 = arith.mulf %247, %251 : vector<8x16x128xf32>
      %253 = arith.addf %244, %252 : vector<8x16x128xf32>
      %c3_i32_115 = arith.constant 3 : i32
      %254 = arith.addi %54, %c3_i32_115 : i32
      %255 = arith.index_cast %254 : i32 to index
      %c6_116 = arith.constant 6 : index
      %c0_117 = arith.constant 0 : index
      %256 = vector.load %arg13[%255, %c6_116, %c0_117] : memref<22x27x128xf32, #tpu.memory_space<vmem>>, vector<8x16x128xf32>
      %257 = vector.extract_strided_slice %11 {offsets = [3, 1, 0], sizes = [1, 1, 128], strides = [1, 1, 1]} : vector<7x7x128xf32> to vector<1x1x128xf32>
      %258 = vector.shape_cast %257 : vector<1x1x128xf32> to vector<128xf32>
      %259 = vector.shape_cast %258 : vector<128xf32> to vector<1x1x128xf32>
      %260 = vector.broadcast %259 : vector<1x1x128xf32> to vector<8x16x128xf32>
      %261 = arith.mulf %256, %260 : vector<8x16x128xf32>
      %262 = arith.addf %253, %261 : vector<8x16x128xf32>
      %c3_i32_118 = arith.constant 3 : i32
      %263 = arith.addi %54, %c3_i32_118 : i32
      %264 = arith.index_cast %263 : i32 to index
      %c7_119 = arith.constant 7 : index
      %c0_120 = arith.constant 0 : index
      %265 = vector.load %arg13[%264, %c7_119, %c0_120] : memref<22x27x128xf32, #tpu.memory_space<vmem>>, vector<8x16x128xf32>
      %266 = vector.extract_strided_slice %11 {offsets = [3, 2, 0], sizes = [1, 1, 128], strides = [1, 1, 1]} : vector<7x7x128xf32> to vector<1x1x128xf32>
      %267 = vector.shape_cast %266 : vector<1x1x128xf32> to vector<128xf32>
      %268 = vector.shape_cast %267 : vector<128xf32> to vector<1x1x128xf32>
      %269 = vector.broadcast %268 : vector<1x1x128xf32> to vector<8x16x128xf32>
      %270 = arith.mulf %265, %269 : vector<8x16x128xf32>
      %271 = arith.addf %262, %270 : vector<8x16x128xf32>
      %c3_i32_121 = arith.constant 3 : i32
      %272 = arith.addi %54, %c3_i32_121 : i32
      %273 = arith.index_cast %272 : i32 to index
      %c8_122 = arith.constant 8 : index
      %c0_123 = arith.constant 0 : index
      %274 = vector.load %arg13[%273, %c8_122, %c0_123] : memref<22x27x128xf32, #tpu.memory_space<vmem>>, vector<8x16x128xf32>
      %275 = vector.extract_strided_slice %11 {offsets = [3, 3, 0], sizes = [1, 1, 128], strides = [1, 1, 1]} : vector<7x7x128xf32> to vector<1x1x128xf32>
      %276 = vector.shape_cast %275 : vector<1x1x128xf32> to vector<128xf32>
      %277 = vector.shape_cast %276 : vector<128xf32> to vector<1x1x128xf32>
      %278 = vector.broadcast %277 : vector<1x1x128xf32> to vector<8x16x128xf32>
      %279 = arith.mulf %274, %278 : vector<8x16x128xf32>
      %280 = arith.addf %271, %279 : vector<8x16x128xf32>
      %c3_i32_124 = arith.constant 3 : i32
      %281 = arith.addi %54, %c3_i32_124 : i32
      %282 = arith.index_cast %281 : i32 to index
      %c9_125 = arith.constant 9 : index
      %c0_126 = arith.constant 0 : index
      %283 = vector.load %arg13[%282, %c9_125, %c0_126] : memref<22x27x128xf32, #tpu.memory_space<vmem>>, vector<8x16x128xf32>
      %284 = vector.extract_strided_slice %11 {offsets = [3, 4, 0], sizes = [1, 1, 128], strides = [1, 1, 1]} : vector<7x7x128xf32> to vector<1x1x128xf32>
      %285 = vector.shape_cast %284 : vector<1x1x128xf32> to vector<128xf32>
      %286 = vector.shape_cast %285 : vector<128xf32> to vector<1x1x128xf32>
      %287 = vector.broadcast %286 : vector<1x1x128xf32> to vector<8x16x128xf32>
      %288 = arith.mulf %283, %287 : vector<8x16x128xf32>
      %289 = arith.addf %280, %288 : vector<8x16x128xf32>
      %c3_i32_127 = arith.constant 3 : i32
      %290 = arith.addi %54, %c3_i32_127 : i32
      %291 = arith.index_cast %290 : i32 to index
      %c10_128 = arith.constant 10 : index
      %c0_129 = arith.constant 0 : index
      %292 = vector.load %arg13[%291, %c10_128, %c0_129] : memref<22x27x128xf32, #tpu.memory_space<vmem>>, vector<8x16x128xf32>
      %293 = vector.extract_strided_slice %11 {offsets = [3, 5, 0], sizes = [1, 1, 128], strides = [1, 1, 1]} : vector<7x7x128xf32> to vector<1x1x128xf32>
      %294 = vector.shape_cast %293 : vector<1x1x128xf32> to vector<128xf32>
      %295 = vector.shape_cast %294 : vector<128xf32> to vector<1x1x128xf32>
      %296 = vector.broadcast %295 : vector<1x1x128xf32> to vector<8x16x128xf32>
      %297 = arith.mulf %292, %296 : vector<8x16x128xf32>
      %298 = arith.addf %289, %297 : vector<8x16x128xf32>
      %c3_i32_130 = arith.constant 3 : i32
      %299 = arith.addi %54, %c3_i32_130 : i32
      %300 = arith.index_cast %299 : i32 to index
      %c11_131 = arith.constant 11 : index
      %c0_132 = arith.constant 0 : index
      %301 = vector.load %arg13[%300, %c11_131, %c0_132] : memref<22x27x128xf32, #tpu.memory_space<vmem>>, vector<8x16x128xf32>
      %302 = vector.extract_strided_slice %11 {offsets = [3, 6, 0], sizes = [1, 1, 128], strides = [1, 1, 1]} : vector<7x7x128xf32> to vector<1x1x128xf32>
      %303 = vector.shape_cast %302 : vector<1x1x128xf32> to vector<128xf32>
      %304 = vector.shape_cast %303 : vector<128xf32> to vector<1x1x128xf32>
      %305 = vector.broadcast %304 : vector<1x1x128xf32> to vector<8x16x128xf32>
      %306 = arith.mulf %301, %305 : vector<8x16x128xf32>
      %307 = arith.addf %298, %306 : vector<8x16x128xf32>
      %c4_i32 = arith.constant 4 : i32
      %308 = arith.addi %54, %c4_i32 : i32
      %309 = arith.index_cast %308 : i32 to index
      %c5_133 = arith.constant 5 : index
      %c0_134 = arith.constant 0 : index
      %310 = vector.load %arg13[%309, %c5_133, %c0_134] : memref<22x27x128xf32, #tpu.memory_space<vmem>>, vector<8x16x128xf32>
      %311 = vector.extract_strided_slice %11 {offsets = [4, 0, 0], sizes = [1, 1, 128], strides = [1, 1, 1]} : vector<7x7x128xf32> to vector<1x1x128xf32>
      %312 = vector.shape_cast %311 : vector<1x1x128xf32> to vector<128xf32>
      %313 = vector.shape_cast %312 : vector<128xf32> to vector<1x1x128xf32>
      %314 = vector.broadcast %313 : vector<1x1x128xf32> to vector<8x16x128xf32>
      %315 = arith.mulf %310, %314 : vector<8x16x128xf32>
      %316 = arith.addf %307, %315 : vector<8x16x128xf32>
      %c4_i32_135 = arith.constant 4 : i32
      %317 = arith.addi %54, %c4_i32_135 : i32
      %318 = arith.index_cast %317 : i32 to index
      %c6_136 = arith.constant 6 : index
      %c0_137 = arith.constant 0 : index
      %319 = vector.load %arg13[%318, %c6_136, %c0_137] : memref<22x27x128xf32, #tpu.memory_space<vmem>>, vector<8x16x128xf32>
      %320 = vector.extract_strided_slice %11 {offsets = [4, 1, 0], sizes = [1, 1, 128], strides = [1, 1, 1]} : vector<7x7x128xf32> to vector<1x1x128xf32>
      %321 = vector.shape_cast %320 : vector<1x1x128xf32> to vector<128xf32>
      %322 = vector.shape_cast %321 : vector<128xf32> to vector<1x1x128xf32>
      %323 = vector.broadcast %322 : vector<1x1x128xf32> to vector<8x16x128xf32>
      %324 = arith.mulf %319, %323 : vector<8x16x128xf32>
      %325 = arith.addf %316, %324 : vector<8x16x128xf32>
      %c4_i32_138 = arith.constant 4 : i32
      %326 = arith.addi %54, %c4_i32_138 : i32
      %327 = arith.index_cast %326 : i32 to index
      %c7_139 = arith.constant 7 : index
      %c0_140 = arith.constant 0 : index
      %328 = vector.load %arg13[%327, %c7_139, %c0_140] : memref<22x27x128xf32, #tpu.memory_space<vmem>>, vector<8x16x128xf32>
      %329 = vector.extract_strided_slice %11 {offsets = [4, 2, 0], sizes = [1, 1, 128], strides = [1, 1, 1]} : vector<7x7x128xf32> to vector<1x1x128xf32>
      %330 = vector.shape_cast %329 : vector<1x1x128xf32> to vector<128xf32>
      %331 = vector.shape_cast %330 : vector<128xf32> to vector<1x1x128xf32>
      %332 = vector.broadcast %331 : vector<1x1x128xf32> to vector<8x16x128xf32>
      %333 = arith.mulf %328, %332 : vector<8x16x128xf32>
      %334 = arith.addf %325, %333 : vector<8x16x128xf32>
      %c4_i32_141 = arith.constant 4 : i32
      %335 = arith.addi %54, %c4_i32_141 : i32
      %336 = arith.index_cast %335 : i32 to index
      %c8_142 = arith.constant 8 : index
      %c0_143 = arith.constant 0 : index
      %337 = vector.load %arg13[%336, %c8_142, %c0_143] : memref<22x27x128xf32, #tpu.memory_space<vmem>>, vector<8x16x128xf32>
      %338 = vector.extract_strided_slice %11 {offsets = [4, 3, 0], sizes = [1, 1, 128], strides = [1, 1, 1]} : vector<7x7x128xf32> to vector<1x1x128xf32>
      %339 = vector.shape_cast %338 : vector<1x1x128xf32> to vector<128xf32>
      %340 = vector.shape_cast %339 : vector<128xf32> to vector<1x1x128xf32>
      %341 = vector.broadcast %340 : vector<1x1x128xf32> to vector<8x16x128xf32>
      %342 = arith.mulf %337, %341 : vector<8x16x128xf32>
      %343 = arith.addf %334, %342 : vector<8x16x128xf32>
      %c4_i32_144 = arith.constant 4 : i32
      %344 = arith.addi %54, %c4_i32_144 : i32
      %345 = arith.index_cast %344 : i32 to index
      %c9_145 = arith.constant 9 : index
      %c0_146 = arith.constant 0 : index
      %346 = vector.load %arg13[%345, %c9_145, %c0_146] : memref<22x27x128xf32, #tpu.memory_space<vmem>>, vector<8x16x128xf32>
      %347 = vector.extract_strided_slice %11 {offsets = [4, 4, 0], sizes = [1, 1, 128], strides = [1, 1, 1]} : vector<7x7x128xf32> to vector<1x1x128xf32>
      %348 = vector.shape_cast %347 : vector<1x1x128xf32> to vector<128xf32>
      %349 = vector.shape_cast %348 : vector<128xf32> to vector<1x1x128xf32>
      %350 = vector.broadcast %349 : vector<1x1x128xf32> to vector<8x16x128xf32>
      %351 = arith.mulf %346, %350 : vector<8x16x128xf32>
      %352 = arith.addf %343, %351 : vector<8x16x128xf32>
      %c4_i32_147 = arith.constant 4 : i32
      %353 = arith.addi %54, %c4_i32_147 : i32
      %354 = arith.index_cast %353 : i32 to index
      %c10_148 = arith.constant 10 : index
      %c0_149 = arith.constant 0 : index
      %355 = vector.load %arg13[%354, %c10_148, %c0_149] : memref<22x27x128xf32, #tpu.memory_space<vmem>>, vector<8x16x128xf32>
      %356 = vector.extract_strided_slice %11 {offsets = [4, 5, 0], sizes = [1, 1, 128], strides = [1, 1, 1]} : vector<7x7x128xf32> to vector<1x1x128xf32>
      %357 = vector.shape_cast %356 : vector<1x1x128xf32> to vector<128xf32>
      %358 = vector.shape_cast %357 : vector<128xf32> to vector<1x1x128xf32>
      %359 = vector.broadcast %358 : vector<1x1x128xf32> to vector<8x16x128xf32>
      %360 = arith.mulf %355, %359 : vector<8x16x128xf32>
      %361 = arith.addf %352, %360 : vector<8x16x128xf32>
      %c4_i32_150 = arith.constant 4 : i32
      %362 = arith.addi %54, %c4_i32_150 : i32
      %363 = arith.index_cast %362 : i32 to index
      %c11_151 = arith.constant 11 : index
      %c0_152 = arith.constant 0 : index
      %364 = vector.load %arg13[%363, %c11_151, %c0_152] : memref<22x27x128xf32, #tpu.memory_space<vmem>>, vector<8x16x128xf32>
      %365 = vector.extract_strided_slice %11 {offsets = [4, 6, 0], sizes = [1, 1, 128], strides = [1, 1, 1]} : vector<7x7x128xf32> to vector<1x1x128xf32>
      %366 = vector.shape_cast %365 : vector<1x1x128xf32> to vector<128xf32>
      %367 = vector.shape_cast %366 : vector<128xf32> to vector<1x1x128xf32>
      %368 = vector.broadcast %367 : vector<1x1x128xf32> to vector<8x16x128xf32>
      %369 = arith.mulf %364, %368 : vector<8x16x128xf32>
      %370 = arith.addf %361, %369 : vector<8x16x128xf32>
      %c5_i32 = arith.constant 5 : i32
      %371 = arith.addi %54, %c5_i32 : i32
      %372 = arith.index_cast %371 : i32 to index
      %c5_153 = arith.constant 5 : index
      %c0_154 = arith.constant 0 : index
      %373 = vector.load %arg13[%372, %c5_153, %c0_154] : memref<22x27x128xf32, #tpu.memory_space<vmem>>, vector<8x16x128xf32>
      %374 = vector.extract_strided_slice %11 {offsets = [5, 0, 0], sizes = [1, 1, 128], strides = [1, 1, 1]} : vector<7x7x128xf32> to vector<1x1x128xf32>
      %375 = vector.shape_cast %374 : vector<1x1x128xf32> to vector<128xf32>
      %376 = vector.shape_cast %375 : vector<128xf32> to vector<1x1x128xf32>
      %377 = vector.broadcast %376 : vector<1x1x128xf32> to vector<8x16x128xf32>
      %378 = arith.mulf %373, %377 : vector<8x16x128xf32>
      %379 = arith.addf %370, %378 : vector<8x16x128xf32>
      %c5_i32_155 = arith.constant 5 : i32
      %380 = arith.addi %54, %c5_i32_155 : i32
      %381 = arith.index_cast %380 : i32 to index
      %c6_156 = arith.constant 6 : index
      %c0_157 = arith.constant 0 : index
      %382 = vector.load %arg13[%381, %c6_156, %c0_157] : memref<22x27x128xf32, #tpu.memory_space<vmem>>, vector<8x16x128xf32>
      %383 = vector.extract_strided_slice %11 {offsets = [5, 1, 0], sizes = [1, 1, 128], strides = [1, 1, 1]} : vector<7x7x128xf32> to vector<1x1x128xf32>
      %384 = vector.shape_cast %383 : vector<1x1x128xf32> to vector<128xf32>
      %385 = vector.shape_cast %384 : vector<128xf32> to vector<1x1x128xf32>
      %386 = vector.broadcast %385 : vector<1x1x128xf32> to vector<8x16x128xf32>
      %387 = arith.mulf %382, %386 : vector<8x16x128xf32>
      %388 = arith.addf %379, %387 : vector<8x16x128xf32>
      %c5_i32_158 = arith.constant 5 : i32
      %389 = arith.addi %54, %c5_i32_158 : i32
      %390 = arith.index_cast %389 : i32 to index
      %c7_159 = arith.constant 7 : index
      %c0_160 = arith.constant 0 : index
      %391 = vector.load %arg13[%390, %c7_159, %c0_160] : memref<22x27x128xf32, #tpu.memory_space<vmem>>, vector<8x16x128xf32>
      %392 = vector.extract_strided_slice %11 {offsets = [5, 2, 0], sizes = [1, 1, 128], strides = [1, 1, 1]} : vector<7x7x128xf32> to vector<1x1x128xf32>
      %393 = vector.shape_cast %392 : vector<1x1x128xf32> to vector<128xf32>
      %394 = vector.shape_cast %393 : vector<128xf32> to vector<1x1x128xf32>
      %395 = vector.broadcast %394 : vector<1x1x128xf32> to vector<8x16x128xf32>
      %396 = arith.mulf %391, %395 : vector<8x16x128xf32>
      %397 = arith.addf %388, %396 : vector<8x16x128xf32>
      %c5_i32_161 = arith.constant 5 : i32
      %398 = arith.addi %54, %c5_i32_161 : i32
      %399 = arith.index_cast %398 : i32 to index
      %c8_162 = arith.constant 8 : index
      %c0_163 = arith.constant 0 : index
      %400 = vector.load %arg13[%399, %c8_162, %c0_163] : memref<22x27x128xf32, #tpu.memory_space<vmem>>, vector<8x16x128xf32>
      %401 = vector.extract_strided_slice %11 {offsets = [5, 3, 0], sizes = [1, 1, 128], strides = [1, 1, 1]} : vector<7x7x128xf32> to vector<1x1x128xf32>
      %402 = vector.shape_cast %401 : vector<1x1x128xf32> to vector<128xf32>
      %403 = vector.shape_cast %402 : vector<128xf32> to vector<1x1x128xf32>
      %404 = vector.broadcast %403 : vector<1x1x128xf32> to vector<8x16x128xf32>
      %405 = arith.mulf %400, %404 : vector<8x16x128xf32>
      %406 = arith.addf %397, %405 : vector<8x16x128xf32>
      %c5_i32_164 = arith.constant 5 : i32
      %407 = arith.addi %54, %c5_i32_164 : i32
      %408 = arith.index_cast %407 : i32 to index
      %c9_165 = arith.constant 9 : index
      %c0_166 = arith.constant 0 : index
      %409 = vector.load %arg13[%408, %c9_165, %c0_166] : memref<22x27x128xf32, #tpu.memory_space<vmem>>, vector<8x16x128xf32>
      %410 = vector.extract_strided_slice %11 {offsets = [5, 4, 0], sizes = [1, 1, 128], strides = [1, 1, 1]} : vector<7x7x128xf32> to vector<1x1x128xf32>
      %411 = vector.shape_cast %410 : vector<1x1x128xf32> to vector<128xf32>
      %412 = vector.shape_cast %411 : vector<128xf32> to vector<1x1x128xf32>
      %413 = vector.broadcast %412 : vector<1x1x128xf32> to vector<8x16x128xf32>
      %414 = arith.mulf %409, %413 : vector<8x16x128xf32>
      %415 = arith.addf %406, %414 : vector<8x16x128xf32>
      %c5_i32_167 = arith.constant 5 : i32
      %416 = arith.addi %54, %c5_i32_167 : i32
      %417 = arith.index_cast %416 : i32 to index
      %c10_168 = arith.constant 10 : index
      %c0_169 = arith.constant 0 : index
      %418 = vector.load %arg13[%417, %c10_168, %c0_169] : memref<22x27x128xf32, #tpu.memory_space<vmem>>, vector<8x16x128xf32>
      %419 = vector.extract_strided_slice %11 {offsets = [5, 5, 0], sizes = [1, 1, 128], strides = [1, 1, 1]} : vector<7x7x128xf32> to vector<1x1x128xf32>
      %420 = vector.shape_cast %419 : vector<1x1x128xf32> to vector<128xf32>
      %421 = vector.shape_cast %420 : vector<128xf32> to vector<1x1x128xf32>
      %422 = vector.broadcast %421 : vector<1x1x128xf32> to vector<8x16x128xf32>
      %423 = arith.mulf %418, %422 : vector<8x16x128xf32>
      %424 = arith.addf %415, %423 : vector<8x16x128xf32>
      %c5_i32_170 = arith.constant 5 : i32
      %425 = arith.addi %54, %c5_i32_170 : i32
      %426 = arith.index_cast %425 : i32 to index
      %c11_171 = arith.constant 11 : index
      %c0_172 = arith.constant 0 : index
      %427 = vector.load %arg13[%426, %c11_171, %c0_172] : memref<22x27x128xf32, #tpu.memory_space<vmem>>, vector<8x16x128xf32>
      %428 = vector.extract_strided_slice %11 {offsets = [5, 6, 0], sizes = [1, 1, 128], strides = [1, 1, 1]} : vector<7x7x128xf32> to vector<1x1x128xf32>
      %429 = vector.shape_cast %428 : vector<1x1x128xf32> to vector<128xf32>
      %430 = vector.shape_cast %429 : vector<128xf32> to vector<1x1x128xf32>
      %431 = vector.broadcast %430 : vector<1x1x128xf32> to vector<8x16x128xf32>
      %432 = arith.mulf %427, %431 : vector<8x16x128xf32>
      %433 = arith.addf %424, %432 : vector<8x16x128xf32>
      %c6_i32 = arith.constant 6 : i32
      %434 = arith.addi %54, %c6_i32 : i32
      %435 = arith.index_cast %434 : i32 to index
      %c5_173 = arith.constant 5 : index
      %c0_174 = arith.constant 0 : index
      %436 = vector.load %arg13[%435, %c5_173, %c0_174] : memref<22x27x128xf32, #tpu.memory_space<vmem>>, vector<8x16x128xf32>
      %437 = vector.extract_strided_slice %11 {offsets = [6, 0, 0], sizes = [1, 1, 128], strides = [1, 1, 1]} : vector<7x7x128xf32> to vector<1x1x128xf32>
      %438 = vector.shape_cast %437 : vector<1x1x128xf32> to vector<128xf32>
      %439 = vector.shape_cast %438 : vector<128xf32> to vector<1x1x128xf32>
      %440 = vector.broadcast %439 : vector<1x1x128xf32> to vector<8x16x128xf32>
      %441 = arith.mulf %436, %440 : vector<8x16x128xf32>
      %442 = arith.addf %433, %441 : vector<8x16x128xf32>
      %c6_i32_175 = arith.constant 6 : i32
      %443 = arith.addi %54, %c6_i32_175 : i32
      %444 = arith.index_cast %443 : i32 to index
      %c6_176 = arith.constant 6 : index
      %c0_177 = arith.constant 0 : index
      %445 = vector.load %arg13[%444, %c6_176, %c0_177] : memref<22x27x128xf32, #tpu.memory_space<vmem>>, vector<8x16x128xf32>
      %446 = vector.extract_strided_slice %11 {offsets = [6, 1, 0], sizes = [1, 1, 128], strides = [1, 1, 1]} : vector<7x7x128xf32> to vector<1x1x128xf32>
      %447 = vector.shape_cast %446 : vector<1x1x128xf32> to vector<128xf32>
      %448 = vector.shape_cast %447 : vector<128xf32> to vector<1x1x128xf32>
      %449 = vector.broadcast %448 : vector<1x1x128xf32> to vector<8x16x128xf32>
      %450 = arith.mulf %445, %449 : vector<8x16x128xf32>
      %451 = arith.addf %442, %450 : vector<8x16x128xf32>
      %c6_i32_178 = arith.constant 6 : i32
      %452 = arith.addi %54, %c6_i32_178 : i32
      %453 = arith.index_cast %452 : i32 to index
      %c7_179 = arith.constant 7 : index
      %c0_180 = arith.constant 0 : index
      %454 = vector.load %arg13[%453, %c7_179, %c0_180] : memref<22x27x128xf32, #tpu.memory_space<vmem>>, vector<8x16x128xf32>
      %455 = vector.extract_strided_slice %11 {offsets = [6, 2, 0], sizes = [1, 1, 128], strides = [1, 1, 1]} : vector<7x7x128xf32> to vector<1x1x128xf32>
      %456 = vector.shape_cast %455 : vector<1x1x128xf32> to vector<128xf32>
      %457 = vector.shape_cast %456 : vector<128xf32> to vector<1x1x128xf32>
      %458 = vector.broadcast %457 : vector<1x1x128xf32> to vector<8x16x128xf32>
      %459 = arith.mulf %454, %458 : vector<8x16x128xf32>
      %460 = arith.addf %451, %459 : vector<8x16x128xf32>
      %c6_i32_181 = arith.constant 6 : i32
      %461 = arith.addi %54, %c6_i32_181 : i32
      %462 = arith.index_cast %461 : i32 to index
      %c8_182 = arith.constant 8 : index
      %c0_183 = arith.constant 0 : index
      %463 = vector.load %arg13[%462, %c8_182, %c0_183] : memref<22x27x128xf32, #tpu.memory_space<vmem>>, vector<8x16x128xf32>
      %464 = vector.extract_strided_slice %11 {offsets = [6, 3, 0], sizes = [1, 1, 128], strides = [1, 1, 1]} : vector<7x7x128xf32> to vector<1x1x128xf32>
      %465 = vector.shape_cast %464 : vector<1x1x128xf32> to vector<128xf32>
      %466 = vector.shape_cast %465 : vector<128xf32> to vector<1x1x128xf32>
      %467 = vector.broadcast %466 : vector<1x1x128xf32> to vector<8x16x128xf32>
      %468 = arith.mulf %463, %467 : vector<8x16x128xf32>
      %469 = arith.addf %460, %468 : vector<8x16x128xf32>
      %c6_i32_184 = arith.constant 6 : i32
      %470 = arith.addi %54, %c6_i32_184 : i32
      %471 = arith.index_cast %470 : i32 to index
      %c9_185 = arith.constant 9 : index
      %c0_186 = arith.constant 0 : index
      %472 = vector.load %arg13[%471, %c9_185, %c0_186] : memref<22x27x128xf32, #tpu.memory_space<vmem>>, vector<8x16x128xf32>
      %473 = vector.extract_strided_slice %11 {offsets = [6, 4, 0], sizes = [1, 1, 128], strides = [1, 1, 1]} : vector<7x7x128xf32> to vector<1x1x128xf32>
      %474 = vector.shape_cast %473 : vector<1x1x128xf32> to vector<128xf32>
      %475 = vector.shape_cast %474 : vector<128xf32> to vector<1x1x128xf32>
      %476 = vector.broadcast %475 : vector<1x1x128xf32> to vector<8x16x128xf32>
      %477 = arith.mulf %472, %476 : vector<8x16x128xf32>
      %478 = arith.addf %469, %477 : vector<8x16x128xf32>
      %c6_i32_187 = arith.constant 6 : i32
      %479 = arith.addi %54, %c6_i32_187 : i32
      %480 = arith.index_cast %479 : i32 to index
      %c10_188 = arith.constant 10 : index
      %c0_189 = arith.constant 0 : index
      %481 = vector.load %arg13[%480, %c10_188, %c0_189] : memref<22x27x128xf32, #tpu.memory_space<vmem>>, vector<8x16x128xf32>
      %482 = vector.extract_strided_slice %11 {offsets = [6, 5, 0], sizes = [1, 1, 128], strides = [1, 1, 1]} : vector<7x7x128xf32> to vector<1x1x128xf32>
      %483 = vector.shape_cast %482 : vector<1x1x128xf32> to vector<128xf32>
      %484 = vector.shape_cast %483 : vector<128xf32> to vector<1x1x128xf32>
      %485 = vector.broadcast %484 : vector<1x1x128xf32> to vector<8x16x128xf32>
      %486 = arith.mulf %481, %485 : vector<8x16x128xf32>
      %487 = arith.addf %478, %486 : vector<8x16x128xf32>
      %c6_i32_190 = arith.constant 6 : i32
      %488 = arith.addi %54, %c6_i32_190 : i32
      %489 = arith.index_cast %488 : i32 to index
      %c11_191 = arith.constant 11 : index
      %c0_192 = arith.constant 0 : index
      %490 = vector.load %arg13[%489, %c11_191, %c0_192] : memref<22x27x128xf32, #tpu.memory_space<vmem>>, vector<8x16x128xf32>
      %491 = vector.extract_strided_slice %11 {offsets = [6, 6, 0], sizes = [1, 1, 128], strides = [1, 1, 1]} : vector<7x7x128xf32> to vector<1x1x128xf32>
      %492 = vector.shape_cast %491 : vector<1x1x128xf32> to vector<128xf32>
      %493 = vector.shape_cast %492 : vector<128xf32> to vector<1x1x128xf32>
      %494 = vector.broadcast %493 : vector<1x1x128xf32> to vector<8x16x128xf32>
      %495 = arith.mulf %490, %494 : vector<8x16x128xf32>
      %496 = arith.addf %487, %495 : vector<8x16x128xf32>
      %497 = vector.shape_cast %496 : vector<8x16x128xf32> to vector<128x128xf32>
      %498 = vector.broadcast %12 : vector<1x128xf32> to vector<128x128xf32>
      %499 = arith.mulf %497, %498 : vector<128x128xf32>
      %500 = vector.broadcast %13 : vector<1x128xf32> to vector<128x128xf32>
      %501 = arith.addf %499, %500 : vector<128x128xf32>
      %cst_193 = arith.constant dense<0.000000e+00> : vector<128xf32>
      %502 = vector.multi_reduction <add>, %501, %cst_193 [1] : vector<128x128xf32> to vector<128xf32>
      %503 = vector.shape_cast %502 : vector<128xf32> to vector<128x1xf32>
      %cst_194 = arith.constant 1.280000e+02 : f32
      %504 = vector.broadcast %cst_194 : f32 to vector<128x1xf32>
      %505 = arith.divf %503, %504 : vector<128x1xf32>
      %506 = vector.broadcast %505 : vector<128x1xf32> to vector<128x128xf32>
      %507 = arith.subf %501, %506 : vector<128x128xf32>
      %508 = arith.mulf %507, %507 : vector<128x128xf32>
      %cst_195 = arith.constant dense<0.000000e+00> : vector<128xf32>
      %509 = vector.multi_reduction <add>, %508, %cst_195 [1] : vector<128x128xf32> to vector<128xf32>
      %510 = vector.shape_cast %509 : vector<128xf32> to vector<128x1xf32>
      %cst_196 = arith.constant 1.280000e+02 : f32
      %511 = vector.broadcast %cst_196 : f32 to vector<128x1xf32>
      %512 = arith.divf %510, %511 : vector<128x1xf32>
      %cst_197 = arith.constant 9.99999997E-7 : f32
      %513 = vector.broadcast %cst_197 : f32 to vector<128x1xf32>
      %514 = arith.addf %512, %513 : vector<128x1xf32>
      %515 = math.rsqrt %514 : vector<128x1xf32>
      %516 = vector.broadcast %515 : vector<128x1xf32> to vector<128x128xf32>
      %517 = arith.mulf %507, %516 : vector<128x128xf32>
      %518 = vector.broadcast %14 : vector<1x128xf32> to vector<128x128xf32>
      %519 = arith.mulf %517, %518 : vector<128x128xf32>
      %520 = vector.broadcast %15 : vector<1x128xf32> to vector<128x128xf32>
      %521 = arith.addf %519, %520 : vector<128x128xf32>
      %c16_i32 = arith.constant 16 : i32
      %522 = arith.muli %54, %c16_i32 : i32
      %523 = tpu.assume_multiple %522, 128 : i32
      %524 = arith.truncf %521 : vector<128x128xf32> to vector<128x128xbf16>
      %525 = arith.index_cast %523 : i32 to index
      %c0_198 = arith.constant 0 : index
      %526 = vector.load %arg14[%525, %c0_198] : memref<256x128xbf16, #tpu.memory_space<vmem>>, vector<128x128xbf16>
      tpu.vector_store %arg14[%525, %c0_198], %524 {strides = array<i32>} : memref<256x128xbf16, #tpu.memory_space<vmem>>, vector<128x128xbf16>,
    }
    %c2_i32_28 = arith.constant 2 : i32
    %c0_29 = arith.constant 0 : index
    %c0_30 = arith.constant 0 : index
    %17 = vector.load %arg14[%c0_29, %c0_30] : memref<256x128xbf16, #tpu.memory_space<vmem>>, vector<256x128xbf16>
    %c0_31 = arith.constant 0 : index
    %c0_32 = arith.constant 0 : index
    %18 = vector.load %arg7[%c0_31, %c0_32] : memref<128x512xbf16, #tpu.memory_space<vmem>>, vector<128x512xbf16>
    %cst_33 = arith.constant dense<0.000000e+00> : vector<256x512xf32>
    %19 = tpu.matmul %17, %18, %cst_33 {dimension_numbers = #tpu.dot_dimension_numbers<[1], [0], [0], [1], [0, 0, 1, 1], [], []>} : vector<256x128xbf16>, vector<128x512xbf16>, vector<256x512xf32> -> vector<256x512xf32>
    %c0_34 = arith.constant 0 : index
    %c0_35 = arith.constant 0 : index
    %20 = vector.load %arg8[%c0_34, %c0_35] : memref<1x512xf32, #tpu.memory_space<vmem>>, vector<1x512xf32>
    %21 = vector.broadcast %20 : vector<1x512xf32> to vector<256x512xf32>
    %22 = arith.addf %19, %21 : vector<256x512xf32>
    %23 = arith.mulf %22, %22 : vector<256x512xf32>
    %cst_36 = arith.constant 0.797884583 : f32
    %24 = vector.broadcast %cst_36 : f32 to vector<256x512xf32>
    %25 = arith.mulf %24, %22 : vector<256x512xf32>
    %cst_37 = arith.constant 4.471500e-02 : f32
    %26 = vector.broadcast %cst_37 : f32 to vector<256x512xf32>
    %27 = arith.mulf %26, %23 : vector<256x512xf32>
    %cst_38 = arith.constant 1.000000e+00 : f32
    %28 = vector.broadcast %cst_38 : f32 to vector<256x512xf32>
    %29 = arith.addf %28, %27 : vector<256x512xf32>
    %30 = arith.mulf %25, %29 : vector<256x512xf32>
    %cst_39 = arith.constant 5.000000e-01 : f32
    %31 = vector.broadcast %cst_39 : f32 to vector<256x512xf32>
    %32 = arith.mulf %31, %22 : vector<256x512xf32>
    %33 = math.tanh %30 : vector<256x512xf32>
    %cst_40 = arith.constant 1.000000e+00 : f32
    %34 = vector.broadcast %cst_40 : f32 to vector<256x512xf32>
    %35 = arith.addf %34, %33 : vector<256x512xf32>
    %36 = arith.mulf %32, %35 : vector<256x512xf32>
    %37 = arith.truncf %36 : vector<256x512xf32> to vector<256x512xbf16>
    %c0_41 = arith.constant 0 : index
    %c0_42 = arith.constant 0 : index
    %38 = vector.load %arg9[%c0_41, %c0_42] : memref<512x128xbf16, #tpu.memory_space<vmem>>, vector<512x128xbf16>
    %cst_43 = arith.constant dense<0.000000e+00> : vector<256x128xf32>
    %39 = tpu.matmul %37, %38, %cst_43 {dimension_numbers = #tpu.dot_dimension_numbers<[1], [0], [0], [1], [0, 0, 1, 1], [], []>} : vector<256x512xbf16>, vector<512x128xbf16>, vector<256x128xf32> -> vector<256x128xf32>
    %c0_44 = arith.constant 0 : index
    %c0_45 = arith.constant 0 : index
    %40 = vector.load %arg10[%c0_44, %c0_45] : memref<1x128xf32, #tpu.memory_space<vmem>>, vector<1x128xf32>
    %41 = vector.broadcast %40 : vector<1x128xf32> to vector<256x128xf32>
    %42 = arith.addf %39, %41 : vector<256x128xf32>
    %c0_46 = arith.constant 0 : index
    %c0_47 = arith.constant 0 : index
    %43 = vector.load %arg11[%c0_46, %c0_47] : memref<1x128xf32, #tpu.memory_space<vmem>>, vector<1x128xf32>
    %44 = vector.broadcast %43 : vector<1x128xf32> to vector<256x128xf32>
    %45 = arith.mulf %42, %44 : vector<256x128xf32>
    %c0_48 = arith.constant 0 : index
    %c0_49 = arith.constant 0 : index
    %c0_50 = arith.constant 0 : index
    %c0_51 = arith.constant 0 : index
    %46 = vector.load %arg1[%c0_48, %c0_49, %c0_50, %c0_51] : memref<1x16x16x128xf32, #tpu.memory_space<vmem>>, vector<1x16x16x128xf32>
    %47 = vector.shape_cast %46 : vector<1x16x16x128xf32> to vector<16x16x128xf32>
    %48 = vector.shape_cast %47 : vector<16x16x128xf32> to vector<256x128xf32>
    %49 = arith.addf %48, %45 : vector<256x128xf32>
    %c0_52 = arith.constant 0 : index
    %c0_53 = arith.constant 0 : index
    %c0_54 = arith.constant 0 : index
    %50 = vector.load %arg12[%c0_52, %c0_53, %c0_54] : memref<1x256x128xf32, #tpu.memory_space<vmem>>, vector<1x256x128xf32>
    %51 = vector.shape_cast %50 : vector<1x256x128xf32> to vector<256x128xf32>
    %52 = vector.shape_cast %49 : vector<256x128xf32> to vector<1x256x128xf32>
    tpu.vector_store %arg12[%c0_52, %c0_53, %c0_54], %52 {strides = array<i32>} : memref<1x256x128xf32, #tpu.memory_space<vmem>>, vector<1x256x128xf32>,
    return
  }
  func.func @transform_0(%arg0: i32) -> (i32, i32, i32, i32) {
    %c0_i32 = arith.constant 0 : i32
    %c0_i32_0 = arith.constant 0 : i32
    %c0_i32_1 = arith.constant 0 : i32
    %c0_i32_2 = arith.constant 0 : i32
    return %arg0, %c0_i32, %c0_i32_0, %c0_i32_1 : i32, i32, i32, i32
  }
  func.func @transform_1(%arg0: i32) -> (i32, i32, i32) {
    %c0_i32 = arith.constant 0 : i32
    %c0_i32_0 = arith.constant 0 : i32
    %c0_i32_1 = arith.constant 0 : i32
    %c0_i32_2 = arith.constant 0 : i32
    return %c0_i32, %c0_i32_0, %c0_i32_1 : i32, i32, i32
  }
  func.func @transform_2(%arg0: i32) -> (i32, i32) {
    %c0_i32 = arith.constant 0 : i32
    %c0_i32_0 = arith.constant 0 : i32
    %c0_i32_1 = arith.constant 0 : i32
    return %c0_i32, %c0_i32_0 : i32, i32
  }
  func.func @transform_3(%arg0: i32) -> (i32, i32) {
    %c0_i32 = arith.constant 0 : i32
    %c0_i32_0 = arith.constant 0 : i32
    %c0_i32_1 = arith.constant 0 : i32
    return %c0_i32, %c0_i32_0 : i32, i32
  }
  func.func @transform_4(%arg0: i32) -> (i32, i32) {
    %c0_i32 = arith.constant 0 : i32
    %c0_i32_0 = arith.constant 0 : i32
    %c0_i32_1 = arith.constant 0 : i32
    return %c0_i32, %c0_i32_0 : i32, i32
  }
  func.func @transform_5(%arg0: i32) -> (i32, i32) {
    %c0_i32 = arith.constant 0 : i32
    %c0_i32_0 = arith.constant 0 : i32
    %c0_i32_1 = arith.constant 0 : i32
    return %c0_i32, %c0_i32_0 : i32, i32
  }
  func.func @transform_6(%arg0: i32) -> (i32, i32) {
    %c0_i32 = arith.constant 0 : i32
    %c0_i32_0 = arith.constant 0 : i32
    %c0_i32_1 = arith.constant 0 : i32
    return %c0_i32, %c0_i32_0 : i32, i32
  }
  func.func @transform_7(%arg0: i32) -> (i32, i32) {
    %c0_i32 = arith.constant 0 : i32
    %c0_i32_0 = arith.constant 0 : i32
    %c0_i32_1 = arith.constant 0 : i32
    return %c0_i32, %c0_i32_0 : i32, i32
  }
  func.func @transform_8(%arg0: i32) -> (i32, i32) {
    %c0_i32 = arith.constant 0 : i32
    %c0_i32_0 = arith.constant 0 : i32
    %c0_i32_1 = arith.constant 0 : i32
    return %c0_i32, %c0_i32_0 : i32, i32
  }
  func.func @transform_9(%arg0: i32) -> (i32, i32) {
    %c0_i32 = arith.constant 0 : i32
    %c0_i32_0 = arith.constant 0 : i32
    %c0_i32_1 = arith.constant 0 : i32
    return %c0_i32, %c0_i32_0 : i32, i32
  }
  func.func @transform_10(%arg0: i32) -> (i32, i32) {
    %c0_i32 = arith.constant 0 : i32
    %c0_i32_0 = arith.constant 0 : i32
    %c0_i32_1 = arith.constant 0 : i32
    return %c0_i32, %c0_i32_0 : i32, i32
  }
  func.func @transform_11(%arg0: i32) -> (i32, i32, i32) {
    %c0_i32 = arith.constant 0 : i32
    %c0_i32_0 = arith.constant 0 : i32
    %c0_i32_1 = arith.constant 0 : i32
    return %arg0, %c0_i32, %c0_i32_0 : i32, i32, i32
  }
}

</mosaic_0001>

<llo_original>
// kernel: tpu_custom_call.1
$region0: #{tpu_custom_call.1}
  #allocation0 [shape = 'u32[]', space=smem, size = 0x4, offset = 0x4, fixed_abs, tag = 'smem constant byte address 0x4 - core index']
  #allocation1 [shape = 'u32[144,128]{1,0:T(1,128)}', space=vmem, size = 0x12000, scoped, tag = 'internal scratch']
  #allocation2 [shape = 'f32[22,27,128]{2,1,0:T(8,128)}', space=vmem, size = 0x58000, scoped, tag = 'scratch operand']
  #allocation3 [shape = 'bf16[256,128]{1,0:T(16,128)(2,1)}', space=vmem, size = 0x10000, scoped, tag = 'scratch operand']
  %s0 = inlined_call_operand.hbm [shape: f32[2,16,16,128], index: 0, kind: input, shape index: {}]
  %s1 = inlined_call_operand.hbm [shape: f32[7,7,128], index: 1, kind: input, shape index: {}]
  %s2 = inlined_call_operand.vmem [shape: f32[1,128], index: 2, kind: input, shape index: {}]
  %s3 = inlined_call_operand.vmem [shape: f32[1,128], index: 3, kind: input, shape index: {}]
  %s4 = inlined_call_operand.vmem [shape: f32[1,128], index: 4, kind: input, shape index: {}]
  %s5 = inlined_call_operand.vmem [shape: f32[1,128], index: 5, kind: input, shape index: {}]
  %s6 = inlined_call_operand.hbm [shape: bf16[128,512], index: 6, kind: input, shape index: {}]
  %s7 = inlined_call_operand.vmem [shape: f32[1,512], index: 7, kind: input, shape index: {}]
  %s8 = inlined_call_operand.hbm [shape: bf16[512,128], index: 8, kind: input, shape index: {}]
  %s9 = inlined_call_operand.vmem [shape: f32[1,128], index: 9, kind: input, shape index: {}]
  %s10 = inlined_call_operand.vmem [shape: f32[1,128], index: 10, kind: input, shape index: {}]
  %s11 = inlined_call_operand.hbm [shape: f32[2,256,128], index: 11, kind: output, shape index: {}]
  %s12 = sld [smem:[#allocation0]]
  $region100: #{tpu_custom_call.1} parent=0
    _
  %s14 = ssub.s32 1, %s12
  %s15 = scalar_select 0, %s14, %s12
  $region1: #{tpu_custom_call.1} parent=0
    #allocation4 [shape = 'u8[262144]{0}', space=vmem, size = 0x40000, scoped, tag = 'input window, operand 0']
    #allocation5 [shape = 's32[2]{0}', space=sflag, size = 0x8, scoped, tag = 'scoped memory for tpu_custom_call.1']
    #allocation6 [shape = 's32[2]{0}', space=sflag, size = 0x8, scoped, tag = 'scoped memory for tpu_custom_call.1']
    #allocation7 [shape = 'u8[28672]{0}', space=vmem, size = 0x7000, scoped, tag = 'input window, operand 1, single buffered']
    #allocation8 [shape = 's32[1]{0}', space=sflag, size = 0x4, scoped, tag = 'scoped memory for tpu_custom_call.1']
    #allocation9 [shape = 'u8[131072]{0}', space=vmem, size = 0x20000, scoped, tag = 'input window, operand 6, single buffered']
    #allocation10 [shape = 'u8[131072]{0}', space=vmem, size = 0x20000, scoped, tag = 'input window, operand 8, single buffered']
    #allocation11 [shape = 's32[1]{0}', space=sflag, size = 0x4, scoped, tag = 'scoped memory for tpu_custom_call.1']
    #allocation12 [shape = 'u8[262144]{0}', space=vmem, size = 0x40000, scoped, tag = 'output window, operand 0']
    %16 = vsyncpa [#allocation5], 0
    %s17 = scalar_lea.sflag [#allocation5], 1
    %18 = vsyncpa %s17, 0
    %19 = vsyncpa [#allocation8], 0
    %20 = vsyncpa [#allocation11], 0
    %21 = vsyncpa [#allocation6], 0
    %s22 = scalar_lea.sflag [#allocation6], 1
    %23 = vsyncpa %s22, 0
    loop: start=0, step=1, limit=4
    $region2: #{tpu_custom_call.1} parent=1 // loop_pre_header
      _
    $region3: #{tpu_custom_call.1} parent=1 // loop_header
      %s25 = sphi 0, %s29
      %p26 = scmp.ge.s32.totalorder %s25, 4
      %s35 = sphi 0, %s37
      %s38 = sphi 0, %s35
      %s39 = sphi 0, %s38
      %s55 = sphi 0, %s39
      %s59 = sphi 0, %s59
      %s61 = sphi 0, %s59
      %s62 = sphi 0, %s61
      %s76 = sphi 0, %s62
      %s80 = sphi 0, %s80
      %s82 = sphi 0, %s80
      %s83 = sphi 0, %s82
      %s97 = sphi 0, %s83
      %s101 = sphi 0, %s101
      %s103 = sphi 0, %s101
      %s104 = sphi 0, %s103
      %s118 = sphi 0, %s104
      %s122 = sphi 0, %s122
      %s124 = sphi 0, %s122
      %s125 = sphi 0, %s124
      %s139 = sphi 0, %s125
      %s143 = sphi 0, %s143
      %s145 = sphi 0, %s143
      %s146 = sphi 0, %s145
      %s160 = sphi 0, %s146
      %s164 = sphi 0, %s164
      %s166 = sphi 0, %s164
      %s167 = sphi 0, %s166
      %s181 = sphi 0, %s167
      %s185 = sphi 0, %s185
      %s187 = sphi 0, %s185
      %s188 = sphi 0, %s187
      %s202 = sphi 0, %s188
      %s206 = sphi 0, %s206
      %s208 = sphi 0, %s206
      %s209 = sphi 0, %s208
      %s223 = sphi 0, %s209
      %s227 = sphi 0, %s227
      %s229 = sphi 0, %s227
      %s230 = sphi 0, %s229
      %s244 = sphi 0, %s230
      %s248 = sphi 0, %s248
      %s250 = sphi 0, %s248
      %s251 = sphi 0, %s250
      %s265 = sphi 0, %s251
      %s271 = sphi 0, %s273
      %s274 = sphi 0, %s271
      %s275 = sphi 0, %s274
      %s291 = sphi 0, %s275
    $region4: #{tpu_custom_call.1} parent=1 // loop_header_branch
      %28 = sbr.rel (%p26) target = $region8
    $region5: #{tpu_custom_call.1} parent=1 // loop_body
      %s30 = ssub.s32 %s25, 1
      %s31 = ssub.s32 %s25, 2
      %s32 = sadd.s32 %s25, 1
      %s33 = ssub.s32 %s25, %s32
      %p34 = scmp.eq.s32.totalorder %s33, 0
      %s36 = sadd.s32 %s35, 1
      %s37 = scalar_select %p34, %s35, %s36
      %p40 = pneg %p34
      %p41 = scmp.eq.s32.totalorder %s25, 1
      %p42 = por %p40, %p41
      %p43 = scmp.ne.s32.totalorder %s35, %s38
      %p44 = scmp.eq.s32.totalorder %s25, 0
      %p45 = por %p43, %p44
      %p46 = scmp.ne.s32.totalorder %s35, %s38
      %p47 = scmp.eq.s32.totalorder %s30, 1
      %p48 = por %p46, %p47
      %p49 = scmp.ne.s32.totalorder %s38, %s39
      %p50 = scmp.eq.s32.totalorder %s30, 0
      %p51 = por %p49, %p50
      %p52 = scmp.ne.s32.totalorder %s38, %s39
      %p53 = scmp.eq.s32.totalorder %s31, 1
      %p54 = por %p52, %p53
      %p56 = scmp.ne.s32.totalorder %s39, %s55
      %p57 = scmp.eq.s32.totalorder %s31, 0
      %p58 = por %p56, %p57
      %s60 = sadd.s32 %s59, 1
      %p63 = scmp.eq.s32.totalorder %s25, 1
      %p64 = scmp.ne.s32.totalorder %s59, %s61
      %p65 = scmp.eq.s32.totalorder %s25, 0
      %p66 = por %p64, %p65
      %p67 = scmp.ne.s32.totalorder %s59, %s61
      %p68 = scmp.eq.s32.totalorder %s30, 1
      %p69 = por %p67, %p68
      %p70 = scmp.ne.s32.totalorder %s61, %s62
      %p71 = scmp.eq.s32.totalorder %s30, 0
      %p72 = por %p70, %p71
      %p73 = scmp.ne.s32.totalorder %s61, %s62
      %p74 = scmp.eq.s32.totalorder %s31, 1
      %p75 = por %p73, %p74
      %p77 = scmp.ne.s32.totalorder %s62, %s76
      %p78 = scmp.eq.s32.totalorder %s31, 0
      %p79 = por %p77, %p78
      %s81 = sadd.s32 %s80, 1
      %p84 = scmp.eq.s32.totalorder %s25, 1
      %p85 = scmp.ne.s32.totalorder %s80, %s82
      %p86 = scmp.eq.s32.totalorder %s25, 0
      %p87 = por %p85, %p86
      %p88 = scmp.ne.s32.totalorder %s80, %s82
      %p89 = scmp.eq.s32.totalorder %s30, 1
      %p90 = por %p88, %p89
      %p91 = scmp.ne.s32.totalorder %s82, %s83
      %p92 = scmp.eq.s32.totalorder %s30, 0
      %p93 = por %p91, %p92
      %p94 = scmp.ne.s32.totalorder %s82, %s83
      %p95 = scmp.eq.s32.totalorder %s31, 1
      %p96 = por %p94, %p95
      %p98 = scmp.ne.s32.totalorder %s83, %s97
      %p99 = scmp.eq.s32.totalorder %s31, 0
      %p100 = por %p98, %p99
      %s102 = sadd.s32 %s101, 1
      %p105 = scmp.eq.s32.totalorder %s25, 1
      %p106 = scmp.ne.s32.totalorder %s101, %s103
      %p107 = scmp.eq.s32.totalorder %s25, 0
      %p108 = por %p106, %p107
      %p109 = scmp.ne.s32.totalorder %s101, %s103
      %p110 = scmp.eq.s32.totalorder %s30, 1
      %p111 = por %p109, %p110
      %p112 = scmp.ne.s32.totalorder %s103, %s104
      %p113 = scmp.eq.s32.totalorder %s30, 0
      %p114 = por %p112, %p113
      %p115 = scmp.ne.s32.totalorder %s103, %s104
      %p116 = scmp.eq.s32.totalorder %s31, 1
      %p117 = por %p115, %p116
      %p119 = scmp.ne.s32.totalorder %s104, %s118
      %p120 = scmp.eq.s32.totalorder %s31, 0
      %p121 = por %p119, %p120
      %s123 = sadd.s32 %s122, 1
      %p126 = scmp.eq.s32.totalorder %s25, 1
      %p127 = scmp.ne.s32.totalorder %s122, %s124
      %p128 = scmp.eq.s32.totalorder %s25, 0
      %p129 = por %p127, %p128
      %p130 = scmp.ne.s32.totalorder %s122, %s124
      %p131 = scmp.eq.s32.totalorder %s30, 1
      %p132 = por %p130, %p131
      %p133 = scmp.ne.s32.totalorder %s124, %s125
      %p134 = scmp.eq.s32.totalorder %s30, 0
      %p135 = por %p133, %p134
      %p136 = scmp.ne.s32.totalorder %s124, %s125
      %p137 = scmp.eq.s32.totalorder %s31, 1
      %p138 = por %p136, %p137
      %p140 = scmp.ne.s32.totalorder %s125, %s139
      %p141 = scmp.eq.s32.totalorder %s31, 0
      %p142 = por %p140, %p141
      %s144 = sadd.s32 %s143, 1
      %p147 = scmp.eq.s32.totalorder %s25, 1
      %p148 = scmp.ne.s32.totalorder %s143, %s145
      %p149 = scmp.eq.s32.totalorder %s25, 0
      %p150 = por %p148, %p149
      %p151 = scmp.ne.s32.totalorder %s143, %s145
      %p152 = scmp.eq.s32.totalorder %s30, 1
      %p153 = por %p151, %p152
      %p154 = scmp.ne.s32.totalorder %s145, %s146
      %p155 = scmp.eq.s32.totalorder %s30, 0
      %p156 = por %p154, %p155
      %p157 = scmp.ne.s32.totalorder %s145, %s146
      %p158 = scmp.eq.s32.totalorder %s31, 1
      %p159 = por %p157, %p158
      %p161 = scmp.ne.s32.totalorder %s146, %s160
      %p162 = scmp.eq.s32.totalorder %s31, 0
      %p163 = por %p161, %p162
      %s165 = sadd.s32 %s164, 1
      %p168 = scmp.eq.s32.totalorder %s25, 1
      %p169 = scmp.ne.s32.totalorder %s164, %s166
      %p170 = scmp.eq.s32.totalorder %s25, 0
      %p171 = por %p169, %p170
      %p172 = scmp.ne.s32.totalorder %s164, %s166
      %p173 = scmp.eq.s32.totalorder %s30, 1
      %p174 = por %p172, %p173
      %p175 = scmp.ne.s32.totalorder %s166, %s167
      %p176 = scmp.eq.s32.totalorder %s30, 0
      %p177 = por %p175, %p176
      %p178 = scmp.ne.s32.totalorder %s166, %s167
      %p179 = scmp.eq.s32.totalorder %s31, 1
      %p180 = por %p178, %p179
      %p182 = scmp.ne.s32.totalorder %s167, %s181
      %p183 = scmp.eq.s32.totalorder %s31, 0
      %p184 = por %p182, %p183
      %s186 = sadd.s32 %s185, 1
      %p189 = scmp.eq.s32.totalorder %s25, 1
      %p190 = scmp.ne.s32.totalorder %s185, %s187
      %p191 = scmp.eq.s32.totalorder %s25, 0
      %p192 = por %p190, %p191
      %p193 = scmp.ne.s32.totalorder %s185, %s187
      %p194 = scmp.eq.s32.totalorder %s30, 1
      %p195 = por %p193, %p194
      %p196 = scmp.ne.s32.totalorder %s187, %s188
      %p197 = scmp.eq.s32.totalorder %s30, 0
      %p198 = por %p196, %p197
      %p199 = scmp.ne.s32.totalorder %s187, %s188
      %p200 = scmp.eq.s32.totalorder %s31, 1
      %p201 = por %p199, %p200
      %p203 = scmp.ne.s32.totalorder %s188, %s202
      %p204 = scmp.eq.s32.totalorder %s31, 0
      %p205 = por %p203, %p204
      %s207 = sadd.s32 %s206, 1
      %p210 = scmp.eq.s32.totalorder %s25, 1
      %p211 = scmp.ne.s32.totalorder %s206, %s208
      %p212 = scmp.eq.s32.totalorder %s25, 0
      %p213 = por %p211, %p212
      %p214 = scmp.ne.s32.totalorder %s206, %s208
      %p215 = scmp.eq.s32.totalorder %s30, 1
      %p216 = por %p214, %p215
      %p217 = scmp.ne.s32.totalorder %s208, %s209
      %p218 = scmp.eq.s32.totalorder %s30, 0
      %p219 = por %p217, %p218
      %p220 = scmp.ne.s32.totalorder %s208, %s209
      %p221 = scmp.eq.s32.totalorder %s31, 1
      %p222 = por %p220, %p221
      %p224 = scmp.ne.s32.totalorder %s209, %s223
      %p225 = scmp.eq.s32.totalorder %s31, 0
      %p226 = por %p224, %p225
      %s228 = sadd.s32 %s227, 1
      %p231 = scmp.eq.s32.totalorder %s25, 1
      %p232 = scmp.ne.s32.totalorder %s227, %s229
      %p233 = scmp.eq.s32.totalorder %s25, 0
      %p234 = por %p232, %p233
      %p235 = scmp.ne.s32.totalorder %s227, %s229
      %p236 = scmp.eq.s32.totalorder %s30, 1
      %p237 = por %p235, %p236
      %p238 = scmp.ne.s32.totalorder %s229, %s230
      %p239 = scmp.eq.s32.totalorder %s30, 0
      %p240 = por %p238, %p239
      %p241 = scmp.ne.s32.totalorder %s229, %s230
      %p242 = scmp.eq.s32.totalorder %s31, 1
      %p243 = por %p241, %p242
      %p245 = scmp.ne.s32.totalorder %s230, %s244
      %p246 = scmp.eq.s32.totalorder %s31, 0
      %p247 = por %p245, %p246
      %s249 = sadd.s32 %s248, 1
      %p252 = scmp.eq.s32.totalorder %s25, 1
      %p253 = scmp.ne.s32.totalorder %s248, %s250
      %p254 = scmp.eq.s32.totalorder %s25, 0
      %p255 = por %p253, %p254
      %p256 = scmp.ne.s32.totalorder %s248, %s250
      %p257 = scmp.eq.s32.totalorder %s30, 1
      %p258 = por %p256, %p257
      %p259 = scmp.ne.s32.totalorder %s250, %s251
      %p260 = scmp.eq.s32.totalorder %s30, 0
      %p261 = por %p259, %p260
      %p262 = scmp.ne.s32.totalorder %s250, %s251
      %p263 = scmp.eq.s32.totalorder %s31, 1
      %p264 = por %p262, %p263
      %p266 = scmp.ne.s32.totalorder %s251, %s265
      %p267 = scmp.eq.s32.totalorder %s31, 0
      %p268 = por %p266, %p267
      %s269 = ssub.s32 %s25, %s32
      %p270 = scmp.eq.s32.totalorder %s269, 0
      %s272 = sadd.s32 %s271, 1
      %s273 = scalar_select %p270, %s271, %s272
      %p276 = pneg %p270
      %p277 = scmp.eq.s32.totalorder %s25, 1
      %p278 = por %p276, %p277
      %p279 = scmp.ne.s32.totalorder %s271, %s274
      %p280 = scmp.eq.s32.totalorder %s25, 0
      %p281 = por %p279, %p280
      %p282 = scmp.ne.s32.totalorder %s271, %s274
      %p283 = scmp.eq.s32.totalorder %s30, 1
      %p284 = por %p282, %p283
      %p285 = scmp.ne.s32.totalorder %s274, %s275
      %p286 = scmp.eq.s32.totalorder %s30, 0
      %p287 = por %p285, %p286
      %p288 = scmp.ne.s32.totalorder %s274, %s275
      %p289 = scmp.eq.s32.totalorder %s31, 1
      %p290 = por %p288, %p289
      %p292 = scmp.ne.s32.totalorder %s275, %s291
      %p293 = scmp.eq.s32.totalorder %s31, 0
      %p294 = por %p292, %p293
      %p295 = scmp.le.s32.totalorder 1, %s25
      %p296 = scmp.lt.s32.totalorder %s25, 3
      %p297 = pnand %p295, %p296
      %p298 = pneg %p297
      // Predicated region
      $region9: #{tpu_custom_call.1} parent=5 // pred_check
        _
      $region10: #{tpu_custom_call.1} parent=5 // pred_check_branch
        %300 = sbr.rel (%p297) target = $region12
      $region11: #{tpu_custom_call.1} parent=5 // pred_region
        %s301 = ssub.s32 %s25, 1
        // Predicated region
        $region13: #{tpu_custom_call.1} parent=11 // pred_check
          %p302 = pneg %p72
        $region14: #{tpu_custom_call.1} parent=11 // pred_check_branch
          %304 = sbr.rel (%p302) target = $region16
        $region15: #{tpu_custom_call.1} parent=11 // pred_region
          %s306 = ssub.s32 896, 896
          %307 = vsyncadd [#allocation8], %s306
          %s308 = sshll.u32 [#allocation7], 4
          %s309 = int_to_ptr.vmem [resolvable:$true] %s308
          %314 = dma.hbm_to_vmem [thread:$0]  %s1, 896, %s309, [#allocation8], 128, 128, 8
        $region16: #{tpu_custom_call.1} parent=11 // pred_fallthru
          _
        // Predicated region
        $region17: #{tpu_custom_call.1} parent=11 // pred_check
          %p315 = pneg %p93
        $region18: #{tpu_custom_call.1} parent=11 // pred_check_branch
          %317 = sbr.rel (%p315) target = $region20
        $region19: #{tpu_custom_call.1} parent=11 // pred_region
          _
        $region20: #{tpu_custom_call.1} parent=11 // pred_fallthru
          _
        // Predicated region
        $region21: #{tpu_custom_call.1} parent=11 // pred_check
          %p318 = pneg %p114
        $region22: #{tpu_custom_call.1} parent=11 // pred_check_branch
          %320 = sbr.rel (%p318) target = $region24
        $region23: #{tpu_custom_call.1} parent=11 // pred_region
          _
        $region24: #{tpu_custom_call.1} parent=11 // pred_fallthru
          _
        // Predicated region
        $region25: #{tpu_custom_call.1} parent=11 // pred_check
          %p321 = pneg %p135
        $region26: #{tpu_custom_call.1} parent=11 // pred_check_branch
          %323 = sbr.rel (%p321) target = $region28
        $region27: #{tpu_custom_call.1} parent=11 // pred_region
          _
        $region28: #{tpu_custom_call.1} parent=11 // pred_fallthru
          _
        // Predicated region
        $region29: #{tpu_custom_call.1} parent=11 // pred_check
          %p324 = pneg %p156
        $region30: #{tpu_custom_call.1} parent=11 // pred_check_branch
          %326 = sbr.rel (%p324) target = $region32
        $region31: #{tpu_custom_call.1} parent=11 // pred_region
          _
        $region32: #{tpu_custom_call.1} parent=11 // pred_fallthru
          _
        // Predicated region
        $region33: #{tpu_custom_call.1} parent=11 // pred_check
          %p327 = pneg %p177
        $region34: #{tpu_custom_call.1} parent=11 // pred_check_branch
          %329 = sbr.rel (%p327) target = $region36
        $region35: #{tpu_custom_call.1} parent=11 // pred_region
          %s331 = ssub.s32 4096, 4096
          %332 = vsyncadd [#allocation8], %s331
          %s333 = sshll.u32 [#allocation9], 4
          %s334 = int_to_ptr.vmem [resolvable:$true] %s333
          %339 = dma.hbm_to_vmem [thread:$0]  %s6, 4096, %s334, [#allocation8], 256, 256, 16
        $region36: #{tpu_custom_call.1} parent=11 // pred_fallthru
          _
        // Predicated region
        $region37: #{tpu_custom_call.1} parent=11 // pred_check
          %p340 = pneg %p198
        $region38: #{tpu_custom_call.1} parent=11 // pred_check_branch
          %342 = sbr.rel (%p340) target = $region40
        $region39: #{tpu_custom_call.1} parent=11 // pred_region
          _
        $region40: #{tpu_custom_call.1} parent=11 // pred_fallthru
          _
        // Predicated region
        $region41: #{tpu_custom_call.1} parent=11 // pred_check
          %p343 = pneg %p219
        $region42: #{tpu_custom_call.1} parent=11 // pred_check_branch
          %345 = sbr.rel (%p343) target = $region44
        $region43: #{tpu_custom_call.1} parent=11 // pred_region
          %s347 = ssub.s32 4096, 4096
          %348 = vsyncadd [#allocation11], %s347
          %s349 = sshll.u32 [#allocation10], 4
          %s350 = int_to_ptr.vmem [resolvable:$true] %s349
          %355 = dma.hbm_to_vmem [thread:$0]  %s8, 4096, %s350, [#allocation11], 64, 64, 4
        $region44: #{tpu_custom_call.1} parent=11 // pred_fallthru
          _
        // Predicated region
        $region45: #{tpu_custom_call.1} parent=11 // pred_check
          %p356 = pneg %p240
        $region46: #{tpu_custom_call.1} parent=11 // pred_check_branch
          %358 = sbr.rel (%p356) target = $region48
        $region47: #{tpu_custom_call.1} parent=11 // pred_region
          _
        $region48: #{tpu_custom_call.1} parent=11 // pred_fallthru
          _
        // Predicated region
        $region49: #{tpu_custom_call.1} parent=11 // pred_check
          %p359 = pneg %p261
        $region50: #{tpu_custom_call.1} parent=11 // pred_check_branch
          %361 = sbr.rel (%p359) target = $region52
        $region51: #{tpu_custom_call.1} parent=11 // pred_region
          _
        $region52: #{tpu_custom_call.1} parent=11 // pred_fallthru
          _
      $region12: #{tpu_custom_call.1} parent=5 // pred_fallthru
        _
      %p362 = scmp.lt.s32.totalorder %s25, 2
      // Predicated region
      $region53: #{tpu_custom_call.1} parent=5 // pred_check
        %p363 = pneg %p362
      $region54: #{tpu_custom_call.1} parent=5 // pred_check_branch
        %365 = sbr.rel (%p363) target = $region56
      $region55: #{tpu_custom_call.1} parent=5 // pred_region
        // Predicated region
        $region57: #{tpu_custom_call.1} parent=55 // pred_check
          %p366 = pneg %p45
        $region58: #{tpu_custom_call.1} parent=55 // pred_check_branch
          %368 = sbr.rel (%p366) target = $region60
        $region59: #{tpu_custom_call.1} parent=55 // pred_region
          %s369 = sand.u32 %s35, 1
          %s370 = scalar_lea.sflag [#allocation5], %s369
          %s371 = sand.u32 %s35, 1
          %s372 = smul.addr %s371, 256
          %s373 = scalar_lea.vmem [#allocation4], %s372
          %s375 = ssub.s32 4096, 4096
          %376 = vsyncadd %s370, %s375
          %s377 = smul.addr %s25, 32
          %s378 = smul.addr %s377, 128
          %s379 = scalar_lea.hbm %s0, %s378
          %s380 = sshll.u32 %s373, 4
          %s381 = int_to_ptr.vmem [resolvable:$true] %s380
          %386 = dma.hbm_to_vmem [thread:$0]  %s379, 4096, %s381, %s370, 128, 128, 8
        $region60: #{tpu_custom_call.1} parent=55 // pred_fallthru
          _
      $region56: #{tpu_custom_call.1} parent=5 // pred_fallthru
        _
      %p387 = scmp.le.s32.totalorder 1, %s25
      %p388 = scmp.lt.s32.totalorder %s25, 3
      %p389 = pnand %p387, %p388
      %p390 = pneg %p389
      // Predicated region
      $region61: #{tpu_custom_call.1} parent=5 // pred_check
        _
      $region62: #{tpu_custom_call.1} parent=5 // pred_check_branch
        %392 = sbr.rel (%p389) target = $region64
      $region63: #{tpu_custom_call.1} parent=5 // pred_region
        %s393 = ssub.s32 %s25, 1
        %s394 = sand.u32 %s38, 1
        %s395 = scalar_lea.sflag [#allocation5], %s394
        %s396 = sand.u32 %s38, 1
        %s397 = smul.addr %s396, 256
        %s398 = scalar_lea.vmem [#allocation4], %s397
        // Predicated region
        $region65: #{tpu_custom_call.1} parent=63 // pred_check
          %p399 = pneg %p51
        $region66: #{tpu_custom_call.1} parent=63 // pred_check_branch
          %401 = sbr.rel (%p399) target = $region68
        $region67: #{tpu_custom_call.1} parent=63 // pred_region
          %402 = dma.done %s395, 4096
        $region68: #{tpu_custom_call.1} parent=63 // pred_fallthru
          _
        // Predicated region
        $region69: #{tpu_custom_call.1} parent=63 // pred_check
          %p403 = pneg %p72
        $region70: #{tpu_custom_call.1} parent=63 // pred_check_branch
          %405 = sbr.rel (%p403) target = $region72
        $region71: #{tpu_custom_call.1} parent=63 // pred_region
          %406 = dma.done [#allocation8], 896
        $region72: #{tpu_custom_call.1} parent=63 // pred_fallthru
          _
        // Predicated region
        $region73: #{tpu_custom_call.1} parent=63 // pred_check
          %p407 = pneg %p177
        $region74: #{tpu_custom_call.1} parent=63 // pred_check_branch
          %409 = sbr.rel (%p407) target = $region76
        $region75: #{tpu_custom_call.1} parent=63 // pred_region
          %410 = dma.done [#allocation8], 4096
        $region76: #{tpu_custom_call.1} parent=63 // pred_fallthru
          _
        // Predicated region
        $region77: #{tpu_custom_call.1} parent=63 // pred_check
          %p411 = pneg %p219
        $region78: #{tpu_custom_call.1} parent=63 // pred_check_branch
          %413 = sbr.rel (%p411) target = $region80
        $region79: #{tpu_custom_call.1} parent=63 // pred_region
          %414 = dma.done [#allocation11], 4096
        $region80: #{tpu_custom_call.1} parent=63 // pred_fallthru
          _
        %s415 = sand.u32 %s38, 1
        %s416 = scalar_lea.sflag [#allocation5], %s415
        %s417 = sand.u32 %s38, 1
        %s418 = smul.addr %s417, 256
        %s419 = scalar_lea.vmem [#allocation4], %s418
        %p420 = pneg %p51
        %p421 = pneg %p48
        %p422 = pneg %p72
        %p423 = pneg %p69
        %p424 = pneg %p93
        %p425 = pneg %p90
        %p426 = pneg %p114
        %p427 = pneg %p111
        %p428 = pneg %p135
        %p429 = pneg %p132
        %p430 = pneg %p156
        %p431 = pneg %p153
        %p432 = pneg %p177
        %p433 = pneg %p174
        %p434 = pneg %p198
        %p435 = pneg %p195
        %p436 = pneg %p219
        %p437 = pneg %p216
        %p438 = pneg %p240
        %p439 = pneg %p237
        %p440 = pneg %p261
        %p441 = pneg %p258
        %p442 = pneg %p287
        %p443 = pneg %p284
        %s444 = sand.u32 %s274, 1
        %s445 = scalar_lea.sflag [#allocation6], %s444
        %s446 = sand.u32 %s274, 1
        %s447 = smul.addr %s446, 256
        %s448 = scalar_lea.vmem [#allocation12], %s447
        %v450 = vld [vmem:[%s398] sm:$0xff]
        %v451 = vld [vmem:[%s398 + $0x8] sm:$0xff]
        %v452 = vld [vmem:[%s398 + $0x10] sm:$0xff]
        %v453 = vld [vmem:[%s398 + $0x18] sm:$0xff]
        %v454 = vld [vmem:[%s398 + $0x20] sm:$0xff]
        %v455 = vld [vmem:[%s398 + $0x28] sm:$0xff]
        %v456 = vld [vmem:[%s398 + $0x30] sm:$0xff]
        %v457 = vld [vmem:[%s398 + $0x38] sm:$0xff]
        %v458 = vld [vmem:[%s398 + $0x40] sm:$0xff]
        %v459 = vld [vmem:[%s398 + $0x48] sm:$0xff]
        %v460 = vld [vmem:[%s398 + $0x50] sm:$0xff]
        %v461 = vld [vmem:[%s398 + $0x58] sm:$0xff]
        %v462 = vld [vmem:[%s398 + $0x60] sm:$0xff]
        %v463 = vld [vmem:[%s398 + $0x68] sm:$0xff]
        %v464 = vld [vmem:[%s398 + $0x70] sm:$0xff]
        %v465 = vld [vmem:[%s398 + $0x78] sm:$0xff]
        %v466 = vld [vmem:[%s398 + $0x80] sm:$0xff]
        %v467 = vld [vmem:[%s398 + $0x88] sm:$0xff]
        %v468 = vld [vmem:[%s398 + $0x90] sm:$0xff]
        %v469 = vld [vmem:[%s398 + $0x98] sm:$0xff]
        %v470 = vld [vmem:[%s398 + $0xa0] sm:$0xff]
        %v471 = vld [vmem:[%s398 + $0xa8] sm:$0xff]
        %v472 = vld [vmem:[%s398 + $0xb0] sm:$0xff]
        %v473 = vld [vmem:[%s398 + $0xb8] sm:$0xff]
        %v474 = vld [vmem:[%s398 + $0xc0] sm:$0xff]
        %v475 = vld [vmem:[%s398 + $0xc8] sm:$0xff]
        %v476 = vld [vmem:[%s398 + $0xd0] sm:$0xff]
        %v477 = vld [vmem:[%s398 + $0xd8] sm:$0xff]
        %v478 = vld [vmem:[%s398 + $0xe0] sm:$0xff]
        %v479 = vld [vmem:[%s398 + $0xe8] sm:$0xff]
        %v480 = vld [vmem:[%s398 + $0xf0] sm:$0xff]
        %v481 = vld [vmem:[%s398 + $0xf8] sm:$0xff]
        %s482 = scalar_lea.vmem [#allocation2], 96
        %483 = vst [vmem:[%s482 + $0x8] sm:$0xff] %v450
        %484 = vst [vmem:[%s482 + $0x10] sm:$0xff] %v451
        %485 = vst [vmem:[%s482 + $0x28] sm:$0xff] %v452
        %486 = vst [vmem:[%s482 + $0x30] sm:$0xff] %v453
        %487 = vst [vmem:[%s482 + $0x48] sm:$0xff] %v454
        %488 = vst [vmem:[%s482 + $0x50] sm:$0xff] %v455
        %489 = vst [vmem:[%s482 + $0x68] sm:$0xff] %v456
        %490 = vst [vmem:[%s482 + $0x70] sm:$0xff] %v457
        %491 = vst [vmem:[%s482 + $0x88] sm:$0xff] %v458
        %492 = vst [vmem:[%s482 + $0x90] sm:$0xff] %v459
        %493 = vst [vmem:[%s482 + $0xa8] sm:$0xff] %v460
        %494 = vst [vmem:[%s482 + $0xb0] sm:$0xff] %v461
        %495 = vst [vmem:[%s482 + $0xc8] sm:$0xff] %v462
        %496 = vst [vmem:[%s482 + $0xd0] sm:$0xff] %v463
        %497 = vst [vmem:[%s482 + $0xe8] sm:$0xff] %v464
        %498 = vst [vmem:[%s482 + $0xf0] sm:$0xff] %v465
        %499 = vst [vmem:[%s482 + $0x108] sm:$0xff] %v466
        %500 = vst [vmem:[%s482 + $0x110] sm:$0xff] %v467
        %501 = vst [vmem:[%s482 + $0x128] sm:$0xff] %v468
        %502 = vst [vmem:[%s482 + $0x130] sm:$0xff] %v469
        %503 = vst [vmem:[%s482 + $0x148] sm:$0xff] %v470
        %504 = vst [vmem:[%s482 + $0x150] sm:$0xff] %v471
        %505 = vst [vmem:[%s482 + $0x168] sm:$0xff] %v472
        %506 = vst [vmem:[%s482 + $0x170] sm:$0xff] %v473
        %507 = vst [vmem:[%s482 + $0x188] sm:$0xff] %v474
        %508 = vst [vmem:[%s482 + $0x190] sm:$0xff] %v475
        %509 = vst [vmem:[%s482 + $0x1a8] sm:$0xff] %v476
        %510 = vst [vmem:[%s482 + $0x1b0] sm:$0xff] %v477
        %511 = vst [vmem:[%s482 + $0x1c8] sm:$0xff] %v478
        %512 = vst [vmem:[%s482 + $0x1d0] sm:$0xff] %v479
        %513 = vst [vmem:[%s482 + $0x1e8] sm:$0xff] %v480
        %514 = vst [vmem:[%s482 + $0x1f0] sm:$0xff] %v481
        %515 = vst [vmem:[#allocation2] sm:$0xff] 0.0
        %516 = vst [vmem:[#allocation2 + $0x8] sm:$0xff] 0.0
        %517 = vst [vmem:[#allocation2 + $0x10] sm:$0xff] 0.0
        %518 = vst [vmem:[#allocation2 + $0x18] sm:$0x7] 0.0
        %519 = vst [vmem:[#allocation2 + $0x20] sm:$0xff] 0.0
        %520 = vst [vmem:[#allocation2 + $0x28] sm:$0xff] 0.0
        %521 = vst [vmem:[#allocation2 + $0x30] sm:$0xff] 0.0
        %522 = vst [vmem:[#allocation2 + $0x38] sm:$0x7] 0.0
        %523 = vst [vmem:[#allocation2 + $0x40] sm:$0xff] 0.0
        %524 = vst [vmem:[#allocation2 + $0x48] sm:$0xff] 0.0
        %525 = vst [vmem:[#allocation2 + $0x50] sm:$0xff] 0.0
        %526 = vst [vmem:[#allocation2 + $0x58] sm:$0x7] 0.0
        %s527 = scalar_lea.vmem [#allocation2], 608
        %528 = vst [vmem:[%s527] sm:$0xff] 0.0
        %529 = vst [vmem:[%s527 + $0x8] sm:$0xff] 0.0
        %530 = vst [vmem:[%s527 + $0x10] sm:$0xff] 0.0
        %531 = vst [vmem:[%s527 + $0x18] sm:$0x7] 0.0
        %532 = vst [vmem:[%s527 + $0x20] sm:$0xff] 0.0
        %533 = vst [vmem:[%s527 + $0x28] sm:$0xff] 0.0
        %534 = vst [vmem:[%s527 + $0x30] sm:$0xff] 0.0
        %535 = vst [vmem:[%s527 + $0x38] sm:$0x7] 0.0
        %536 = vst [vmem:[%s527 + $0x40] sm:$0xff] 0.0
        %537 = vst [vmem:[%s527 + $0x48] sm:$0xff] 0.0
        %538 = vst [vmem:[%s527 + $0x50] sm:$0xff] 0.0
        %539 = vst [vmem:[%s527 + $0x58] sm:$0x7] 0.0
        %540 = vst [vmem:[%s482] sm:$0xff] 0.0
        %541 = vst [vmem:[%s482 + $0x20] sm:$0xff] 0.0
        %542 = vst [vmem:[%s482 + $0x40] sm:$0xff] 0.0
        %543 = vst [vmem:[%s482 + $0x60] sm:$0xff] 0.0
        %544 = vst [vmem:[%s482 + $0x80] sm:$0xff] 0.0
        %545 = vst [vmem:[%s482 + $0xa0] sm:$0xff] 0.0
        %546 = vst [vmem:[%s482 + $0xc0] sm:$0xff] 0.0
        %547 = vst [vmem:[%s482 + $0xe0] sm:$0xff] 0.0
        %548 = vst [vmem:[%s482 + $0x100] sm:$0xff] 0.0
        %549 = vst [vmem:[%s482 + $0x120] sm:$0xff] 0.0
        %550 = vst [vmem:[%s482 + $0x140] sm:$0xff] 0.0
        %551 = vst [vmem:[%s482 + $0x160] sm:$0xff] 0.0
        %552 = vst [vmem:[%s482 + $0x180] sm:$0xff] 0.0
        %553 = vst [vmem:[%s482 + $0x1a0] sm:$0xff] 0.0
        %554 = vst [vmem:[%s482 + $0x1c0] sm:$0xff] 0.0
        %555 = vst [vmem:[%s482 + $0x1e0] sm:$0xff] 0.0
        %556 = vst [vmem:[%s482 + $0x18] sm:$0x7] 0.0
        %557 = vst [vmem:[%s482 + $0x38] sm:$0x7] 0.0
        %558 = vst [vmem:[%s482 + $0x58] sm:$0x7] 0.0
        %559 = vst [vmem:[%s482 + $0x78] sm:$0x7] 0.0
        %560 = vst [vmem:[%s482 + $0x98] sm:$0x7] 0.0
        %561 = vst [vmem:[%s482 + $0xb8] sm:$0x7] 0.0
        %562 = vst [vmem:[%s482 + $0xd8] sm:$0x7] 0.0
        %563 = vst [vmem:[%s482 + $0xf8] sm:$0x7] 0.0
        %564 = vst [vmem:[%s482 + $0x118] sm:$0x7] 0.0
        %565 = vst [vmem:[%s482 + $0x138] sm:$0x7] 0.0
        %566 = vst [vmem:[%s482 + $0x158] sm:$0x7] 0.0
        %567 = vst [vmem:[%s482 + $0x178] sm:$0x7] 0.0
        %568 = vst [vmem:[%s482 + $0x198] sm:$0x7] 0.0
        %569 = vst [vmem:[%s482 + $0x1b8] sm:$0x7] 0.0
        %570 = vst [vmem:[%s482 + $0x1d8] sm:$0x7] 0.0
        %571 = vst [vmem:[%s482 + $0x1f8] sm:$0x7] 0.0
        %v572 = vld [vmem:[#allocation7] sm:$0x7f]
        %v573 = vld [vmem:[#allocation7 + $0x8] sm:$0x7f]
        %v574 = vld [vmem:[#allocation7 + $0x10] sm:$0x7f]
        %v575 = vld [vmem:[#allocation7 + $0x18] sm:$0x7f]
        %v576 = vld [vmem:[#allocation7 + $0x20] sm:$0x7f]
        %v577 = vld [vmem:[#allocation7 + $0x28] sm:$0x7f]
        %v578 = vld [vmem:[#allocation7 + $0x30] sm:$0x7f]
        %v579 = vld [vmem:[%s2] sm:$0x1]
        %v580 = vld [vmem:[%s3] sm:$0x1]
        %v581 = vld [vmem:[%s4] sm:$0x1]
        %v582 = vld [vmem:[%s5] sm:$0x1]
        loop: start=0, step=1, limit=2
        $region81: #{tpu_custom_call.1} parent=63 // loop_pre_header
          _
        $region82: #{tpu_custom_call.1} parent=63 // loop_header
          %s584 = sphi 0, %s588
          %p585 = scmp.ge.s32.totalorder %s584, 2
        $region83: #{tpu_custom_call.1} parent=63 // loop_header_branch
          %587 = sbr.rel (%p585) target = $region87
        $region84: #{tpu_custom_call.1} parent=63 // loop_body
          %s589 = smul.u32 %s584, 8
          %s590 = smul.u32 %s589, 32
          %s591 = scalar_lea.vmem [#allocation2], %s590
          %v592 = vld [vmem:[%s591 + $0x5] sm:$0xff]
          %v593 = vld [vmem:[%s591 + $0xd] sm:$0xff]
          %v594 = vld [vmem:[%s591 + $0x25] sm:$0xff]
          %v595 = vld [vmem:[%s591 + $0x2d] sm:$0xff]
          %v596 = vld [vmem:[%s591 + $0x45] sm:$0xff]
          %v597 = vld [vmem:[%s591 + $0x4d] sm:$0xff]
          %v598 = vld [vmem:[%s591 + $0x65] sm:$0xff]
          %v599 = vld [vmem:[%s591 + $0x6d] sm:$0xff]
          %v600 = vld [vmem:[%s591 + $0x85] sm:$0xff]
          %v601 = vld [vmem:[%s591 + $0x8d] sm:$0xff]
          %v602 = vld [vmem:[%s591 + $0xa5] sm:$0xff]
          %v603 = vld [vmem:[%s591 + $0xad] sm:$0xff]
          %v604 = vld [vmem:[%s591 + $0xc5] sm:$0xff]
          %v605 = vld [vmem:[%s591 + $0xcd] sm:$0xff]
          %v606 = vld [vmem:[%s591 + $0xe5] sm:$0xff]
          %v607 = vld [vmem:[%s591 + $0xed] sm:$0xff]
          %v608 = vlaneseq
          %v609 = vshrl.u32 %v608, 7
          %v610 = vsub.s32 0, %v609
          %v611 = vrot.slane %v572, %v610
          %v612 = vmul.f32 %v592, %v611
          %v613 = vmul.f32 %v593, %v611
          %v614 = vmul.f32 %v594, %v611
          %v615 = vmul.f32 %v595, %v611
          %v616 = vmul.f32 %v596, %v611
          %v617 = vmul.f32 %v597, %v611
          %v618 = vmul.f32 %v598, %v611
          %v619 = vmul.f32 %v599, %v611
          %v620 = vmul.f32 %v600, %v611
          %v621 = vmul.f32 %v601, %v611
          %v622 = vmul.f32 %v602, %v611
          %v623 = vmul.f32 %v603, %v611
          %v624 = vmul.f32 %v604, %v611
          %v625 = vmul.f32 %v605, %v611
          %v626 = vmul.f32 %v606, %v611
          %v627 = vmul.f32 %v607, %v611
          %v628 = vadd.f32 %v612, 0.0
          %v629 = vadd.f32 %v613, 0.0
          %v630 = vadd.f32 %v614, 0.0
          %v631 = vadd.f32 %v615, 0.0
          %v632 = vadd.f32 %v616, 0.0
          %v633 = vadd.f32 %v617, 0.0
          %v634 = vadd.f32 %v618, 0.0
          %v635 = vadd.f32 %v619, 0.0
          %v636 = vadd.f32 %v620, 0.0
          %v637 = vadd.f32 %v621, 0.0
          %v638 = vadd.f32 %v622, 0.0
          %v639 = vadd.f32 %v623, 0.0
          %v640 = vadd.f32 %v624, 0.0
          %v641 = vadd.f32 %v625, 0.0
          %v642 = vadd.f32 %v626, 0.0
          %v643 = vadd.f32 %v627, 0.0
          %v644 = vld [vmem:[%s591 + $0x6] sm:$0xff]
          %v645 = vld [vmem:[%s591 + $0xe] sm:$0xff]
          %v646 = vld [vmem:[%s591 + $0x26] sm:$0xff]
          %v647 = vld [vmem:[%s591 + $0x2e] sm:$0xff]
          %v648 = vld [vmem:[%s591 + $0x46] sm:$0xff]
          %v649 = vld [vmem:[%s591 + $0x4e] sm:$0xff]
          %v650 = vld [vmem:[%s591 + $0x66] sm:$0xff]
          %v651 = vld [vmem:[%s591 + $0x6e] sm:$0xff]
          %v652 = vld [vmem:[%s591 + $0x86] sm:$0xff]
          %v653 = vld [vmem:[%s591 + $0x8e] sm:$0xff]
          %v654 = vld [vmem:[%s591 + $0xa6] sm:$0xff]
          %v655 = vld [vmem:[%s591 + $0xae] sm:$0xff]
          %v656 = vld [vmem:[%s591 + $0xc6] sm:$0xff]
          %v657 = vld [vmem:[%s591 + $0xce] sm:$0xff]
          %v658 = vld [vmem:[%s591 + $0xe6] sm:$0xff]
          %v659 = vld [vmem:[%s591 + $0xee] sm:$0xff]
          %v660 = vlaneseq
          %v661 = vshrl.u32 %v660, 7
          %v662 = vsub.s32 1, %v661
          %v663 = vrot.slane %v572, %v662
          %v664 = vmul.f32 %v644, %v663
          %v665 = vmul.f32 %v645, %v663
          %v666 = vmul.f32 %v646, %v663
          %v667 = vmul.f32 %v647, %v663
          %v668 = vmul.f32 %v648, %v663
          %v669 = vmul.f32 %v649, %v663
          %v670 = vmul.f32 %v650, %v663
          %v671 = vmul.f32 %v651, %v663
          %v672 = vmul.f32 %v652, %v663
          %v673 = vmul.f32 %v653, %v663
          %v674 = vmul.f32 %v654, %v663
          %v675 = vmul.f32 %v655, %v663
          %v676 = vmul.f32 %v656, %v663
          %v677 = vmul.f32 %v657, %v663
          %v678 = vmul.f32 %v658, %v663
          %v679 = vmul.f32 %v659, %v663
          %v680 = vadd.f32 %v628, %v664
          %v681 = vadd.f32 %v629, %v665
          %v682 = vadd.f32 %v630, %v666
          %v683 = vadd.f32 %v631, %v667
          %v684 = vadd.f32 %v632, %v668
          %v685 = vadd.f32 %v633, %v669
          %v686 = vadd.f32 %v634, %v670
          %v687 = vadd.f32 %v635, %v671
          %v688 = vadd.f32 %v636, %v672
          %v689 = vadd.f32 %v637, %v673
          %v690 = vadd.f32 %v638, %v674
          %v691 = vadd.f32 %v639, %v675
          %v692 = vadd.f32 %v640, %v676
          %v693 = vadd.f32 %v641, %v677
          %v694 = vadd.f32 %v642, %v678
          %v695 = vadd.f32 %v643, %v679
          %v696 = vld [vmem:[%s591 + $0x7] sm:$0xff]
          %v697 = vld [vmem:[%s591 + $0xf] sm:$0xff]
          %v698 = vld [vmem:[%s591 + $0x27] sm:$0xff]
          %v699 = vld [vmem:[%s591 + $0x2f] sm:$0xff]
          %v700 = vld [vmem:[%s591 + $0x47] sm:$0xff]
          %v701 = vld [vmem:[%s591 + $0x4f] sm:$0xff]
          %v702 = vld [vmem:[%s591 + $0x67] sm:$0xff]
          %v703 = vld [vmem:[%s591 + $0x6f] sm:$0xff]
          %v704 = vld [vmem:[%s591 + $0x87] sm:$0xff]
          %v705 = vld [vmem:[%s591 + $0x8f] sm:$0xff]
          %v706 = vld [vmem:[%s591 + $0xa7] sm:$0xff]
          %v707 = vld [vmem:[%s591 + $0xaf] sm:$0xff]
          %v708 = vld [vmem:[%s591 + $0xc7] sm:$0xff]
          %v709 = vld [vmem:[%s591 + $0xcf] sm:$0xff]
          %v710 = vld [vmem:[%s591 + $0xe7] sm:$0xff]
          %v711 = vld [vmem:[%s591 + $0xef] sm:$0xff]
          %v712 = vlaneseq
          %v713 = vshrl.u32 %v712, 7
          %v714 = vsub.s32 2, %v713
          %v715 = vrot.slane %v572, %v714
          %v716 = vmul.f32 %v696, %v715
          %v717 = vmul.f32 %v697, %v715
          %v718 = vmul.f32 %v698, %v715
          %v719 = vmul.f32 %v699, %v715
          %v720 = vmul.f32 %v700, %v715
          %v721 = vmul.f32 %v701, %v715
          %v722 = vmul.f32 %v702, %v715
          %v723 = vmul.f32 %v703, %v715
          %v724 = vmul.f32 %v704, %v715
          %v725 = vmul.f32 %v705, %v715
          %v726 = vmul.f32 %v706, %v715
          %v727 = vmul.f32 %v707, %v715
          %v728 = vmul.f32 %v708, %v715
          %v729 = vmul.f32 %v709, %v715
          %v730 = vmul.f32 %v710, %v715
          %v731 = vmul.f32 %v711, %v715
          %v732 = vadd.f32 %v680, %v716
          %v733 = vadd.f32 %v681, %v717
          %v734 = vadd.f32 %v682, %v718
          %v735 = vadd.f32 %v683, %v719
          %v736 = vadd.f32 %v684, %v720
          %v737 = vadd.f32 %v685, %v721
          %v738 = vadd.f32 %v686, %v722
          %v739 = vadd.f32 %v687, %v723
          %v740 = vadd.f32 %v688, %v724
          %v741 = vadd.f32 %v689, %v725
          %v742 = vadd.f32 %v690, %v726
          %v743 = vadd.f32 %v691, %v727
          %v744 = vadd.f32 %v692, %v728
          %v745 = vadd.f32 %v693, %v729
          %v746 = vadd.f32 %v694, %v730
          %v747 = vadd.f32 %v695, %v731
          %v748 = vld [vmem:[%s591 + $0x8] sm:$0xff]
          %v749 = vld [vmem:[%s591 + $0x10] sm:$0xff]
          %v750 = vld [vmem:[%s591 + $0x28] sm:$0xff]
          %v751 = vld [vmem:[%s591 + $0x30] sm:$0xff]
          %v752 = vld [vmem:[%s591 + $0x48] sm:$0xff]
          %v753 = vld [vmem:[%s591 + $0x50] sm:$0xff]
          %v754 = vld [vmem:[%s591 + $0x68] sm:$0xff]
          %v755 = vld [vmem:[%s591 + $0x70] sm:$0xff]
          %v756 = vld [vmem:[%s591 + $0x88] sm:$0xff]
          %v757 = vld [vmem:[%s591 + $0x90] sm:$0xff]
          %v758 = vld [vmem:[%s591 + $0xa8] sm:$0xff]
          %v759 = vld [vmem:[%s591 + $0xb0] sm:$0xff]
          %v760 = vld [vmem:[%s591 + $0xc8] sm:$0xff]
          %v761 = vld [vmem:[%s591 + $0xd0] sm:$0xff]
          %v762 = vld [vmem:[%s591 + $0xe8] sm:$0xff]
          %v763 = vld [vmem:[%s591 + $0xf0] sm:$0xff]
          %v764 = vlaneseq
          %v765 = vshrl.u32 %v764, 7
          %v766 = vsub.s32 3, %v765
          %v767 = vrot.slane %v572, %v766
          %v768 = vmul.f32 %v748, %v767
          %v769 = vmul.f32 %v749, %v767
          %v770 = vmul.f32 %v750, %v767
          %v771 = vmul.f32 %v751, %v767
          %v772 = vmul.f32 %v752, %v767
          %v773 = vmul.f32 %v753, %v767
          %v774 = vmul.f32 %v754, %v767
          %v775 = vmul.f32 %v755, %v767
          %v776 = vmul.f32 %v756, %v767
          %v777 = vmul.f32 %v757, %v767
          %v778 = vmul.f32 %v758, %v767
          %v779 = vmul.f32 %v759, %v767
          %v780 = vmul.f32 %v760, %v767
          %v781 = vmul.f32 %v761, %v767
          %v782 = vmul.f32 %v762, %v767
          %v783 = vmul.f32 %v763, %v767
          %v784 = vadd.f32 %v732, %v768
          %v785 = vadd.f32 %v733, %v769
          %v786 = vadd.f32 %v734, %v770
          %v787 = vadd.f32 %v735, %v771
          %v788 = vadd.f32 %v736, %v772
          %v789 = vadd.f32 %v737, %v773
          %v790 = vadd.f32 %v738, %v774
          %v791 = vadd.f32 %v739, %v775
          %v792 = vadd.f32 %v740, %v776
          %v793 = vadd.f32 %v741, %v777
          %v794 = vadd.f32 %v742, %v778
          %v795 = vadd.f32 %v743, %v779
          %v796 = vadd.f32 %v744, %v780
          %v797 = vadd.f32 %v745, %v781
          %v798 = vadd.f32 %v746, %v782
          %v799 = vadd.f32 %v747, %v783
          %v800 = vld [vmem:[%s591 + $0x9] sm:$0xff]
          %v801 = vld [vmem:[%s591 + $0x11] sm:$0xff]
          %v802 = vld [vmem:[%s591 + $0x29] sm:$0xff]
          %v803 = vld [vmem:[%s591 + $0x31] sm:$0xff]
          %v804 = vld [vmem:[%s591 + $0x49] sm:$0xff]
          %v805 = vld [vmem:[%s591 + $0x51] sm:$0xff]
          %v806 = vld [vmem:[%s591 + $0x69] sm:$0xff]
          %v807 = vld [vmem:[%s591 + $0x71] sm:$0xff]
          %v808 = vld [vmem:[%s591 + $0x89] sm:$0xff]
          %v809 = vld [vmem:[%s591 + $0x91] sm:$0xff]
          %v810 = vld [vmem:[%s591 + $0xa9] sm:$0xff]
          %v811 = vld [vmem:[%s591 + $0xb1] sm:$0xff]
          %v812 = vld [vmem:[%s591 + $0xc9] sm:$0xff]
          %v813 = vld [vmem:[%s591 + $0xd1] sm:$0xff]
          %v814 = vld [vmem:[%s591 + $0xe9] sm:$0xff]
          %v815 = vld [vmem:[%s591 + $0xf1] sm:$0xff]
          %v816 = vlaneseq
          %v817 = vshrl.u32 %v816, 7
          %v818 = vsub.s32 4, %v817
          %v819 = vrot.slane %v572, %v818
          %v820 = vmul.f32 %v800, %v819
          %v821 = vmul.f32 %v801, %v819
          %v822 = vmul.f32 %v802, %v819
          %v823 = vmul.f32 %v803, %v819
          %v824 = vmul.f32 %v804, %v819
          %v825 = vmul.f32 %v805, %v819
          %v826 = vmul.f32 %v806, %v819
          %v827 = vmul.f32 %v807, %v819
          %v828 = vmul.f32 %v808, %v819
          %v829 = vmul.f32 %v809, %v819
          %v830 = vmul.f32 %v810, %v819
          %v831 = vmul.f32 %v811, %v819
          %v832 = vmul.f32 %v812, %v819
          %v833 = vmul.f32 %v813, %v819
          %v834 = vmul.f32 %v814, %v819
          %v835 = vmul.f32 %v815, %v819
          %v836 = vadd.f32 %v784, %v820
          %v837 = vadd.f32 %v785, %v821
          %v838 = vadd.f32 %v786, %v822
          %v839 = vadd.f32 %v787, %v823
          %v840 = vadd.f32 %v788, %v824
          %v841 = vadd.f32 %v789, %v825
          %v842 = vadd.f32 %v790, %v826
          %v843 = vadd.f32 %v791, %v827
          %v844 = vadd.f32 %v792, %v828
          %v845 = vadd.f32 %v793, %v829
          %v846 = vadd.f32 %v794, %v830
          %v847 = vadd.f32 %v795, %v831
          %v848 = vadd.f32 %v796, %v832
          %v849 = vadd.f32 %v797, %v833
          %v850 = vadd.f32 %v798, %v834
          %v851 = vadd.f32 %v799, %v835
          %v852 = vld [vmem:[%s591 + $0xa] sm:$0xff]
          %v853 = vld [vmem:[%s591 + $0x12] sm:$0xff]
          %v854 = vld [vmem:[%s591 + $0x2a] sm:$0xff]
          %v855 = vld [vmem:[%s591 + $0x32] sm:$0xff]
          %v856 = vld [vmem:[%s591 + $0x4a] sm:$0xff]
          %v857 = vld [vmem:[%s591 + $0x52] sm:$0xff]
          %v858 = vld [vmem:[%s591 + $0x6a] sm:$0xff]
          %v859 = vld [vmem:[%s591 + $0x72] sm:$0xff]
          %v860 = vld [vmem:[%s591 + $0x8a] sm:$0xff]
          %v861 = vld [vmem:[%s591 + $0x92] sm:$0xff]
          %v862 = vld [vmem:[%s591 + $0xaa] sm:$0xff]
          %v863 = vld [vmem:[%s591 + $0xb2] sm:$0xff]
          %v864 = vld [vmem:[%s591 + $0xca] sm:$0xff]
          %v865 = vld [vmem:[%s591 + $0xd2] sm:$0xff]
          %v866 = vld [vmem:[%s591 + $0xea] sm:$0xff]
          %v867 = vld [vmem:[%s591 + $0xf2] sm:$0xff]
          %v868 = vlaneseq
          %v869 = vshrl.u32 %v868, 7
          %v870 = vsub.s32 5, %v869
          %v871 = vrot.slane %v572, %v870
          %v872 = vmul.f32 %v852, %v871
          %v873 = vmul.f32 %v853, %v871
          %v874 = vmul.f32 %v854, %v871
          %v875 = vmul.f32 %v855, %v871
          %v876 = vmul.f32 %v856, %v871
          %v877 = vmul.f32 %v857, %v871
          %v878 = vmul.f32 %v858, %v871
          %v879 = vmul.f32 %v859, %v871
          %v880 = vmul.f32 %v860, %v871
          %v881 = vmul.f32 %v861, %v871
          %v882 = vmul.f32 %v862, %v871
          %v883 = vmul.f32 %v863, %v871
          %v884 = vmul.f32 %v864, %v871
          %v885 = vmul.f32 %v865, %v871
          %v886 = vmul.f32 %v866, %v871
          %v887 = vmul.f32 %v867, %v871
          %v888 = vadd.f32 %v836, %v872
          %v889 = vadd.f32 %v837, %v873
          %v890 = vadd.f32 %v838, %v874
          %v891 = vadd.f32 %v839, %v875
          %v892 = vadd.f32 %v840, %v876
          %v893 = vadd.f32 %v841, %v877
          %v894 = vadd.f32 %v842, %v878
          %v895 = vadd.f32 %v843, %v879
          %v896 = vadd.f32 %v844, %v880
          %v897 = vadd.f32 %v845, %v881
          %v898 = vadd.f32 %v846, %v882
          %v899 = vadd.f32 %v847, %v883
          %v900 = vadd.f32 %v848, %v884
          %v901 = vadd.f32 %v849, %v885
          %v902 = vadd.f32 %v850, %v886
          %v903 = vadd.f32 %v851, %v887
          %v904 = vld [vmem:[%s591 + $0xb] sm:$0xff]
          %v905 = vld [vmem:[%s591 + $0x13] sm:$0xff]
          %v906 = vld [vmem:[%s591 + $0x2b] sm:$0xff]
          %v907 = vld [vmem:[%s591 + $0x33] sm:$0xff]
          %v908 = vld [vmem:[%s591 + $0x4b] sm:$0xff]
          %v909 = vld [vmem:[%s591 + $0x53] sm:$0xff]
          %v910 = vld [vmem:[%s591 + $0x6b] sm:$0xff]
          %v911 = vld [vmem:[%s591 + $0x73] sm:$0xff]
          %v912 = vld [vmem:[%s591 + $0x8b] sm:$0xff]
          %v913 = vld [vmem:[%s591 + $0x93] sm:$0xff]
          %v914 = vld [vmem:[%s591 + $0xab] sm:$0xff]
          %v915 = vld [vmem:[%s591 + $0xb3] sm:$0xff]
          %v916 = vld [vmem:[%s591 + $0xcb] sm:$0xff]
          %v917 = vld [vmem:[%s591 + $0xd3] sm:$0xff]
          %v918 = vld [vmem:[%s591 + $0xeb] sm:$0xff]
          %v919 = vld [vmem:[%s591 + $0xf3] sm:$0xff]
          %v920 = vlaneseq
          %v921 = vshrl.u32 %v920, 7
          %v922 = vsub.s32 6, %v921
          %v923 = vrot.slane %v572, %v922
          %v924 = vmul.f32 %v904, %v923
          %v925 = vmul.f32 %v905, %v923
          %v926 = vmul.f32 %v906, %v923
          %v927 = vmul.f32 %v907, %v923
          %v928 = vmul.f32 %v908, %v923
          %v929 = vmul.f32 %v909, %v923
          %v930 = vmul.f32 %v910, %v923
          %v931 = vmul.f32 %v911, %v923
          %v932 = vmul.f32 %v912, %v923
          %v933 = vmul.f32 %v913, %v923
          %v934 = vmul.f32 %v914, %v923
          %v935 = vmul.f32 %v915, %v923
          %v936 = vmul.f32 %v916, %v923
          %v937 = vmul.f32 %v917, %v923
          %v938 = vmul.f32 %v918, %v923
          %v939 = vmul.f32 %v919, %v923
          %v940 = vadd.f32 %v888, %v924
          %v941 = vadd.f32 %v889, %v925
          %v942 = vadd.f32 %v890, %v926
          %v943 = vadd.f32 %v891, %v927
          %v944 = vadd.f32 %v892, %v928
          %v945 = vadd.f32 %v893, %v929
          %v946 = vadd.f32 %v894, %v930
          %v947 = vadd.f32 %v895, %v931
          %v948 = vadd.f32 %v896, %v932
          %v949 = vadd.f32 %v897, %v933
          %v950 = vadd.f32 %v898, %v934
          %v951 = vadd.f32 %v899, %v935
          %v952 = vadd.f32 %v900, %v936
          %v953 = vadd.f32 %v901, %v937
          %v954 = vadd.f32 %v902, %v938
          %v955 = vadd.f32 %v903, %v939
          %s956 = sadd.s32 %s589, 1
          %s957 = smul.u32 %s956, 32
          %s958 = scalar_lea.vmem [#allocation2], %s957
          %v959 = vld [vmem:[%s958 + $0x5] sm:$0xff]
          %v960 = vld [vmem:[%s958 + $0xd] sm:$0xff]
          %v961 = vld [vmem:[%s958 + $0x25] sm:$0xff]
          %v962 = vld [vmem:[%s958 + $0x2d] sm:$0xff]
          %v963 = vld [vmem:[%s958 + $0x45] sm:$0xff]
          %v964 = vld [vmem:[%s958 + $0x4d] sm:$0xff]
          %v965 = vld [vmem:[%s958 + $0x65] sm:$0xff]
          %v966 = vld [vmem:[%s958 + $0x6d] sm:$0xff]
          %v967 = vld [vmem:[%s958 + $0x85] sm:$0xff]
          %v968 = vld [vmem:[%s958 + $0x8d] sm:$0xff]
          %v969 = vld [vmem:[%s958 + $0xa5] sm:$0xff]
          %v970 = vld [vmem:[%s958 + $0xad] sm:$0xff]
          %v971 = vld [vmem:[%s958 + $0xc5] sm:$0xff]
          %v972 = vld [vmem:[%s958 + $0xcd] sm:$0xff]
          %v973 = vld [vmem:[%s958 + $0xe5] sm:$0xff]
          %v974 = vld [vmem:[%s958 + $0xed] sm:$0xff]
          %v975 = vlaneseq
          %v976 = vshrl.u32 %v975, 7
          %v977 = vsub.s32 0, %v976
          %v978 = vrot.slane %v573, %v977
          %v979 = vmul.f32 %v959, %v978
          %v980 = vmul.f32 %v960, %v978
          %v981 = vmul.f32 %v961, %v978
          %v982 = vmul.f32 %v962, %v978
          %v983 = vmul.f32 %v963, %v978
          %v984 = vmul.f32 %v964, %v978
          %v985 = vmul.f32 %v965, %v978
          %v986 = vmul.f32 %v966, %v978
          %v987 = vmul.f32 %v967, %v978
          %v988 = vmul.f32 %v968, %v978
          %v989 = vmul.f32 %v969, %v978
          %v990 = vmul.f32 %v970, %v978
          %v991 = vmul.f32 %v971, %v978
          %v992 = vmul.f32 %v972, %v978
          %v993 = vmul.f32 %v973, %v978
          %v994 = vmul.f32 %v974, %v978
          %v995 = vadd.f32 %v940, %v979
          %v996 = vadd.f32 %v941, %v980
          %v997 = vadd.f32 %v942, %v981
          %v998 = vadd.f32 %v943, %v982
          %v999 = vadd.f32 %v944, %v983
          %v1000 = vadd.f32 %v945, %v984
          %v1001 = vadd.f32 %v946, %v985
          %v1002 = vadd.f32 %v947, %v986
          %v1003 = vadd.f32 %v948, %v987
          %v1004 = vadd.f32 %v949, %v988
          %v1005 = vadd.f32 %v950, %v989
          %v1006 = vadd.f32 %v951, %v990
          %v1007 = vadd.f32 %v952, %v991
          %v1008 = vadd.f32 %v953, %v992
          %v1009 = vadd.f32 %v954, %v993
          %v1010 = vadd.f32 %v955, %v994
          %v1011 = vld [vmem:[%s958 + $0x6] sm:$0xff]
          %v1012 = vld [vmem:[%s958 + $0xe] sm:$0xff]
          %v1013 = vld [vmem:[%s958 + $0x26] sm:$0xff]
          %v1014 = vld [vmem:[%s958 + $0x2e] sm:$0xff]
          %v1015 = vld [vmem:[%s958 + $0x46] sm:$0xff]
          %v1016 = vld [vmem:[%s958 + $0x4e] sm:$0xff]
          %v1017 = vld [vmem:[%s958 + $0x66] sm:$0xff]
          %v1018 = vld [vmem:[%s958 + $0x6e] sm:$0xff]
          %v1019 = vld [vmem:[%s958 + $0x86] sm:$0xff]
          %v1020 = vld [vmem:[%s958 + $0x8e] sm:$0xff]
          %v1021 = vld [vmem:[%s958 + $0xa6] sm:$0xff]
          %v1022 = vld [vmem:[%s958 + $0xae] sm:$0xff]
          %v1023 = vld [vmem:[%s958 + $0xc6] sm:$0xff]
          %v1024 = vld [vmem:[%s958 + $0xce] sm:$0xff]
          %v1025 = vld [vmem:[%s958 + $0xe6] sm:$0xff]
          %v1026 = vld [vmem:[%s958 + $0xee] sm:$0xff]
          %v1027 = vlaneseq
          %v1028 = vshrl.u32 %v1027, 7
          %v1029 = vsub.s32 1, %v1028
          %v1030 = vrot.slane %v573, %v1029
          %v1031 = vmul.f32 %v1011, %v1030
          %v1032 = vmul.f32 %v1012, %v1030
          %v1033 = vmul.f32 %v1013, %v1030
          %v1034 = vmul.f32 %v1014, %v1030
          %v1035 = vmul.f32 %v1015, %v1030
          %v1036 = vmul.f32 %v1016, %v1030
          %v1037 = vmul.f32 %v1017, %v1030
          %v1038 = vmul.f32 %v1018, %v1030
          %v1039 = vmul.f32 %v1019, %v1030
          %v1040 = vmul.f32 %v1020, %v1030
          %v1041 = vmul.f32 %v1021, %v1030
          %v1042 = vmul.f32 %v1022, %v1030
          %v1043 = vmul.f32 %v1023, %v1030
          %v1044 = vmul.f32 %v1024, %v1030
          %v1045 = vmul.f32 %v1025, %v1030
          %v1046 = vmul.f32 %v1026, %v1030
          %v1047 = vadd.f32 %v995, %v1031
          %v1048 = vadd.f32 %v996, %v1032
          %v1049 = vadd.f32 %v997, %v1033
          %v1050 = vadd.f32 %v998, %v1034
          %v1051 = vadd.f32 %v999, %v1035
          %v1052 = vadd.f32 %v1000, %v1036
          %v1053 = vadd.f32 %v1001, %v1037
          %v1054 = vadd.f32 %v1002, %v1038
          %v1055 = vadd.f32 %v1003, %v1039
          %v1056 = vadd.f32 %v1004, %v1040
          %v1057 = vadd.f32 %v1005, %v1041
          %v1058 = vadd.f32 %v1006, %v1042
          %v1059 = vadd.f32 %v1007, %v1043
          %v1060 = vadd.f32 %v1008, %v1044
          %v1061 = vadd.f32 %v1009, %v1045
          %v1062 = vadd.f32 %v1010, %v1046
          %v1063 = vld [vmem:[%s958 + $0x7] sm:$0xff]
          %v1064 = vld [vmem:[%s958 + $0xf] sm:$0xff]
          %v1065 = vld [vmem:[%s958 + $0x27] sm:$0xff]
          %v1066 = vld [vmem:[%s958 + $0x2f] sm:$0xff]
          %v1067 = vld [vmem:[%s958 + $0x47] sm:$0xff]
          %v1068 = vld [vmem:[%s958 + $0x4f] sm:$0xff]
          %v1069 = vld [vmem:[%s958 + $0x67] sm:$0xff]
          %v1070 = vld [vmem:[%s958 + $0x6f] sm:$0xff]
          %v1071 = vld [vmem:[%s958 + $0x87] sm:$0xff]
          %v1072 = vld [vmem:[%s958 + $0x8f] sm:$0xff]
          %v1073 = vld [vmem:[%s958 + $0xa7] sm:$0xff]
          %v1074 = vld [vmem:[%s958 + $0xaf] sm:$0xff]
          %v1075 = vld [vmem:[%s958 + $0xc7] sm:$0xff]
          %v1076 = vld [vmem:[%s958 + $0xcf] sm:$0xff]
          %v1077 = vld [vmem:[%s958 + $0xe7] sm:$0xff]
          %v1078 = vld [vmem:[%s958 + $0xef] sm:$0xff]
          %v1079 = vlaneseq
          %v1080 = vshrl.u32 %v1079, 7
          %v1081 = vsub.s32 2, %v1080
          %v1082 = vrot.slane %v573, %v1081
          %v1083 = vmul.f32 %v1063, %v1082
          %v1084 = vmul.f32 %v1064, %v1082
          %v1085 = vmul.f32 %v1065, %v1082
          %v1086 = vmul.f32 %v1066, %v1082
          %v1087 = vmul.f32 %v1067, %v1082
          %v1088 = vmul.f32 %v1068, %v1082
          %v1089 = vmul.f32 %v1069, %v1082
          %v1090 = vmul.f32 %v1070, %v1082
          %v1091 = vmul.f32 %v1071, %v1082
          %v1092 = vmul.f32 %v1072, %v1082
          %v1093 = vmul.f32 %v1073, %v1082
          %v1094 = vmul.f32 %v1074, %v1082
          %v1095 = vmul.f32 %v1075, %v1082
          %v1096 = vmul.f32 %v1076, %v1082
          %v1097 = vmul.f32 %v1077, %v1082
          %v1098 = vmul.f32 %v1078, %v1082
          %v1099 = vadd.f32 %v1047, %v1083
          %v1100 = vadd.f32 %v1048, %v1084
          %v1101 = vadd.f32 %v1049, %v1085
          %v1102 = vadd.f32 %v1050, %v1086
          %v1103 = vadd.f32 %v1051, %v1087
          %v1104 = vadd.f32 %v1052, %v1088
          %v1105 = vadd.f32 %v1053, %v1089
          %v1106 = vadd.f32 %v1054, %v1090
          %v1107 = vadd.f32 %v1055, %v1091
          %v1108 = vadd.f32 %v1056, %v1092
          %v1109 = vadd.f32 %v1057, %v1093
          %v1110 = vadd.f32 %v1058, %v1094
          %v1111 = vadd.f32 %v1059, %v1095
          %v1112 = vadd.f32 %v1060, %v1096
          %v1113 = vadd.f32 %v1061, %v1097
          %v1114 = vadd.f32 %v1062, %v1098
          %v1115 = vld [vmem:[%s958 + $0x8] sm:$0xff]
          %v1116 = vld [vmem:[%s958 + $0x10] sm:$0xff]
          %v1117 = vld [vmem:[%s958 + $0x28] sm:$0xff]
          %v1118 = vld [vmem:[%s958 + $0x30] sm:$0xff]
          %v1119 = vld [vmem:[%s958 + $0x48] sm:$0xff]
          %v1120 = vld [vmem:[%s958 + $0x50] sm:$0xff]
          %v1121 = vld [vmem:[%s958 + $0x68] sm:$0xff]
          %v1122 = vld [vmem:[%s958 + $0x70] sm:$0xff]
          %v1123 = vld [vmem:[%s958 + $0x88] sm:$0xff]
          %v1124 = vld [vmem:[%s958 + $0x90] sm:$0xff]
          %v1125 = vld [vmem:[%s958 + $0xa8] sm:$0xff]
          %v1126 = vld [vmem:[%s958 + $0xb0] sm:$0xff]
          %v1127 = vld [vmem:[%s958 + $0xc8] sm:$0xff]
          %v1128 = vld [vmem:[%s958 + $0xd0] sm:$0xff]
          %v1129 = vld [vmem:[%s958 + $0xe8] sm:$0xff]
          %v1130 = vld [vmem:[%s958 + $0xf0] sm:$0xff]
          %v1131 = vlaneseq
          %v1132 = vshrl.u32 %v1131, 7
          %v1133 = vsub.s32 3, %v1132
          %v1134 = vrot.slane %v573, %v1133
          %v1135 = vmul.f32 %v1115, %v1134
          %v1136 = vmul.f32 %v1116, %v1134
          %v1137 = vmul.f32 %v1117, %v1134
          %v1138 = vmul.f32 %v1118, %v1134
          %v1139 = vmul.f32 %v1119, %v1134
          %v1140 = vmul.f32 %v1120, %v1134
          %v1141 = vmul.f32 %v1121, %v1134
          %v1142 = vmul.f32 %v1122, %v1134
          %v1143 = vmul.f32 %v1123, %v1134
          %v1144 = vmul.f32 %v1124, %v1134
          %v1145 = vmul.f32 %v1125, %v1134
          %v1146 = vmul.f32 %v1126, %v1134
          %v1147 = vmul.f32 %v1127, %v1134
          %v1148 = vmul.f32 %v1128, %v1134
          %v1149 = vmul.f32 %v1129, %v1134
          %v1150 = vmul.f32 %v1130, %v1134
          %v1151 = vadd.f32 %v1099, %v1135
          %v1152 = vadd.f32 %v1100, %v1136
          %v1153 = vadd.f32 %v1101, %v1137
          %v1154 = vadd.f32 %v1102, %v1138
          %v1155 = vadd.f32 %v1103, %v1139
          %v1156 = vadd.f32 %v1104, %v1140
          %v1157 = vadd.f32 %v1105, %v1141
          %v1158 = vadd.f32 %v1106, %v1142
          %v1159 = vadd.f32 %v1107, %v1143
          %v1160 = vadd.f32 %v1108, %v1144
          %v1161 = vadd.f32 %v1109, %v1145
          %v1162 = vadd.f32 %v1110, %v1146
          %v1163 = vadd.f32 %v1111, %v1147
          %v1164 = vadd.f32 %v1112, %v1148
          %v1165 = vadd.f32 %v1113, %v1149
          %v1166 = vadd.f32 %v1114, %v1150
          %v1167 = vld [vmem:[%s958 + $0x9] sm:$0xff]
          %v1168 = vld [vmem:[%s958 + $0x11] sm:$0xff]
          %v1169 = vld [vmem:[%s958 + $0x29] sm:$0xff]
          %v1170 = vld [vmem:[%s958 + $0x31] sm:$0xff]
          %v1171 = vld [vmem:[%s958 + $0x49] sm:$0xff]
          %v1172 = vld [vmem:[%s958 + $0x51] sm:$0xff]
          %v1173 = vld [vmem:[%s958 + $0x69] sm:$0xff]
          %v1174 = vld [vmem:[%s958 + $0x71] sm:$0xff]
          %v1175 = vld [vmem:[%s958 + $0x89] sm:$0xff]
          %v1176 = vld [vmem:[%s958 + $0x91] sm:$0xff]
          %v1177 = vld [vmem:[%s958 + $0xa9] sm:$0xff]
          %v1178 = vld [vmem:[%s958 + $0xb1] sm:$0xff]
          %v1179 = vld [vmem:[%s958 + $0xc9] sm:$0xff]
          %v1180 = vld [vmem:[%s958 + $0xd1] sm:$0xff]
          %v1181 = vld [vmem:[%s958 + $0xe9] sm:$0xff]
          %v1182 = vld [vmem:[%s958 + $0xf1] sm:$0xff]
          %v1183 = vlaneseq
          %v1184 = vshrl.u32 %v1183, 7
          %v1185 = vsub.s32 4, %v1184
          %v1186 = vrot.slane %v573, %v1185
          %v1187 = vmul.f32 %v1167, %v1186
          %v1188 = vmul.f32 %v1168, %v1186
          %v1189 = vmul.f32 %v1169, %v1186
          %v1190 = vmul.f32 %v1170, %v1186
          %v1191 = vmul.f32 %v1171, %v1186
          %v1192 = vmul.f32 %v1172, %v1186
          %v1193 = vmul.f32 %v1173, %v1186
          %v1194 = vmul.f32 %v1174, %v1186
          %v1195 = vmul.f32 %v1175, %v1186
          %v1196 = vmul.f32 %v1176, %v1186
          %v1197 = vmul.f32 %v1177, %v1186
          %v1198 = vmul.f32 %v1178, %v1186
          %v1199 = vmul.f32 %v1179, %v1186
          %v1200 = vmul.f32 %v1180, %v1186
          %v1201 = vmul.f32 %v1181, %v1186
          %v1202 = vmul.f32 %v1182, %v1186
          %v1203 = vadd.f32 %v1151, %v1187
          %v1204 = vadd.f32 %v1152, %v1188
          %v1205 = vadd.f32 %v1153, %v1189
          %v1206 = vadd.f32 %v1154, %v1190
          %v1207 = vadd.f32 %v1155, %v1191
          %v1208 = vadd.f32 %v1156, %v1192
          %v1209 = vadd.f32 %v1157, %v1193
          %v1210 = vadd.f32 %v1158, %v1194
          %v1211 = vadd.f32 %v1159, %v1195
          %v1212 = vadd.f32 %v1160, %v1196
          %v1213 = vadd.f32 %v1161, %v1197
          %v1214 = vadd.f32 %v1162, %v1198
          %v1215 = vadd.f32 %v1163, %v1199
          %v1216 = vadd.f32 %v1164, %v1200
          %v1217 = vadd.f32 %v1165, %v1201
          %v1218 = vadd.f32 %v1166, %v1202
          %v1219 = vld [vmem:[%s958 + $0xa] sm:$0xff]
          %v1220 = vld [vmem:[%s958 + $0x12] sm:$0xff]
          %v1221 = vld [vmem:[%s958 + $0x2a] sm:$0xff]
          %v1222 = vld [vmem:[%s958 + $0x32] sm:$0xff]
          %v1223 = vld [vmem:[%s958 + $0x4a] sm:$0xff]
          %v1224 = vld [vmem:[%s958 + $0x52] sm:$0xff]
          %v1225 = vld [vmem:[%s958 + $0x6a] sm:$0xff]
          %v1226 = vld [vmem:[%s958 + $0x72] sm:$0xff]
          %v1227 = vld [vmem:[%s958 + $0x8a] sm:$0xff]
          %v1228 = vld [vmem:[%s958 + $0x92] sm:$0xff]
          %v1229 = vld [vmem:[%s958 + $0xaa] sm:$0xff]
          %v1230 = vld [vmem:[%s958 + $0xb2] sm:$0xff]
          %v1231 = vld [vmem:[%s958 + $0xca] sm:$0xff]
          %v1232 = vld [vmem:[%s958 + $0xd2] sm:$0xff]
          %v1233 = vld [vmem:[%s958 + $0xea] sm:$0xff]
          %v1234 = vld [vmem:[%s958 + $0xf2] sm:$0xff]
          %v1235 = vlaneseq
          %v1236 = vshrl.u32 %v1235, 7
          %v1237 = vsub.s32 5, %v1236
          %v1238 = vrot.slane %v573, %v1237
          %v1239 = vmul.f32 %v1219, %v1238
          %v1240 = vmul.f32 %v1220, %v1238
          %v1241 = vmul.f32 %v1221, %v1238
          %v1242 = vmul.f32 %v1222, %v1238
          %v1243 = vmul.f32 %v1223, %v1238
          %v1244 = vmul.f32 %v1224, %v1238
          %v1245 = vmul.f32 %v1225, %v1238
          %v1246 = vmul.f32 %v1226, %v1238
          %v1247 = vmul.f32 %v1227, %v1238
          %v1248 = vmul.f32 %v1228, %v1238
          %v1249 = vmul.f32 %v1229, %v1238
          %v1250 = vmul.f32 %v1230, %v1238
          %v1251 = vmul.f32 %v1231, %v1238
          %v1252 = vmul.f32 %v1232, %v1238
          %v1253 = vmul.f32 %v1233, %v1238
          %v1254 = vmul.f32 %v1234, %v1238
          %v1255 = vadd.f32 %v1203, %v1239
          %v1256 = vadd.f32 %v1204, %v1240
          %v1257 = vadd.f32 %v1205, %v1241
          %v1258 = vadd.f32 %v1206, %v1242
          %v1259 = vadd.f32 %v1207, %v1243
          %v1260 = vadd.f32 %v1208, %v1244
          %v1261 = vadd.f32 %v1209, %v1245
          %v1262 = vadd.f32 %v1210, %v1246
          %v1263 = vadd.f32 %v1211, %v1247
          %v1264 = vadd.f32 %v1212, %v1248
          %v1265 = vadd.f32 %v1213, %v1249
          %v1266 = vadd.f32 %v1214, %v1250
          %v1267 = vadd.f32 %v1215, %v1251
          %v1268 = vadd.f32 %v1216, %v1252
          %v1269 = vadd.f32 %v1217, %v1253
          %v1270 = vadd.f32 %v1218, %v1254
          %v1271 = vld [vmem:[%s958 + $0xb] sm:$0xff]
          %v1272 = vld [vmem:[%s958 + $0x13] sm:$0xff]
          %v1273 = vld [vmem:[%s958 + $0x2b] sm:$0xff]
          %v1274 = vld [vmem:[%s958 + $0x33] sm:$0xff]
          %v1275 = vld [vmem:[%s958 + $0x4b] sm:$0xff]
          %v1276 = vld [vmem:[%s958 + $0x53] sm:$0xff]
          %v1277 = vld [vmem:[%s958 + $0x6b] sm:$0xff]
          %v1278 = vld [vmem:[%s958 + $0x73] sm:$0xff]
          %v1279 = vld [vmem:[%s958 + $0x8b] sm:$0xff]
          %v1280 = vld [vmem:[%s958 + $0x93] sm:$0xff]
          %v1281 = vld [vmem:[%s958 + $0xab] sm:$0xff]
          %v1282 = vld [vmem:[%s958 + $0xb3] sm:$0xff]
          %v1283 = vld [vmem:[%s958 + $0xcb] sm:$0xff]
          %v1284 = vld [vmem:[%s958 + $0xd3] sm:$0xff]
          %v1285 = vld [vmem:[%s958 + $0xeb] sm:$0xff]
          %v1286 = vld [vmem:[%s958 + $0xf3] sm:$0xff]
          %v1287 = vlaneseq
          %v1288 = vshrl.u32 %v1287, 7
          %v1289 = vsub.s32 6, %v1288
          %v1290 = vrot.slane %v573, %v1289
          %v1291 = vmul.f32 %v1271, %v1290
          %v1292 = vmul.f32 %v1272, %v1290
          %v1293 = vmul.f32 %v1273, %v1290
          %v1294 = vmul.f32 %v1274, %v1290
          %v1295 = vmul.f32 %v1275, %v1290
          %v1296 = vmul.f32 %v1276, %v1290
          %v1297 = vmul.f32 %v1277, %v1290
          %v1298 = vmul.f32 %v1278, %v1290
          %v1299 = vmul.f32 %v1279, %v1290
          %v1300 = vmul.f32 %v1280, %v1290
          %v1301 = vmul.f32 %v1281, %v1290
          %v1302 = vmul.f32 %v1282, %v1290
          %v1303 = vmul.f32 %v1283, %v1290
          %v1304 = vmul.f32 %v1284, %v1290
          %v1305 = vmul.f32 %v1285, %v1290
          %v1306 = vmul.f32 %v1286, %v1290
          %v1307 = vadd.f32 %v1255, %v1291
          %v1308 = vadd.f32 %v1256, %v1292
          %v1309 = vadd.f32 %v1257, %v1293
          %v1310 = vadd.f32 %v1258, %v1294
          %v1311 = vadd.f32 %v1259, %v1295
          %v1312 = vadd.f32 %v1260, %v1296
          %v1313 = vadd.f32 %v1261, %v1297
          %v1314 = vadd.f32 %v1262, %v1298
          %v1315 = vadd.f32 %v1263, %v1299
          %v1316 = vadd.f32 %v1264, %v1300
          %v1317 = vadd.f32 %v1265, %v1301
          %v1318 = vadd.f32 %v1266, %v1302
          %v1319 = vadd.f32 %v1267, %v1303
          %v1320 = vadd.f32 %v1268, %v1304
          %v1321 = vadd.f32 %v1269, %v1305
          %v1322 = vadd.f32 %v1270, %v1306
          %s1323 = sadd.s32 %s589, 2
          %s1324 = smul.u32 %s1323, 32
          %s1325 = scalar_lea.vmem [#allocation2], %s1324
          %v1326 = vld [vmem:[%s1325 + $0x5] sm:$0xff]
          %v1327 = vld [vmem:[%s1325 + $0xd] sm:$0xff]
          %v1328 = vld [vmem:[%s1325 + $0x25] sm:$0xff]
          %v1329 = vld [vmem:[%s1325 + $0x2d] sm:$0xff]
          %v1330 = vld [vmem:[%s1325 + $0x45] sm:$0xff]
          %v1331 = vld [vmem:[%s1325 + $0x4d] sm:$0xff]
          %v1332 = vld [vmem:[%s1325 + $0x65] sm:$0xff]
          %v1333 = vld [vmem:[%s1325 + $0x6d] sm:$0xff]
          %v1334 = vld [vmem:[%s1325 + $0x85] sm:$0xff]
          %v1335 = vld [vmem:[%s1325 + $0x8d] sm:$0xff]
          %v1336 = vld [vmem:[%s1325 + $0xa5] sm:$0xff]
          %v1337 = vld [vmem:[%s1325 + $0xad] sm:$0xff]
          %v1338 = vld [vmem:[%s1325 + $0xc5] sm:$0xff]
          %v1339 = vld [vmem:[%s1325 + $0xcd] sm:$0xff]
          %v1340 = vld [vmem:[%s1325 + $0xe5] sm:$0xff]
          %v1341 = vld [vmem:[%s1325 + $0xed] sm:$0xff]
          %v1342 = vlaneseq
          %v1343 = vshrl.u32 %v1342, 7
          %v1344 = vsub.s32 0, %v1343
          %v1345 = vrot.slane %v574, %v1344
          %v1346 = vmul.f32 %v1326, %v1345
          %v1347 = vmul.f32 %v1327, %v1345
          %v1348 = vmul.f32 %v1328, %v1345
          %v1349 = vmul.f32 %v1329, %v1345
          %v1350 = vmul.f32 %v1330, %v1345
          %v1351 = vmul.f32 %v1331, %v1345
          %v1352 = vmul.f32 %v1332, %v1345
          %v1353 = vmul.f32 %v1333, %v1345
          %v1354 = vmul.f32 %v1334, %v1345
          %v1355 = vmul.f32 %v1335, %v1345
          %v1356 = vmul.f32 %v1336, %v1345
          %v1357 = vmul.f32 %v1337, %v1345
          %v1358 = vmul.f32 %v1338, %v1345
          %v1359 = vmul.f32 %v1339, %v1345
          %v1360 = vmul.f32 %v1340, %v1345
          %v1361 = vmul.f32 %v1341, %v1345
          %v1362 = vadd.f32 %v1307, %v1346
          %v1363 = vadd.f32 %v1308, %v1347
          %v1364 = vadd.f32 %v1309, %v1348
          %v1365 = vadd.f32 %v1310, %v1349
          %v1366 = vadd.f32 %v1311, %v1350
          %v1367 = vadd.f32 %v1312, %v1351
          %v1368 = vadd.f32 %v1313, %v1352
          %v1369 = vadd.f32 %v1314, %v1353
          %v1370 = vadd.f32 %v1315, %v1354
          %v1371 = vadd.f32 %v1316, %v1355
          %v1372 = vadd.f32 %v1317, %v1356
          %v1373 = vadd.f32 %v1318, %v1357
          %v1374 = vadd.f32 %v1319, %v1358
          %v1375 = vadd.f32 %v1320, %v1359
          %v1376 = vadd.f32 %v1321, %v1360
          %v1377 = vadd.f32 %v1322, %v1361
          %v1378 = vld [vmem:[%s1325 + $0x6] sm:$0xff]
          %v1379 = vld [vmem:[%s1325 + $0xe] sm:$0xff]
          %v1380 = vld [vmem:[%s1325 + $0x26] sm:$0xff]
          %v1381 = vld [vmem:[%s1325 + $0x2e] sm:$0xff]
          %v1382 = vld [vmem:[%s1325 + $0x46] sm:$0xff]
          %v1383 = vld [vmem:[%s1325 + $0x4e] sm:$0xff]
          %v1384 = vld [vmem:[%s1325 + $0x66] sm:$0xff]
          %v1385 = vld [vmem:[%s1325 + $0x6e] sm:$0xff]
          %v1386 = vld [vmem:[%s1325 + $0x86] sm:$0xff]
          %v1387 = vld [vmem:[%s1325 + $0x8e] sm:$0xff]
          %v1388 = vld [vmem:[%s1325 + $0xa6] sm:$0xff]
          %v1389 = vld [vmem:[%s1325 + $0xae] sm:$0xff]
          %v1390 = vld [vmem:[%s1325 + $0xc6] sm:$0xff]
          %v1391 = vld [vmem:[%s1325 + $0xce] sm:$0xff]
          %v1392 = vld [vmem:[%s1325 + $0xe6] sm:$0xff]
          %v1393 = vld [vmem:[%s1325 + $0xee] sm:$0xff]
          %v1394 = vlaneseq
          %v1395 = vshrl.u32 %v1394, 7
          %v1396 = vsub.s32 1, %v1395
          %v1397 = vrot.slane %v574, %v1396
          %v1398 = vmul.f32 %v1378, %v1397
          %v1399 = vmul.f32 %v1379, %v1397
          %v1400 = vmul.f32 %v1380, %v1397
          %v1401 = vmul.f32 %v1381, %v1397
          %v1402 = vmul.f32 %v1382, %v1397
          %v1403 = vmul.f32 %v1383, %v1397
          %v1404 = vmul.f32 %v1384, %v1397
          %v1405 = vmul.f32 %v1385, %v1397
          %v1406 = vmul.f32 %v1386, %v1397
          %v1407 = vmul.f32 %v1387, %v1397
          %v1408 = vmul.f32 %v1388, %v1397
          %v1409 = vmul.f32 %v1389, %v1397
          %v1410 = vmul.f32 %v1390, %v1397
          %v1411 = vmul.f32 %v1391, %v1397
          %v1412 = vmul.f32 %v1392, %v1397
          %v1413 = vmul.f32 %v1393, %v1397
          %v1414 = vadd.f32 %v1362, %v1398
          %v1415 = vadd.f32 %v1363, %v1399
          %v1416 = vadd.f32 %v1364, %v1400
          %v1417 = vadd.f32 %v1365, %v1401
          %v1418 = vadd.f32 %v1366, %v1402
          %v1419 = vadd.f32 %v1367, %v1403
          %v1420 = vadd.f32 %v1368, %v1404
          %v1421 = vadd.f32 %v1369, %v1405
          %v1422 = vadd.f32 %v1370, %v1406
          %v1423 = vadd.f32 %v1371, %v1407
          %v1424 = vadd.f32 %v1372, %v1408
          %v1425 = vadd.f32 %v1373, %v1409
          %v1426 = vadd.f32 %v1374, %v1410
          %v1427 = vadd.f32 %v1375, %v1411
          %v1428 = vadd.f32 %v1376, %v1412
          %v1429 = vadd.f32 %v1377, %v1413
          %v1430 = vld [vmem:[%s1325 + $0x7] sm:$0xff]
          %v1431 = vld [vmem:[%s1325 + $0xf] sm:$0xff]
          %v1432 = vld [vmem:[%s1325 + $0x27] sm:$0xff]
          %v1433 = vld [vmem:[%s1325 + $0x2f] sm:$0xff]
          %v1434 = vld [vmem:[%s1325 + $0x47] sm:$0xff]
          %v1435 = vld [vmem:[%s1325 + $0x4f] sm:$0xff]
          %v1436 = vld [vmem:[%s1325 + $0x67] sm:$0xff]
          %v1437 = vld [vmem:[%s1325 + $0x6f] sm:$0xff]
          %v1438 = vld [vmem:[%s1325 + $0x87] sm:$0xff]
          %v1439 = vld [vmem:[%s1325 + $0x8f] sm:$0xff]
          %v1440 = vld [vmem:[%s1325 + $0xa7] sm:$0xff]
          %v1441 = vld [vmem:[%s1325 + $0xaf] sm:$0xff]
          %v1442 = vld [vmem:[%s1325 + $0xc7] sm:$0xff]
          %v1443 = vld [vmem:[%s1325 + $0xcf] sm:$0xff]
          %v1444 = vld [vmem:[%s1325 + $0xe7] sm:$0xff]
          %v1445 = vld [vmem:[%s1325 + $0xef] sm:$0xff]
          %v1446 = vlaneseq
          %v1447 = vshrl.u32 %v1446, 7
          %v1448 = vsub.s32 2, %v1447
          %v1449 = vrot.slane %v574, %v1448
          %v1450 = vmul.f32 %v1430, %v1449
          %v1451 = vmul.f32 %v1431, %v1449
          %v1452 = vmul.f32 %v1432, %v1449
          %v1453 = vmul.f32 %v1433, %v1449
          %v1454 = vmul.f32 %v1434, %v1449
          %v1455 = vmul.f32 %v1435, %v1449
          %v1456 = vmul.f32 %v1436, %v1449
          %v1457 = vmul.f32 %v1437, %v1449
          %v1458 = vmul.f32 %v1438, %v1449
          %v1459 = vmul.f32 %v1439, %v1449
          %v1460 = vmul.f32 %v1440, %v1449
          %v1461 = vmul.f32 %v1441, %v1449
          %v1462 = vmul.f32 %v1442, %v1449
          %v1463 = vmul.f32 %v1443, %v1449
          %v1464 = vmul.f32 %v1444, %v1449
          %v1465 = vmul.f32 %v1445, %v1449
          %v1466 = vadd.f32 %v1414, %v1450
          %v1467 = vadd.f32 %v1415, %v1451
          %v1468 = vadd.f32 %v1416, %v1452
          %v1469 = vadd.f32 %v1417, %v1453
          %v1470 = vadd.f32 %v1418, %v1454
          %v1471 = vadd.f32 %v1419, %v1455
          %v1472 = vadd.f32 %v1420, %v1456
          %v1473 = vadd.f32 %v1421, %v1457
          %v1474 = vadd.f32 %v1422, %v1458
          %v1475 = vadd.f32 %v1423, %v1459
          %v1476 = vadd.f32 %v1424, %v1460
          %v1477 = vadd.f32 %v1425, %v1461
          %v1478 = vadd.f32 %v1426, %v1462
          %v1479 = vadd.f32 %v1427, %v1463
          %v1480 = vadd.f32 %v1428, %v1464
          %v1481 = vadd.f32 %v1429, %v1465
          %v1482 = vld [vmem:[%s1325 + $0x8] sm:$0xff]
          %v1483 = vld [vmem:[%s1325 + $0x10] sm:$0xff]
          %v1484 = vld [vmem:[%s1325 + $0x28] sm:$0xff]
          %v1485 = vld [vmem:[%s1325 + $0x30] sm:$0xff]
          %v1486 = vld [vmem:[%s1325 + $0x48] sm:$0xff]
          %v1487 = vld [vmem:[%s1325 + $0x50] sm:$0xff]
          %v1488 = vld [vmem:[%s1325 + $0x68] sm:$0xff]
          %v1489 = vld [vmem:[%s1325 + $0x70] sm:$0xff]
          %v1490 = vld [vmem:[%s1325 + $0x88] sm:$0xff]
          %v1491 = vld [vmem:[%s1325 + $0x90] sm:$0xff]
          %v1492 = vld [vmem:[%s1325 + $0xa8] sm:$0xff]
          %v1493 = vld [vmem:[%s1325 + $0xb0] sm:$0xff]
          %v1494 = vld [vmem:[%s1325 + $0xc8] sm:$0xff]
          %v1495 = vld [vmem:[%s1325 + $0xd0] sm:$0xff]
          %v1496 = vld [vmem:[%s1325 + $0xe8] sm:$0xff]
          %v1497 = vld [vmem:[%s1325 + $0xf0] sm:$0xff]
          %v1498 = vlaneseq
          %v1499 = vshrl.u32 %v1498, 7
          %v1500 = vsub.s32 3, %v1499
          %v1501 = vrot.slane %v574, %v1500
          %v1502 = vmul.f32 %v1482, %v1501
          %v1503 = vmul.f32 %v1483, %v1501
          %v1504 = vmul.f32 %v1484, %v1501
          %v1505 = vmul.f32 %v1485, %v1501
          %v1506 = vmul.f32 %v1486, %v1501
          %v1507 = vmul.f32 %v1487, %v1501
          %v1508 = vmul.f32 %v1488, %v1501
          %v1509 = vmul.f32 %v1489, %v1501
          %v1510 = vmul.f32 %v1490, %v1501
          %v1511 = vmul.f32 %v1491, %v1501
          %v1512 = vmul.f32 %v1492, %v1501
          %v1513 = vmul.f32 %v1493, %v1501
          %v1514 = vmul.f32 %v1494, %v1501
          %v1515 = vmul.f32 %v1495, %v1501
          %v1516 = vmul.f32 %v1496, %v1501
          %v1517 = vmul.f32 %v1497, %v1501
          %v1518 = vadd.f32 %v1466, %v1502
          %v1519 = vadd.f32 %v1467, %v1503
          %v1520 = vadd.f32 %v1468, %v1504
          %v1521 = vadd.f32 %v1469, %v1505
          %v1522 = vadd.f32 %v1470, %v1506
          %v1523 = vadd.f32 %v1471, %v1507
          %v1524 = vadd.f32 %v1472, %v1508
          %v1525 = vadd.f32 %v1473, %v1509
          %v1526 = vadd.f32 %v1474, %v1510
          %v1527 = vadd.f32 %v1475, %v1511
          %v1528 = vadd.f32 %v1476, %v1512
          %v1529 = vadd.f32 %v1477, %v1513
          %v1530 = vadd.f32 %v1478, %v1514
          %v1531 = vadd.f32 %v1479, %v1515
          %v1532 = vadd.f32 %v1480, %v1516
          %v1533 = vadd.f32 %v1481, %v1517
          %v1534 = vld [vmem:[%s1325 + $0x9] sm:$0xff]
          %v1535 = vld [vmem:[%s1325 + $0x11] sm:$0xff]
          %v1536 = vld [vmem:[%s1325 + $0x29] sm:$0xff]
          %v1537 = vld [vmem:[%s1325 + $0x31] sm:$0xff]
          %v1538 = vld [vmem:[%s1325 + $0x49] sm:$0xff]
          %v1539 = vld [vmem:[%s1325 + $0x51] sm:$0xff]
          %v1540 = vld [vmem:[%s1325 + $0x69] sm:$0xff]
          %v1541 = vld [vmem:[%s1325 + $0x71] sm:$0xff]
          %v1542 = vld [vmem:[%s1325 + $0x89] sm:$0xff]
          %v1543 = vld [vmem:[%s1325 + $0x91] sm:$0xff]
          %v1544 = vld [vmem:[%s1325 + $0xa9] sm:$0xff]
          %v1545 = vld [vmem:[%s1325 + $0xb1] sm:$0xff]
          %v1546 = vld [vmem:[%s1325 + $0xc9] sm:$0xff]
          %v1547 = vld [vmem:[%s1325 + $0xd1] sm:$0xff]
          %v1548 = vld [vmem:[%s1325 + $0xe9] sm:$0xff]
          %v1549 = vld [vmem:[%s1325 + $0xf1] sm:$0xff]
          %v1550 = vlaneseq
          %v1551 = vshrl.u32 %v1550, 7
          %v1552 = vsub.s32 4, %v1551
          %v1553 = vrot.slane %v574, %v1552
          %v1554 = vmul.f32 %v1534, %v1553
          %v1555 = vmul.f32 %v1535, %v1553
          %v1556 = vmul.f32 %v1536, %v1553
          %v1557 = vmul.f32 %v1537, %v1553
          %v1558 = vmul.f32 %v1538, %v1553
          %v1559 = vmul.f32 %v1539, %v1553
          %v1560 = vmul.f32 %v1540, %v1553
          %v1561 = vmul.f32 %v1541, %v1553
          %v1562 = vmul.f32 %v1542, %v1553
          %v1563 = vmul.f32 %v1543, %v1553
          %v1564 = vmul.f32 %v1544, %v1553
          %v1565 = vmul.f32 %v1545, %v1553
          %v1566 = vmul.f32 %v1546, %v1553
          %v1567 = vmul.f32 %v1547, %v1553
          %v1568 = vmul.f32 %v1548, %v1553
          %v1569 = vmul.f32 %v1549, %v1553
          %v1570 = vadd.f32 %v1518, %v1554
          %v1571 = vadd.f32 %v1519, %v1555
          %v1572 = vadd.f32 %v1520, %v1556
          %v1573 = vadd.f32 %v1521, %v1557
          %v1574 = vadd.f32 %v1522, %v1558
          %v1575 = vadd.f32 %v1523, %v1559
          %v1576 = vadd.f32 %v1524, %v1560
          %v1577 = vadd.f32 %v1525, %v1561
          %v1578 = vadd.f32 %v1526, %v1562
          %v1579 = vadd.f32 %v1527, %v1563
          %v1580 = vadd.f32 %v1528, %v1564
          %v1581 = vadd.f32 %v1529, %v1565
          %v1582 = vadd.f32 %v1530, %v1566
          %v1583 = vadd.f32 %v1531, %v1567
          %v1584 = vadd.f32 %v1532, %v1568
          %v1585 = vadd.f32 %v1533, %v1569
          %v1586 = vld [vmem:[%s1325 + $0xa] sm:$0xff]
          %v1587 = vld [vmem:[%s1325 + $0x12] sm:$0xff]
          %v1588 = vld [vmem:[%s1325 + $0x2a] sm:$0xff]
          %v1589 = vld [vmem:[%s1325 + $0x32] sm:$0xff]
          %v1590 = vld [vmem:[%s1325 + $0x4a] sm:$0xff]
          %v1591 = vld [vmem:[%s1325 + $0x52] sm:$0xff]
          %v1592 = vld [vmem:[%s1325 + $0x6a] sm:$0xff]
          %v1593 = vld [vmem:[%s1325 + $0x72] sm:$0xff]
          %v1594 = vld [vmem:[%s1325 + $0x8a] sm:$0xff]
          %v1595 = vld [vmem:[%s1325 + $0x92] sm:$0xff]
          %v1596 = vld [vmem:[%s1325 + $0xaa] sm:$0xff]
          %v1597 = vld [vmem:[%s1325 + $0xb2] sm:$0xff]
          %v1598 = vld [vmem:[%s1325 + $0xca] sm:$0xff]
          %v1599 = vld [vmem:[%s1325 + $0xd2] sm:$0xff]
          %v1600 = vld [vmem:[%s1325 + $0xea] sm:$0xff]
          %v1601 = vld [vmem:[%s1325 + $0xf2] sm:$0xff]
          %v1602 = vlaneseq
          %v1603 = vshrl.u32 %v1602, 7
          %v1604 = vsub.s32 5, %v1603
          %v1605 = vrot.slane %v574, %v1604
          %v1606 = vmul.f32 %v1586, %v1605
          %v1607 = vmul.f32 %v1587, %v1605
          %v1608 = vmul.f32 %v1588, %v1605
          %v1609 = vmul.f32 %v1589, %v1605
          %v1610 = vmul.f32 %v1590, %v1605
          %v1611 = vmul.f32 %v1591, %v1605
          %v1612 = vmul.f32 %v1592, %v1605
          %v1613 = vmul.f32 %v1593, %v1605
          %v1614 = vmul.f32 %v1594, %v1605
          %v1615 = vmul.f32 %v1595, %v1605
          %v1616 = vmul.f32 %v1596, %v1605
          %v1617 = vmul.f32 %v1597, %v1605
          %v1618 = vmul.f32 %v1598, %v1605
          %v1619 = vmul.f32 %v1599, %v1605
          %v1620 = vmul.f32 %v1600, %v1605
          %v1621 = vmul.f32 %v1601, %v1605
          %v1622 = vadd.f32 %v1570, %v1606
          %v1623 = vadd.f32 %v1571, %v1607
          %v1624 = vadd.f32 %v1572, %v1608
          %v1625 = vadd.f32 %v1573, %v1609
          %v1626 = vadd.f32 %v1574, %v1610
          %v1627 = vadd.f32 %v1575, %v1611
          %v1628 = vadd.f32 %v1576, %v1612
          %v1629 = vadd.f32 %v1577, %v1613
          %v1630 = vadd.f32 %v1578, %v1614
          %v1631 = vadd.f32 %v1579, %v1615
          %v1632 = vadd.f32 %v1580, %v1616
          %v1633 = vadd.f32 %v1581, %v1617
          %v1634 = vadd.f32 %v1582, %v1618
          %v1635 = vadd.f32 %v1583, %v1619
          %v1636 = vadd.f32 %v1584, %v1620
          %v1637 = vadd.f32 %v1585, %v1621
          %v1638 = vld [vmem:[%s1325 + $0xb] sm:$0xff]
          %v1639 = vld [vmem:[%s1325 + $0x13] sm:$0xff]
          %v1640 = vld [vmem:[%s1325 + $0x2b] sm:$0xff]
          %v1641 = vld [vmem:[%s1325 + $0x33] sm:$0xff]
          %v1642 = vld [vmem:[%s1325 + $0x4b] sm:$0xff]
          %v1643 = vld [vmem:[%s1325 + $0x53] sm:$0xff]
          %v1644 = vld [vmem:[%s1325 + $0x6b] sm:$0xff]
          %v1645 = vld [vmem:[%s1325 + $0x73] sm:$0xff]
          %v1646 = vld [vmem:[%s1325 + $0x8b] sm:$0xff]
          %v1647 = vld [vmem:[%s1325 + $0x93] sm:$0xff]
          %v1648 = vld [vmem:[%s1325 + $0xab] sm:$0xff]
          %v1649 = vld [vmem:[%s1325 + $0xb3] sm:$0xff]
          %v1650 = vld [vmem:[%s1325 + $0xcb] sm:$0xff]
          %v1651 = vld [vmem:[%s1325 + $0xd3] sm:$0xff]
          %v1652 = vld [vmem:[%s1325 + $0xeb] sm:$0xff]
          %v1653 = vld [vmem:[%s1325 + $0xf3] sm:$0xff]
          %v1654 = vlaneseq
          %v1655 = vshrl.u32 %v1654, 7
          %v1656 = vsub.s32 6, %v1655
          %v1657 = vrot.slane %v574, %v1656
          %v1658 = vmul.f32 %v1638, %v1657
          %v1659 = vmul.f32 %v1639, %v1657
          %v1660 = vmul.f32 %v1640, %v1657
          %v1661 = vmul.f32 %v1641, %v1657
          %v1662 = vmul.f32 %v1642, %v1657
          %v1663 = vmul.f32 %v1643, %v1657
          %v1664 = vmul.f32 %v1644, %v1657
          %v1665 = vmul.f32 %v1645, %v1657
          %v1666 = vmul.f32 %v1646, %v1657
          %v1667 = vmul.f32 %v1647, %v1657
          %v1668 = vmul.f32 %v1648, %v1657
          %v1669 = vmul.f32 %v1649, %v1657
          %v1670 = vmul.f32 %v1650, %v1657
          %v1671 = vmul.f32 %v1651, %v1657
          %v1672 = vmul.f32 %v1652, %v1657
          %v1673 = vmul.f32 %v1653, %v1657
          %v1674 = vadd.f32 %v1622, %v1658
          %v1675 = vadd.f32 %v1623, %v1659
          %v1676 = vadd.f32 %v1624, %v1660
          %v1677 = vadd.f32 %v1625, %v1661
          %v1678 = vadd.f32 %v1626, %v1662
          %v1679 = vadd.f32 %v1627, %v1663
          %v1680 = vadd.f32 %v1628, %v1664
          %v1681 = vadd.f32 %v1629, %v1665
          %v1682 = vadd.f32 %v1630, %v1666
          %v1683 = vadd.f32 %v1631, %v1667
          %v1684 = vadd.f32 %v1632, %v1668
          %v1685 = vadd.f32 %v1633, %v1669
          %v1686 = vadd.f32 %v1634, %v1670
          %v1687 = vadd.f32 %v1635, %v1671
          %v1688 = vadd.f32 %v1636, %v1672
          %v1689 = vadd.f32 %v1637, %v1673
          %s1690 = sadd.s32 %s589, 3
          %s1691 = smul.u32 %s1690, 32
          %s1692 = scalar_lea.vmem [#allocation2], %s1691
          %v1693 = vld [vmem:[%s1692 + $0x5] sm:$0xff]
          %v1694 = vld [vmem:[%s1692 + $0xd] sm:$0xff]
          %v1695 = vld [vmem:[%s1692 + $0x25] sm:$0xff]
          %v1696 = vld [vmem:[%s1692 + $0x2d] sm:$0xff]
          %v1697 = vld [vmem:[%s1692 + $0x45] sm:$0xff]
          %v1698 = vld [vmem:[%s1692 + $0x4d] sm:$0xff]
          %v1699 = vld [vmem:[%s1692 + $0x65] sm:$0xff]
          %v1700 = vld [vmem:[%s1692 + $0x6d] sm:$0xff]
          %v1701 = vld [vmem:[%s1692 + $0x85] sm:$0xff]
          %v1702 = vld [vmem:[%s1692 + $0x8d] sm:$0xff]
          %v1703 = vld [vmem:[%s1692 + $0xa5] sm:$0xff]
          %v1704 = vld [vmem:[%s1692 + $0xad] sm:$0xff]
          %v1705 = vld [vmem:[%s1692 + $0xc5] sm:$0xff]
          %v1706 = vld [vmem:[%s1692 + $0xcd] sm:$0xff]
          %v1707 = vld [vmem:[%s1692 + $0xe5] sm:$0xff]
          %v1708 = vld [vmem:[%s1692 + $0xed] sm:$0xff]
          %v1709 = vlaneseq
          %v1710 = vshrl.u32 %v1709, 7
          %v1711 = vsub.s32 0, %v1710
          %v1712 = vrot.slane %v575, %v1711
          %v1713 = vmul.f32 %v1693, %v1712
          %v1714 = vmul.f32 %v1694, %v1712
          %v1715 = vmul.f32 %v1695, %v1712
          %v1716 = vmul.f32 %v1696, %v1712
          %v1717 = vmul.f32 %v1697, %v1712
          %v1718 = vmul.f32 %v1698, %v1712
          %v1719 = vmul.f32 %v1699, %v1712
          %v1720 = vmul.f32 %v1700, %v1712
          %v1721 = vmul.f32 %v1701, %v1712
          %v1722 = vmul.f32 %v1702, %v1712
          %v1723 = vmul.f32 %v1703, %v1712
          %v1724 = vmul.f32 %v1704, %v1712
          %v1725 = vmul.f32 %v1705, %v1712
          %v1726 = vmul.f32 %v1706, %v1712
          %v1727 = vmul.f32 %v1707, %v1712
          %v1728 = vmul.f32 %v1708, %v1712
          %v1729 = vadd.f32 %v1674, %v1713
          %v1730 = vadd.f32 %v1675, %v1714
          %v1731 = vadd.f32 %v1676, %v1715
          %v1732 = vadd.f32 %v1677, %v1716
          %v1733 = vadd.f32 %v1678, %v1717
          %v1734 = vadd.f32 %v1679, %v1718
          %v1735 = vadd.f32 %v1680, %v1719
          %v1736 = vadd.f32 %v1681, %v1720
          %v1737 = vadd.f32 %v1682, %v1721
          %v1738 = vadd.f32 %v1683, %v1722
          %v1739 = vadd.f32 %v1684, %v1723
          %v1740 = vadd.f32 %v1685, %v1724
          %v1741 = vadd.f32 %v1686, %v1725
          %v1742 = vadd.f32 %v1687, %v1726
          %v1743 = vadd.f32 %v1688, %v1727
          %v1744 = vadd.f32 %v1689, %v1728
          %v1745 = vld [vmem:[%s1692 + $0x6] sm:$0xff]
          %v1746 = vld [vmem:[%s1692 + $0xe] sm:$0xff]
          %v1747 = vld [vmem:[%s1692 + $0x26] sm:$0xff]
          %v1748 = vld [vmem:[%s1692 + $0x2e] sm:$0xff]
          %v1749 = vld [vmem:[%s1692 + $0x46] sm:$0xff]
          %v1750 = vld [vmem:[%s1692 + $0x4e] sm:$0xff]
          %v1751 = vld [vmem:[%s1692 + $0x66] sm:$0xff]
          %v1752 = vld [vmem:[%s1692 + $0x6e] sm:$0xff]
          %v1753 = vld [vmem:[%s1692 + $0x86] sm:$0xff]
          %v1754 = vld [vmem:[%s1692 + $0x8e] sm:$0xff]
          %v1755 = vld [vmem:[%s1692 + $0xa6] sm:$0xff]
          %v1756 = vld [vmem:[%s1692 + $0xae] sm:$0xff]
          %v1757 = vld [vmem:[%s1692 + $0xc6] sm:$0xff]
          %v1758 = vld [vmem:[%s1692 + $0xce] sm:$0xff]
          %v1759 = vld [vmem:[%s1692 + $0xe6] sm:$0xff]
          %v1760 = vld [vmem:[%s1692 + $0xee] sm:$0xff]
          %v1761 = vlaneseq
          %v1762 = vshrl.u32 %v1761, 7
          %v1763 = vsub.s32 1, %v1762
          %v1764 = vrot.slane %v575, %v1763
          %v1765 = vmul.f32 %v1745, %v1764
          %v1766 = vmul.f32 %v1746, %v1764
          %v1767 = vmul.f32 %v1747, %v1764
          %v1768 = vmul.f32 %v1748, %v1764
          %v1769 = vmul.f32 %v1749, %v1764
          %v1770 = vmul.f32 %v1750, %v1764
          %v1771 = vmul.f32 %v1751, %v1764
          %v1772 = vmul.f32 %v1752, %v1764
          %v1773 = vmul.f32 %v1753, %v1764
          %v1774 = vmul.f32 %v1754, %v1764
          %v1775 = vmul.f32 %v1755, %v1764
          %v1776 = vmul.f32 %v1756, %v1764
          %v1777 = vmul.f32 %v1757, %v1764
          %v1778 = vmul.f32 %v1758, %v1764
          %v1779 = vmul.f32 %v1759, %v1764
          %v1780 = vmul.f32 %v1760, %v1764
          %v1781 = vadd.f32 %v1729, %v1765
          %v1782 = vadd.f32 %v1730, %v1766
          %v1783 = vadd.f32 %v1731, %v1767
          %v1784 = vadd.f32 %v1732, %v1768
          %v1785 = vadd.f32 %v1733, %v1769
          %v1786 = vadd.f32 %v1734, %v1770
          %v1787 = vadd.f32 %v1735, %v1771
          %v1788 = vadd.f32 %v1736, %v1772
          %v1789 = vadd.f32 %v1737, %v1773
          %v1790 = vadd.f32 %v1738, %v1774
          %v1791 = vadd.f32 %v1739, %v1775
          %v1792 = vadd.f32 %v1740, %v1776
          %v1793 = vadd.f32 %v1741, %v1777
          %v1794 = vadd.f32 %v1742, %v1778
          %v1795 = vadd.f32 %v1743, %v1779
          %v1796 = vadd.f32 %v1744, %v1780
          %v1797 = vld [vmem:[%s1692 + $0x7] sm:$0xff]
          %v1798 = vld [vmem:[%s1692 + $0xf] sm:$0xff]
          %v1799 = vld [vmem:[%s1692 + $0x27] sm:$0xff]
          %v1800 = vld [vmem:[%s1692 + $0x2f] sm:$0xff]
          %v1801 = vld [vmem:[%s1692 + $0x47] sm:$0xff]
          %v1802 = vld [vmem:[%s1692 + $0x4f] sm:$0xff]
          %v1803 = vld [vmem:[%s1692 + $0x67] sm:$0xff]
          %v1804 = vld [vmem:[%s1692 + $0x6f] sm:$0xff]
          %v1805 = vld [vmem:[%s1692 + $0x87] sm:$0xff]
          %v1806 = vld [vmem:[%s1692 + $0x8f] sm:$0xff]
          %v1807 = vld [vmem:[%s1692 + $0xa7] sm:$0xff]
          %v1808 = vld [vmem:[%s1692 + $0xaf] sm:$0xff]
          %v1809 = vld [vmem:[%s1692 + $0xc7] sm:$0xff]
          %v1810 = vld [vmem:[%s1692 + $0xcf] sm:$0xff]
          %v1811 = vld [vmem:[%s1692 + $0xe7] sm:$0xff]
          %v1812 = vld [vmem:[%s1692 + $0xef] sm:$0xff]
          %v1813 = vlaneseq
          %v1814 = vshrl.u32 %v1813, 7
          %v1815 = vsub.s32 2, %v1814
          %v1816 = vrot.slane %v575, %v1815
          %v1817 = vmul.f32 %v1797, %v1816
          %v1818 = vmul.f32 %v1798, %v1816
          %v1819 = vmul.f32 %v1799, %v1816
          %v1820 = vmul.f32 %v1800, %v1816
          %v1821 = vmul.f32 %v1801, %v1816
          %v1822 = vmul.f32 %v1802, %v1816
          %v1823 = vmul.f32 %v1803, %v1816
          %v1824 = vmul.f32 %v1804, %v1816
          %v1825 = vmul.f32 %v1805, %v1816
          %v1826 = vmul.f32 %v1806, %v1816
          %v1827 = vmul.f32 %v1807, %v1816
          %v1828 = vmul.f32 %v1808, %v1816
          %v1829 = vmul.f32 %v1809, %v1816
          %v1830 = vmul.f32 %v1810, %v1816
          %v1831 = vmul.f32 %v1811, %v1816
          %v1832 = vmul.f32 %v1812, %v1816
          %v1833 = vadd.f32 %v1781, %v1817
          %v1834 = vadd.f32 %v1782, %v1818
          %v1835 = vadd.f32 %v1783, %v1819
          %v1836 = vadd.f32 %v1784, %v1820
          %v1837 = vadd.f32 %v1785, %v1821
          %v1838 = vadd.f32 %v1786, %v1822
          %v1839 = vadd.f32 %v1787, %v1823
          %v1840 = vadd.f32 %v1788, %v1824
          %v1841 = vadd.f32 %v1789, %v1825
          %v1842 = vadd.f32 %v1790, %v1826
          %v1843 = vadd.f32 %v1791, %v1827
          %v1844 = vadd.f32 %v1792, %v1828
          %v1845 = vadd.f32 %v1793, %v1829
          %v1846 = vadd.f32 %v1794, %v1830
          %v1847 = vadd.f32 %v1795, %v1831
          %v1848 = vadd.f32 %v1796, %v1832
          %v1849 = vld [vmem:[%s1692 + $0x8] sm:$0xff]
          %v1850 = vld [vmem:[%s1692 + $0x10] sm:$0xff]
          %v1851 = vld [vmem:[%s1692 + $0x28] sm:$0xff]
          %v1852 = vld [vmem:[%s1692 + $0x30] sm:$0xff]
          %v1853 = vld [vmem:[%s1692 + $0x48] sm:$0xff]
          %v1854 = vld [vmem:[%s1692 + $0x50] sm:$0xff]
          %v1855 = vld [vmem:[%s1692 + $0x68] sm:$0xff]
          %v1856 = vld [vmem:[%s1692 + $0x70] sm:$0xff]
          %v1857 = vld [vmem:[%s1692 + $0x88] sm:$0xff]
          %v1858 = vld [vmem:[%s1692 + $0x90] sm:$0xff]
          %v1859 = vld [vmem:[%s1692 + $0xa8] sm:$0xff]
          %v1860 = vld [vmem:[%s1692 + $0xb0] sm:$0xff]
          %v1861 = vld [vmem:[%s1692 + $0xc8] sm:$0xff]
          %v1862 = vld [vmem:[%s1692 + $0xd0] sm:$0xff]
          %v1863 = vld [vmem:[%s1692 + $0xe8] sm:$0xff]
          %v1864 = vld [vmem:[%s1692 + $0xf0] sm:$0xff]
          %v1865 = vlaneseq
          %v1866 = vshrl.u32 %v1865, 7
          %v1867 = vsub.s32 3, %v1866
          %v1868 = vrot.slane %v575, %v1867
          %v1869 = vmul.f32 %v1849, %v1868
          %v1870 = vmul.f32 %v1850, %v1868
          %v1871 = vmul.f32 %v1851, %v1868
          %v1872 = vmul.f32 %v1852, %v1868
          %v1873 = vmul.f32 %v1853, %v1868
          %v1874 = vmul.f32 %v1854, %v1868
          %v1875 = vmul.f32 %v1855, %v1868
          %v1876 = vmul.f32 %v1856, %v1868
          %v1877 = vmul.f32 %v1857, %v1868
          %v1878 = vmul.f32 %v1858, %v1868
          %v1879 = vmul.f32 %v1859, %v1868
          %v1880 = vmul.f32 %v1860, %v1868
          %v1881 = vmul.f32 %v1861, %v1868
          %v1882 = vmul.f32 %v1862, %v1868
          %v1883 = vmul.f32 %v1863, %v1868
          %v1884 = vmul.f32 %v1864, %v1868
          %v1885 = vadd.f32 %v1833, %v1869
          %v1886 = vadd.f32 %v1834, %v1870
          %v1887 = vadd.f32 %v1835, %v1871
          %v1888 = vadd.f32 %v1836, %v1872
          %v1889 = vadd.f32 %v1837, %v1873
          %v1890 = vadd.f32 %v1838, %v1874
          %v1891 = vadd.f32 %v1839, %v1875
          %v1892 = vadd.f32 %v1840, %v1876
          %v1893 = vadd.f32 %v1841, %v1877
          %v1894 = vadd.f32 %v1842, %v1878
          %v1895 = vadd.f32 %v1843, %v1879
          %v1896 = vadd.f32 %v1844, %v1880
          %v1897 = vadd.f32 %v1845, %v1881
          %v1898 = vadd.f32 %v1846, %v1882
          %v1899 = vadd.f32 %v1847, %v1883
          %v1900 = vadd.f32 %v1848, %v1884
          %v1901 = vld [vmem:[%s1692 + $0x9] sm:$0xff]
          %v1902 = vld [vmem:[%s1692 + $0x11] sm:$0xff]
          %v1903 = vld [vmem:[%s1692 + $0x29] sm:$0xff]
          %v1904 = vld [vmem:[%s1692 + $0x31] sm:$0xff]
          %v1905 = vld [vmem:[%s1692 + $0x49] sm:$0xff]
          %v1906 = vld [vmem:[%s1692 + $0x51] sm:$0xff]
          %v1907 = vld [vmem:[%s1692 + $0x69] sm:$0xff]
          %v1908 = vld [vmem:[%s1692 + $0x71] sm:$0xff]
          %v1909 = vld [vmem:[%s1692 + $0x89] sm:$0xff]
          %v1910 = vld [vmem:[%s1692 + $0x91] sm:$0xff]
          %v1911 = vld [vmem:[%s1692 + $0xa9] sm:$0xff]
          %v1912 = vld [vmem:[%s1692 + $0xb1] sm:$0xff]
          %v1913 = vld [vmem:[%s1692 + $0xc9] sm:$0xff]
          %v1914 = vld [vmem:[%s1692 + $0xd1] sm:$0xff]
          %v1915 = vld [vmem:[%s1692 + $0xe9] sm:$0xff]
          %v1916 = vld [vmem:[%s1692 + $0xf1] sm:$0xff]
          %v1917 = vlaneseq
          %v1918 = vshrl.u32 %v1917, 7
          %v1919 = vsub.s32 4, %v1918
          %v1920 = vrot.slane %v575, %v1919
          %v1921 = vmul.f32 %v1901, %v1920
          %v1922 = vmul.f32 %v1902, %v1920
          %v1923 = vmul.f32 %v1903, %v1920
          %v1924 = vmul.f32 %v1904, %v1920
          %v1925 = vmul.f32 %v1905, %v1920
          %v1926 = vmul.f32 %v1906, %v1920
          %v1927 = vmul.f32 %v1907, %v1920
          %v1928 = vmul.f32 %v1908, %v1920
          %v1929 = vmul.f32 %v1909, %v1920
          %v1930 = vmul.f32 %v1910, %v1920
          %v1931 = vmul.f32 %v1911, %v1920
          %v1932 = vmul.f32 %v1912, %v1920
          %v1933 = vmul.f32 %v1913, %v1920
          %v1934 = vmul.f32 %v1914, %v1920
          %v1935 = vmul.f32 %v1915, %v1920
          %v1936 = vmul.f32 %v1916, %v1920
          %v1937 = vadd.f32 %v1885, %v1921
          %v1938 = vadd.f32 %v1886, %v1922
          %v1939 = vadd.f32 %v1887, %v1923
          %v1940 = vadd.f32 %v1888, %v1924
          %v1941 = vadd.f32 %v1889, %v1925
          %v1942 = vadd.f32 %v1890, %v1926
          %v1943 = vadd.f32 %v1891, %v1927
          %v1944 = vadd.f32 %v1892, %v1928
          %v1945 = vadd.f32 %v1893, %v1929
          %v1946 = vadd.f32 %v1894, %v1930
          %v1947 = vadd.f32 %v1895, %v1931
          %v1948 = vadd.f32 %v1896, %v1932
          %v1949 = vadd.f32 %v1897, %v1933
          %v1950 = vadd.f32 %v1898, %v1934
          %v1951 = vadd.f32 %v1899, %v1935
          %v1952 = vadd.f32 %v1900, %v1936
          %v1953 = vld [vmem:[%s1692 + $0xa] sm:$0xff]
          %v1954 = vld [vmem:[%s1692 + $0x12] sm:$0xff]
          %v1955 = vld [vmem:[%s1692 + $0x2a] sm:$0xff]
          %v1956 = vld [vmem:[%s1692 + $0x32] sm:$0xff]
          %v1957 = vld [vmem:[%s1692 + $0x4a] sm:$0xff]
          %v1958 = vld [vmem:[%s1692 + $0x52] sm:$0xff]
          %v1959 = vld [vmem:[%s1692 + $0x6a] sm:$0xff]
          %v1960 = vld [vmem:[%s1692 + $0x72] sm:$0xff]
          %v1961 = vld [vmem:[%s1692 + $0x8a] sm:$0xff]
          %v1962 = vld [vmem:[%s1692 + $0x92] sm:$0xff]
          %v1963 = vld [vmem:[%s1692 + $0xaa] sm:$0xff]
          %v1964 = vld [vmem:[%s1692 + $0xb2] sm:$0xff]
          %v1965 = vld [vmem:[%s1692 + $0xca] sm:$0xff]
          %v1966 = vld [vmem:[%s1692 + $0xd2] sm:$0xff]
          %v1967 = vld [vmem:[%s1692 + $0xea] sm:$0xff]
          %v1968 = vld [vmem:[%s1692 + $0xf2] sm:$0xff]
          %v1969 = vlaneseq
          %v1970 = vshrl.u32 %v1969, 7
          %v1971 = vsub.s32 5, %v1970
          %v1972 = vrot.slane %v575, %v1971
          %v1973 = vmul.f32 %v1953, %v1972
          %v1974 = vmul.f32 %v1954, %v1972
          %v1975 = vmul.f32 %v1955, %v1972
          %v1976 = vmul.f32 %v1956, %v1972
          %v1977 = vmul.f32 %v1957, %v1972
          %v1978 = vmul.f32 %v1958, %v1972
          %v1979 = vmul.f32 %v1959, %v1972
          %v1980 = vmul.f32 %v1960, %v1972
          %v1981 = vmul.f32 %v1961, %v1972
          %v1982 = vmul.f32 %v1962, %v1972
          %v1983 = vmul.f32 %v1963, %v1972
          %v1984 = vmul.f32 %v1964, %v1972
          %v1985 = vmul.f32 %v1965, %v1972
          %v1986 = vmul.f32 %v1966, %v1972
          %v1987 = vmul.f32 %v1967, %v1972
          %v1988 = vmul.f32 %v1968, %v1972
          %v1989 = vadd.f32 %v1937, %v1973
          %v1990 = vadd.f32 %v1938, %v1974
          %v1991 = vadd.f32 %v1939, %v1975
          %v1992 = vadd.f32 %v1940, %v1976
          %v1993 = vadd.f32 %v1941, %v1977
          %v1994 = vadd.f32 %v1942, %v1978
          %v1995 = vadd.f32 %v1943, %v1979
          %v1996 = vadd.f32 %v1944, %v1980
          %v1997 = vadd.f32 %v1945, %v1981
          %v1998 = vadd.f32 %v1946, %v1982
          %v1999 = vadd.f32 %v1947, %v1983
          %v2000 = vadd.f32 %v1948, %v1984
          %v2001 = vadd.f32 %v1949, %v1985
          %v2002 = vadd.f32 %v1950, %v1986
          %v2003 = vadd.f32 %v1951, %v1987
          %v2004 = vadd.f32 %v1952, %v1988
          %v2005 = vld [vmem:[%s1692 + $0xb] sm:$0xff]
          %v2006 = vld [vmem:[%s1692 + $0x13] sm:$0xff]
          %v2007 = vld [vmem:[%s1692 + $0x2b] sm:$0xff]
          %v2008 = vld [vmem:[%s1692 + $0x33] sm:$0xff]
          %v2009 = vld [vmem:[%s1692 + $0x4b] sm:$0xff]
          %v2010 = vld [vmem:[%s1692 + $0x53] sm:$0xff]
          %v2011 = vld [vmem:[%s1692 + $0x6b] sm:$0xff]
          %v2012 = vld [vmem:[%s1692 + $0x73] sm:$0xff]
          %v2013 = vld [vmem:[%s1692 + $0x8b] sm:$0xff]
          %v2014 = vld [vmem:[%s1692 + $0x93] sm:$0xff]
          %v2015 = vld [vmem:[%s1692 + $0xab] sm:$0xff]
          %v2016 = vld [vmem:[%s1692 + $0xb3] sm:$0xff]
          %v2017 = vld [vmem:[%s1692 + $0xcb] sm:$0xff]
          %v2018 = vld [vmem:[%s1692 + $0xd3] sm:$0xff]
          %v2019 = vld [vmem:[%s1692 + $0xeb] sm:$0xff]
          %v2020 = vld [vmem:[%s1692 + $0xf3] sm:$0xff]
          %v2021 = vlaneseq
          %v2022 = vshrl.u32 %v2021, 7
          %v2023 = vsub.s32 6, %v2022
          %v2024 = vrot.slane %v575, %v2023
          %v2025 = vmul.f32 %v2005, %v2024
          %v2026 = vmul.f32 %v2006, %v2024
          %v2027 = vmul.f32 %v2007, %v2024
          %v2028 = vmul.f32 %v2008, %v2024
          %v2029 = vmul.f32 %v2009, %v2024
          %v2030 = vmul.f32 %v2010, %v2024
          %v2031 = vmul.f32 %v2011, %v2024
          %v2032 = vmul.f32 %v2012, %v2024
          %v2033 = vmul.f32 %v2013, %v2024
          %v2034 = vmul.f32 %v2014, %v2024
          %v2035 = vmul.f32 %v2015, %v2024
          %v2036 = vmul.f32 %v2016, %v2024
          %v2037 = vmul.f32 %v2017, %v2024
          %v2038 = vmul.f32 %v2018, %v2024
          %v2039 = vmul.f32 %v2019, %v2024
          %v2040 = vmul.f32 %v2020, %v2024
          %v2041 = vadd.f32 %v1989, %v2025
          %v2042 = vadd.f32 %v1990, %v2026
          %v2043 = vadd.f32 %v1991, %v2027
          %v2044 = vadd.f32 %v1992, %v2028
          %v2045 = vadd.f32 %v1993, %v2029
          %v2046 = vadd.f32 %v1994, %v2030
          %v2047 = vadd.f32 %v1995, %v2031
          %v2048 = vadd.f32 %v1996, %v2032
          %v2049 = vadd.f32 %v1997, %v2033
          %v2050 = vadd.f32 %v1998, %v2034
          %v2051 = vadd.f32 %v1999, %v2035
          %v2052 = vadd.f32 %v2000, %v2036
          %v2053 = vadd.f32 %v2001, %v2037
          %v2054 = vadd.f32 %v2002, %v2038
          %v2055 = vadd.f32 %v2003, %v2039
          %v2056 = vadd.f32 %v2004, %v2040
          %s2057 = sadd.s32 %s589, 4
          %s2058 = smul.u32 %s2057, 32
          %s2059 = scalar_lea.vmem [#allocation2], %s2058
          %v2060 = vld [vmem:[%s2059 + $0x5] sm:$0xff]
          %v2061 = vld [vmem:[%s2059 + $0xd] sm:$0xff]
          %v2062 = vld [vmem:[%s2059 + $0x25] sm:$0xff]
          %v2063 = vld [vmem:[%s2059 + $0x2d] sm:$0xff]
          %v2064 = vld [vmem:[%s2059 + $0x45] sm:$0xff]
          %v2065 = vld [vmem:[%s2059 + $0x4d] sm:$0xff]
          %v2066 = vld [vmem:[%s2059 + $0x65] sm:$0xff]
          %v2067 = vld [vmem:[%s2059 + $0x6d] sm:$0xff]
          %v2068 = vld [vmem:[%s2059 + $0x85] sm:$0xff]
          %v2069 = vld [vmem:[%s2059 + $0x8d] sm:$0xff]
          %v2070 = vld [vmem:[%s2059 + $0xa5] sm:$0xff]
          %v2071 = vld [vmem:[%s2059 + $0xad] sm:$0xff]
          %v2072 = vld [vmem:[%s2059 + $0xc5] sm:$0xff]
          %v2073 = vld [vmem:[%s2059 + $0xcd] sm:$0xff]
          %v2074 = vld [vmem:[%s2059 + $0xe5] sm:$0xff]
          %v2075 = vld [vmem:[%s2059 + $0xed] sm:$0xff]
          %v2076 = vlaneseq
          %v2077 = vshrl.u32 %v2076, 7
          %v2078 = vsub.s32 0, %v2077
          %v2079 = vrot.slane %v576, %v2078
          %v2080 = vmul.f32 %v2060, %v2079
          %v2081 = vmul.f32 %v2061, %v2079
          %v2082 = vmul.f32 %v2062, %v2079
          %v2083 = vmul.f32 %v2063, %v2079
          %v2084 = vmul.f32 %v2064, %v2079
          %v2085 = vmul.f32 %v2065, %v2079
          %v2086 = vmul.f32 %v2066, %v2079
          %v2087 = vmul.f32 %v2067, %v2079
          %v2088 = vmul.f32 %v2068, %v2079
          %v2089 = vmul.f32 %v2069, %v2079
          %v2090 = vmul.f32 %v2070, %v2079
          %v2091 = vmul.f32 %v2071, %v2079
          %v2092 = vmul.f32 %v2072, %v2079
          %v2093 = vmul.f32 %v2073, %v2079
          %v2094 = vmul.f32 %v2074, %v2079
          %v2095 = vmul.f32 %v2075, %v2079
          %v2096 = vadd.f32 %v2041, %v2080
          %v2097 = vadd.f32 %v2042, %v2081
          %v2098 = vadd.f32 %v2043, %v2082
          %v2099 = vadd.f32 %v2044, %v2083
          %v2100 = vadd.f32 %v2045, %v2084
          %v2101 = vadd.f32 %v2046, %v2085
          %v2102 = vadd.f32 %v2047, %v2086
          %v2103 = vadd.f32 %v2048, %v2087
          %v2104 = vadd.f32 %v2049, %v2088
          %v2105 = vadd.f32 %v2050, %v2089
          %v2106 = vadd.f32 %v2051, %v2090
          %v2107 = vadd.f32 %v2052, %v2091
          %v2108 = vadd.f32 %v2053, %v2092
          %v2109 = vadd.f32 %v2054, %v2093
          %v2110 = vadd.f32 %v2055, %v2094
          %v2111 = vadd.f32 %v2056, %v2095
          %v2112 = vld [vmem:[%s2059 + $0x6] sm:$0xff]
          %v2113 = vld [vmem:[%s2059 + $0xe] sm:$0xff]
          %v2114 = vld [vmem:[%s2059 + $0x26] sm:$0xff]
          %v2115 = vld [vmem:[%s2059 + $0x2e] sm:$0xff]
          %v2116 = vld [vmem:[%s2059 + $0x46] sm:$0xff]
          %v2117 = vld [vmem:[%s2059 + $0x4e] sm:$0xff]
          %v2118 = vld [vmem:[%s2059 + $0x66] sm:$0xff]
          %v2119 = vld [vmem:[%s2059 + $0x6e] sm:$0xff]
          %v2120 = vld [vmem:[%s2059 + $0x86] sm:$0xff]
          %v2121 = vld [vmem:[%s2059 + $0x8e] sm:$0xff]
          %v2122 = vld [vmem:[%s2059 + $0xa6] sm:$0xff]
          %v2123 = vld [vmem:[%s2059 + $0xae] sm:$0xff]
          %v2124 = vld [vmem:[%s2059 + $0xc6] sm:$0xff]
          %v2125 = vld [vmem:[%s2059 + $0xce] sm:$0xff]
          %v2126 = vld [vmem:[%s2059 + $0xe6] sm:$0xff]
          %v2127 = vld [vmem:[%s2059 + $0xee] sm:$0xff]
          %v2128 = vlaneseq
          %v2129 = vshrl.u32 %v2128, 7
          %v2130 = vsub.s32 1, %v2129
          %v2131 = vrot.slane %v576, %v2130
          %v2132 = vmul.f32 %v2112, %v2131
          %v2133 = vmul.f32 %v2113, %v2131
          %v2134 = vmul.f32 %v2114, %v2131
          %v2135 = vmul.f32 %v2115, %v2131
          %v2136 = vmul.f32 %v2116, %v2131
          %v2137 = vmul.f32 %v2117, %v2131
          %v2138 = vmul.f32 %v2118, %v2131
          %v2139 = vmul.f32 %v2119, %v2131
          %v2140 = vmul.f32 %v2120, %v2131
          %v2141 = vmul.f32 %v2121, %v2131
          %v2142 = vmul.f32 %v2122, %v2131
          %v2143 = vmul.f32 %v2123, %v2131
          %v2144 = vmul.f32 %v2124, %v2131
          %v2145 = vmul.f32 %v2125, %v2131
          %v2146 = vmul.f32 %v2126, %v2131
          %v2147 = vmul.f32 %v2127, %v2131
          %v2148 = vadd.f32 %v2096, %v2132
          %v2149 = vadd.f32 %v2097, %v2133
          %v2150 = vadd.f32 %v2098, %v2134
          %v2151 = vadd.f32 %v2099, %v2135
          %v2152 = vadd.f32 %v2100, %v2136
          %v2153 = vadd.f32 %v2101, %v2137
          %v2154 = vadd.f32 %v2102, %v2138
          %v2155 = vadd.f32 %v2103, %v2139
          %v2156 = vadd.f32 %v2104, %v2140
          %v2157 = vadd.f32 %v2105, %v2141
          %v2158 = vadd.f32 %v2106, %v2142
          %v2159 = vadd.f32 %v2107, %v2143
          %v2160 = vadd.f32 %v2108, %v2144
          %v2161 = vadd.f32 %v2109, %v2145
          %v2162 = vadd.f32 %v2110, %v2146
          %v2163 = vadd.f32 %v2111, %v2147
          %v2164 = vld [vmem:[%s2059 + $0x7] sm:$0xff]
          %v2165 = vld [vmem:[%s2059 + $0xf] sm:$0xff]
          %v2166 = vld [vmem:[%s2059 + $0x27] sm:$0xff]
          %v2167 = vld [vmem:[%s2059 + $0x2f] sm:$0xff]
          %v2168 = vld [vmem:[%s2059 + $0x47] sm:$0xff]
          %v2169 = vld [vmem:[%s2059 + $0x4f] sm:$0xff]
          %v2170 = vld [vmem:[%s2059 + $0x67] sm:$0xff]
          %v2171 = vld [vmem:[%s2059 + $0x6f] sm:$0xff]
          %v2172 = vld [vmem:[%s2059 + $0x87] sm:$0xff]
          %v2173 = vld [vmem:[%s2059 + $0x8f] sm:$0xff]
          %v2174 = vld [vmem:[%s2059 + $0xa7] sm:$0xff]
          %v2175 = vld [vmem:[%s2059 + $0xaf] sm:$0xff]
          %v2176 = vld [vmem:[%s2059 + $0xc7] sm:$0xff]
          %v2177 = vld [vmem:[%s2059 + $0xcf] sm:$0xff]
          %v2178 = vld [vmem:[%s2059 + $0xe7] sm:$0xff]
          %v2179 = vld [vmem:[%s2059 + $0xef] sm:$0xff]
          %v2180 = vlaneseq
          %v2181 = vshrl.u32 %v2180, 7
          %v2182 = vsub.s32 2, %v2181
          %v2183 = vrot.slane %v576, %v2182
          %v2184 = vmul.f32 %v2164, %v2183
          %v2185 = vmul.f32 %v2165, %v2183
          %v2186 = vmul.f32 %v2166, %v2183
          %v2187 = vmul.f32 %v2167, %v2183
          %v2188 = vmul.f32 %v2168, %v2183
          %v2189 = vmul.f32 %v2169, %v2183
          %v2190 = vmul.f32 %v2170, %v2183
          %v2191 = vmul.f32 %v2171, %v2183
          %v2192 = vmul.f32 %v2172, %v2183
          %v2193 = vmul.f32 %v2173, %v2183
          %v2194 = vmul.f32 %v2174, %v2183
          %v2195 = vmul.f32 %v2175, %v2183
          %v2196 = vmul.f32 %v2176, %v2183
          %v2197 = vmul.f32 %v2177, %v2183
          %v2198 = vmul.f32 %v2178, %v2183
          %v2199 = vmul.f32 %v2179, %v2183
          %v2200 = vadd.f32 %v2148, %v2184
          %v2201 = vadd.f32 %v2149, %v2185
          %v2202 = vadd.f32 %v2150, %v2186
          %v2203 = vadd.f32 %v2151, %v2187
          %v2204 = vadd.f32 %v2152, %v2188
          %v2205 = vadd.f32 %v2153, %v2189
          %v2206 = vadd.f32 %v2154, %v2190
          %v2207 = vadd.f32 %v2155, %v2191
          %v2208 = vadd.f32 %v2156, %v2192
          %v2209 = vadd.f32 %v2157, %v2193
          %v2210 = vadd.f32 %v2158, %v2194
          %v2211 = vadd.f32 %v2159, %v2195
          %v2212 = vadd.f32 %v2160, %v2196
          %v2213 = vadd.f32 %v2161, %v2197
          %v2214 = vadd.f32 %v2162, %v2198
          %v2215 = vadd.f32 %v2163, %v2199
          %v2216 = vld [vmem:[%s2059 + $0x8] sm:$0xff]
          %v2217 = vld [vmem:[%s2059 + $0x10] sm:$0xff]
          %v2218 = vld [vmem:[%s2059 + $0x28] sm:$0xff]
          %v2219 = vld [vmem:[%s2059 + $0x30] sm:$0xff]
          %v2220 = vld [vmem:[%s2059 + $0x48] sm:$0xff]
          %v2221 = vld [vmem:[%s2059 + $0x50] sm:$0xff]
          %v2222 = vld [vmem:[%s2059 + $0x68] sm:$0xff]
          %v2223 = vld [vmem:[%s2059 + $0x70] sm:$0xff]
          %v2224 = vld [vmem:[%s2059 + $0x88] sm:$0xff]
          %v2225 = vld [vmem:[%s2059 + $0x90] sm:$0xff]
          %v2226 = vld [vmem:[%s2059 + $0xa8] sm:$0xff]
          %v2227 = vld [vmem:[%s2059 + $0xb0] sm:$0xff]
          %v2228 = vld [vmem:[%s2059 + $0xc8] sm:$0xff]
          %v2229 = vld [vmem:[%s2059 + $0xd0] sm:$0xff]
          %v2230 = vld [vmem:[%s2059 + $0xe8] sm:$0xff]
          %v2231 = vld [vmem:[%s2059 + $0xf0] sm:$0xff]
          %v2232 = vlaneseq
          %v2233 = vshrl.u32 %v2232, 7
          %v2234 = vsub.s32 3, %v2233
          %v2235 = vrot.slane %v576, %v2234
          %v2236 = vmul.f32 %v2216, %v2235
          %v2237 = vmul.f32 %v2217, %v2235
          %v2238 = vmul.f32 %v2218, %v2235
          %v2239 = vmul.f32 %v2219, %v2235
          %v2240 = vmul.f32 %v2220, %v2235
          %v2241 = vmul.f32 %v2221, %v2235
          %v2242 = vmul.f32 %v2222, %v2235
          %v2243 = vmul.f32 %v2223, %v2235
          %v2244 = vmul.f32 %v2224, %v2235
          %v2245 = vmul.f32 %v2225, %v2235
          %v2246 = vmul.f32 %v2226, %v2235
          %v2247 = vmul.f32 %v2227, %v2235
          %v2248 = vmul.f32 %v2228, %v2235
          %v2249 = vmul.f32 %v2229, %v2235
          %v2250 = vmul.f32 %v2230, %v2235
          %v2251 = vmul.f32 %v2231, %v2235
          %v2252 = vadd.f32 %v2200, %v2236
          %v2253 = vadd.f32 %v2201, %v2237
          %v2254 = vadd.f32 %v2202, %v2238
          %v2255 = vadd.f32 %v2203, %v2239
          %v2256 = vadd.f32 %v2204, %v2240
          %v2257 = vadd.f32 %v2205, %v2241
          %v2258 = vadd.f32 %v2206, %v2242
          %v2259 = vadd.f32 %v2207, %v2243
          %v2260 = vadd.f32 %v2208, %v2244
          %v2261 = vadd.f32 %v2209, %v2245
          %v2262 = vadd.f32 %v2210, %v2246
          %v2263 = vadd.f32 %v2211, %v2247
          %v2264 = vadd.f32 %v2212, %v2248
          %v2265 = vadd.f32 %v2213, %v2249
          %v2266 = vadd.f32 %v2214, %v2250
          %v2267 = vadd.f32 %v2215, %v2251
          %v2268 = vld [vmem:[%s2059 + $0x9] sm:$0xff]
          %v2269 = vld [vmem:[%s2059 + $0x11] sm:$0xff]
          %v2270 = vld [vmem:[%s2059 + $0x29] sm:$0xff]
          %v2271 = vld [vmem:[%s2059 + $0x31] sm:$0xff]
          %v2272 = vld [vmem:[%s2059 + $0x49] sm:$0xff]
          %v2273 = vld [vmem:[%s2059 + $0x51] sm:$0xff]
          %v2274 = vld [vmem:[%s2059 + $0x69] sm:$0xff]
          %v2275 = vld [vmem:[%s2059 + $0x71] sm:$0xff]
          %v2276 = vld [vmem:[%s2059 + $0x89] sm:$0xff]
          %v2277 = vld [vmem:[%s2059 + $0x91] sm:$0xff]
          %v2278 = vld [vmem:[%s2059 + $0xa9] sm:$0xff]
          %v2279 = vld [vmem:[%s2059 + $0xb1] sm:$0xff]
          %v2280 = vld [vmem:[%s2059 + $0xc9] sm:$0xff]
          %v2281 = vld [vmem:[%s2059 + $0xd1] sm:$0xff]
          %v2282 = vld [vmem:[%s2059 + $0xe9] sm:$0xff]
          %v2283 = vld [vmem:[%s2059 + $0xf1] sm:$0xff]
          %v2284 = vlaneseq
          %v2285 = vshrl.u32 %v2284, 7
          %v2286 = vsub.s32 4, %v2285
          %v2287 = vrot.slane %v576, %v2286
          %v2288 = vmul.f32 %v2268, %v2287
          %v2289 = vmul.f32 %v2269, %v2287
          %v2290 = vmul.f32 %v2270, %v2287
          %v2291 = vmul.f32 %v2271, %v2287
          %v2292 = vmul.f32 %v2272, %v2287
          %v2293 = vmul.f32 %v2273, %v2287
          %v2294 = vmul.f32 %v2274, %v2287
          %v2295 = vmul.f32 %v2275, %v2287
          %v2296 = vmul.f32 %v2276, %v2287
          %v2297 = vmul.f32 %v2277, %v2287
          %v2298 = vmul.f32 %v2278, %v2287
          %v2299 = vmul.f32 %v2279, %v2287
          %v2300 = vmul.f32 %v2280, %v2287
          %v2301 = vmul.f32 %v2281, %v2287
          %v2302 = vmul.f32 %v2282, %v2287
          %v2303 = vmul.f32 %v2283, %v2287
          %v2304 = vadd.f32 %v2252, %v2288
          %v2305 = vadd.f32 %v2253, %v2289
          %v2306 = vadd.f32 %v2254, %v2290
          %v2307 = vadd.f32 %v2255, %v2291
          %v2308 = vadd.f32 %v2256, %v2292
          %v2309 = vadd.f32 %v2257, %v2293
          %v2310 = vadd.f32 %v2258, %v2294
          %v2311 = vadd.f32 %v2259, %v2295
          %v2312 = vadd.f32 %v2260, %v2296
          %v2313 = vadd.f32 %v2261, %v2297
          %v2314 = vadd.f32 %v2262, %v2298
          %v2315 = vadd.f32 %v2263, %v2299
          %v2316 = vadd.f32 %v2264, %v2300
          %v2317 = vadd.f32 %v2265, %v2301
          %v2318 = vadd.f32 %v2266, %v2302
          %v2319 = vadd.f32 %v2267, %v2303
          %v2320 = vld [vmem:[%s2059 + $0xa] sm:$0xff]
          %v2321 = vld [vmem:[%s2059 + $0x12] sm:$0xff]
          %v2322 = vld [vmem:[%s2059 + $0x2a] sm:$0xff]
          %v2323 = vld [vmem:[%s2059 + $0x32] sm:$0xff]
          %v2324 = vld [vmem:[%s2059 + $0x4a] sm:$0xff]
          %v2325 = vld [vmem:[%s2059 + $0x52] sm:$0xff]
          %v2326 = vld [vmem:[%s2059 + $0x6a] sm:$0xff]
          %v2327 = vld [vmem:[%s2059 + $0x72] sm:$0xff]
          %v2328 = vld [vmem:[%s2059 + $0x8a] sm:$0xff]
          %v2329 = vld [vmem:[%s2059 + $0x92] sm:$0xff]
          %v2330 = vld [vmem:[%s2059 + $0xaa] sm:$0xff]
          %v2331 = vld [vmem:[%s2059 + $0xb2] sm:$0xff]
          %v2332 = vld [vmem:[%s2059 + $0xca] sm:$0xff]
          %v2333 = vld [vmem:[%s2059 + $0xd2] sm:$0xff]
          %v2334 = vld [vmem:[%s2059 + $0xea] sm:$0xff]
          %v2335 = vld [vmem:[%s2059 + $0xf2] sm:$0xff]
          %v2336 = vlaneseq
          %v2337 = vshrl.u32 %v2336, 7
          %v2338 = vsub.s32 5, %v2337
          %v2339 = vrot.slane %v576, %v2338
          %v2340 = vmul.f32 %v2320, %v2339
          %v2341 = vmul.f32 %v2321, %v2339
          %v2342 = vmul.f32 %v2322, %v2339
          %v2343 = vmul.f32 %v2323, %v2339
          %v2344 = vmul.f32 %v2324, %v2339
          %v2345 = vmul.f32 %v2325, %v2339
          %v2346 = vmul.f32 %v2326, %v2339
          %v2347 = vmul.f32 %v2327, %v2339
          %v2348 = vmul.f32 %v2328, %v2339
          %v2349 = vmul.f32 %v2329, %v2339
          %v2350 = vmul.f32 %v2330, %v2339
          %v2351 = vmul.f32 %v2331, %v2339
          %v2352 = vmul.f32 %v2332, %v2339
          %v2353 = vmul.f32 %v2333, %v2339
          %v2354 = vmul.f32 %v2334, %v2339
          %v2355 = vmul.f32 %v2335, %v2339
          %v2356 = vadd.f32 %v2304, %v2340
          %v2357 = vadd.f32 %v2305, %v2341
          %v2358 = vadd.f32 %v2306, %v2342
          %v2359 = vadd.f32 %v2307, %v2343
          %v2360 = vadd.f32 %v2308, %v2344
          %v2361 = vadd.f32 %v2309, %v2345
          %v2362 = vadd.f32 %v2310, %v2346
          %v2363 = vadd.f32 %v2311, %v2347
          %v2364 = vadd.f32 %v2312, %v2348
          %v2365 = vadd.f32 %v2313, %v2349
          %v2366 = vadd.f32 %v2314, %v2350
          %v2367 = vadd.f32 %v2315, %v2351
          %v2368 = vadd.f32 %v2316, %v2352
          %v2369 = vadd.f32 %v2317, %v2353
          %v2370 = vadd.f32 %v2318, %v2354
          %v2371 = vadd.f32 %v2319, %v2355
          %v2372 = vld [vmem:[%s2059 + $0xb] sm:$0xff]
          %v2373 = vld [vmem:[%s2059 + $0x13] sm:$0xff]
          %v2374 = vld [vmem:[%s2059 + $0x2b] sm:$0xff]
          %v2375 = vld [vmem:[%s2059 + $0x33] sm:$0xff]
          %v2376 = vld [vmem:[%s2059 + $0x4b] sm:$0xff]
          %v2377 = vld [vmem:[%s2059 + $0x53] sm:$0xff]
          %v2378 = vld [vmem:[%s2059 + $0x6b] sm:$0xff]
          %v2379 = vld [vmem:[%s2059 + $0x73] sm:$0xff]
          %v2380 = vld [vmem:[%s2059 + $0x8b] sm:$0xff]
          %v2381 = vld [vmem:[%s2059 + $0x93] sm:$0xff]
          %v2382 = vld [vmem:[%s2059 + $0xab] sm:$0xff]
          %v2383 = vld [vmem:[%s2059 + $0xb3] sm:$0xff]
          %v2384 = vld [vmem:[%s2059 + $0xcb] sm:$0xff]
          %v2385 = vld [vmem:[%s2059 + $0xd3] sm:$0xff]
          %v2386 = vld [vmem:[%s2059 + $0xeb] sm:$0xff]
          %v2387 = vld [vmem:[%s2059 + $0xf3] sm:$0xff]
          %v2388 = vlaneseq
          %v2389 = vshrl.u32 %v2388, 7
          %v2390 = vsub.s32 6, %v2389
          %v2391 = vrot.slane %v576, %v2390
          %v2392 = vmul.f32 %v2372, %v2391
          %v2393 = vmul.f32 %v2373, %v2391
          %v2394 = vmul.f32 %v2374, %v2391
          %v2395 = vmul.f32 %v2375, %v2391
          %v2396 = vmul.f32 %v2376, %v2391
          %v2397 = vmul.f32 %v2377, %v2391
          %v2398 = vmul.f32 %v2378, %v2391
          %v2399 = vmul.f32 %v2379, %v2391
          %v2400 = vmul.f32 %v2380, %v2391
          %v2401 = vmul.f32 %v2381, %v2391
          %v2402 = vmul.f32 %v2382, %v2391
          %v2403 = vmul.f32 %v2383, %v2391
          %v2404 = vmul.f32 %v2384, %v2391
          %v2405 = vmul.f32 %v2385, %v2391
          %v2406 = vmul.f32 %v2386, %v2391
          %v2407 = vmul.f32 %v2387, %v2391
          %v2408 = vadd.f32 %v2356, %v2392
          %v2409 = vadd.f32 %v2357, %v2393
          %v2410 = vadd.f32 %v2358, %v2394
          %v2411 = vadd.f32 %v2359, %v2395
          %v2412 = vadd.f32 %v2360, %v2396
          %v2413 = vadd.f32 %v2361, %v2397
          %v2414 = vadd.f32 %v2362, %v2398
          %v2415 = vadd.f32 %v2363, %v2399
          %v2416 = vadd.f32 %v2364, %v2400
          %v2417 = vadd.f32 %v2365, %v2401
          %v2418 = vadd.f32 %v2366, %v2402
          %v2419 = vadd.f32 %v2367, %v2403
          %v2420 = vadd.f32 %v2368, %v2404
          %v2421 = vadd.f32 %v2369, %v2405
          %v2422 = vadd.f32 %v2370, %v2406
          %v2423 = vadd.f32 %v2371, %v2407
          %s2424 = sadd.s32 %s589, 5
          %s2425 = smul.u32 %s2424, 32
          %s2426 = scalar_lea.vmem [#allocation2], %s2425
          %v2427 = vld [vmem:[%s2426 + $0x5] sm:$0xff]
          %v2428 = vld [vmem:[%s2426 + $0xd] sm:$0xff]
          %v2429 = vld [vmem:[%s2426 + $0x25] sm:$0xff]
          %v2430 = vld [vmem:[%s2426 + $0x2d] sm:$0xff]
          %v2431 = vld [vmem:[%s2426 + $0x45] sm:$0xff]
          %v2432 = vld [vmem:[%s2426 + $0x4d] sm:$0xff]
          %v2433 = vld [vmem:[%s2426 + $0x65] sm:$0xff]
          %v2434 = vld [vmem:[%s2426 + $0x6d] sm:$0xff]
          %v2435 = vld [vmem:[%s2426 + $0x85] sm:$0xff]
          %v2436 = vld [vmem:[%s2426 + $0x8d] sm:$0xff]
          %v2437 = vld [vmem:[%s2426 + $0xa5] sm:$0xff]
          %v2438 = vld [vmem:[%s2426 + $0xad] sm:$0xff]
          %v2439 = vld [vmem:[%s2426 + $0xc5] sm:$0xff]
          %v2440 = vld [vmem:[%s2426 + $0xcd] sm:$0xff]
          %v2441 = vld [vmem:[%s2426 + $0xe5] sm:$0xff]
          %v2442 = vld [vmem:[%s2426 + $0xed] sm:$0xff]
          %v2443 = vlaneseq
          %v2444 = vshrl.u32 %v2443, 7
          %v2445 = vsub.s32 0, %v2444
          %v2446 = vrot.slane %v577, %v2445
          %v2447 = vmul.f32 %v2427, %v2446
          %v2448 = vmul.f32 %v2428, %v2446
          %v2449 = vmul.f32 %v2429, %v2446
          %v2450 = vmul.f32 %v2430, %v2446
          %v2451 = vmul.f32 %v2431, %v2446
          %v2452 = vmul.f32 %v2432, %v2446
          %v2453 = vmul.f32 %v2433, %v2446
          %v2454 = vmul.f32 %v2434, %v2446
          %v2455 = vmul.f32 %v2435, %v2446
          %v2456 = vmul.f32 %v2436, %v2446
          %v2457 = vmul.f32 %v2437, %v2446
          %v2458 = vmul.f32 %v2438, %v2446
          %v2459 = vmul.f32 %v2439, %v2446
          %v2460 = vmul.f32 %v2440, %v2446
          %v2461 = vmul.f32 %v2441, %v2446
          %v2462 = vmul.f32 %v2442, %v2446
          %v2463 = vadd.f32 %v2408, %v2447
          %v2464 = vadd.f32 %v2409, %v2448
          %v2465 = vadd.f32 %v2410, %v2449
          %v2466 = vadd.f32 %v2411, %v2450
          %v2467 = vadd.f32 %v2412, %v2451
          %v2468 = vadd.f32 %v2413, %v2452
          %v2469 = vadd.f32 %v2414, %v2453
          %v2470 = vadd.f32 %v2415, %v2454
          %v2471 = vadd.f32 %v2416, %v2455
          %v2472 = vadd.f32 %v2417, %v2456
          %v2473 = vadd.f32 %v2418, %v2457
          %v2474 = vadd.f32 %v2419, %v2458
          %v2475 = vadd.f32 %v2420, %v2459
          %v2476 = vadd.f32 %v2421, %v2460
          %v2477 = vadd.f32 %v2422, %v2461
          %v2478 = vadd.f32 %v2423, %v2462
          %v2479 = vld [vmem:[%s2426 + $0x6] sm:$0xff]
          %v2480 = vld [vmem:[%s2426 + $0xe] sm:$0xff]
          %v2481 = vld [vmem:[%s2426 + $0x26] sm:$0xff]
          %v2482 = vld [vmem:[%s2426 + $0x2e] sm:$0xff]
          %v2483 = vld [vmem:[%s2426 + $0x46] sm:$0xff]
          %v2484 = vld [vmem:[%s2426 + $0x4e] sm:$0xff]
          %v2485 = vld [vmem:[%s2426 + $0x66] sm:$0xff]
          %v2486 = vld [vmem:[%s2426 + $0x6e] sm:$0xff]
          %v2487 = vld [vmem:[%s2426 + $0x86] sm:$0xff]
          %v2488 = vld [vmem:[%s2426 + $0x8e] sm:$0xff]
          %v2489 = vld [vmem:[%s2426 + $0xa6] sm:$0xff]
          %v2490 = vld [vmem:[%s2426 + $0xae] sm:$0xff]
          %v2491 = vld [vmem:[%s2426 + $0xc6] sm:$0xff]
          %v2492 = vld [vmem:[%s2426 + $0xce] sm:$0xff]
          %v2493 = vld [vmem:[%s2426 + $0xe6] sm:$0xff]
          %v2494 = vld [vmem:[%s2426 + $0xee] sm:$0xff]
          %v2495 = vlaneseq
          %v2496 = vshrl.u32 %v2495, 7
          %v2497 = vsub.s32 1, %v2496
          %v2498 = vrot.slane %v577, %v2497
          %v2499 = vmul.f32 %v2479, %v2498
          %v2500 = vmul.f32 %v2480, %v2498
          %v2501 = vmul.f32 %v2481, %v2498
          %v2502 = vmul.f32 %v2482, %v2498
          %v2503 = vmul.f32 %v2483, %v2498
          %v2504 = vmul.f32 %v2484, %v2498
          %v2505 = vmul.f32 %v2485, %v2498
          %v2506 = vmul.f32 %v2486, %v2498
          %v2507 = vmul.f32 %v2487, %v2498
          %v2508 = vmul.f32 %v2488, %v2498
          %v2509 = vmul.f32 %v2489, %v2498
          %v2510 = vmul.f32 %v2490, %v2498
          %v2511 = vmul.f32 %v2491, %v2498
          %v2512 = vmul.f32 %v2492, %v2498
          %v2513 = vmul.f32 %v2493, %v2498
          %v2514 = vmul.f32 %v2494, %v2498
          %v2515 = vadd.f32 %v2463, %v2499
          %v2516 = vadd.f32 %v2464, %v2500
          %v2517 = vadd.f32 %v2465, %v2501
          %v2518 = vadd.f32 %v2466, %v2502
          %v2519 = vadd.f32 %v2467, %v2503
          %v2520 = vadd.f32 %v2468, %v2504
          %v2521 = vadd.f32 %v2469, %v2505
          %v2522 = vadd.f32 %v2470, %v2506
          %v2523 = vadd.f32 %v2471, %v2507
          %v2524 = vadd.f32 %v2472, %v2508
          %v2525 = vadd.f32 %v2473, %v2509
          %v2526 = vadd.f32 %v2474, %v2510
          %v2527 = vadd.f32 %v2475, %v2511
          %v2528 = vadd.f32 %v2476, %v2512
          %v2529 = vadd.f32 %v2477, %v2513
          %v2530 = vadd.f32 %v2478, %v2514
          %v2531 = vld [vmem:[%s2426 + $0x7] sm:$0xff]
          %v2532 = vld [vmem:[%s2426 + $0xf] sm:$0xff]
          %v2533 = vld [vmem:[%s2426 + $0x27] sm:$0xff]
          %v2534 = vld [vmem:[%s2426 + $0x2f] sm:$0xff]
          %v2535 = vld [vmem:[%s2426 + $0x47] sm:$0xff]
          %v2536 = vld [vmem:[%s2426 + $0x4f] sm:$0xff]
          %v2537 = vld [vmem:[%s2426 + $0x67] sm:$0xff]
          %v2538 = vld [vmem:[%s2426 + $0x6f] sm:$0xff]
          %v2539 = vld [vmem:[%s2426 + $0x87] sm:$0xff]
          %v2540 = vld [vmem:[%s2426 + $0x8f] sm:$0xff]
          %v2541 = vld [vmem:[%s2426 + $0xa7] sm:$0xff]
          %v2542 = vld [vmem:[%s2426 + $0xaf] sm:$0xff]
          %v2543 = vld [vmem:[%s2426 + $0xc7] sm:$0xff]
          %v2544 = vld [vmem:[%s2426 + $0xcf] sm:$0xff]
          %v2545 = vld [vmem:[%s2426 + $0xe7] sm:$0xff]
          %v2546 = vld [vmem:[%s2426 + $0xef] sm:$0xff]
          %v2547 = vlaneseq
          %v2548 = vshrl.u32 %v2547, 7
          %v2549 = vsub.s32 2, %v2548
          %v2550 = vrot.slane %v577, %v2549
          %v2551 = vmul.f32 %v2531, %v2550
          %v2552 = vmul.f32 %v2532, %v2550
          %v2553 = vmul.f32 %v2533, %v2550
          %v2554 = vmul.f32 %v2534, %v2550
          %v2555 = vmul.f32 %v2535, %v2550
          %v2556 = vmul.f32 %v2536, %v2550
          %v2557 = vmul.f32 %v2537, %v2550
          %v2558 = vmul.f32 %v2538, %v2550
          %v2559 = vmul.f32 %v2539, %v2550
          %v2560 = vmul.f32 %v2540, %v2550
          %v2561 = vmul.f32 %v2541, %v2550
          %v2562 = vmul.f32 %v2542, %v2550
          %v2563 = vmul.f32 %v2543, %v2550
          %v2564 = vmul.f32 %v2544, %v2550
          %v2565 = vmul.f32 %v2545, %v2550
          %v2566 = vmul.f32 %v2546, %v2550
          %v2567 = vadd.f32 %v2515, %v2551
          %v2568 = vadd.f32 %v2516, %v2552
          %v2569 = vadd.f32 %v2517, %v2553
          %v2570 = vadd.f32 %v2518, %v2554
          %v2571 = vadd.f32 %v2519, %v2555
          %v2572 = vadd.f32 %v2520, %v2556
          %v2573 = vadd.f32 %v2521, %v2557
          %v2574 = vadd.f32 %v2522, %v2558
          %v2575 = vadd.f32 %v2523, %v2559
          %v2576 = vadd.f32 %v2524, %v2560
          %v2577 = vadd.f32 %v2525, %v2561
          %v2578 = vadd.f32 %v2526, %v2562
          %v2579 = vadd.f32 %v2527, %v2563
          %v2580 = vadd.f32 %v2528, %v2564
          %v2581 = vadd.f32 %v2529, %v2565
          %v2582 = vadd.f32 %v2530, %v2566
          %v2583 = vld [vmem:[%s2426 + $0x8] sm:$0xff]
          %v2584 = vld [vmem:[%s2426 + $0x10] sm:$0xff]
          %v2585 = vld [vmem:[%s2426 + $0x28] sm:$0xff]
          %v2586 = vld [vmem:[%s2426 + $0x30] sm:$0xff]
          %v2587 = vld [vmem:[%s2426 + $0x48] sm:$0xff]
          %v2588 = vld [vmem:[%s2426 + $0x50] sm:$0xff]
          %v2589 = vld [vmem:[%s2426 + $0x68] sm:$0xff]
          %v2590 = vld [vmem:[%s2426 + $0x70] sm:$0xff]
          %v2591 = vld [vmem:[%s2426 + $0x88] sm:$0xff]
          %v2592 = vld [vmem:[%s2426 + $0x90] sm:$0xff]
          %v2593 = vld [vmem:[%s2426 + $0xa8] sm:$0xff]
          %v2594 = vld [vmem:[%s2426 + $0xb0] sm:$0xff]
          %v2595 = vld [vmem:[%s2426 + $0xc8] sm:$0xff]
          %v2596 = vld [vmem:[%s2426 + $0xd0] sm:$0xff]
          %v2597 = vld [vmem:[%s2426 + $0xe8] sm:$0xff]
          %v2598 = vld [vmem:[%s2426 + $0xf0] sm:$0xff]
          %v2599 = vlaneseq
          %v2600 = vshrl.u32 %v2599, 7
          %v2601 = vsub.s32 3, %v2600
          %v2602 = vrot.slane %v577, %v2601
          %v2603 = vmul.f32 %v2583, %v2602
          %v2604 = vmul.f32 %v2584, %v2602
          %v2605 = vmul.f32 %v2585, %v2602
          %v2606 = vmul.f32 %v2586, %v2602
          %v2607 = vmul.f32 %v2587, %v2602
          %v2608 = vmul.f32 %v2588, %v2602
          %v2609 = vmul.f32 %v2589, %v2602
          %v2610 = vmul.f32 %v2590, %v2602
          %v2611 = vmul.f32 %v2591, %v2602
          %v2612 = vmul.f32 %v2592, %v2602
          %v2613 = vmul.f32 %v2593, %v2602
          %v2614 = vmul.f32 %v2594, %v2602
          %v2615 = vmul.f32 %v2595, %v2602
          %v2616 = vmul.f32 %v2596, %v2602
          %v2617 = vmul.f32 %v2597, %v2602
          %v2618 = vmul.f32 %v2598, %v2602
          %v2619 = vadd.f32 %v2567, %v2603
          %v2620 = vadd.f32 %v2568, %v2604
          %v2621 = vadd.f32 %v2569, %v2605
          %v2622 = vadd.f32 %v2570, %v2606
          %v2623 = vadd.f32 %v2571, %v2607
          %v2624 = vadd.f32 %v2572, %v2608
          %v2625 = vadd.f32 %v2573, %v2609
          %v2626 = vadd.f32 %v2574, %v2610
          %v2627 = vadd.f32 %v2575, %v2611
          %v2628 = vadd.f32 %v2576, %v2612
          %v2629 = vadd.f32 %v2577, %v2613
          %v2630 = vadd.f32 %v2578, %v2614
          %v2631 = vadd.f32 %v2579, %v2615
          %v2632 = vadd.f32 %v2580, %v2616
          %v2633 = vadd.f32 %v2581, %v2617
          %v2634 = vadd.f32 %v2582, %v2618
          %v2635 = vld [vmem:[%s2426 + $0x9] sm:$0xff]
          %v2636 = vld [vmem:[%s2426 + $0x11] sm:$0xff]
          %v2637 = vld [vmem:[%s2426 + $0x29] sm:$0xff]
          %v2638 = vld [vmem:[%s2426 + $0x31] sm:$0xff]
          %v2639 = vld [vmem:[%s2426 + $0x49] sm:$0xff]
          %v2640 = vld [vmem:[%s2426 + $0x51] sm:$0xff]
          %v2641 = vld [vmem:[%s2426 + $0x69] sm:$0xff]
          %v2642 = vld [vmem:[%s2426 + $0x71] sm:$0xff]
          %v2643 = vld [vmem:[%s2426 + $0x89] sm:$0xff]
          %v2644 = vld [vmem:[%s2426 + $0x91] sm:$0xff]
          %v2645 = vld [vmem:[%s2426 + $0xa9] sm:$0xff]
          %v2646 = vld [vmem:[%s2426 + $0xb1] sm:$0xff]
          %v2647 = vld [vmem:[%s2426 + $0xc9] sm:$0xff]
          %v2648 = vld [vmem:[%s2426 + $0xd1] sm:$0xff]
          %v2649 = vld [vmem:[%s2426 + $0xe9] sm:$0xff]
          %v2650 = vld [vmem:[%s2426 + $0xf1] sm:$0xff]
          %v2651 = vlaneseq
          %v2652 = vshrl.u32 %v2651, 7
          %v2653 = vsub.s32 4, %v2652
          %v2654 = vrot.slane %v577, %v2653
          %v2655 = vmul.f32 %v2635, %v2654
          %v2656 = vmul.f32 %v2636, %v2654
          %v2657 = vmul.f32 %v2637, %v2654
          %v2658 = vmul.f32 %v2638, %v2654
          %v2659 = vmul.f32 %v2639, %v2654
          %v2660 = vmul.f32 %v2640, %v2654
          %v2661 = vmul.f32 %v2641, %v2654
          %v2662 = vmul.f32 %v2642, %v2654
          %v2663 = vmul.f32 %v2643, %v2654
          %v2664 = vmul.f32 %v2644, %v2654
          %v2665 = vmul.f32 %v2645, %v2654
          %v2666 = vmul.f32 %v2646, %v2654
          %v2667 = vmul.f32 %v2647, %v2654
          %v2668 = vmul.f32 %v2648, %v2654
          %v2669 = vmul.f32 %v2649, %v2654
          %v2670 = vmul.f32 %v2650, %v2654
          %v2671 = vadd.f32 %v2619, %v2655
          %v2672 = vadd.f32 %v2620, %v2656
          %v2673 = vadd.f32 %v2621, %v2657
          %v2674 = vadd.f32 %v2622, %v2658
          %v2675 = vadd.f32 %v2623, %v2659
          %v2676 = vadd.f32 %v2624, %v2660
          %v2677 = vadd.f32 %v2625, %v2661
          %v2678 = vadd.f32 %v2626, %v2662
          %v2679 = vadd.f32 %v2627, %v2663
          %v2680 = vadd.f32 %v2628, %v2664
          %v2681 = vadd.f32 %v2629, %v2665
          %v2682 = vadd.f32 %v2630, %v2666
          %v2683 = vadd.f32 %v2631, %v2667
          %v2684 = vadd.f32 %v2632, %v2668
          %v2685 = vadd.f32 %v2633, %v2669
          %v2686 = vadd.f32 %v2634, %v2670
          %v2687 = vld [vmem:[%s2426 + $0xa] sm:$0xff]
          %v2688 = vld [vmem:[%s2426 + $0x12] sm:$0xff]
          %v2689 = vld [vmem:[%s2426 + $0x2a] sm:$0xff]
          %v2690 = vld [vmem:[%s2426 + $0x32] sm:$0xff]
          %v2691 = vld [vmem:[%s2426 + $0x4a] sm:$0xff]
          %v2692 = vld [vmem:[%s2426 + $0x52] sm:$0xff]
          %v2693 = vld [vmem:[%s2426 + $0x6a] sm:$0xff]
          %v2694 = vld [vmem:[%s2426 + $0x72] sm:$0xff]
          %v2695 = vld [vmem:[%s2426 + $0x8a] sm:$0xff]
          %v2696 = vld [vmem:[%s2426 + $0x92] sm:$0xff]
          %v2697 = vld [vmem:[%s2426 + $0xaa] sm:$0xff]
          %v2698 = vld [vmem:[%s2426 + $0xb2] sm:$0xff]
          %v2699 = vld [vmem:[%s2426 + $0xca] sm:$0xff]
          %v2700 = vld [vmem:[%s2426 + $0xd2] sm:$0xff]
          %v2701 = vld [vmem:[%s2426 + $0xea] sm:$0xff]
          %v2702 = vld [vmem:[%s2426 + $0xf2] sm:$0xff]
          %v2703 = vlaneseq
          %v2704 = vshrl.u32 %v2703, 7
          %v2705 = vsub.s32 5, %v2704
          %v2706 = vrot.slane %v577, %v2705
          %v2707 = vmul.f32 %v2687, %v2706
          %v2708 = vmul.f32 %v2688, %v2706
          %v2709 = vmul.f32 %v2689, %v2706
          %v2710 = vmul.f32 %v2690, %v2706
          %v2711 = vmul.f32 %v2691, %v2706
          %v2712 = vmul.f32 %v2692, %v2706
          %v2713 = vmul.f32 %v2693, %v2706
          %v2714 = vmul.f32 %v2694, %v2706
          %v2715 = vmul.f32 %v2695, %v2706
          %v2716 = vmul.f32 %v2696, %v2706
          %v2717 = vmul.f32 %v2697, %v2706
          %v2718 = vmul.f32 %v2698, %v2706
          %v2719 = vmul.f32 %v2699, %v2706
          %v2720 = vmul.f32 %v2700, %v2706
          %v2721 = vmul.f32 %v2701, %v2706
          %v2722 = vmul.f32 %v2702, %v2706
          %v2723 = vadd.f32 %v2671, %v2707
          %v2724 = vadd.f32 %v2672, %v2708
          %v2725 = vadd.f32 %v2673, %v2709
          %v2726 = vadd.f32 %v2674, %v2710
          %v2727 = vadd.f32 %v2675, %v2711
          %v2728 = vadd.f32 %v2676, %v2712
          %v2729 = vadd.f32 %v2677, %v2713
          %v2730 = vadd.f32 %v2678, %v2714
          %v2731 = vadd.f32 %v2679, %v2715
          %v2732 = vadd.f32 %v2680, %v2716
          %v2733 = vadd.f32 %v2681, %v2717
          %v2734 = vadd.f32 %v2682, %v2718
          %v2735 = vadd.f32 %v2683, %v2719
          %v2736 = vadd.f32 %v2684, %v2720
          %v2737 = vadd.f32 %v2685, %v2721
          %v2738 = vadd.f32 %v2686, %v2722
          %v2739 = vld [vmem:[%s2426 + $0xb] sm:$0xff]
          %v2740 = vld [vmem:[%s2426 + $0x13] sm:$0xff]
          %v2741 = vld [vmem:[%s2426 + $0x2b] sm:$0xff]
          %v2742 = vld [vmem:[%s2426 + $0x33] sm:$0xff]
          %v2743 = vld [vmem:[%s2426 + $0x4b] sm:$0xff]
          %v2744 = vld [vmem:[%s2426 + $0x53] sm:$0xff]
          %v2745 = vld [vmem:[%s2426 + $0x6b] sm:$0xff]
          %v2746 = vld [vmem:[%s2426 + $0x73] sm:$0xff]
          %v2747 = vld [vmem:[%s2426 + $0x8b] sm:$0xff]
          %v2748 = vld [vmem:[%s2426 + $0x93] sm:$0xff]
          %v2749 = vld [vmem:[%s2426 + $0xab] sm:$0xff]
          %v2750 = vld [vmem:[%s2426 + $0xb3] sm:$0xff]
          %v2751 = vld [vmem:[%s2426 + $0xcb] sm:$0xff]
          %v2752 = vld [vmem:[%s2426 + $0xd3] sm:$0xff]
          %v2753 = vld [vmem:[%s2426 + $0xeb] sm:$0xff]
          %v2754 = vld [vmem:[%s2426 + $0xf3] sm:$0xff]
          %v2755 = vlaneseq
          %v2756 = vshrl.u32 %v2755, 7
          %v2757 = vsub.s32 6, %v2756
          %v2758 = vrot.slane %v577, %v2757
          %v2759 = vmul.f32 %v2739, %v2758
          %v2760 = vmul.f32 %v2740, %v2758
          %v2761 = vmul.f32 %v2741, %v2758
          %v2762 = vmul.f32 %v2742, %v2758
          %v2763 = vmul.f32 %v2743, %v2758
          %v2764 = vmul.f32 %v2744, %v2758
          %v2765 = vmul.f32 %v2745, %v2758
          %v2766 = vmul.f32 %v2746, %v2758
          %v2767 = vmul.f32 %v2747, %v2758
          %v2768 = vmul.f32 %v2748, %v2758
          %v2769 = vmul.f32 %v2749, %v2758
          %v2770 = vmul.f32 %v2750, %v2758
          %v2771 = vmul.f32 %v2751, %v2758
          %v2772 = vmul.f32 %v2752, %v2758
          %v2773 = vmul.f32 %v2753, %v2758
          %v2774 = vmul.f32 %v2754, %v2758
          %v2775 = vadd.f32 %v2723, %v2759
          %v2776 = vadd.f32 %v2724, %v2760
          %v2777 = vadd.f32 %v2725, %v2761
          %v2778 = vadd.f32 %v2726, %v2762
          %v2779 = vadd.f32 %v2727, %v2763
          %v2780 = vadd.f32 %v2728, %v2764
          %v2781 = vadd.f32 %v2729, %v2765
          %v2782 = vadd.f32 %v2730, %v2766
          %v2783 = vadd.f32 %v2731, %v2767
          %v2784 = vadd.f32 %v2732, %v2768
          %v2785 = vadd.f32 %v2733, %v2769
          %v2786 = vadd.f32 %v2734, %v2770
          %v2787 = vadd.f32 %v2735, %v2771
          %v2788 = vadd.f32 %v2736, %v2772
          %v2789 = vadd.f32 %v2737, %v2773
          %v2790 = vadd.f32 %v2738, %v2774
          %s2791 = sadd.s32 %s589, 6
          %s2792 = smul.u32 %s2791, 32
          %s2793 = scalar_lea.vmem [#allocation2], %s2792
          %v2794 = vld [vmem:[%s2793 + $0x5] sm:$0xff]
          %v2795 = vld [vmem:[%s2793 + $0xd] sm:$0xff]
          %v2796 = vld [vmem:[%s2793 + $0x25] sm:$0xff]
          %v2797 = vld [vmem:[%s2793 + $0x2d] sm:$0xff]
          %v2798 = vld [vmem:[%s2793 + $0x45] sm:$0xff]
          %v2799 = vld [vmem:[%s2793 + $0x4d] sm:$0xff]
          %v2800 = vld [vmem:[%s2793 + $0x65] sm:$0xff]
          %v2801 = vld [vmem:[%s2793 + $0x6d] sm:$0xff]
          %v2802 = vld [vmem:[%s2793 + $0x85] sm:$0xff]
          %v2803 = vld [vmem:[%s2793 + $0x8d] sm:$0xff]
          %v2804 = vld [vmem:[%s2793 + $0xa5] sm:$0xff]
          %v2805 = vld [vmem:[%s2793 + $0xad] sm:$0xff]
          %v2806 = vld [vmem:[%s2793 + $0xc5] sm:$0xff]
          %v2807 = vld [vmem:[%s2793 + $0xcd] sm:$0xff]
          %v2808 = vld [vmem:[%s2793 + $0xe5] sm:$0xff]
          %v2809 = vld [vmem:[%s2793 + $0xed] sm:$0xff]
          %v2810 = vlaneseq
          %v2811 = vshrl.u32 %v2810, 7
          %v2812 = vsub.s32 0, %v2811
          %v2813 = vrot.slane %v578, %v2812
          %v2814 = vmul.f32 %v2794, %v2813
          %v2815 = vmul.f32 %v2795, %v2813
          %v2816 = vmul.f32 %v2796, %v2813
          %v2817 = vmul.f32 %v2797, %v2813
          %v2818 = vmul.f32 %v2798, %v2813
          %v2819 = vmul.f32 %v2799, %v2813
          %v2820 = vmul.f32 %v2800, %v2813
          %v2821 = vmul.f32 %v2801, %v2813
          %v2822 = vmul.f32 %v2802, %v2813
          %v2823 = vmul.f32 %v2803, %v2813
          %v2824 = vmul.f32 %v2804, %v2813
          %v2825 = vmul.f32 %v2805, %v2813
          %v2826 = vmul.f32 %v2806, %v2813
          %v2827 = vmul.f32 %v2807, %v2813
          %v2828 = vmul.f32 %v2808, %v2813
          %v2829 = vmul.f32 %v2809, %v2813
          %v2830 = vadd.f32 %v2775, %v2814
          %v2831 = vadd.f32 %v2776, %v2815
          %v2832 = vadd.f32 %v2777, %v2816
          %v2833 = vadd.f32 %v2778, %v2817
          %v2834 = vadd.f32 %v2779, %v2818
          %v2835 = vadd.f32 %v2780, %v2819
          %v2836 = vadd.f32 %v2781, %v2820
          %v2837 = vadd.f32 %v2782, %v2821
          %v2838 = vadd.f32 %v2783, %v2822
          %v2839 = vadd.f32 %v2784, %v2823
          %v2840 = vadd.f32 %v2785, %v2824
          %v2841 = vadd.f32 %v2786, %v2825
          %v2842 = vadd.f32 %v2787, %v2826
          %v2843 = vadd.f32 %v2788, %v2827
          %v2844 = vadd.f32 %v2789, %v2828
          %v2845 = vadd.f32 %v2790, %v2829
          %v2846 = vld [vmem:[%s2793 + $0x6] sm:$0xff]
          %v2847 = vld [vmem:[%s2793 + $0xe] sm:$0xff]
          %v2848 = vld [vmem:[%s2793 + $0x26] sm:$0xff]
          %v2849 = vld [vmem:[%s2793 + $0x2e] sm:$0xff]
          %v2850 = vld [vmem:[%s2793 + $0x46] sm:$0xff]
          %v2851 = vld [vmem:[%s2793 + $0x4e] sm:$0xff]
          %v2852 = vld [vmem:[%s2793 + $0x66] sm:$0xff]
          %v2853 = vld [vmem:[%s2793 + $0x6e] sm:$0xff]
          %v2854 = vld [vmem:[%s2793 + $0x86] sm:$0xff]
          %v2855 = vld [vmem:[%s2793 + $0x8e] sm:$0xff]
          %v2856 = vld [vmem:[%s2793 + $0xa6] sm:$0xff]
          %v2857 = vld [vmem:[%s2793 + $0xae] sm:$0xff]
          %v2858 = vld [vmem:[%s2793 + $0xc6] sm:$0xff]
          %v2859 = vld [vmem:[%s2793 + $0xce] sm:$0xff]
          %v2860 = vld [vmem:[%s2793 + $0xe6] sm:$0xff]
          %v2861 = vld [vmem:[%s2793 + $0xee] sm:$0xff]
          %v2862 = vlaneseq
          %v2863 = vshrl.u32 %v2862, 7
          %v2864 = vsub.s32 1, %v2863
          %v2865 = vrot.slane %v578, %v2864
          %v2866 = vmul.f32 %v2846, %v2865
          %v2867 = vmul.f32 %v2847, %v2865
          %v2868 = vmul.f32 %v2848, %v2865
          %v2869 = vmul.f32 %v2849, %v2865
          %v2870 = vmul.f32 %v2850, %v2865
          %v2871 = vmul.f32 %v2851, %v2865
          %v2872 = vmul.f32 %v2852, %v2865
          %v2873 = vmul.f32 %v2853, %v2865
          %v2874 = vmul.f32 %v2854, %v2865
          %v2875 = vmul.f32 %v2855, %v2865
          %v2876 = vmul.f32 %v2856, %v2865
          %v2877 = vmul.f32 %v2857, %v2865
          %v2878 = vmul.f32 %v2858, %v2865
          %v2879 = vmul.f32 %v2859, %v2865
          %v2880 = vmul.f32 %v2860, %v2865
          %v2881 = vmul.f32 %v2861, %v2865
          %v2882 = vadd.f32 %v2830, %v2866
          %v2883 = vadd.f32 %v2831, %v2867
          %v2884 = vadd.f32 %v2832, %v2868
          %v2885 = vadd.f32 %v2833, %v2869
          %v2886 = vadd.f32 %v2834, %v2870
          %v2887 = vadd.f32 %v2835, %v2871
          %v2888 = vadd.f32 %v2836, %v2872
          %v2889 = vadd.f32 %v2837, %v2873
          %v2890 = vadd.f32 %v2838, %v2874
          %v2891 = vadd.f32 %v2839, %v2875
          %v2892 = vadd.f32 %v2840, %v2876
          %v2893 = vadd.f32 %v2841, %v2877
          %v2894 = vadd.f32 %v2842, %v2878
          %v2895 = vadd.f32 %v2843, %v2879
          %v2896 = vadd.f32 %v2844, %v2880
          %v2897 = vadd.f32 %v2845, %v2881
          %v2898 = vld [vmem:[%s2793 + $0x7] sm:$0xff]
          %v2899 = vld [vmem:[%s2793 + $0xf] sm:$0xff]
          %v2900 = vld [vmem:[%s2793 + $0x27] sm:$0xff]
          %v2901 = vld [vmem:[%s2793 + $0x2f] sm:$0xff]
          %v2902 = vld [vmem:[%s2793 + $0x47] sm:$0xff]
          %v2903 = vld [vmem:[%s2793 + $0x4f] sm:$0xff]
          %v2904 = vld [vmem:[%s2793 + $0x67] sm:$0xff]
          %v2905 = vld [vmem:[%s2793 + $0x6f] sm:$0xff]
          %v2906 = vld [vmem:[%s2793 + $0x87] sm:$0xff]
          %v2907 = vld [vmem:[%s2793 + $0x8f] sm:$0xff]
          %v2908 = vld [vmem:[%s2793 + $0xa7] sm:$0xff]
          %v2909 = vld [vmem:[%s2793 + $0xaf] sm:$0xff]
          %v2910 = vld [vmem:[%s2793 + $0xc7] sm:$0xff]
          %v2911 = vld [vmem:[%s2793 + $0xcf] sm:$0xff]
          %v2912 = vld [vmem:[%s2793 + $0xe7] sm:$0xff]
          %v2913 = vld [vmem:[%s2793 + $0xef] sm:$0xff]
          %v2914 = vlaneseq
          %v2915 = vshrl.u32 %v2914, 7
          %v2916 = vsub.s32 2, %v2915
          %v2917 = vrot.slane %v578, %v2916
          %v2918 = vmul.f32 %v2898, %v2917
          %v2919 = vmul.f32 %v2899, %v2917
          %v2920 = vmul.f32 %v2900, %v2917
          %v2921 = vmul.f32 %v2901, %v2917
          %v2922 = vmul.f32 %v2902, %v2917
          %v2923 = vmul.f32 %v2903, %v2917
          %v2924 = vmul.f32 %v2904, %v2917
          %v2925 = vmul.f32 %v2905, %v2917
          %v2926 = vmul.f32 %v2906, %v2917
          %v2927 = vmul.f32 %v2907, %v2917
          %v2928 = vmul.f32 %v2908, %v2917
          %v2929 = vmul.f32 %v2909, %v2917
          %v2930 = vmul.f32 %v2910, %v2917
          %v2931 = vmul.f32 %v2911, %v2917
          %v2932 = vmul.f32 %v2912, %v2917
          %v2933 = vmul.f32 %v2913, %v2917
          %v2934 = vadd.f32 %v2882, %v2918
          %v2935 = vadd.f32 %v2883, %v2919
          %v2936 = vadd.f32 %v2884, %v2920
          %v2937 = vadd.f32 %v2885, %v2921
          %v2938 = vadd.f32 %v2886, %v2922
          %v2939 = vadd.f32 %v2887, %v2923
          %v2940 = vadd.f32 %v2888, %v2924
          %v2941 = vadd.f32 %v2889, %v2925
          %v2942 = vadd.f32 %v2890, %v2926
          %v2943 = vadd.f32 %v2891, %v2927
          %v2944 = vadd.f32 %v2892, %v2928
          %v2945 = vadd.f32 %v2893, %v2929
          %v2946 = vadd.f32 %v2894, %v2930
          %v2947 = vadd.f32 %v2895, %v2931
          %v2948 = vadd.f32 %v2896, %v2932
          %v2949 = vadd.f32 %v2897, %v2933
          %v2950 = vld [vmem:[%s2793 + $0x8] sm:$0xff]
          %v2951 = vld [vmem:[%s2793 + $0x10] sm:$0xff]
          %v2952 = vld [vmem:[%s2793 + $0x28] sm:$0xff]
          %v2953 = vld [vmem:[%s2793 + $0x30] sm:$0xff]
          %v2954 = vld [vmem:[%s2793 + $0x48] sm:$0xff]
          %v2955 = vld [vmem:[%s2793 + $0x50] sm:$0xff]
          %v2956 = vld [vmem:[%s2793 + $0x68] sm:$0xff]
          %v2957 = vld [vmem:[%s2793 + $0x70] sm:$0xff]
          %v2958 = vld [vmem:[%s2793 + $0x88] sm:$0xff]
          %v2959 = vld [vmem:[%s2793 + $0x90] sm:$0xff]
          %v2960 = vld [vmem:[%s2793 + $0xa8] sm:$0xff]
          %v2961 = vld [vmem:[%s2793 + $0xb0] sm:$0xff]
          %v2962 = vld [vmem:[%s2793 + $0xc8] sm:$0xff]
          %v2963 = vld [vmem:[%s2793 + $0xd0] sm:$0xff]
          %v2964 = vld [vmem:[%s2793 + $0xe8] sm:$0xff]
          %v2965 = vld [vmem:[%s2793 + $0xf0] sm:$0xff]
          %v2966 = vlaneseq
          %v2967 = vshrl.u32 %v2966, 7
          %v2968 = vsub.s32 3, %v2967
          %v2969 = vrot.slane %v578, %v2968
          %v2970 = vmul.f32 %v2950, %v2969
          %v2971 = vmul.f32 %v2951, %v2969
          %v2972 = vmul.f32 %v2952, %v2969
          %v2973 = vmul.f32 %v2953, %v2969
          %v2974 = vmul.f32 %v2954, %v2969
          %v2975 = vmul.f32 %v2955, %v2969
          %v2976 = vmul.f32 %v2956, %v2969
          %v2977 = vmul.f32 %v2957, %v2969
          %v2978 = vmul.f32 %v2958, %v2969
          %v2979 = vmul.f32 %v2959, %v2969
          %v2980 = vmul.f32 %v2960, %v2969
          %v2981 = vmul.f32 %v2961, %v2969
          %v2982 = vmul.f32 %v2962, %v2969
          %v2983 = vmul.f32 %v2963, %v2969
          %v2984 = vmul.f32 %v2964, %v2969
          %v2985 = vmul.f32 %v2965, %v2969
          %v2986 = vadd.f32 %v2934, %v2970
          %v2987 = vadd.f32 %v2935, %v2971
          %v2988 = vadd.f32 %v2936, %v2972
          %v2989 = vadd.f32 %v2937, %v2973
          %v2990 = vadd.f32 %v2938, %v2974
          %v2991 = vadd.f32 %v2939, %v2975
          %v2992 = vadd.f32 %v2940, %v2976
          %v2993 = vadd.f32 %v2941, %v2977
          %v2994 = vadd.f32 %v2942, %v2978
          %v2995 = vadd.f32 %v2943, %v2979
          %v2996 = vadd.f32 %v2944, %v2980
          %v2997 = vadd.f32 %v2945, %v2981
          %v2998 = vadd.f32 %v2946, %v2982
          %v2999 = vadd.f32 %v2947, %v2983
          %v3000 = vadd.f32 %v2948, %v2984
          %v3001 = vadd.f32 %v2949, %v2985
          %v3002 = vld [vmem:[%s2793 + $0x9] sm:$0xff]
          %v3003 = vld [vmem:[%s2793 + $0x11] sm:$0xff]
          %v3004 = vld [vmem:[%s2793 + $0x29] sm:$0xff]
          %v3005 = vld [vmem:[%s2793 + $0x31] sm:$0xff]
          %v3006 = vld [vmem:[%s2793 + $0x49] sm:$0xff]
          %v3007 = vld [vmem:[%s2793 + $0x51] sm:$0xff]
          %v3008 = vld [vmem:[%s2793 + $0x69] sm:$0xff]
          %v3009 = vld [vmem:[%s2793 + $0x71] sm:$0xff]
          %v3010 = vld [vmem:[%s2793 + $0x89] sm:$0xff]
          %v3011 = vld [vmem:[%s2793 + $0x91] sm:$0xff]
          %v3012 = vld [vmem:[%s2793 + $0xa9] sm:$0xff]
          %v3013 = vld [vmem:[%s2793 + $0xb1] sm:$0xff]
          %v3014 = vld [vmem:[%s2793 + $0xc9] sm:$0xff]
          %v3015 = vld [vmem:[%s2793 + $0xd1] sm:$0xff]
          %v3016 = vld [vmem:[%s2793 + $0xe9] sm:$0xff]
          %v3017 = vld [vmem:[%s2793 + $0xf1] sm:$0xff]
          %v3018 = vlaneseq
          %v3019 = vshrl.u32 %v3018, 7
          %v3020 = vsub.s32 4, %v3019
          %v3021 = vrot.slane %v578, %v3020
          %v3022 = vmul.f32 %v3002, %v3021
          %v3023 = vmul.f32 %v3003, %v3021
          %v3024 = vmul.f32 %v3004, %v3021
          %v3025 = vmul.f32 %v3005, %v3021
          %v3026 = vmul.f32 %v3006, %v3021
          %v3027 = vmul.f32 %v3007, %v3021
          %v3028 = vmul.f32 %v3008, %v3021
          %v3029 = vmul.f32 %v3009, %v3021
          %v3030 = vmul.f32 %v3010, %v3021
          %v3031 = vmul.f32 %v3011, %v3021
          %v3032 = vmul.f32 %v3012, %v3021
          %v3033 = vmul.f32 %v3013, %v3021
          %v3034 = vmul.f32 %v3014, %v3021
          %v3035 = vmul.f32 %v3015, %v3021
          %v3036 = vmul.f32 %v3016, %v3021
          %v3037 = vmul.f32 %v3017, %v3021
          %v3038 = vadd.f32 %v2986, %v3022
          %v3039 = vadd.f32 %v2987, %v3023
          %v3040 = vadd.f32 %v2988, %v3024
          %v3041 = vadd.f32 %v2989, %v3025
          %v3042 = vadd.f32 %v2990, %v3026
          %v3043 = vadd.f32 %v2991, %v3027
          %v3044 = vadd.f32 %v2992, %v3028
          %v3045 = vadd.f32 %v2993, %v3029
          %v3046 = vadd.f32 %v2994, %v3030
          %v3047 = vadd.f32 %v2995, %v3031
          %v3048 = vadd.f32 %v2996, %v3032
          %v3049 = vadd.f32 %v2997, %v3033
          %v3050 = vadd.f32 %v2998, %v3034
          %v3051 = vadd.f32 %v2999, %v3035
          %v3052 = vadd.f32 %v3000, %v3036
          %v3053 = vadd.f32 %v3001, %v3037
          %v3054 = vld [vmem:[%s2793 + $0xa] sm:$0xff]
          %v3055 = vld [vmem:[%s2793 + $0x12] sm:$0xff]
          %v3056 = vld [vmem:[%s2793 + $0x2a] sm:$0xff]
          %v3057 = vld [vmem:[%s2793 + $0x32] sm:$0xff]
          %v3058 = vld [vmem:[%s2793 + $0x4a] sm:$0xff]
          %v3059 = vld [vmem:[%s2793 + $0x52] sm:$0xff]
          %v3060 = vld [vmem:[%s2793 + $0x6a] sm:$0xff]
          %v3061 = vld [vmem:[%s2793 + $0x72] sm:$0xff]
          %v3062 = vld [vmem:[%s2793 + $0x8a] sm:$0xff]
          %v3063 = vld [vmem:[%s2793 + $0x92] sm:$0xff]
          %v3064 = vld [vmem:[%s2793 + $0xaa] sm:$0xff]
          %v3065 = vld [vmem:[%s2793 + $0xb2] sm:$0xff]
          %v3066 = vld [vmem:[%s2793 + $0xca] sm:$0xff]
          %v3067 = vld [vmem:[%s2793 + $0xd2] sm:$0xff]
          %v3068 = vld [vmem:[%s2793 + $0xea] sm:$0xff]
          %v3069 = vld [vmem:[%s2793 + $0xf2] sm:$0xff]
          %v3070 = vlaneseq
          %v3071 = vshrl.u32 %v3070, 7
          %v3072 = vsub.s32 5, %v3071
          %v3073 = vrot.slane %v578, %v3072
          %v3074 = vmul.f32 %v3054, %v3073
          %v3075 = vmul.f32 %v3055, %v3073
          %v3076 = vmul.f32 %v3056, %v3073
          %v3077 = vmul.f32 %v3057, %v3073
          %v3078 = vmul.f32 %v3058, %v3073
          %v3079 = vmul.f32 %v3059, %v3073
          %v3080 = vmul.f32 %v3060, %v3073
          %v3081 = vmul.f32 %v3061, %v3073
          %v3082 = vmul.f32 %v3062, %v3073
          %v3083 = vmul.f32 %v3063, %v3073
          %v3084 = vmul.f32 %v3064, %v3073
          %v3085 = vmul.f32 %v3065, %v3073
          %v3086 = vmul.f32 %v3066, %v3073
          %v3087 = vmul.f32 %v3067, %v3073
          %v3088 = vmul.f32 %v3068, %v3073
          %v3089 = vmul.f32 %v3069, %v3073
          %v3090 = vadd.f32 %v3038, %v3074
          %v3091 = vadd.f32 %v3039, %v3075
          %v3092 = vadd.f32 %v3040, %v3076
          %v3093 = vadd.f32 %v3041, %v3077
          %v3094 = vadd.f32 %v3042, %v3078
          %v3095 = vadd.f32 %v3043, %v3079
          %v3096 = vadd.f32 %v3044, %v3080
          %v3097 = vadd.f32 %v3045, %v3081
          %v3098 = vadd.f32 %v3046, %v3082
          %v3099 = vadd.f32 %v3047, %v3083
          %v3100 = vadd.f32 %v3048, %v3084
          %v3101 = vadd.f32 %v3049, %v3085
          %v3102 = vadd.f32 %v3050, %v3086
          %v3103 = vadd.f32 %v3051, %v3087
          %v3104 = vadd.f32 %v3052, %v3088
          %v3105 = vadd.f32 %v3053, %v3089
          %v3106 = vld [vmem:[%s2793 + $0xb] sm:$0xff]
          %v3107 = vld [vmem:[%s2793 + $0x13] sm:$0xff]
          %v3108 = vld [vmem:[%s2793 + $0x2b] sm:$0xff]
          %v3109 = vld [vmem:[%s2793 + $0x33] sm:$0xff]
          %v3110 = vld [vmem:[%s2793 + $0x4b] sm:$0xff]
          %v3111 = vld [vmem:[%s2793 + $0x53] sm:$0xff]
          %v3112 = vld [vmem:[%s2793 + $0x6b] sm:$0xff]
          %v3113 = vld [vmem:[%s2793 + $0x73] sm:$0xff]
          %v3114 = vld [vmem:[%s2793 + $0x8b] sm:$0xff]
          %v3115 = vld [vmem:[%s2793 + $0x93] sm:$0xff]
          %v3116 = vld [vmem:[%s2793 + $0xab] sm:$0xff]
          %v3117 = vld [vmem:[%s2793 + $0xb3] sm:$0xff]
          %v3118 = vld [vmem:[%s2793 + $0xcb] sm:$0xff]
          %v3119 = vld [vmem:[%s2793 + $0xd3] sm:$0xff]
          %v3120 = vld [vmem:[%s2793 + $0xeb] sm:$0xff]
          %v3121 = vld [vmem:[%s2793 + $0xf3] sm:$0xff]
          %v3122 = vlaneseq
          %v3123 = vshrl.u32 %v3122, 7
          %v3124 = vsub.s32 6, %v3123
          %v3125 = vrot.slane %v578, %v3124
          %v3126 = vmul.f32 %v3106, %v3125
          %v3127 = vmul.f32 %v3107, %v3125
          %v3128 = vmul.f32 %v3108, %v3125
          %v3129 = vmul.f32 %v3109, %v3125
          %v3130 = vmul.f32 %v3110, %v3125
          %v3131 = vmul.f32 %v3111, %v3125
          %v3132 = vmul.f32 %v3112, %v3125
          %v3133 = vmul.f32 %v3113, %v3125
          %v3134 = vmul.f32 %v3114, %v3125
          %v3135 = vmul.f32 %v3115, %v3125
          %v3136 = vmul.f32 %v3116, %v3125
          %v3137 = vmul.f32 %v3117, %v3125
          %v3138 = vmul.f32 %v3118, %v3125
          %v3139 = vmul.f32 %v3119, %v3125
          %v3140 = vmul.f32 %v3120, %v3125
          %v3141 = vmul.f32 %v3121, %v3125
          %v3142 = vadd.f32 %v3090, %v3126
          %v3143 = vadd.f32 %v3091, %v3127
          %v3144 = vadd.f32 %v3092, %v3128
          %v3145 = vadd.f32 %v3093, %v3129
          %v3146 = vadd.f32 %v3094, %v3130
          %v3147 = vadd.f32 %v3095, %v3131
          %v3148 = vadd.f32 %v3096, %v3132
          %v3149 = vadd.f32 %v3097, %v3133
          %v3150 = vadd.f32 %v3098, %v3134
          %v3151 = vadd.f32 %v3099, %v3135
          %v3152 = vadd.f32 %v3100, %v3136
          %v3153 = vadd.f32 %v3101, %v3137
          %v3154 = vadd.f32 %v3102, %v3138
          %v3155 = vadd.f32 %v3103, %v3139
          %v3156 = vadd.f32 %v3104, %v3140
          %v3157 = vadd.f32 %v3105, %v3141
          %v3159 = vlaneseq
          %v3160 = vshrl.u32 %v3159, 7
          %v3161 = vsub.s32 0, %v3160
          %v3162 = vrot.slane %v579, %v3161
          %v3164 = vmul.f32 %v3142, %v3162
          %v3165 = vmul.f32 %v3143, %v3162
          %v3166 = vmul.f32 %v3144, %v3162
          %v3167 = vmul.f32 %v3145, %v3162
          %v3168 = vmul.f32 %v3146, %v3162
          %v3169 = vmul.f32 %v3147, %v3162
          %v3170 = vmul.f32 %v3148, %v3162
          %v3171 = vmul.f32 %v3149, %v3162
          %v3172 = vmul.f32 %v3150, %v3162
          %v3173 = vmul.f32 %v3151, %v3162
          %v3174 = vmul.f32 %v3152, %v3162
          %v3175 = vmul.f32 %v3153, %v3162
          %v3176 = vmul.f32 %v3154, %v3162
          %v3177 = vmul.f32 %v3155, %v3162
          %v3178 = vmul.f32 %v3156, %v3162
          %v3179 = vmul.f32 %v3157, %v3162
          %v3181 = vlaneseq
          %v3182 = vshrl.u32 %v3181, 7
          %v3183 = vsub.s32 0, %v3182
          %v3184 = vrot.slane %v580, %v3183
          %v3186 = vadd.f32 %v3164, %v3184
          %v3187 = vadd.f32 %v3165, %v3184
          %v3188 = vadd.f32 %v3166, %v3184
          %v3189 = vadd.f32 %v3167, %v3184
          %v3190 = vadd.f32 %v3168, %v3184
          %v3191 = vadd.f32 %v3169, %v3184
          %v3192 = vadd.f32 %v3170, %v3184
          %v3193 = vadd.f32 %v3171, %v3184
          %v3194 = vadd.f32 %v3172, %v3184
          %v3195 = vadd.f32 %v3173, %v3184
          %v3196 = vadd.f32 %v3174, %v3184
          %v3197 = vadd.f32 %v3175, %v3184
          %v3198 = vadd.f32 %v3176, %v3184
          %v3199 = vadd.f32 %v3177, %v3184
          %v3200 = vadd.f32 %v3178, %v3184
          %v3201 = vadd.f32 %v3179, %v3184
          %3202 = vadd.xlane.f32.xlu0 %v3186
          %v3203 = vpop.xlane.xlu0 %3202
          %3204 = vadd.xlane.f32.xlu0 %v3187
          %v3205 = vpop.xlane.xlu0 %3204
          %3206 = vadd.xlane.f32.xlu0 %v3188
          %v3207 = vpop.xlane.xlu0 %3206
          %3208 = vadd.xlane.f32.xlu0 %v3189
          %v3209 = vpop.xlane.xlu0 %3208
          %3210 = vadd.xlane.f32.xlu0 %v3190
          %v3211 = vpop.xlane.xlu0 %3210
          %3212 = vadd.xlane.f32.xlu0 %v3191
          %v3213 = vpop.xlane.xlu0 %3212
          %3214 = vadd.xlane.f32.xlu0 %v3192
          %v3215 = vpop.xlane.xlu0 %3214
          %3216 = vadd.xlane.f32.xlu0 %v3193
          %v3217 = vpop.xlane.xlu0 %3216
          %3218 = vadd.xlane.f32.xlu0 %v3194
          %v3219 = vpop.xlane.xlu0 %3218
          %3220 = vadd.xlane.f32.xlu0 %v3195
          %v3221 = vpop.xlane.xlu0 %3220
          %3222 = vadd.xlane.f32.xlu0 %v3196
          %v3223 = vpop.xlane.xlu0 %3222
          %3224 = vadd.xlane.f32.xlu0 %v3197
          %v3225 = vpop.xlane.xlu0 %3224
          %3226 = vadd.xlane.f32.xlu0 %v3198
          %v3227 = vpop.xlane.xlu0 %3226
          %3228 = vadd.xlane.f32.xlu0 %v3199
          %v3229 = vpop.xlane.xlu0 %3228
          %3230 = vadd.xlane.f32.xlu0 %v3200
          %v3231 = vpop.xlane.xlu0 %3230
          %3232 = vadd.xlane.f32.xlu0 %v3201
          %v3233 = vpop.xlane.xlu0 %3232
          %v3234 = vrcp.pop 128.0
          %v3235 = vmul.f32 %v3203, %v3234
          %v3236 = vmul.f32 %v3205, %v3234
          %v3237 = vmul.f32 %v3207, %v3234
          %v3238 = vmul.f32 %v3209, %v3234
          %v3239 = vmul.f32 %v3211, %v3234
          %v3240 = vmul.f32 %v3213, %v3234
          %v3241 = vmul.f32 %v3215, %v3234
          %v3242 = vmul.f32 %v3217, %v3234
          %v3243 = vmul.f32 %v3219, %v3234
          %v3244 = vmul.f32 %v3221, %v3234
          %v3245 = vmul.f32 %v3223, %v3234
          %v3246 = vmul.f32 %v3225, %v3234
          %v3247 = vmul.f32 %v3227, %v3234
          %v3248 = vmul.f32 %v3229, %v3234
          %v3249 = vmul.f32 %v3231, %v3234
          %v3250 = vmul.f32 %v3233, %v3234
          %v3251 = vsub.f32 %v3186, %v3235
          %v3252 = vsub.f32 %v3187, %v3236
          %v3253 = vsub.f32 %v3188, %v3237
          %v3254 = vsub.f32 %v3189, %v3238
          %v3255 = vsub.f32 %v3190, %v3239
          %v3256 = vsub.f32 %v3191, %v3240
          %v3257 = vsub.f32 %v3192, %v3241
          %v3258 = vsub.f32 %v3193, %v3242
          %v3259 = vsub.f32 %v3194, %v3243
          %v3260 = vsub.f32 %v3195, %v3244
          %v3261 = vsub.f32 %v3196, %v3245
          %v3262 = vsub.f32 %v3197, %v3246
          %v3263 = vsub.f32 %v3198, %v3247
          %v3264 = vsub.f32 %v3199, %v3248
          %v3265 = vsub.f32 %v3200, %v3249
          %v3266 = vsub.f32 %v3201, %v3250
          %v3267 = vmul.f32 %v3251, %v3251
          %v3268 = vmul.f32 %v3252, %v3252
          %v3269 = vmul.f32 %v3253, %v3253
          %v3270 = vmul.f32 %v3254, %v3254
          %v3271 = vmul.f32 %v3255, %v3255
          %v3272 = vmul.f32 %v3256, %v3256
          %v3273 = vmul.f32 %v3257, %v3257
          %v3274 = vmul.f32 %v3258, %v3258
          %v3275 = vmul.f32 %v3259, %v3259
          %v3276 = vmul.f32 %v3260, %v3260
          %v3277 = vmul.f32 %v3261, %v3261
          %v3278 = vmul.f32 %v3262, %v3262
          %v3279 = vmul.f32 %v3263, %v3263
          %v3280 = vmul.f32 %v3264, %v3264
          %v3281 = vmul.f32 %v3265, %v3265
          %v3282 = vmul.f32 %v3266, %v3266
          %3283 = vadd.xlane.f32.xlu0 %v3267
          %v3284 = vpop.xlane.xlu0 %3283
          %3285 = vadd.xlane.f32.xlu0 %v3268
          %v3286 = vpop.xlane.xlu0 %3285
          %3287 = vadd.xlane.f32.xlu0 %v3269
          %v3288 = vpop.xlane.xlu0 %3287
          %3289 = vadd.xlane.f32.xlu0 %v3270
          %v3290 = vpop.xlane.xlu0 %3289
          %3291 = vadd.xlane.f32.xlu0 %v3271
          %v3292 = vpop.xlane.xlu0 %3291
          %3293 = vadd.xlane.f32.xlu0 %v3272
          %v3294 = vpop.xlane.xlu0 %3293
          %3295 = vadd.xlane.f32.xlu0 %v3273
          %v3296 = vpop.xlane.xlu0 %3295
          %3297 = vadd.xlane.f32.xlu0 %v3274
          %v3298 = vpop.xlane.xlu0 %3297
          %3299 = vadd.xlane.f32.xlu0 %v3275
          %v3300 = vpop.xlane.xlu0 %3299
          %3301 = vadd.xlane.f32.xlu0 %v3276
          %v3302 = vpop.xlane.xlu0 %3301
          %3303 = vadd.xlane.f32.xlu0 %v3277
          %v3304 = vpop.xlane.xlu0 %3303
          %3305 = vadd.xlane.f32.xlu0 %v3278
          %v3306 = vpop.xlane.xlu0 %3305
          %3307 = vadd.xlane.f32.xlu0 %v3279
          %v3308 = vpop.xlane.xlu0 %3307
          %3309 = vadd.xlane.f32.xlu0 %v3280
          %v3310 = vpop.xlane.xlu0 %3309
          %3311 = vadd.xlane.f32.xlu0 %v3281
          %v3312 = vpop.xlane.xlu0 %3311
          %3313 = vadd.xlane.f32.xlu0 %v3282
          %v3314 = vpop.xlane.xlu0 %3313
          %v3315 = vmul.f32 %v3284, %v3234
          %v3316 = vmul.f32 %v3286, %v3234
          %v3317 = vmul.f32 %v3288, %v3234
          %v3318 = vmul.f32 %v3290, %v3234
          %v3319 = vmul.f32 %v3292, %v3234
          %v3320 = vmul.f32 %v3294, %v3234
          %v3321 = vmul.f32 %v3296, %v3234
          %v3322 = vmul.f32 %v3298, %v3234
          %v3323 = vmul.f32 %v3300, %v3234
          %v3324 = vmul.f32 %v3302, %v3234
          %v3325 = vmul.f32 %v3304, %v3234
          %v3326 = vmul.f32 %v3306, %v3234
          %v3327 = vmul.f32 %v3308, %v3234
          %v3328 = vmul.f32 %v3310, %v3234
          %v3329 = vmul.f32 %v3312, %v3234
          %v3330 = vmul.f32 %v3314, %v3234
          %v3331 = vadd.f32 %v3315, 1e-06
          %v3332 = vadd.f32 %v3316, 1e-06
          %v3333 = vadd.f32 %v3317, 1e-06
          %v3334 = vadd.f32 %v3318, 1e-06
          %v3335 = vadd.f32 %v3319, 1e-06
          %v3336 = vadd.f32 %v3320, 1e-06
          %v3337 = vadd.f32 %v3321, 1e-06
          %v3338 = vadd.f32 %v3322, 1e-06
          %v3339 = vadd.f32 %v3323, 1e-06
          %v3340 = vadd.f32 %v3324, 1e-06
          %v3341 = vadd.f32 %v3325, 1e-06
          %v3342 = vadd.f32 %v3326, 1e-06
          %v3343 = vadd.f32 %v3327, 1e-06
          %v3344 = vadd.f32 %v3328, 1e-06
          %v3345 = vadd.f32 %v3329, 1e-06
          %v3346 = vadd.f32 %v3330, 1e-06
          %v3347 = vrsqrt.pop %v3331
          %v3348 = vrsqrt.pop %v3332
          %v3349 = vrsqrt.pop %v3333
          %v3350 = vrsqrt.pop %v3334
          %v3351 = vrsqrt.pop %v3335
          %v3352 = vrsqrt.pop %v3336
          %v3353 = vrsqrt.pop %v3337
          %v3354 = vrsqrt.pop %v3338
          %v3355 = vrsqrt.pop %v3339
          %v3356 = vrsqrt.pop %v3340
          %v3357 = vrsqrt.pop %v3341
          %v3358 = vrsqrt.pop %v3342
          %v3359 = vrsqrt.pop %v3343
          %v3360 = vrsqrt.pop %v3344
          %v3361 = vrsqrt.pop %v3345
          %v3362 = vrsqrt.pop %v3346
          %v3363 = vmul.f32 %v3251, %v3347
          %v3364 = vmul.f32 %v3252, %v3348
          %v3365 = vmul.f32 %v3253, %v3349
          %v3366 = vmul.f32 %v3254, %v3350
          %v3367 = vmul.f32 %v3255, %v3351
          %v3368 = vmul.f32 %v3256, %v3352
          %v3369 = vmul.f32 %v3257, %v3353
          %v3370 = vmul.f32 %v3258, %v3354
          %v3371 = vmul.f32 %v3259, %v3355
          %v3372 = vmul.f32 %v3260, %v3356
          %v3373 = vmul.f32 %v3261, %v3357
          %v3374 = vmul.f32 %v3262, %v3358
          %v3375 = vmul.f32 %v3263, %v3359
          %v3376 = vmul.f32 %v3264, %v3360
          %v3377 = vmul.f32 %v3265, %v3361
          %v3378 = vmul.f32 %v3266, %v3362
          %v3380 = vlaneseq
          %v3381 = vshrl.u32 %v3380, 7
          %v3382 = vsub.s32 0, %v3381
          %v3383 = vrot.slane %v581, %v3382
          %v3385 = vmul.f32 %v3363, %v3383
          %v3386 = vmul.f32 %v3364, %v3383
          %v3387 = vmul.f32 %v3365, %v3383
          %v3388 = vmul.f32 %v3366, %v3383
          %v3389 = vmul.f32 %v3367, %v3383
          %v3390 = vmul.f32 %v3368, %v3383
          %v3391 = vmul.f32 %v3369, %v3383
          %v3392 = vmul.f32 %v3370, %v3383
          %v3393 = vmul.f32 %v3371, %v3383
          %v3394 = vmul.f32 %v3372, %v3383
          %v3395 = vmul.f32 %v3373, %v3383
          %v3396 = vmul.f32 %v3374, %v3383
          %v3397 = vmul.f32 %v3375, %v3383
          %v3398 = vmul.f32 %v3376, %v3383
          %v3399 = vmul.f32 %v3377, %v3383
          %v3400 = vmul.f32 %v3378, %v3383
          %v3402 = vlaneseq
          %v3403 = vshrl.u32 %v3402, 7
          %v3404 = vsub.s32 0, %v3403
          %v3405 = vrot.slane %v582, %v3404
          %v3407 = vadd.f32 %v3385, %v3405
          %v3408 = vadd.f32 %v3386, %v3405
          %v3409 = vadd.f32 %v3387, %v3405
          %v3410 = vadd.f32 %v3388, %v3405
          %v3411 = vadd.f32 %v3389, %v3405
          %v3412 = vadd.f32 %v3390, %v3405
          %v3413 = vadd.f32 %v3391, %v3405
          %v3414 = vadd.f32 %v3392, %v3405
          %v3415 = vadd.f32 %v3393, %v3405
          %v3416 = vadd.f32 %v3394, %v3405
          %v3417 = vadd.f32 %v3395, %v3405
          %v3418 = vadd.f32 %v3396, %v3405
          %v3419 = vadd.f32 %v3397, %v3405
          %v3420 = vadd.f32 %v3398, %v3405
          %v3421 = vadd.f32 %v3399, %v3405
          %v3422 = vadd.f32 %v3400, %v3405
          %s3423 = smul.u32 %s589, 16
          %v3424 = vpack.c.bf16 %v3408, %v3407
          %v3425 = vpack.c.bf16 %v3410, %v3409
          %v3426 = vpack.c.bf16 %v3412, %v3411
          %v3427 = vpack.c.bf16 %v3414, %v3413
          %v3428 = vpack.c.bf16 %v3416, %v3415
          %v3429 = vpack.c.bf16 %v3418, %v3417
          %v3430 = vpack.c.bf16 %v3420, %v3419
          %v3431 = vpack.c.bf16 %v3422, %v3421
          %s3432 = sshra.s32 %s3423, 4
          %s3433 = sand.u32 %s3423, 15
          %s3434 = smul.addr %s3432, 8
          %s3435 = scalar_lea.vmem [#allocation3], %s3434
          %3436 = vst [vmem:[%s3435] sm:$0xff] %v3424
          %3437 = vst [vmem:[%s3435 + $0x8] sm:$0xff] %v3425
          %3438 = vst [vmem:[%s3435 + $0x10] sm:$0xff] %v3426
          %3439 = vst [vmem:[%s3435 + $0x18] sm:$0xff] %v3427
          %3440 = vst [vmem:[%s3435 + $0x20] sm:$0xff] %v3428
          %3441 = vst [vmem:[%s3435 + $0x28] sm:$0xff] %v3429
          %3442 = vst [vmem:[%s3435 + $0x30] sm:$0xff] %v3430
          %3443 = vst [vmem:[%s3435 + $0x38] sm:$0xff] %v3431
        $region85: #{tpu_custom_call.1} parent=63 // loop_footer
          %s588 = sadd.s32 1, %s584
        $region86: #{tpu_custom_call.1} parent=63 // loop_footer_branch
          %583 = sbr.rel target = $region82
        $region87: #{tpu_custom_call.1} parent=63 // loop_exit
          _
        %v3444 = vld [vmem:[#allocation3] sm:$0xff]
        %v3445 = vld [vmem:[#allocation3 + $0x8] sm:$0xff]
        %v3446 = vld [vmem:[#allocation3 + $0x10] sm:$0xff]
        %v3447 = vld [vmem:[#allocation3 + $0x18] sm:$0xff]
        %v3448 = vld [vmem:[#allocation3 + $0x20] sm:$0xff]
        %v3449 = vld [vmem:[#allocation3 + $0x28] sm:$0xff]
        %v3450 = vld [vmem:[#allocation3 + $0x30] sm:$0xff]
        %v3451 = vld [vmem:[#allocation3 + $0x38] sm:$0xff]
        %v3452 = vld [vmem:[#allocation3 + $0x40] sm:$0xff]
        %v3453 = vld [vmem:[#allocation3 + $0x48] sm:$0xff]
        %v3454 = vld [vmem:[#allocation3 + $0x50] sm:$0xff]
        %v3455 = vld [vmem:[#allocation3 + $0x58] sm:$0xff]
        %v3456 = vld [vmem:[#allocation3 + $0x60] sm:$0xff]
        %v3457 = vld [vmem:[#allocation3 + $0x68] sm:$0xff]
        %v3458 = vld [vmem:[#allocation3 + $0x70] sm:$0xff]
        %v3459 = vld [vmem:[#allocation3 + $0x78] sm:$0xff]
        %v3460 = vld [vmem:[#allocation9] sm:$0xff]
        %v3461 = vld [vmem:[#allocation9 + $0x8] sm:$0xff]
        %v3462 = vld [vmem:[#allocation9 + $0x10] sm:$0xff]
        %v3463 = vld [vmem:[#allocation9 + $0x18] sm:$0xff]
        %v3464 = vld [vmem:[#allocation9 + $0x20] sm:$0xff]
        %v3465 = vld [vmem:[#allocation9 + $0x28] sm:$0xff]
        %v3466 = vld [vmem:[#allocation9 + $0x30] sm:$0xff]
        %v3467 = vld [vmem:[#allocation9 + $0x38] sm:$0xff]
        %v3468 = vld [vmem:[#allocation9 + $0x40] sm:$0xff]
        %v3469 = vld [vmem:[#allocation9 + $0x48] sm:$0xff]
        %v3470 = vld [vmem:[#allocation9 + $0x50] sm:$0xff]
        %v3471 = vld [vmem:[#allocation9 + $0x58] sm:$0xff]
        %v3472 = vld [vmem:[#allocation9 + $0x60] sm:$0xff]
        %v3473 = vld [vmem:[#allocation9 + $0x68] sm:$0xff]
        %v3474 = vld [vmem:[#allocation9 + $0x70] sm:$0xff]
        %v3475 = vld [vmem:[#allocation9 + $0x78] sm:$0xff]
        %v3476 = vld [vmem:[#allocation9 + $0x80] sm:$0xff]
        %v3477 = vld [vmem:[#allocation9 + $0x88] sm:$0xff]
        %v3478 = vld [vmem:[#allocation9 + $0x90] sm:$0xff]
        %v3479 = vld [vmem:[#allocation9 + $0x98] sm:$0xff]
        %v3480 = vld [vmem:[#allocation9 + $0xa0] sm:$0xff]
        %v3481 = vld [vmem:[#allocation9 + $0xa8] sm:$0xff]
        %v3482 = vld [vmem:[#allocation9 + $0xb0] sm:$0xff]
        %v3483 = vld [vmem:[#allocation9 + $0xb8] sm:$0xff]
        %v3484 = vld [vmem:[#allocation9 + $0xc0] sm:$0xff]
        %v3485 = vld [vmem:[#allocation9 + $0xc8] sm:$0xff]
        %v3486 = vld [vmem:[#allocation9 + $0xd0] sm:$0xff]
        %v3487 = vld [vmem:[#allocation9 + $0xd8] sm:$0xff]
        %v3488 = vld [vmem:[#allocation9 + $0xe0] sm:$0xff]
        %v3489 = vld [vmem:[#allocation9 + $0xe8] sm:$0xff]
        %v3490 = vld [vmem:[#allocation9 + $0xf0] sm:$0xff]
        %v3491 = vld [vmem:[#allocation9 + $0xf8] sm:$0xff]
        %v3492 = vld [vmem:[%s7] sm:$0xf]
        %v3494 = vlaneseq
        %v3495 = vshrl.u32 %v3494, 7
        %v3496 = vsub.s32 0, %v3495
        %v3497 = vrot.slane %v3492, %v3496
        %v3498 = vlaneseq
        %v3499 = vshrl.u32 %v3498, 7
        %v3500 = vsub.s32 1, %v3499
        %v3501 = vrot.slane %v3492, %v3500
        %v3502 = vlaneseq
        %v3503 = vshrl.u32 %v3502, 7
        %v3504 = vsub.s32 2, %v3503
        %v3505 = vrot.slane %v3492, %v3504
        %v3506 = vlaneseq
        %v3507 = vshrl.u32 %v3506, 7
        %v3508 = vsub.s32 3, %v3507
        %v3509 = vrot.slane %v3492, %v3508
        %v3546 = vunpack.c.l.b16 %v3460
        %v3547 = vunpack.c.h.b16 %v3460
        %v3548 = vunpack.c.l.b16 %v3461
        %v3549 = vunpack.c.h.b16 %v3461
        %v3550 = vunpack.c.l.b16 %v3462
        %v3551 = vunpack.c.h.b16 %v3462
        %v3552 = vunpack.c.l.b16 %v3463
        %v3553 = vunpack.c.h.b16 %v3463
        %v3554 = vunpack.c.l.b16 %v3464
        %v3555 = vunpack.c.h.b16 %v3464
        %v3556 = vunpack.c.l.b16 %v3465
        %v3557 = vunpack.c.h.b16 %v3465
        %v3558 = vunpack.c.l.b16 %v3466
        %v3559 = vunpack.c.h.b16 %v3466
        %v3560 = vunpack.c.l.b16 %v3467
        %v3561 = vunpack.c.h.b16 %v3467
        %v3562 = vunpack.c.l.b16 %v3468
        %v3563 = vunpack.c.h.b16 %v3468
        %v3564 = vunpack.c.l.b16 %v3469
        %v3565 = vunpack.c.h.b16 %v3469
        %v3566 = vunpack.c.l.b16 %v3470
        %v3567 = vunpack.c.h.b16 %v3470
        %v3568 = vunpack.c.l.b16 %v3471
        %v3569 = vunpack.c.h.b16 %v3471
        %v3570 = vunpack.c.l.b16 %v3472
        %v3571 = vunpack.c.h.b16 %v3472
        %v3572 = vunpack.c.l.b16 %v3473
        %v3573 = vunpack.c.h.b16 %v3473
        %v3574 = vunpack.c.l.b16 %v3474
        %v3575 = vunpack.c.h.b16 %v3474
        %v3576 = vunpack.c.l.b16 %v3475
        %v3577 = vunpack.c.h.b16 %v3475
        %v3578 = vunpack.c.l.b16 %v3476
        %v3579 = vunpack.c.h.b16 %v3476
        %v3580 = vunpack.c.l.b16 %v3477
        %v3581 = vunpack.c.h.b16 %v3477
        %v3582 = vunpack.c.l.b16 %v3478
        %v3583 = vunpack.c.h.b16 %v3478
        %v3584 = vunpack.c.l.b16 %v3479
        %v3585 = vunpack.c.h.b16 %v3479
        %v3586 = vunpack.c.l.b16 %v3480
        %v3587 = vunpack.c.h.b16 %v3480
        %v3588 = vunpack.c.l.b16 %v3481
        %v3589 = vunpack.c.h.b16 %v3481
        %v3590 = vunpack.c.l.b16 %v3482
        %v3591 = vunpack.c.h.b16 %v3482
        %v3592 = vunpack.c.l.b16 %v3483
        %v3593 = vunpack.c.h.b16 %v3483
        %v3594 = vunpack.c.l.b16 %v3484
        %v3595 = vunpack.c.h.b16 %v3484
        %v3596 = vunpack.c.l.b16 %v3485
        %v3597 = vunpack.c.h.b16 %v3485
        %v3598 = vunpack.c.l.b16 %v3486
        %v3599 = vunpack.c.h.b16 %v3486
        %v3600 = vunpack.c.l.b16 %v3487
        %v3601 = vunpack.c.h.b16 %v3487
        %v3602 = vunpack.c.l.b16 %v3488
        %v3603 = vunpack.c.h.b16 %v3488
        %v3604 = vunpack.c.l.b16 %v3489
        %v3605 = vunpack.c.h.b16 %v3489
        %v3606 = vunpack.c.l.b16 %v3490
        %v3607 = vunpack.c.h.b16 %v3490
        %v3608 = vunpack.c.l.b16 %v3491
        %v3609 = vunpack.c.h.b16 %v3491
        %v3610 = vpack.c.b16 %v3550, %v3546
        %v3611 = vpack.c.b16 %v3551, %v3547
        %v3612 = vpack.c.b16 %v3552, %v3548
        %v3613 = vpack.c.b16 %v3553, %v3549
        %v3614 = vpack.c.b16 %v3558, %v3554
        %v3615 = vpack.c.b16 %v3559, %v3555
        %v3616 = vpack.c.b16 %v3560, %v3556
        %v3617 = vpack.c.b16 %v3561, %v3557
        %v3618 = vpack.c.b16 %v3566, %v3562
        %v3619 = vpack.c.b16 %v3567, %v3563
        %v3620 = vpack.c.b16 %v3568, %v3564
        %v3621 = vpack.c.b16 %v3569, %v3565
        %v3622 = vpack.c.b16 %v3574, %v3570
        %v3623 = vpack.c.b16 %v3575, %v3571
        %v3624 = vpack.c.b16 %v3576, %v3572
        %v3625 = vpack.c.b16 %v3577, %v3573
        %v3626 = vpack.c.b16 %v3582, %v3578
        %v3627 = vpack.c.b16 %v3583, %v3579
        %v3628 = vpack.c.b16 %v3584, %v3580
        %v3629 = vpack.c.b16 %v3585, %v3581
        %v3630 = vpack.c.b16 %v3590, %v3586
        %v3631 = vpack.c.b16 %v3591, %v3587
        %v3632 = vpack.c.b16 %v3592, %v3588
        %v3633 = vpack.c.b16 %v3593, %v3589
        %v3634 = vpack.c.b16 %v3598, %v3594
        %v3635 = vpack.c.b16 %v3599, %v3595
        %v3636 = vpack.c.b16 %v3600, %v3596
        %v3637 = vpack.c.b16 %v3601, %v3597
        %v3638 = vpack.c.b16 %v3606, %v3602
        %v3639 = vpack.c.b16 %v3607, %v3603
        %v3640 = vpack.c.b16 %v3608, %v3604
        %v3641 = vpack.c.b16 %v3609, %v3605
        %3674 = vmatprep.subr.bf16.mxu0 %v3611
        %3675 = vmatpush1.bf16.msra.mxu0 %v3610
        %3676 = vmatprep.subr.bf16.mxu0 %v3615
        %3677 = vmatpush1.bf16.msra.mxu0 %v3614
        %3678 = vmatprep.subr.bf16.mxu0 %v3619
        %3679 = vmatpush1.bf16.msra.mxu0 %v3618
        %3680 = vmatprep.subr.bf16.mxu0 %v3623
        %3681 = vmatpush1.bf16.msra.mxu0 %v3622
        %3682 = vmatprep.subr.bf16.mxu0 %v3627
        %3683 = vmatpush1.bf16.msra.mxu0 %v3626
        %3684 = vmatprep.subr.bf16.mxu0 %v3631
        %3685 = vmatpush1.bf16.msra.mxu0 %v3630
        %3686 = vmatprep.subr.bf16.mxu0 %v3635
        %3687 = vmatpush1.bf16.msra.mxu0 %v3634
        %3688 = vmatprep.subr.bf16.mxu0 %v3639
        %3689 = vmatpush1.bf16.msra.mxu0 %v3638
        %3690 = vmatprep.subr.bf16.mxu0 0
        %3691 = vmatpush1.bf16.msra.mxu0 0
        %3692 = vmatprep.subr.bf16.mxu0 0
        %3693 = vmatpush1.bf16.msra.mxu0 0
        %3694 = vmatprep.subr.bf16.mxu0 0
        %3695 = vmatpush1.bf16.msra.mxu0 0
        %3696 = vmatprep.subr.bf16.mxu0 0
        %3697 = vmatpush1.bf16.msra.mxu0 0
        %3698 = vmatprep.subr.bf16.mxu0 0
        %3699 = vmatpush1.bf16.msra.mxu0 0
        %3700 = vmatprep.subr.bf16.mxu0 0
        %3701 = vmatpush1.bf16.msra.mxu0 0
        %3702 = vmatprep.subr.bf16.mxu0 0
        %3703 = vmatpush1.bf16.msra.mxu0 0
        %3704 = vmatprep.subr.bf16.mxu0 0
        %3705 = vmatpush1.bf16.msra.mxu0 0
        %3706 = vmatprep.mubr.bf16.mxu0 0
        %3707 = vmatmul.mubr.bf16.gmra.mrb[0].mxu0 %v3444
        %v3708 = vpop.f32.mrb[0].mxu0
        %v3709 = vadd.f32 %v3497, %v3708
        %v3710 = vpop.f32.mrb[0].mxu0
        %v3711 = vadd.f32 %v3501, %v3710
        %v3712 = vpop.f32.mrb[0].mxu0
        %v3713 = vadd.f32 %v3497, %v3712
        %v3714 = vpop.f32.mrb[0].mxu0
        %v3715 = vadd.f32 %v3501, %v3714
        %3716 = vmatprep.mubr.bf16.mxu0 0
        %3717 = vmatmul.mubr.bf16.gmra.mrb[0].mxu0 %v3445
        %v3718 = vpop.f32.mrb[0].mxu0
        %v3719 = vadd.f32 %v3497, %v3718
        %v3720 = vpop.f32.mrb[0].mxu0
        %v3721 = vadd.f32 %v3501, %v3720
        %v3722 = vpop.f32.mrb[0].mxu0
        %v3723 = vadd.f32 %v3497, %v3722
        %v3724 = vpop.f32.mrb[0].mxu0
        %v3725 = vadd.f32 %v3501, %v3724
        %3726 = vmatprep.mubr.bf16.mxu0 0
        %3727 = vmatmul.mubr.bf16.gmra.mrb[0].mxu0 %v3446
        %v3728 = vpop.f32.mrb[0].mxu0
        %v3729 = vadd.f32 %v3497, %v3728
        %v3730 = vpop.f32.mrb[0].mxu0
        %v3731 = vadd.f32 %v3501, %v3730
        %v3732 = vpop.f32.mrb[0].mxu0
        %v3733 = vadd.f32 %v3497, %v3732
        %v3734 = vpop.f32.mrb[0].mxu0
        %v3735 = vadd.f32 %v3501, %v3734
        %3736 = vmatprep.mubr.bf16.mxu0 0
        %3737 = vmatmul.mubr.bf16.gmra.mrb[0].mxu0 %v3447
        %v3738 = vpop.f32.mrb[0].mxu0
        %v3739 = vadd.f32 %v3497, %v3738
        %v3740 = vpop.f32.mrb[0].mxu0
        %v3741 = vadd.f32 %v3501, %v3740
        %v3742 = vpop.f32.mrb[0].mxu0
        %v3743 = vadd.f32 %v3497, %v3742
        %v3744 = vpop.f32.mrb[0].mxu0
        %v3745 = vadd.f32 %v3501, %v3744
        %3746 = vmatprep.mubr.bf16.mxu0 0
        %3747 = vmatmul.mubr.bf16.gmra.mrb[0].mxu0 %v3448
        %v3748 = vpop.f32.mrb[0].mxu0
        %v3749 = vadd.f32 %v3497, %v3748
        %v3750 = vpop.f32.mrb[0].mxu0
        %v3751 = vadd.f32 %v3501, %v3750
        %v3752 = vpop.f32.mrb[0].mxu0
        %v3753 = vadd.f32 %v3497, %v3752
        %v3754 = vpop.f32.mrb[0].mxu0
        %v3755 = vadd.f32 %v3501, %v3754
        %3756 = vmatprep.mubr.bf16.mxu0 0
        %3757 = vmatmul.mubr.bf16.gmra.mrb[0].mxu0 %v3449
        %v3758 = vpop.f32.mrb[0].mxu0
        %v3759 = vadd.f32 %v3497, %v3758
        %v3760 = vpop.f32.mrb[0].mxu0
        %v3761 = vadd.f32 %v3501, %v3760
        %v3762 = vpop.f32.mrb[0].mxu0
        %v3763 = vadd.f32 %v3497, %v3762
        %v3764 = vpop.f32.mrb[0].mxu0
        %v3765 = vadd.f32 %v3501, %v3764
        %3766 = vmatprep.mubr.bf16.mxu0 0
        %3767 = vmatmul.mubr.bf16.gmra.mrb[0].mxu0 %v3450
        %v3768 = vpop.f32.mrb[0].mxu0
        %v3769 = vadd.f32 %v3497, %v3768
        %v3770 = vpop.f32.mrb[0].mxu0
        %v3771 = vadd.f32 %v3501, %v3770
        %v3772 = vpop.f32.mrb[0].mxu0
        %v3773 = vadd.f32 %v3497, %v3772
        %v3774 = vpop.f32.mrb[0].mxu0
        %v3775 = vadd.f32 %v3501, %v3774
        %3776 = vmatprep.mubr.bf16.mxu0 0
        %3777 = vmatmul.mubr.bf16.gmra.mrb[0].mxu0 %v3451
        %v3778 = vpop.f32.mrb[0].mxu0
        %v3779 = vadd.f32 %v3497, %v3778
        %v3780 = vpop.f32.mrb[0].mxu0
        %v3781 = vadd.f32 %v3501, %v3780
        %v3782 = vpop.f32.mrb[0].mxu0
        %v3783 = vadd.f32 %v3497, %v3782
        %v3784 = vpop.f32.mrb[0].mxu0
        %v3785 = vadd.f32 %v3501, %v3784
        %3786 = vmatprep.mubr.bf16.mxu0 0
        %3787 = vmatmul.mubr.bf16.gmra.mrb[0].mxu0 %v3452
        %v3788 = vpop.f32.mrb[0].mxu0
        %v3789 = vadd.f32 %v3497, %v3788
        %v3790 = vpop.f32.mrb[0].mxu0
        %v3791 = vadd.f32 %v3501, %v3790
        %v3792 = vpop.f32.mrb[0].mxu0
        %v3793 = vadd.f32 %v3497, %v3792
        %v3794 = vpop.f32.mrb[0].mxu0
        %v3795 = vadd.f32 %v3501, %v3794
        %3796 = vmatprep.mubr.bf16.mxu0 0
        %3797 = vmatmul.mubr.bf16.gmra.mrb[0].mxu0 %v3453
        %v3798 = vpop.f32.mrb[0].mxu0
        %v3799 = vadd.f32 %v3497, %v3798
        %v3800 = vpop.f32.mrb[0].mxu0
        %v3801 = vadd.f32 %v3501, %v3800
        %v3802 = vpop.f32.mrb[0].mxu0
        %v3803 = vadd.f32 %v3497, %v3802
        %v3804 = vpop.f32.mrb[0].mxu0
        %v3805 = vadd.f32 %v3501, %v3804
        %3806 = vmatprep.mubr.bf16.mxu0 0
        %3807 = vmatmul.mubr.bf16.gmra.mrb[0].mxu0 %v3454
        %v3808 = vpop.f32.mrb[0].mxu0
        %v3809 = vadd.f32 %v3497, %v3808
        %v3810 = vpop.f32.mrb[0].mxu0
        %v3811 = vadd.f32 %v3501, %v3810
        %v3812 = vpop.f32.mrb[0].mxu0
        %v3813 = vadd.f32 %v3497, %v3812
        %v3814 = vpop.f32.mrb[0].mxu0
        %v3815 = vadd.f32 %v3501, %v3814
        %3816 = vmatprep.mubr.bf16.mxu0 0
        %3817 = vmatmul.mubr.bf16.gmra.mrb[0].mxu0 %v3455
        %v3818 = vpop.f32.mrb[0].mxu0
        %v3819 = vadd.f32 %v3497, %v3818
        %v3820 = vpop.f32.mrb[0].mxu0
        %v3821 = vadd.f32 %v3501, %v3820
        %v3822 = vpop.f32.mrb[0].mxu0
        %v3823 = vadd.f32 %v3497, %v3822
        %v3824 = vpop.f32.mrb[0].mxu0
        %v3825 = vadd.f32 %v3501, %v3824
        %3826 = vmatprep.mubr.bf16.mxu0 0
        %3827 = vmatmul.mubr.bf16.gmra.mrb[0].mxu0 %v3456
        %v3828 = vpop.f32.mrb[0].mxu0
        %v3829 = vadd.f32 %v3497, %v3828
        %v3830 = vpop.f32.mrb[0].mxu0
        %v3831 = vadd.f32 %v3501, %v3830
        %v3832 = vpop.f32.mrb[0].mxu0
        %v3833 = vadd.f32 %v3497, %v3832
        %v3834 = vpop.f32.mrb[0].mxu0
        %v3835 = vadd.f32 %v3501, %v3834
        %3836 = vmatprep.mubr.bf16.mxu0 0
        %3837 = vmatmul.mubr.bf16.gmra.mrb[0].mxu0 %v3457
        %v3838 = vpop.f32.mrb[0].mxu0
        %v3839 = vadd.f32 %v3497, %v3838
        %v3840 = vpop.f32.mrb[0].mxu0
        %v3841 = vadd.f32 %v3501, %v3840
        %v3842 = vpop.f32.mrb[0].mxu0
        %v3843 = vadd.f32 %v3497, %v3842
        %v3844 = vpop.f32.mrb[0].mxu0
        %v3845 = vadd.f32 %v3501, %v3844
        %3846 = vmatprep.mubr.bf16.mxu0 0
        %3847 = vmatmul.mubr.bf16.gmra.mrb[0].mxu0 %v3458
        %v3848 = vpop.f32.mrb[0].mxu0
        %v3849 = vadd.f32 %v3497, %v3848
        %v3850 = vpop.f32.mrb[0].mxu0
        %v3851 = vadd.f32 %v3501, %v3850
        %v3852 = vpop.f32.mrb[0].mxu0
        %v3853 = vadd.f32 %v3497, %v3852
        %v3854 = vpop.f32.mrb[0].mxu0
        %v3855 = vadd.f32 %v3501, %v3854
        %3856 = vmatprep.mubr.bf16.mxu0 0
        %3857 = vmatmul.mubr.bf16.gmra.mrb[0].mxu0 %v3459
        %v3858 = vpop.f32.mrb[0].mxu0
        %v3859 = vadd.f32 %v3497, %v3858
        %v3860 = vpop.f32.mrb[0].mxu0
        %v3861 = vadd.f32 %v3501, %v3860
        %v3862 = vpop.f32.mrb[0].mxu0
        %v3863 = vadd.f32 %v3497, %v3862
        %v3864 = vpop.f32.mrb[0].mxu0
        %v3865 = vadd.f32 %v3501, %v3864
        %3866 = vdwg.mxu0
        %3867 = vmatprep.subr.bf16.mxu0 %v3613
        %3868 = vmatpush1.bf16.msra.mxu0 %v3612
        %3869 = vmatprep.subr.bf16.mxu0 %v3617
        %3870 = vmatpush1.bf16.msra.mxu0 %v3616
        %3871 = vmatprep.subr.bf16.mxu0 %v3621
        %3872 = vmatpush1.bf16.msra.mxu0 %v3620
        %3873 = vmatprep.subr.bf16.mxu0 %v3625
        %3874 = vmatpush1.bf16.msra.mxu0 %v3624
        %3875 = vmatprep.subr.bf16.mxu0 %v3629
        %3876 = vmatpush1.bf16.msra.mxu0 %v3628
        %3877 = vmatprep.subr.bf16.mxu0 %v3633
        %3878 = vmatpush1.bf16.msra.mxu0 %v3632
        %3879 = vmatprep.subr.bf16.mxu0 %v3637
        %3880 = vmatpush1.bf16.msra.mxu0 %v3636
        %3881 = vmatprep.subr.bf16.mxu0 %v3641
        %3882 = vmatpush1.bf16.msra.mxu0 %v3640
        %3883 = vmatprep.subr.bf16.mxu0 0
        %3884 = vmatpush1.bf16.msra.mxu0 0
        %3885 = vmatprep.subr.bf16.mxu0 0
        %3886 = vmatpush1.bf16.msra.mxu0 0
        %3887 = vmatprep.subr.bf16.mxu0 0
        %3888 = vmatpush1.bf16.msra.mxu0 0
        %3889 = vmatprep.subr.bf16.mxu0 0
        %3890 = vmatpush1.bf16.msra.mxu0 0
        %3891 = vmatprep.subr.bf16.mxu0 0
        %3892 = vmatpush1.bf16.msra.mxu0 0
        %3893 = vmatprep.subr.bf16.mxu0 0
        %3894 = vmatpush1.bf16.msra.mxu0 0
        %3895 = vmatprep.subr.bf16.mxu0 0
        %3896 = vmatpush1.bf16.msra.mxu0 0
        %3897 = vmatprep.subr.bf16.mxu0 0
        %3898 = vmatpush1.bf16.msra.mxu0 0
        %3899 = vmatprep.mubr.bf16.mxu0 0
        %3900 = vmatmul.mubr.bf16.gmra.mrb[0].mxu0 %v3444
        %v3901 = vpop.f32.mrb[0].mxu0
        %v3902 = vadd.f32 %v3505, %v3901
        %v3903 = vpop.f32.mrb[0].mxu0
        %v3904 = vadd.f32 %v3509, %v3903
        %v3905 = vpop.f32.mrb[0].mxu0
        %v3906 = vadd.f32 %v3505, %v3905
        %v3907 = vpop.f32.mrb[0].mxu0
        %v3908 = vadd.f32 %v3509, %v3907
        %3909 = vmatprep.mubr.bf16.mxu0 0
        %3910 = vmatmul.mubr.bf16.gmra.mrb[0].mxu0 %v3445
        %v3911 = vpop.f32.mrb[0].mxu0
        %v3912 = vadd.f32 %v3505, %v3911
        %v3913 = vpop.f32.mrb[0].mxu0
        %v3914 = vadd.f32 %v3509, %v3913
        %v3915 = vpop.f32.mrb[0].mxu0
        %v3916 = vadd.f32 %v3505, %v3915
        %v3917 = vpop.f32.mrb[0].mxu0
        %v3918 = vadd.f32 %v3509, %v3917
        %3919 = vmatprep.mubr.bf16.mxu0 0
        %3920 = vmatmul.mubr.bf16.gmra.mrb[0].mxu0 %v3446
        %v3921 = vpop.f32.mrb[0].mxu0
        %v3922 = vadd.f32 %v3505, %v3921
        %v3923 = vpop.f32.mrb[0].mxu0
        %v3924 = vadd.f32 %v3509, %v3923
        %v3925 = vpop.f32.mrb[0].mxu0
        %v3926 = vadd.f32 %v3505, %v3925
        %v3927 = vpop.f32.mrb[0].mxu0
        %v3928 = vadd.f32 %v3509, %v3927
        %3929 = vmatprep.mubr.bf16.mxu0 0
        %3930 = vmatmul.mubr.bf16.gmra.mrb[0].mxu0 %v3447
        %v3931 = vpop.f32.mrb[0].mxu0
        %v3932 = vadd.f32 %v3505, %v3931
        %v3933 = vpop.f32.mrb[0].mxu0
        %v3934 = vadd.f32 %v3509, %v3933
        %v3935 = vpop.f32.mrb[0].mxu0
        %v3936 = vadd.f32 %v3505, %v3935
        %v3937 = vpop.f32.mrb[0].mxu0
        %v3938 = vadd.f32 %v3509, %v3937
        %3939 = vmatprep.mubr.bf16.mxu0 0
        %3940 = vmatmul.mubr.bf16.gmra.mrb[0].mxu0 %v3448
        %v3941 = vpop.f32.mrb[0].mxu0
        %v3942 = vadd.f32 %v3505, %v3941
        %v3943 = vpop.f32.mrb[0].mxu0
        %v3944 = vadd.f32 %v3509, %v3943
        %v3945 = vpop.f32.mrb[0].mxu0
        %v3946 = vadd.f32 %v3505, %v3945
        %v3947 = vpop.f32.mrb[0].mxu0
        %v3948 = vadd.f32 %v3509, %v3947
        %3949 = vmatprep.mubr.bf16.mxu0 0
        %3950 = vmatmul.mubr.bf16.gmra.mrb[0].mxu0 %v3449
        %v3951 = vpop.f32.mrb[0].mxu0
        %v3952 = vadd.f32 %v3505, %v3951
        %v3953 = vpop.f32.mrb[0].mxu0
        %v3954 = vadd.f32 %v3509, %v3953
        %v3955 = vpop.f32.mrb[0].mxu0
        %v3956 = vadd.f32 %v3505, %v3955
        %v3957 = vpop.f32.mrb[0].mxu0
        %v3958 = vadd.f32 %v3509, %v3957
        %3959 = vmatprep.mubr.bf16.mxu0 0
        %3960 = vmatmul.mubr.bf16.gmra.mrb[0].mxu0 %v3450
        %v3961 = vpop.f32.mrb[0].mxu0
        %v3962 = vadd.f32 %v3505, %v3961
        %v3963 = vpop.f32.mrb[0].mxu0
        %v3964 = vadd.f32 %v3509, %v3963
        %v3965 = vpop.f32.mrb[0].mxu0
        %v3966 = vadd.f32 %v3505, %v3965
        %v3967 = vpop.f32.mrb[0].mxu0
        %v3968 = vadd.f32 %v3509, %v3967
        %3969 = vmatprep.mubr.bf16.mxu0 0
        %3970 = vmatmul.mubr.bf16.gmra.mrb[0].mxu0 %v3451
        %v3971 = vpop.f32.mrb[0].mxu0
        %v3972 = vadd.f32 %v3505, %v3971
        %v3973 = vpop.f32.mrb[0].mxu0
        %v3974 = vadd.f32 %v3509, %v3973
        %v3975 = vpop.f32.mrb[0].mxu0
        %v3976 = vadd.f32 %v3505, %v3975
        %v3977 = vpop.f32.mrb[0].mxu0
        %v3978 = vadd.f32 %v3509, %v3977
        %3979 = vmatprep.mubr.bf16.mxu0 0
        %3980 = vmatmul.mubr.bf16.gmra.mrb[0].mxu0 %v3452
        %v3981 = vpop.f32.mrb[0].mxu0
        %v3982 = vadd.f32 %v3505, %v3981
        %v3983 = vpop.f32.mrb[0].mxu0
        %v3984 = vadd.f32 %v3509, %v3983
        %v3985 = vpop.f32.mrb[0].mxu0
        %v3986 = vadd.f32 %v3505, %v3985
        %v3987 = vpop.f32.mrb[0].mxu0
        %v3988 = vadd.f32 %v3509, %v3987
        %3989 = vmatprep.mubr.bf16.mxu0 0
        %3990 = vmatmul.mubr.bf16.gmra.mrb[0].mxu0 %v3453
        %v3991 = vpop.f32.mrb[0].mxu0
        %v3992 = vadd.f32 %v3505, %v3991
        %v3993 = vpop.f32.mrb[0].mxu0
        %v3994 = vadd.f32 %v3509, %v3993
        %v3995 = vpop.f32.mrb[0].mxu0
        %v3996 = vadd.f32 %v3505, %v3995
        %v3997 = vpop.f32.mrb[0].mxu0
        %v3998 = vadd.f32 %v3509, %v3997
        %3999 = vmatprep.mubr.bf16.mxu0 0
        %4000 = vmatmul.mubr.bf16.gmra.mrb[0].mxu0 %v3454
        %v4001 = vpop.f32.mrb[0].mxu0
        %v4002 = vadd.f32 %v3505, %v4001
        %v4003 = vpop.f32.mrb[0].mxu0
        %v4004 = vadd.f32 %v3509, %v4003
        %v4005 = vpop.f32.mrb[0].mxu0
        %v4006 = vadd.f32 %v3505, %v4005
        %v4007 = vpop.f32.mrb[0].mxu0
        %v4008 = vadd.f32 %v3509, %v4007
        %4009 = vmatprep.mubr.bf16.mxu0 0
        %4010 = vmatmul.mubr.bf16.gmra.mrb[0].mxu0 %v3455
        %v4011 = vpop.f32.mrb[0].mxu0
        %v4012 = vadd.f32 %v3505, %v4011
        %v4013 = vpop.f32.mrb[0].mxu0
        %v4014 = vadd.f32 %v3509, %v4013
        %v4015 = vpop.f32.mrb[0].mxu0
        %v4016 = vadd.f32 %v3505, %v4015
        %v4017 = vpop.f32.mrb[0].mxu0
        %v4018 = vadd.f32 %v3509, %v4017
        %4019 = vmatprep.mubr.bf16.mxu0 0
        %4020 = vmatmul.mubr.bf16.gmra.mrb[0].mxu0 %v3456
        %v4021 = vpop.f32.mrb[0].mxu0
        %v4022 = vadd.f32 %v3505, %v4021
        %v4023 = vpop.f32.mrb[0].mxu0
        %v4024 = vadd.f32 %v3509, %v4023
        %v4025 = vpop.f32.mrb[0].mxu0
        %v4026 = vadd.f32 %v3505, %v4025
        %v4027 = vpop.f32.mrb[0].mxu0
        %v4028 = vadd.f32 %v3509, %v4027
        %4029 = vmatprep.mubr.bf16.mxu0 0
        %4030 = vmatmul.mubr.bf16.gmra.mrb[0].mxu0 %v3457
        %v4031 = vpop.f32.mrb[0].mxu0
        %v4032 = vadd.f32 %v3505, %v4031
        %v4033 = vpop.f32.mrb[0].mxu0
        %v4034 = vadd.f32 %v3509, %v4033
        %v4035 = vpop.f32.mrb[0].mxu0
        %v4036 = vadd.f32 %v3505, %v4035
        %v4037 = vpop.f32.mrb[0].mxu0
        %v4038 = vadd.f32 %v3509, %v4037
        %4039 = vmatprep.mubr.bf16.mxu0 0
        %4040 = vmatmul.mubr.bf16.gmra.mrb[0].mxu0 %v3458
        %v4041 = vpop.f32.mrb[0].mxu0
        %v4042 = vadd.f32 %v3505, %v4041
        %v4043 = vpop.f32.mrb[0].mxu0
        %v4044 = vadd.f32 %v3509, %v4043
        %v4045 = vpop.f32.mrb[0].mxu0
        %v4046 = vadd.f32 %v3505, %v4045
        %v4047 = vpop.f32.mrb[0].mxu0
        %v4048 = vadd.f32 %v3509, %v4047
        %4049 = vmatprep.mubr.bf16.mxu0 0
        %4050 = vmatmul.mubr.bf16.gmra.mrb[0].mxu0 %v3459
        %v4051 = vpop.f32.mrb[0].mxu0
        %v4052 = vadd.f32 %v3505, %v4051
        %v4053 = vpop.f32.mrb[0].mxu0
        %v4054 = vadd.f32 %v3509, %v4053
        %v4055 = vpop.f32.mrb[0].mxu0
        %v4056 = vadd.f32 %v3505, %v4055
        %v4057 = vpop.f32.mrb[0].mxu0
        %v4058 = vadd.f32 %v3509, %v4057
        %4059 = vdwg.mxu0
        %v4060 = vmul.f32 %v3709, %v3709
        %v4061 = vmul.f32 %v3711, %v3711
        %v4062 = vmul.f32 %v3902, %v3902
        %v4063 = vmul.f32 %v3904, %v3904
        %v4064 = vmul.f32 %v3713, %v3713
        %v4065 = vmul.f32 %v3715, %v3715
        %v4066 = vmul.f32 %v3906, %v3906
        %v4067 = vmul.f32 %v3908, %v3908
        %v4068 = vmul.f32 %v3719, %v3719
        %v4069 = vmul.f32 %v3721, %v3721
        %v4070 = vmul.f32 %v3912, %v3912
        %v4071 = vmul.f32 %v3914, %v3914
        %v4072 = vmul.f32 %v3723, %v3723
        %v4073 = vmul.f32 %v3725, %v3725
        %v4074 = vmul.f32 %v3916, %v3916
        %v4075 = vmul.f32 %v3918, %v3918
        %v4076 = vmul.f32 %v3729, %v3729
        %v4077 = vmul.f32 %v3731, %v3731
        %v4078 = vmul.f32 %v3922, %v3922
        %v4079 = vmul.f32 %v3924, %v3924
        %v4080 = vmul.f32 %v3733, %v3733
        %v4081 = vmul.f32 %v3735, %v3735
        %v4082 = vmul.f32 %v3926, %v3926
        %v4083 = vmul.f32 %v3928, %v3928
        %v4084 = vmul.f32 %v3739, %v3739
        %v4085 = vmul.f32 %v3741, %v3741
        %v4086 = vmul.f32 %v3932, %v3932
        %v4087 = vmul.f32 %v3934, %v3934
        %v4088 = vmul.f32 %v3743, %v3743
        %v4089 = vmul.f32 %v3745, %v3745
        %v4090 = vmul.f32 %v3936, %v3936
        %v4091 = vmul.f32 %v3938, %v3938
        %v4092 = vmul.f32 %v3749, %v3749
        %v4093 = vmul.f32 %v3751, %v3751
        %v4094 = vmul.f32 %v3942, %v3942
        %v4095 = vmul.f32 %v3944, %v3944
        %v4096 = vmul.f32 %v3753, %v3753
        %v4097 = vmul.f32 %v3755, %v3755
        %v4098 = vmul.f32 %v3946, %v3946
        %v4099 = vmul.f32 %v3948, %v3948
        %v4100 = vmul.f32 %v3759, %v3759
        %v4101 = vmul.f32 %v3761, %v3761
        %v4102 = vmul.f32 %v3952, %v3952
        %v4103 = vmul.f32 %v3954, %v3954
        %v4104 = vmul.f32 %v3763, %v3763
        %v4105 = vmul.f32 %v3765, %v3765
        %v4106 = vmul.f32 %v3956, %v3956
        %v4107 = vmul.f32 %v3958, %v3958
        %v4108 = vmul.f32 %v3769, %v3769
        %v4109 = vmul.f32 %v3771, %v3771
        %v4110 = vmul.f32 %v3962, %v3962
        %v4111 = vmul.f32 %v3964, %v3964
        %v4112 = vmul.f32 %v3773, %v3773
        %v4113 = vmul.f32 %v3775, %v3775
        %v4114 = vmul.f32 %v3966, %v3966
        %v4115 = vmul.f32 %v3968, %v3968
        %v4116 = vmul.f32 %v3779, %v3779
        %v4117 = vmul.f32 %v3781, %v3781
        %v4118 = vmul.f32 %v3972, %v3972
        %v4119 = vmul.f32 %v3974, %v3974
        %v4120 = vmul.f32 %v3783, %v3783
        %v4121 = vmul.f32 %v3785, %v3785
        %v4122 = vmul.f32 %v3976, %v3976
        %v4123 = vmul.f32 %v3978, %v3978
        %v4124 = vmul.f32 %v3789, %v3789
        %v4125 = vmul.f32 %v3791, %v3791
        %v4126 = vmul.f32 %v3982, %v3982
        %v4127 = vmul.f32 %v3984, %v3984
        %v4128 = vmul.f32 %v3793, %v3793
        %v4129 = vmul.f32 %v3795, %v3795
        %v4130 = vmul.f32 %v3986, %v3986
        %v4131 = vmul.f32 %v3988, %v3988
        %v4132 = vmul.f32 %v3799, %v3799
        %v4133 = vmul.f32 %v3801, %v3801
        %v4134 = vmul.f32 %v3992, %v3992
        %v4135 = vmul.f32 %v3994, %v3994
        %v4136 = vmul.f32 %v3803, %v3803
        %v4137 = vmul.f32 %v3805, %v3805
        %v4138 = vmul.f32 %v3996, %v3996
        %v4139 = vmul.f32 %v3998, %v3998
        %v4140 = vmul.f32 %v3809, %v3809
        %v4141 = vmul.f32 %v3811, %v3811
        %v4142 = vmul.f32 %v4002, %v4002
        %v4143 = vmul.f32 %v4004, %v4004
        %v4144 = vmul.f32 %v3813, %v3813
        %v4145 = vmul.f32 %v3815, %v3815
        %v4146 = vmul.f32 %v4006, %v4006
        %v4147 = vmul.f32 %v4008, %v4008
        %v4148 = vmul.f32 %v3819, %v3819
        %v4149 = vmul.f32 %v3821, %v3821
        %v4150 = vmul.f32 %v4012, %v4012
        %v4151 = vmul.f32 %v4014, %v4014
        %v4152 = vmul.f32 %v3823, %v3823
        %v4153 = vmul.f32 %v3825, %v3825
        %v4154 = vmul.f32 %v4016, %v4016
        %v4155 = vmul.f32 %v4018, %v4018
        %v4156 = vmul.f32 %v3829, %v3829
        %v4157 = vmul.f32 %v3831, %v3831
        %v4158 = vmul.f32 %v4022, %v4022
        %v4159 = vmul.f32 %v4024, %v4024
        %v4160 = vmul.f32 %v3833, %v3833
        %v4161 = vmul.f32 %v3835, %v3835
        %v4162 = vmul.f32 %v4026, %v4026
        %v4163 = vmul.f32 %v4028, %v4028
        %v4164 = vmul.f32 %v3839, %v3839
        %v4165 = vmul.f32 %v3841, %v3841
        %v4166 = vmul.f32 %v4032, %v4032
        %v4167 = vmul.f32 %v4034, %v4034
        %v4168 = vmul.f32 %v3843, %v3843
        %v4169 = vmul.f32 %v3845, %v3845
        %v4170 = vmul.f32 %v4036, %v4036
        %v4171 = vmul.f32 %v4038, %v4038
        %v4172 = vmul.f32 %v3849, %v3849
        %v4173 = vmul.f32 %v3851, %v3851
        %v4174 = vmul.f32 %v4042, %v4042
        %v4175 = vmul.f32 %v4044, %v4044
        %v4176 = vmul.f32 %v3853, %v3853
        %v4177 = vmul.f32 %v3855, %v3855
        %v4178 = vmul.f32 %v4046, %v4046
        %v4179 = vmul.f32 %v4048, %v4048
        %v4180 = vmul.f32 %v3859, %v3859
        %v4181 = vmul.f32 %v3861, %v3861
        %v4182 = vmul.f32 %v4052, %v4052
        %v4183 = vmul.f32 %v4054, %v4054
        %v4184 = vmul.f32 %v3863, %v3863
        %v4185 = vmul.f32 %v3865, %v3865
        %v4186 = vmul.f32 %v4056, %v4056
        %v4187 = vmul.f32 %v4058, %v4058
        %v4188 = vmul.f32 %v3709, 0.7978846
        %v4189 = vmul.f32 %v3711, 0.7978846
        %v4190 = vmul.f32 %v3902, 0.7978846
        %v4191 = vmul.f32 %v3904, 0.7978846
        %v4192 = vmul.f32 %v3713, 0.7978846
        %v4193 = vmul.f32 %v3715, 0.7978846
        %v4194 = vmul.f32 %v3906, 0.7978846
        %v4195 = vmul.f32 %v3908, 0.7978846
        %v4196 = vmul.f32 %v3719, 0.7978846
        %v4197 = vmul.f32 %v3721, 0.7978846
        %v4198 = vmul.f32 %v3912, 0.7978846
        %v4199 = vmul.f32 %v3914, 0.7978846
        %v4200 = vmul.f32 %v3723, 0.7978846
        %v4201 = vmul.f32 %v3725, 0.7978846
        %v4202 = vmul.f32 %v3916, 0.7978846
        %v4203 = vmul.f32 %v3918, 0.7978846
        %v4204 = vmul.f32 %v3729, 0.7978846
        %v4205 = vmul.f32 %v3731, 0.7978846
        %v4206 = vmul.f32 %v3922, 0.7978846
        %v4207 = vmul.f32 %v3924, 0.7978846
        %v4208 = vmul.f32 %v3733, 0.7978846
        %v4209 = vmul.f32 %v3735, 0.7978846
        %v4210 = vmul.f32 %v3926, 0.7978846
        %v4211 = vmul.f32 %v3928, 0.7978846
        %v4212 = vmul.f32 %v3739, 0.7978846
        %v4213 = vmul.f32 %v3741, 0.7978846
        %v4214 = vmul.f32 %v3932, 0.7978846
        %v4215 = vmul.f32 %v3934, 0.7978846
        %v4216 = vmul.f32 %v3743, 0.7978846
        %v4217 = vmul.f32 %v3745, 0.7978846
        %v4218 = vmul.f32 %v3936, 0.7978846
        %v4219 = vmul.f32 %v3938, 0.7978846
        %v4220 = vmul.f32 %v3749, 0.7978846
        %v4221 = vmul.f32 %v3751, 0.7978846
        %v4222 = vmul.f32 %v3942, 0.7978846
        %v4223 = vmul.f32 %v3944, 0.7978846
        %v4224 = vmul.f32 %v3753, 0.7978846
        %v4225 = vmul.f32 %v3755, 0.7978846
        %v4226 = vmul.f32 %v3946, 0.7978846
        %v4227 = vmul.f32 %v3948, 0.7978846
        %v4228 = vmul.f32 %v3759, 0.7978846
        %v4229 = vmul.f32 %v3761, 0.7978846
        %v4230 = vmul.f32 %v3952, 0.7978846
        %v4231 = vmul.f32 %v3954, 0.7978846
        %v4232 = vmul.f32 %v3763, 0.7978846
        %v4233 = vmul.f32 %v3765, 0.7978846
        %v4234 = vmul.f32 %v3956, 0.7978846
        %v4235 = vmul.f32 %v3958, 0.7978846
        %v4236 = vmul.f32 %v3769, 0.7978846
        %v4237 = vmul.f32 %v3771, 0.7978846
        %v4238 = vmul.f32 %v3962, 0.7978846
        %v4239 = vmul.f32 %v3964, 0.7978846
        %v4240 = vmul.f32 %v3773, 0.7978846
        %v4241 = vmul.f32 %v3775, 0.7978846
        %v4242 = vmul.f32 %v3966, 0.7978846
        %v4243 = vmul.f32 %v3968, 0.7978846
        %v4244 = vmul.f32 %v3779, 0.7978846
        %v4245 = vmul.f32 %v3781, 0.7978846
        %v4246 = vmul.f32 %v3972, 0.7978846
        %v4247 = vmul.f32 %v3974, 0.7978846
        %v4248 = vmul.f32 %v3783, 0.7978846
        %v4249 = vmul.f32 %v3785, 0.7978846
        %v4250 = vmul.f32 %v3976, 0.7978846
        %v4251 = vmul.f32 %v3978, 0.7978846
        %v4252 = vmul.f32 %v3789, 0.7978846
        %v4253 = vmul.f32 %v3791, 0.7978846
        %v4254 = vmul.f32 %v3982, 0.7978846
        %v4255 = vmul.f32 %v3984, 0.7978846
        %v4256 = vmul.f32 %v3793, 0.7978846
        %v4257 = vmul.f32 %v3795, 0.7978846
        %v4258 = vmul.f32 %v3986, 0.7978846
        %v4259 = vmul.f32 %v3988, 0.7978846
        %v4260 = vmul.f32 %v3799, 0.7978846
        %v4261 = vmul.f32 %v3801, 0.7978846
        %v4262 = vmul.f32 %v3992, 0.7978846
        %v4263 = vmul.f32 %v3994, 0.7978846
        %v4264 = vmul.f32 %v3803, 0.7978846
        %v4265 = vmul.f32 %v3805, 0.7978846
        %v4266 = vmul.f32 %v3996, 0.7978846
        %v4267 = vmul.f32 %v3998, 0.7978846
        %v4268 = vmul.f32 %v3809, 0.7978846
        %v4269 = vmul.f32 %v3811, 0.7978846
        %v4270 = vmul.f32 %v4002, 0.7978846
        %v4271 = vmul.f32 %v4004, 0.7978846
        %v4272 = vmul.f32 %v3813, 0.7978846
        %v4273 = vmul.f32 %v3815, 0.7978846
        %v4274 = vmul.f32 %v4006, 0.7978846
        %v4275 = vmul.f32 %v4008, 0.7978846
        %v4276 = vmul.f32 %v3819, 0.7978846
        %v4277 = vmul.f32 %v3821, 0.7978846
        %v4278 = vmul.f32 %v4012, 0.7978846
        %v4279 = vmul.f32 %v4014, 0.7978846
        %v4280 = vmul.f32 %v3823, 0.7978846
        %v4281 = vmul.f32 %v3825, 0.7978846
        %v4282 = vmul.f32 %v4016, 0.7978846
        %v4283 = vmul.f32 %v4018, 0.7978846
        %v4284 = vmul.f32 %v3829, 0.7978846
        %v4285 = vmul.f32 %v3831, 0.7978846
        %v4286 = vmul.f32 %v4022, 0.7978846
        %v4287 = vmul.f32 %v4024, 0.7978846
        %v4288 = vmul.f32 %v3833, 0.7978846
        %v4289 = vmul.f32 %v3835, 0.7978846
        %v4290 = vmul.f32 %v4026, 0.7978846
        %v4291 = vmul.f32 %v4028, 0.7978846
        %v4292 = vmul.f32 %v3839, 0.7978846
        %v4293 = vmul.f32 %v3841, 0.7978846
        %v4294 = vmul.f32 %v4032, 0.7978846
        %v4295 = vmul.f32 %v4034, 0.7978846
        %v4296 = vmul.f32 %v3843, 0.7978846
        %v4297 = vmul.f32 %v3845, 0.7978846
        %v4298 = vmul.f32 %v4036, 0.7978846
        %v4299 = vmul.f32 %v4038, 0.7978846
        %v4300 = vmul.f32 %v3849, 0.7978846
        %v4301 = vmul.f32 %v3851, 0.7978846
        %v4302 = vmul.f32 %v4042, 0.7978846
        %v4303 = vmul.f32 %v4044, 0.7978846
        %v4304 = vmul.f32 %v3853, 0.7978846
        %v4305 = vmul.f32 %v3855, 0.7978846
        %v4306 = vmul.f32 %v4046, 0.7978846
        %v4307 = vmul.f32 %v4048, 0.7978846
        %v4308 = vmul.f32 %v3859, 0.7978846
        %v4309 = vmul.f32 %v3861, 0.7978846
        %v4310 = vmul.f32 %v4052, 0.7978846
        %v4311 = vmul.f32 %v4054, 0.7978846
        %v4312 = vmul.f32 %v3863, 0.7978846
        %v4313 = vmul.f32 %v3865, 0.7978846
        %v4314 = vmul.f32 %v4056, 0.7978846
        %v4315 = vmul.f32 %v4058, 0.7978846
        %v4316 = vmul.f32 %v4060, 0.044715
        %v4317 = vmul.f32 %v4061, 0.044715
        %v4318 = vmul.f32 %v4062, 0.044715
        %v4319 = vmul.f32 %v4063, 0.044715
        %v4320 = vmul.f32 %v4064, 0.044715
        %v4321 = vmul.f32 %v4065, 0.044715
        %v4322 = vmul.f32 %v4066, 0.044715
        %v4323 = vmul.f32 %v4067, 0.044715
        %v4324 = vmul.f32 %v4068, 0.044715
        %v4325 = vmul.f32 %v4069, 0.044715
        %v4326 = vmul.f32 %v4070, 0.044715
        %v4327 = vmul.f32 %v4071, 0.044715
        %v4328 = vmul.f32 %v4072, 0.044715
        %v4329 = vmul.f32 %v4073, 0.044715
        %v4330 = vmul.f32 %v4074, 0.044715
        %v4331 = vmul.f32 %v4075, 0.044715
        %v4332 = vmul.f32 %v4076, 0.044715
        %v4333 = vmul.f32 %v4077, 0.044715
        %v4334 = vmul.f32 %v4078, 0.044715
        %v4335 = vmul.f32 %v4079, 0.044715
        %v4336 = vmul.f32 %v4080, 0.044715
        %v4337 = vmul.f32 %v4081, 0.044715
        %v4338 = vmul.f32 %v4082, 0.044715
        %v4339 = vmul.f32 %v4083, 0.044715
        %v4340 = vmul.f32 %v4084, 0.044715
        %v4341 = vmul.f32 %v4085, 0.044715
        %v4342 = vmul.f32 %v4086, 0.044715
        %v4343 = vmul.f32 %v4087, 0.044715
        %v4344 = vmul.f32 %v4088, 0.044715
        %v4345 = vmul.f32 %v4089, 0.044715
        %v4346 = vmul.f32 %v4090, 0.044715
        %v4347 = vmul.f32 %v4091, 0.044715
        %v4348 = vmul.f32 %v4092, 0.044715
        %v4349 = vmul.f32 %v4093, 0.044715
        %v4350 = vmul.f32 %v4094, 0.044715
        %v4351 = vmul.f32 %v4095, 0.044715
        %v4352 = vmul.f32 %v4096, 0.044715
        %v4353 = vmul.f32 %v4097, 0.044715
        %v4354 = vmul.f32 %v4098, 0.044715
        %v4355 = vmul.f32 %v4099, 0.044715
        %v4356 = vmul.f32 %v4100, 0.044715
        %v4357 = vmul.f32 %v4101, 0.044715
        %v4358 = vmul.f32 %v4102, 0.044715
        %v4359 = vmul.f32 %v4103, 0.044715
        %v4360 = vmul.f32 %v4104, 0.044715
        %v4361 = vmul.f32 %v4105, 0.044715
        %v4362 = vmul.f32 %v4106, 0.044715
        %v4363 = vmul.f32 %v4107, 0.044715
        %v4364 = vmul.f32 %v4108, 0.044715
        %v4365 = vmul.f32 %v4109, 0.044715
        %v4366 = vmul.f32 %v4110, 0.044715
        %v4367 = vmul.f32 %v4111, 0.044715
        %v4368 = vmul.f32 %v4112, 0.044715
        %v4369 = vmul.f32 %v4113, 0.044715
        %v4370 = vmul.f32 %v4114, 0.044715
        %v4371 = vmul.f32 %v4115, 0.044715
        %v4372 = vmul.f32 %v4116, 0.044715
        %v4373 = vmul.f32 %v4117, 0.044715
        %v4374 = vmul.f32 %v4118, 0.044715
        %v4375 = vmul.f32 %v4119, 0.044715
        %v4376 = vmul.f32 %v4120, 0.044715
        %v4377 = vmul.f32 %v4121, 0.044715
        %v4378 = vmul.f32 %v4122, 0.044715
        %v4379 = vmul.f32 %v4123, 0.044715
        %v4380 = vmul.f32 %v4124, 0.044715
        %v4381 = vmul.f32 %v4125, 0.044715
        %v4382 = vmul.f32 %v4126, 0.044715
        %v4383 = vmul.f32 %v4127, 0.044715
        %v4384 = vmul.f32 %v4128, 0.044715
        %v4385 = vmul.f32 %v4129, 0.044715
        %v4386 = vmul.f32 %v4130, 0.044715
        %v4387 = vmul.f32 %v4131, 0.044715
        %v4388 = vmul.f32 %v4132, 0.044715
        %v4389 = vmul.f32 %v4133, 0.044715
        %v4390 = vmul.f32 %v4134, 0.044715
        %v4391 = vmul.f32 %v4135, 0.044715
        %v4392 = vmul.f32 %v4136, 0.044715
        %v4393 = vmul.f32 %v4137, 0.044715
        %v4394 = vmul.f32 %v4138, 0.044715
        %v4395 = vmul.f32 %v4139, 0.044715
        %v4396 = vmul.f32 %v4140, 0.044715
        %v4397 = vmul.f32 %v4141, 0.044715
        %v4398 = vmul.f32 %v4142, 0.044715
        %v4399 = vmul.f32 %v4143, 0.044715
        %v4400 = vmul.f32 %v4144, 0.044715
        %v4401 = vmul.f32 %v4145, 0.044715
        %v4402 = vmul.f32 %v4146, 0.044715
        %v4403 = vmul.f32 %v4147, 0.044715
        %v4404 = vmul.f32 %v4148, 0.044715
        %v4405 = vmul.f32 %v4149, 0.044715
        %v4406 = vmul.f32 %v4150, 0.044715
        %v4407 = vmul.f32 %v4151, 0.044715
        %v4408 = vmul.f32 %v4152, 0.044715
        %v4409 = vmul.f32 %v4153, 0.044715
        %v4410 = vmul.f32 %v4154, 0.044715
        %v4411 = vmul.f32 %v4155, 0.044715
        %v4412 = vmul.f32 %v4156, 0.044715
        %v4413 = vmul.f32 %v4157, 0.044715
        %v4414 = vmul.f32 %v4158, 0.044715
        %v4415 = vmul.f32 %v4159, 0.044715
        %v4416 = vmul.f32 %v4160, 0.044715
        %v4417 = vmul.f32 %v4161, 0.044715
        %v4418 = vmul.f32 %v4162, 0.044715
        %v4419 = vmul.f32 %v4163, 0.044715
        %v4420 = vmul.f32 %v4164, 0.044715
        %v4421 = vmul.f32 %v4165, 0.044715
        %v4422 = vmul.f32 %v4166, 0.044715
        %v4423 = vmul.f32 %v4167, 0.044715
        %v4424 = vmul.f32 %v4168, 0.044715
        %v4425 = vmul.f32 %v4169, 0.044715
        %v4426 = vmul.f32 %v4170, 0.044715
        %v4427 = vmul.f32 %v4171, 0.044715
        %v4428 = vmul.f32 %v4172, 0.044715
        %v4429 = vmul.f32 %v4173, 0.044715
        %v4430 = vmul.f32 %v4174, 0.044715
        %v4431 = vmul.f32 %v4175, 0.044715
        %v4432 = vmul.f32 %v4176, 0.044715
        %v4433 = vmul.f32 %v4177, 0.044715
        %v4434 = vmul.f32 %v4178, 0.044715
        %v4435 = vmul.f32 %v4179, 0.044715
        %v4436 = vmul.f32 %v4180, 0.044715
        %v4437 = vmul.f32 %v4181, 0.044715
        %v4438 = vmul.f32 %v4182, 0.044715
        %v4439 = vmul.f32 %v4183, 0.044715
        %v4440 = vmul.f32 %v4184, 0.044715
        %v4441 = vmul.f32 %v4185, 0.044715
        %v4442 = vmul.f32 %v4186, 0.044715
        %v4443 = vmul.f32 %v4187, 0.044715
        %v4444 = vadd.f32 %v4316, 1.0
        %v4445 = vadd.f32 %v4317, 1.0
        %v4446 = vadd.f32 %v4318, 1.0
        %v4447 = vadd.f32 %v4319, 1.0
        %v4448 = vadd.f32 %v4320, 1.0
        %v4449 = vadd.f32 %v4321, 1.0
        %v4450 = vadd.f32 %v4322, 1.0
        %v4451 = vadd.f32 %v4323, 1.0
        %v4452 = vadd.f32 %v4324, 1.0
        %v4453 = vadd.f32 %v4325, 1.0
        %v4454 = vadd.f32 %v4326, 1.0
        %v4455 = vadd.f32 %v4327, 1.0
        %v4456 = vadd.f32 %v4328, 1.0
        %v4457 = vadd.f32 %v4329, 1.0
        %v4458 = vadd.f32 %v4330, 1.0
        %v4459 = vadd.f32 %v4331, 1.0
        %v4460 = vadd.f32 %v4332, 1.0
        %v4461 = vadd.f32 %v4333, 1.0
        %v4462 = vadd.f32 %v4334, 1.0
        %v4463 = vadd.f32 %v4335, 1.0
        %v4464 = vadd.f32 %v4336, 1.0
        %v4465 = vadd.f32 %v4337, 1.0
        %v4466 = vadd.f32 %v4338, 1.0
        %v4467 = vadd.f32 %v4339, 1.0
        %v4468 = vadd.f32 %v4340, 1.0
        %v4469 = vadd.f32 %v4341, 1.0
        %v4470 = vadd.f32 %v4342, 1.0
        %v4471 = vadd.f32 %v4343, 1.0
        %v4472 = vadd.f32 %v4344, 1.0
        %v4473 = vadd.f32 %v4345, 1.0
        %v4474 = vadd.f32 %v4346, 1.0
        %v4475 = vadd.f32 %v4347, 1.0
        %v4476 = vadd.f32 %v4348, 1.0
        %v4477 = vadd.f32 %v4349, 1.0
        %v4478 = vadd.f32 %v4350, 1.0
        %v4479 = vadd.f32 %v4351, 1.0
        %v4480 = vadd.f32 %v4352, 1.0
        %v4481 = vadd.f32 %v4353, 1.0
        %v4482 = vadd.f32 %v4354, 1.0
        %v4483 = vadd.f32 %v4355, 1.0
        %v4484 = vadd.f32 %v4356, 1.0
        %v4485 = vadd.f32 %v4357, 1.0
        %v4486 = vadd.f32 %v4358, 1.0
        %v4487 = vadd.f32 %v4359, 1.0
        %v4488 = vadd.f32 %v4360, 1.0
        %v4489 = vadd.f32 %v4361, 1.0
        %v4490 = vadd.f32 %v4362, 1.0
        %v4491 = vadd.f32 %v4363, 1.0
        %v4492 = vadd.f32 %v4364, 1.0
        %v4493 = vadd.f32 %v4365, 1.0
        %v4494 = vadd.f32 %v4366, 1.0
        %v4495 = vadd.f32 %v4367, 1.0
        %v4496 = vadd.f32 %v4368, 1.0
        %v4497 = vadd.f32 %v4369, 1.0
        %v4498 = vadd.f32 %v4370, 1.0
        %v4499 = vadd.f32 %v4371, 1.0
        %v4500 = vadd.f32 %v4372, 1.0
        %v4501 = vadd.f32 %v4373, 1.0
        %v4502 = vadd.f32 %v4374, 1.0
        %v4503 = vadd.f32 %v4375, 1.0
        %v4504 = vadd.f32 %v4376, 1.0
        %v4505 = vadd.f32 %v4377, 1.0
        %v4506 = vadd.f32 %v4378, 1.0
        %v4507 = vadd.f32 %v4379, 1.0
        %v4508 = vadd.f32 %v4380, 1.0
        %v4509 = vadd.f32 %v4381, 1.0
        %v4510 = vadd.f32 %v4382, 1.0
        %v4511 = vadd.f32 %v4383, 1.0
        %v4512 = vadd.f32 %v4384, 1.0
        %v4513 = vadd.f32 %v4385, 1.0
        %v4514 = vadd.f32 %v4386, 1.0
        %v4515 = vadd.f32 %v4387, 1.0
        %v4516 = vadd.f32 %v4388, 1.0
        %v4517 = vadd.f32 %v4389, 1.0
        %v4518 = vadd.f32 %v4390, 1.0
        %v4519 = vadd.f32 %v4391, 1.0
        %v4520 = vadd.f32 %v4392, 1.0
        %v4521 = vadd.f32 %v4393, 1.0
        %v4522 = vadd.f32 %v4394, 1.0
        %v4523 = vadd.f32 %v4395, 1.0
        %v4524 = vadd.f32 %v4396, 1.0
        %v4525 = vadd.f32 %v4397, 1.0
        %v4526 = vadd.f32 %v4398, 1.0
        %v4527 = vadd.f32 %v4399, 1.0
        %v4528 = vadd.f32 %v4400, 1.0
        %v4529 = vadd.f32 %v4401, 1.0
        %v4530 = vadd.f32 %v4402, 1.0
        %v4531 = vadd.f32 %v4403, 1.0
        %v4532 = vadd.f32 %v4404, 1.0
        %v4533 = vadd.f32 %v4405, 1.0
        %v4534 = vadd.f32 %v4406, 1.0
        %v4535 = vadd.f32 %v4407, 1.0
        %v4536 = vadd.f32 %v4408, 1.0
        %v4537 = vadd.f32 %v4409, 1.0
        %v4538 = vadd.f32 %v4410, 1.0
        %v4539 = vadd.f32 %v4411, 1.0
        %v4540 = vadd.f32 %v4412, 1.0
        %v4541 = vadd.f32 %v4413, 1.0
        %v4542 = vadd.f32 %v4414, 1.0
        %v4543 = vadd.f32 %v4415, 1.0
        %v4544 = vadd.f32 %v4416, 1.0
        %v4545 = vadd.f32 %v4417, 1.0
        %v4546 = vadd.f32 %v4418, 1.0
        %v4547 = vadd.f32 %v4419, 1.0
        %v4548 = vadd.f32 %v4420, 1.0
        %v4549 = vadd.f32 %v4421, 1.0
        %v4550 = vadd.f32 %v4422, 1.0
        %v4551 = vadd.f32 %v4423, 1.0
        %v4552 = vadd.f32 %v4424, 1.0
        %v4553 = vadd.f32 %v4425, 1.0
        %v4554 = vadd.f32 %v4426, 1.0
        %v4555 = vadd.f32 %v4427, 1.0
        %v4556 = vadd.f32 %v4428, 1.0
        %v4557 = vadd.f32 %v4429, 1.0
        %v4558 = vadd.f32 %v4430, 1.0
        %v4559 = vadd.f32 %v4431, 1.0
        %v4560 = vadd.f32 %v4432, 1.0
        %v4561 = vadd.f32 %v4433, 1.0
        %v4562 = vadd.f32 %v4434, 1.0
        %v4563 = vadd.f32 %v4435, 1.0
        %v4564 = vadd.f32 %v4436, 1.0
        %v4565 = vadd.f32 %v4437, 1.0
        %v4566 = vadd.f32 %v4438, 1.0
        %v4567 = vadd.f32 %v4439, 1.0
        %v4568 = vadd.f32 %v4440, 1.0
        %v4569 = vadd.f32 %v4441, 1.0
        %v4570 = vadd.f32 %v4442, 1.0
        %v4571 = vadd.f32 %v4443, 1.0
        %v4572 = vmul.f32 %v4188, %v4444
        %v4573 = vmul.f32 %v4189, %v4445
        %v4574 = vmul.f32 %v4190, %v4446
        %v4575 = vmul.f32 %v4191, %v4447
        %v4576 = vmul.f32 %v4192, %v4448
        %v4577 = vmul.f32 %v4193, %v4449
        %v4578 = vmul.f32 %v4194, %v4450
        %v4579 = vmul.f32 %v4195, %v4451
        %v4580 = vmul.f32 %v4196, %v4452
        %v4581 = vmul.f32 %v4197, %v4453
        %v4582 = vmul.f32 %v4198, %v4454
        %v4583 = vmul.f32 %v4199, %v4455
        %v4584 = vmul.f32 %v4200, %v4456
        %v4585 = vmul.f32 %v4201, %v4457
        %v4586 = vmul.f32 %v4202, %v4458
        %v4587 = vmul.f32 %v4203, %v4459
        %v4588 = vmul.f32 %v4204, %v4460
        %v4589 = vmul.f32 %v4205, %v4461
        %v4590 = vmul.f32 %v4206, %v4462
        %v4591 = vmul.f32 %v4207, %v4463
        %v4592 = vmul.f32 %v4208, %v4464
        %v4593 = vmul.f32 %v4209, %v4465
        %v4594 = vmul.f32 %v4210, %v4466
        %v4595 = vmul.f32 %v4211, %v4467
        %v4596 = vmul.f32 %v4212, %v4468
        %v4597 = vmul.f32 %v4213, %v4469
        %v4598 = vmul.f32 %v4214, %v4470
        %v4599 = vmul.f32 %v4215, %v4471
        %v4600 = vmul.f32 %v4216, %v4472
        %v4601 = vmul.f32 %v4217, %v4473
        %v4602 = vmul.f32 %v4218, %v4474
        %v4603 = vmul.f32 %v4219, %v4475
        %v4604 = vmul.f32 %v4220, %v4476
        %v4605 = vmul.f32 %v4221, %v4477
        %v4606 = vmul.f32 %v4222, %v4478
        %v4607 = vmul.f32 %v4223, %v4479
        %v4608 = vmul.f32 %v4224, %v4480
        %v4609 = vmul.f32 %v4225, %v4481
        %v4610 = vmul.f32 %v4226, %v4482
        %v4611 = vmul.f32 %v4227, %v4483
        %v4612 = vmul.f32 %v4228, %v4484
        %v4613 = vmul.f32 %v4229, %v4485
        %v4614 = vmul.f32 %v4230, %v4486
        %v4615 = vmul.f32 %v4231, %v4487
        %v4616 = vmul.f32 %v4232, %v4488
        %v4617 = vmul.f32 %v4233, %v4489
        %v4618 = vmul.f32 %v4234, %v4490
        %v4619 = vmul.f32 %v4235, %v4491
        %v4620 = vmul.f32 %v4236, %v4492
        %v4621 = vmul.f32 %v4237, %v4493
        %v4622 = vmul.f32 %v4238, %v4494
        %v4623 = vmul.f32 %v4239, %v4495
        %v4624 = vmul.f32 %v4240, %v4496
        %v4625 = vmul.f32 %v4241, %v4497
        %v4626 = vmul.f32 %v4242, %v4498
        %v4627 = vmul.f32 %v4243, %v4499
        %v4628 = vmul.f32 %v4244, %v4500
        %v4629 = vmul.f32 %v4245, %v4501
        %v4630 = vmul.f32 %v4246, %v4502
        %v4631 = vmul.f32 %v4247, %v4503
        %v4632 = vmul.f32 %v4248, %v4504
        %v4633 = vmul.f32 %v4249, %v4505
        %v4634 = vmul.f32 %v4250, %v4506
        %v4635 = vmul.f32 %v4251, %v4507
        %v4636 = vmul.f32 %v4252, %v4508
        %v4637 = vmul.f32 %v4253, %v4509
        %v4638 = vmul.f32 %v4254, %v4510
        %v4639 = vmul.f32 %v4255, %v4511
        %v4640 = vmul.f32 %v4256, %v4512
        %v4641 = vmul.f32 %v4257, %v4513
        %v4642 = vmul.f32 %v4258, %v4514
        %v4643 = vmul.f32 %v4259, %v4515
        %v4644 = vmul.f32 %v4260, %v4516
        %v4645 = vmul.f32 %v4261, %v4517
        %v4646 = vmul.f32 %v4262, %v4518
        %v4647 = vmul.f32 %v4263, %v4519
        %v4648 = vmul.f32 %v4264, %v4520
        %v4649 = vmul.f32 %v4265, %v4521
        %v4650 = vmul.f32 %v4266, %v4522
        %v4651 = vmul.f32 %v4267, %v4523
        %v4652 = vmul.f32 %v4268, %v4524
        %v4653 = vmul.f32 %v4269, %v4525
        %v4654 = vmul.f32 %v4270, %v4526
        %v4655 = vmul.f32 %v4271, %v4527
        %v4656 = vmul.f32 %v4272, %v4528
        %v4657 = vmul.f32 %v4273, %v4529
        %v4658 = vmul.f32 %v4274, %v4530
        %v4659 = vmul.f32 %v4275, %v4531
        %v4660 = vmul.f32 %v4276, %v4532
        %v4661 = vmul.f32 %v4277, %v4533
        %v4662 = vmul.f32 %v4278, %v4534
        %v4663 = vmul.f32 %v4279, %v4535
        %v4664 = vmul.f32 %v4280, %v4536
        %v4665 = vmul.f32 %v4281, %v4537
        %v4666 = vmul.f32 %v4282, %v4538
        %v4667 = vmul.f32 %v4283, %v4539
        %v4668 = vmul.f32 %v4284, %v4540
        %v4669 = vmul.f32 %v4285, %v4541
        %v4670 = vmul.f32 %v4286, %v4542
        %v4671 = vmul.f32 %v4287, %v4543
        %v4672 = vmul.f32 %v4288, %v4544
        %v4673 = vmul.f32 %v4289, %v4545
        %v4674 = vmul.f32 %v4290, %v4546
        %v4675 = vmul.f32 %v4291, %v4547
        %v4676 = vmul.f32 %v4292, %v4548
        %v4677 = vmul.f32 %v4293, %v4549
        %v4678 = vmul.f32 %v4294, %v4550
        %v4679 = vmul.f32 %v4295, %v4551
        %v4680 = vmul.f32 %v4296, %v4552
        %v4681 = vmul.f32 %v4297, %v4553
        %v4682 = vmul.f32 %v4298, %v4554
        %v4683 = vmul.f32 %v4299, %v4555
        %v4684 = vmul.f32 %v4300, %v4556
        %v4685 = vmul.f32 %v4301, %v4557
        %v4686 = vmul.f32 %v4302, %v4558
        %v4687 = vmul.f32 %v4303, %v4559
        %v4688 = vmul.f32 %v4304, %v4560
        %v4689 = vmul.f32 %v4305, %v4561
        %v4690 = vmul.f32 %v4306, %v4562
        %v4691 = vmul.f32 %v4307, %v4563
        %v4692 = vmul.f32 %v4308, %v4564
        %v4693 = vmul.f32 %v4309, %v4565
        %v4694 = vmul.f32 %v4310, %v4566
        %v4695 = vmul.f32 %v4311, %v4567
        %v4696 = vmul.f32 %v4312, %v4568
        %v4697 = vmul.f32 %v4313, %v4569
        %v4698 = vmul.f32 %v4314, %v4570
        %v4699 = vmul.f32 %v4315, %v4571
        %v4700 = vmul.f32 %v3709, 0.5
        %v4701 = vmul.f32 %v3711, 0.5
        %v4702 = vmul.f32 %v3902, 0.5
        %v4703 = vmul.f32 %v3904, 0.5
        %v4704 = vmul.f32 %v3713, 0.5
        %v4705 = vmul.f32 %v3715, 0.5
        %v4706 = vmul.f32 %v3906, 0.5
        %v4707 = vmul.f32 %v3908, 0.5
        %v4708 = vmul.f32 %v3719, 0.5
        %v4709 = vmul.f32 %v3721, 0.5
        %v4710 = vmul.f32 %v3912, 0.5
        %v4711 = vmul.f32 %v3914, 0.5
        %v4712 = vmul.f32 %v3723, 0.5
        %v4713 = vmul.f32 %v3725, 0.5
        %v4714 = vmul.f32 %v3916, 0.5
        %v4715 = vmul.f32 %v3918, 0.5
        %v4716 = vmul.f32 %v3729, 0.5
        %v4717 = vmul.f32 %v3731, 0.5
        %v4718 = vmul.f32 %v3922, 0.5
        %v4719 = vmul.f32 %v3924, 0.5
        %v4720 = vmul.f32 %v3733, 0.5
        %v4721 = vmul.f32 %v3735, 0.5
        %v4722 = vmul.f32 %v3926, 0.5
        %v4723 = vmul.f32 %v3928, 0.5
        %v4724 = vmul.f32 %v3739, 0.5
        %v4725 = vmul.f32 %v3741, 0.5
        %v4726 = vmul.f32 %v3932, 0.5
        %v4727 = vmul.f32 %v3934, 0.5
        %v4728 = vmul.f32 %v3743, 0.5
        %v4729 = vmul.f32 %v3745, 0.5
        %v4730 = vmul.f32 %v3936, 0.5
        %v4731 = vmul.f32 %v3938, 0.5
        %v4732 = vmul.f32 %v3749, 0.5
        %v4733 = vmul.f32 %v3751, 0.5
        %v4734 = vmul.f32 %v3942, 0.5
        %v4735 = vmul.f32 %v3944, 0.5
        %v4736 = vmul.f32 %v3753, 0.5
        %v4737 = vmul.f32 %v3755, 0.5
        %v4738 = vmul.f32 %v3946, 0.5
        %v4739 = vmul.f32 %v3948, 0.5
        %v4740 = vmul.f32 %v3759, 0.5
        %v4741 = vmul.f32 %v3761, 0.5
        %v4742 = vmul.f32 %v3952, 0.5
        %v4743 = vmul.f32 %v3954, 0.5
        %v4744 = vmul.f32 %v3763, 0.5
        %v4745 = vmul.f32 %v3765, 0.5
        %v4746 = vmul.f32 %v3956, 0.5
        %v4747 = vmul.f32 %v3958, 0.5
        %v4748 = vmul.f32 %v3769, 0.5
        %v4749 = vmul.f32 %v3771, 0.5
        %v4750 = vmul.f32 %v3962, 0.5
        %v4751 = vmul.f32 %v3964, 0.5
        %v4752 = vmul.f32 %v3773, 0.5
        %v4753 = vmul.f32 %v3775, 0.5
        %v4754 = vmul.f32 %v3966, 0.5
        %v4755 = vmul.f32 %v3968, 0.5
        %v4756 = vmul.f32 %v3779, 0.5
        %v4757 = vmul.f32 %v3781, 0.5
        %v4758 = vmul.f32 %v3972, 0.5
        %v4759 = vmul.f32 %v3974, 0.5
        %v4760 = vmul.f32 %v3783, 0.5
        %v4761 = vmul.f32 %v3785, 0.5
        %v4762 = vmul.f32 %v3976, 0.5
        %v4763 = vmul.f32 %v3978, 0.5
        %v4764 = vmul.f32 %v3789, 0.5
        %v4765 = vmul.f32 %v3791, 0.5
        %v4766 = vmul.f32 %v3982, 0.5
        %v4767 = vmul.f32 %v3984, 0.5
        %v4768 = vmul.f32 %v3793, 0.5
        %v4769 = vmul.f32 %v3795, 0.5
        %v4770 = vmul.f32 %v3986, 0.5
        %v4771 = vmul.f32 %v3988, 0.5
        %v4772 = vmul.f32 %v3799, 0.5
        %v4773 = vmul.f32 %v3801, 0.5
        %v4774 = vmul.f32 %v3992, 0.5
        %v4775 = vmul.f32 %v3994, 0.5
        %v4776 = vmul.f32 %v3803, 0.5
        %v4777 = vmul.f32 %v3805, 0.5
        %v4778 = vmul.f32 %v3996, 0.5
        %v4779 = vmul.f32 %v3998, 0.5
        %v4780 = vmul.f32 %v3809, 0.5
        %v4781 = vmul.f32 %v3811, 0.5
        %v4782 = vmul.f32 %v4002, 0.5
        %v4783 = vmul.f32 %v4004, 0.5
        %v4784 = vmul.f32 %v3813, 0.5
        %v4785 = vmul.f32 %v3815, 0.5
        %v4786 = vmul.f32 %v4006, 0.5
        %v4787 = vmul.f32 %v4008, 0.5
        %v4788 = vmul.f32 %v3819, 0.5
        %v4789 = vmul.f32 %v3821, 0.5
        %v4790 = vmul.f32 %v4012, 0.5
        %v4791 = vmul.f32 %v4014, 0.5
        %v4792 = vmul.f32 %v3823, 0.5
        %v4793 = vmul.f32 %v3825, 0.5
        %v4794 = vmul.f32 %v4016, 0.5
        %v4795 = vmul.f32 %v4018, 0.5
        %v4796 = vmul.f32 %v3829, 0.5
        %v4797 = vmul.f32 %v3831, 0.5
        %v4798 = vmul.f32 %v4022, 0.5
        %v4799 = vmul.f32 %v4024, 0.5
        %v4800 = vmul.f32 %v3833, 0.5
        %v4801 = vmul.f32 %v3835, 0.5
        %v4802 = vmul.f32 %v4026, 0.5
        %v4803 = vmul.f32 %v4028, 0.5
        %v4804 = vmul.f32 %v3839, 0.5
        %v4805 = vmul.f32 %v3841, 0.5
        %v4806 = vmul.f32 %v4032, 0.5
        %v4807 = vmul.f32 %v4034, 0.5
        %v4808 = vmul.f32 %v3843, 0.5
        %v4809 = vmul.f32 %v3845, 0.5
        %v4810 = vmul.f32 %v4036, 0.5
        %v4811 = vmul.f32 %v4038, 0.5
        %v4812 = vmul.f32 %v3849, 0.5
        %v4813 = vmul.f32 %v3851, 0.5
        %v4814 = vmul.f32 %v4042, 0.5
        %v4815 = vmul.f32 %v4044, 0.5
        %v4816 = vmul.f32 %v3853, 0.5
        %v4817 = vmul.f32 %v3855, 0.5
        %v4818 = vmul.f32 %v4046, 0.5
        %v4819 = vmul.f32 %v4048, 0.5
        %v4820 = vmul.f32 %v3859, 0.5
        %v4821 = vmul.f32 %v3861, 0.5
        %v4822 = vmul.f32 %v4052, 0.5
        %v4823 = vmul.f32 %v4054, 0.5
        %v4824 = vmul.f32 %v3863, 0.5
        %v4825 = vmul.f32 %v3865, 0.5
        %v4826 = vmul.f32 %v4056, 0.5
        %v4827 = vmul.f32 %v4058, 0.5
        %v4828 = vtanh.pop %v4572
        %v4829 = vtanh.pop %v4573
        %v4830 = vtanh.pop %v4574
        %v4831 = vtanh.pop %v4575
        %v4832 = vtanh.pop %v4576
        %v4833 = vtanh.pop %v4577
        %v4834 = vtanh.pop %v4578
        %v4835 = vtanh.pop %v4579
        %v4836 = vtanh.pop %v4580
        %v4837 = vtanh.pop %v4581
        %v4838 = vtanh.pop %v4582
        %v4839 = vtanh.pop %v4583
        %v4840 = vtanh.pop %v4584
        %v4841 = vtanh.pop %v4585
        %v4842 = vtanh.pop %v4586
        %v4843 = vtanh.pop %v4587
        %v4844 = vtanh.pop %v4588
        %v4845 = vtanh.pop %v4589
        %v4846 = vtanh.pop %v4590
        %v4847 = vtanh.pop %v4591
        %v4848 = vtanh.pop %v4592
        %v4849 = vtanh.pop %v4593
        %v4850 = vtanh.pop %v4594
        %v4851 = vtanh.pop %v4595
        %v4852 = vtanh.pop %v4596
        %v4853 = vtanh.pop %v4597
        %v4854 = vtanh.pop %v4598
        %v4855 = vtanh.pop %v4599
        %v4856 = vtanh.pop %v4600
        %v4857 = vtanh.pop %v4601
        %v4858 = vtanh.pop %v4602
        %v4859 = vtanh.pop %v4603
        %v4860 = vtanh.pop %v4604
        %v4861 = vtanh.pop %v4605
        %v4862 = vtanh.pop %v4606
        %v4863 = vtanh.pop %v4607
        %v4864 = vtanh.pop %v4608
        %v4865 = vtanh.pop %v4609
        %v4866 = vtanh.pop %v4610
        %v4867 = vtanh.pop %v4611
        %v4868 = vtanh.pop %v4612
        %v4869 = vtanh.pop %v4613
        %v4870 = vtanh.pop %v4614
        %v4871 = vtanh.pop %v4615
        %v4872 = vtanh.pop %v4616
        %v4873 = vtanh.pop %v4617
        %v4874 = vtanh.pop %v4618
        %v4875 = vtanh.pop %v4619
        %v4876 = vtanh.pop %v4620
        %v4877 = vtanh.pop %v4621
        %v4878 = vtanh.pop %v4622
        %v4879 = vtanh.pop %v4623
        %v4880 = vtanh.pop %v4624
        %v4881 = vtanh.pop %v4625
        %v4882 = vtanh.pop %v4626
        %v4883 = vtanh.pop %v4627
        %v4884 = vtanh.pop %v4628
        %v4885 = vtanh.pop %v4629
        %v4886 = vtanh.pop %v4630
        %v4887 = vtanh.pop %v4631
        %v4888 = vtanh.pop %v4632
        %v4889 = vtanh.pop %v4633
        %v4890 = vtanh.pop %v4634
        %v4891 = vtanh.pop %v4635
        %v4892 = vtanh.pop %v4636
        %v4893 = vtanh.pop %v4637
        %v4894 = vtanh.pop %v4638
        %v4895 = vtanh.pop %v4639
        %v4896 = vtanh.pop %v4640
        %v4897 = vtanh.pop %v4641
        %v4898 = vtanh.pop %v4642
        %v4899 = vtanh.pop %v4643
        %v4900 = vtanh.pop %v4644
        %v4901 = vtanh.pop %v4645
        %v4902 = vtanh.pop %v4646
        %v4903 = vtanh.pop %v4647
        %v4904 = vtanh.pop %v4648
        %v4905 = vtanh.pop %v4649
        %v4906 = vtanh.pop %v4650
        %v4907 = vtanh.pop %v4651
        %v4908 = vtanh.pop %v4652
        %v4909 = vtanh.pop %v4653
        %v4910 = vtanh.pop %v4654
        %v4911 = vtanh.pop %v4655
        %v4912 = vtanh.pop %v4656
        %v4913 = vtanh.pop %v4657
        %v4914 = vtanh.pop %v4658
        %v4915 = vtanh.pop %v4659
        %v4916 = vtanh.pop %v4660
        %v4917 = vtanh.pop %v4661
        %v4918 = vtanh.pop %v4662
        %v4919 = vtanh.pop %v4663
        %v4920 = vtanh.pop %v4664
        %v4921 = vtanh.pop %v4665
        %v4922 = vtanh.pop %v4666
        %v4923 = vtanh.pop %v4667
        %v4924 = vtanh.pop %v4668
        %v4925 = vtanh.pop %v4669
        %v4926 = vtanh.pop %v4670
        %v4927 = vtanh.pop %v4671
        %v4928 = vtanh.pop %v4672
        %v4929 = vtanh.pop %v4673
        %v4930 = vtanh.pop %v4674
        %v4931 = vtanh.pop %v4675
        %v4932 = vtanh.pop %v4676
        %v4933 = vtanh.pop %v4677
        %v4934 = vtanh.pop %v4678
        %v4935 = vtanh.pop %v4679
        %v4936 = vtanh.pop %v4680
        %v4937 = vtanh.pop %v4681
        %v4938 = vtanh.pop %v4682
        %v4939 = vtanh.pop %v4683
        %v4940 = vtanh.pop %v4684
        %v4941 = vtanh.pop %v4685
        %v4942 = vtanh.pop %v4686
        %v4943 = vtanh.pop %v4687
        %v4944 = vtanh.pop %v4688
        %v4945 = vtanh.pop %v4689
        %v4946 = vtanh.pop %v4690
        %v4947 = vtanh.pop %v4691
        %v4948 = vtanh.pop %v4692
        %v4949 = vtanh.pop %v4693
        %v4950 = vtanh.pop %v4694
        %v4951 = vtanh.pop %v4695
        %v4952 = vtanh.pop %v4696
        %v4953 = vtanh.pop %v4697
        %v4954 = vtanh.pop %v4698
        %v4955 = vtanh.pop %v4699
        %v4956 = vadd.f32 %v4828, 1.0
        %v4957 = vadd.f32 %v4829, 1.0
        %v4958 = vadd.f32 %v4830, 1.0
        %v4959 = vadd.f32 %v4831, 1.0
        %v4960 = vadd.f32 %v4832, 1.0
        %v4961 = vadd.f32 %v4833, 1.0
        %v4962 = vadd.f32 %v4834, 1.0
        %v4963 = vadd.f32 %v4835, 1.0
        %v4964 = vadd.f32 %v4836, 1.0
        %v4965 = vadd.f32 %v4837, 1.0
        %v4966 = vadd.f32 %v4838, 1.0
        %v4967 = vadd.f32 %v4839, 1.0
        %v4968 = vadd.f32 %v4840, 1.0
        %v4969 = vadd.f32 %v4841, 1.0
        %v4970 = vadd.f32 %v4842, 1.0
        %v4971 = vadd.f32 %v4843, 1.0
        %v4972 = vadd.f32 %v4844, 1.0
        %v4973 = vadd.f32 %v4845, 1.0
        %v4974 = vadd.f32 %v4846, 1.0
        %v4975 = vadd.f32 %v4847, 1.0
        %v4976 = vadd.f32 %v4848, 1.0
        %v4977 = vadd.f32 %v4849, 1.0
        %v4978 = vadd.f32 %v4850, 1.0
        %v4979 = vadd.f32 %v4851, 1.0
        %v4980 = vadd.f32 %v4852, 1.0
        %v4981 = vadd.f32 %v4853, 1.0
        %v4982 = vadd.f32 %v4854, 1.0
        %v4983 = vadd.f32 %v4855, 1.0
        %v4984 = vadd.f32 %v4856, 1.0
        %v4985 = vadd.f32 %v4857, 1.0
        %v4986 = vadd.f32 %v4858, 1.0
        %v4987 = vadd.f32 %v4859, 1.0
        %v4988 = vadd.f32 %v4860, 1.0
        %v4989 = vadd.f32 %v4861, 1.0
        %v4990 = vadd.f32 %v4862, 1.0
        %v4991 = vadd.f32 %v4863, 1.0
        %v4992 = vadd.f32 %v4864, 1.0
        %v4993 = vadd.f32 %v4865, 1.0
        %v4994 = vadd.f32 %v4866, 1.0
        %v4995 = vadd.f32 %v4867, 1.0
        %v4996 = vadd.f32 %v4868, 1.0
        %v4997 = vadd.f32 %v4869, 1.0
        %v4998 = vadd.f32 %v4870, 1.0
        %v4999 = vadd.f32 %v4871, 1.0
        %v5000 = vadd.f32 %v4872, 1.0
        %v5001 = vadd.f32 %v4873, 1.0
        %v5002 = vadd.f32 %v4874, 1.0
        %v5003 = vadd.f32 %v4875, 1.0
        %v5004 = vadd.f32 %v4876, 1.0
        %v5005 = vadd.f32 %v4877, 1.0
        %v5006 = vadd.f32 %v4878, 1.0
        %v5007 = vadd.f32 %v4879, 1.0
        %v5008 = vadd.f32 %v4880, 1.0
        %v5009 = vadd.f32 %v4881, 1.0
        %v5010 = vadd.f32 %v4882, 1.0
        %v5011 = vadd.f32 %v4883, 1.0
        %v5012 = vadd.f32 %v4884, 1.0
        %v5013 = vadd.f32 %v4885, 1.0
        %v5014 = vadd.f32 %v4886, 1.0
        %v5015 = vadd.f32 %v4887, 1.0
        %v5016 = vadd.f32 %v4888, 1.0
        %v5017 = vadd.f32 %v4889, 1.0
        %v5018 = vadd.f32 %v4890, 1.0
        %v5019 = vadd.f32 %v4891, 1.0
        %v5020 = vadd.f32 %v4892, 1.0
        %v5021 = vadd.f32 %v4893, 1.0
        %v5022 = vadd.f32 %v4894, 1.0
        %v5023 = vadd.f32 %v4895, 1.0
        %v5024 = vadd.f32 %v4896, 1.0
        %v5025 = vadd.f32 %v4897, 1.0
        %v5026 = vadd.f32 %v4898, 1.0
        %v5027 = vadd.f32 %v4899, 1.0
        %v5028 = vadd.f32 %v4900, 1.0
        %v5029 = vadd.f32 %v4901, 1.0
        %v5030 = vadd.f32 %v4902, 1.0
        %v5031 = vadd.f32 %v4903, 1.0
        %v5032 = vadd.f32 %v4904, 1.0
        %v5033 = vadd.f32 %v4905, 1.0
        %v5034 = vadd.f32 %v4906, 1.0
        %v5035 = vadd.f32 %v4907, 1.0
        %v5036 = vadd.f32 %v4908, 1.0
        %v5037 = vadd.f32 %v4909, 1.0
        %v5038 = vadd.f32 %v4910, 1.0
        %v5039 = vadd.f32 %v4911, 1.0
        %v5040 = vadd.f32 %v4912, 1.0
        %v5041 = vadd.f32 %v4913, 1.0
        %v5042 = vadd.f32 %v4914, 1.0
        %v5043 = vadd.f32 %v4915, 1.0
        %v5044 = vadd.f32 %v4916, 1.0
        %v5045 = vadd.f32 %v4917, 1.0
        %v5046 = vadd.f32 %v4918, 1.0
        %v5047 = vadd.f32 %v4919, 1.0
        %v5048 = vadd.f32 %v4920, 1.0
        %v5049 = vadd.f32 %v4921, 1.0
        %v5050 = vadd.f32 %v4922, 1.0
        %v5051 = vadd.f32 %v4923, 1.0
        %v5052 = vadd.f32 %v4924, 1.0
        %v5053 = vadd.f32 %v4925, 1.0
        %v5054 = vadd.f32 %v4926, 1.0
        %v5055 = vadd.f32 %v4927, 1.0
        %v5056 = vadd.f32 %v4928, 1.0
        %v5057 = vadd.f32 %v4929, 1.0
        %v5058 = vadd.f32 %v4930, 1.0
        %v5059 = vadd.f32 %v4931, 1.0
        %v5060 = vadd.f32 %v4932, 1.0
        %v5061 = vadd.f32 %v4933, 1.0
        %v5062 = vadd.f32 %v4934, 1.0
        %v5063 = vadd.f32 %v4935, 1.0
        %v5064 = vadd.f32 %v4936, 1.0
        %v5065 = vadd.f32 %v4937, 1.0
        %v5066 = vadd.f32 %v4938, 1.0
        %v5067 = vadd.f32 %v4939, 1.0
        %v5068 = vadd.f32 %v4940, 1.0
        %v5069 = vadd.f32 %v4941, 1.0
        %v5070 = vadd.f32 %v4942, 1.0
        %v5071 = vadd.f32 %v4943, 1.0
        %v5072 = vadd.f32 %v4944, 1.0
        %v5073 = vadd.f32 %v4945, 1.0
        %v5074 = vadd.f32 %v4946, 1.0
        %v5075 = vadd.f32 %v4947, 1.0
        %v5076 = vadd.f32 %v4948, 1.0
        %v5077 = vadd.f32 %v4949, 1.0
        %v5078 = vadd.f32 %v4950, 1.0
        %v5079 = vadd.f32 %v4951, 1.0
        %v5080 = vadd.f32 %v4952, 1.0
        %v5081 = vadd.f32 %v4953, 1.0
        %v5082 = vadd.f32 %v4954, 1.0
        %v5083 = vadd.f32 %v4955, 1.0
        %v5084 = vmul.f32 %v4700, %v4956
        %v5085 = vmul.f32 %v4701, %v4957
        %v5086 = vmul.f32 %v4702, %v4958
        %v5087 = vmul.f32 %v4703, %v4959
        %v5088 = vmul.f32 %v4704, %v4960
        %v5089 = vmul.f32 %v4705, %v4961
        %v5090 = vmul.f32 %v4706, %v4962
        %v5091 = vmul.f32 %v4707, %v4963
        %v5092 = vmul.f32 %v4708, %v4964
        %v5093 = vmul.f32 %v4709, %v4965
        %v5094 = vmul.f32 %v4710, %v4966
        %v5095 = vmul.f32 %v4711, %v4967
        %v5096 = vmul.f32 %v4712, %v4968
        %v5097 = vmul.f32 %v4713, %v4969
        %v5098 = vmul.f32 %v4714, %v4970
        %v5099 = vmul.f32 %v4715, %v4971
        %v5100 = vmul.f32 %v4716, %v4972
        %v5101 = vmul.f32 %v4717, %v4973
        %v5102 = vmul.f32 %v4718, %v4974
        %v5103 = vmul.f32 %v4719, %v4975
        %v5104 = vmul.f32 %v4720, %v4976
        %v5105 = vmul.f32 %v4721, %v4977
        %v5106 = vmul.f32 %v4722, %v4978
        %v5107 = vmul.f32 %v4723, %v4979
        %v5108 = vmul.f32 %v4724, %v4980
        %v5109 = vmul.f32 %v4725, %v4981
        %v5110 = vmul.f32 %v4726, %v4982
        %v5111 = vmul.f32 %v4727, %v4983
        %v5112 = vmul.f32 %v4728, %v4984
        %v5113 = vmul.f32 %v4729, %v4985
        %v5114 = vmul.f32 %v4730, %v4986
        %v5115 = vmul.f32 %v4731, %v4987
        %v5116 = vmul.f32 %v4732, %v4988
        %v5117 = vmul.f32 %v4733, %v4989
        %v5118 = vmul.f32 %v4734, %v4990
        %v5119 = vmul.f32 %v4735, %v4991
        %v5120 = vmul.f32 %v4736, %v4992
        %v5121 = vmul.f32 %v4737, %v4993
        %v5122 = vmul.f32 %v4738, %v4994
        %v5123 = vmul.f32 %v4739, %v4995
        %v5124 = vmul.f32 %v4740, %v4996
        %v5125 = vmul.f32 %v4741, %v4997
        %v5126 = vmul.f32 %v4742, %v4998
        %v5127 = vmul.f32 %v4743, %v4999
        %v5128 = vmul.f32 %v4744, %v5000
        %v5129 = vmul.f32 %v4745, %v5001
        %v5130 = vmul.f32 %v4746, %v5002
        %v5131 = vmul.f32 %v4747, %v5003
        %v5132 = vmul.f32 %v4748, %v5004
        %v5133 = vmul.f32 %v4749, %v5005
        %v5134 = vmul.f32 %v4750, %v5006
        %v5135 = vmul.f32 %v4751, %v5007
        %v5136 = vmul.f32 %v4752, %v5008
        %v5137 = vmul.f32 %v4753, %v5009
        %v5138 = vmul.f32 %v4754, %v5010
        %v5139 = vmul.f32 %v4755, %v5011
        %v5140 = vmul.f32 %v4756, %v5012
        %v5141 = vmul.f32 %v4757, %v5013
        %v5142 = vmul.f32 %v4758, %v5014
        %v5143 = vmul.f32 %v4759, %v5015
        %v5144 = vmul.f32 %v4760, %v5016
        %v5145 = vmul.f32 %v4761, %v5017
        %v5146 = vmul.f32 %v4762, %v5018
        %v5147 = vmul.f32 %v4763, %v5019
        %v5148 = vmul.f32 %v4764, %v5020
        %v5149 = vmul.f32 %v4765, %v5021
        %v5150 = vmul.f32 %v4766, %v5022
        %v5151 = vmul.f32 %v4767, %v5023
        %v5152 = vmul.f32 %v4768, %v5024
        %v5153 = vmul.f32 %v4769, %v5025
        %v5154 = vmul.f32 %v4770, %v5026
        %v5155 = vmul.f32 %v4771, %v5027
        %v5156 = vmul.f32 %v4772, %v5028
        %v5157 = vmul.f32 %v4773, %v5029
        %v5158 = vmul.f32 %v4774, %v5030
        %v5159 = vmul.f32 %v4775, %v5031
        %v5160 = vmul.f32 %v4776, %v5032
        %v5161 = vmul.f32 %v4777, %v5033
        %v5162 = vmul.f32 %v4778, %v5034
        %v5163 = vmul.f32 %v4779, %v5035
        %v5164 = vmul.f32 %v4780, %v5036
        %v5165 = vmul.f32 %v4781, %v5037
        %v5166 = vmul.f32 %v4782, %v5038
        %v5167 = vmul.f32 %v4783, %v5039
        %v5168 = vmul.f32 %v4784, %v5040
        %v5169 = vmul.f32 %v4785, %v5041
        %v5170 = vmul.f32 %v4786, %v5042
        %v5171 = vmul.f32 %v4787, %v5043
        %v5172 = vmul.f32 %v4788, %v5044
        %v5173 = vmul.f32 %v4789, %v5045
        %v5174 = vmul.f32 %v4790, %v5046
        %v5175 = vmul.f32 %v4791, %v5047
        %v5176 = vmul.f32 %v4792, %v5048
        %v5177 = vmul.f32 %v4793, %v5049
        %v5178 = vmul.f32 %v4794, %v5050
        %v5179 = vmul.f32 %v4795, %v5051
        %v5180 = vmul.f32 %v4796, %v5052
        %v5181 = vmul.f32 %v4797, %v5053
        %v5182 = vmul.f32 %v4798, %v5054
        %v5183 = vmul.f32 %v4799, %v5055
        %v5184 = vmul.f32 %v4800, %v5056
        %v5185 = vmul.f32 %v4801, %v5057
        %v5186 = vmul.f32 %v4802, %v5058
        %v5187 = vmul.f32 %v4803, %v5059
        %v5188 = vmul.f32 %v4804, %v5060
        %v5189 = vmul.f32 %v4805, %v5061
        %v5190 = vmul.f32 %v4806, %v5062
        %v5191 = vmul.f32 %v4807, %v5063
        %v5192 = vmul.f32 %v4808, %v5064
        %v5193 = vmul.f32 %v4809, %v5065
        %v5194 = vmul.f32 %v4810, %v5066
        %v5195 = vmul.f32 %v4811, %v5067
        %v5196 = vmul.f32 %v4812, %v5068
        %v5197 = vmul.f32 %v4813, %v5069
        %v5198 = vmul.f32 %v4814, %v5070
        %v5199 = vmul.f32 %v4815, %v5071
        %v5200 = vmul.f32 %v4816, %v5072
        %v5201 = vmul.f32 %v4817, %v5073
        %v5202 = vmul.f32 %v4818, %v5074
        %v5203 = vmul.f32 %v4819, %v5075
        %v5204 = vmul.f32 %v4820, %v5076
        %v5205 = vmul.f32 %v4821, %v5077
        %v5206 = vmul.f32 %v4822, %v5078
        %v5207 = vmul.f32 %v4823, %v5079
        %v5208 = vmul.f32 %v4824, %v5080
        %v5209 = vmul.f32 %v4825, %v5081
        %v5210 = vmul.f32 %v4826, %v5082
        %v5211 = vmul.f32 %v4827, %v5083
        %v5212 = vpack.c.bf16 %v5088, %v5084
        %v5213 = vpack.c.bf16 %v5089, %v5085
        %v5214 = vpack.c.bf16 %v5090, %v5086
        %v5215 = vpack.c.bf16 %v5091, %v5087
        %v5216 = vpack.c.bf16 %v5096, %v5092
        %v5217 = vpack.c.bf16 %v5097, %v5093
        %v5218 = vpack.c.bf16 %v5098, %v5094
        %v5219 = vpack.c.bf16 %v5099, %v5095
        %v5220 = vpack.c.bf16 %v5104, %v5100
        %v5221 = vpack.c.bf16 %v5105, %v5101
        %v5222 = vpack.c.bf16 %v5106, %v5102
        %v5223 = vpack.c.bf16 %v5107, %v5103
        %v5224 = vpack.c.bf16 %v5112, %v5108
        %v5225 = vpack.c.bf16 %v5113, %v5109
        %v5226 = vpack.c.bf16 %v5114, %v5110
        %v5227 = vpack.c.bf16 %v5115, %v5111
        %v5228 = vpack.c.bf16 %v5120, %v5116
        %v5229 = vpack.c.bf16 %v5121, %v5117
        %v5230 = vpack.c.bf16 %v5122, %v5118
        %v5231 = vpack.c.bf16 %v5123, %v5119
        %v5232 = vpack.c.bf16 %v5128, %v5124
        %v5233 = vpack.c.bf16 %v5129, %v5125
        %v5234 = vpack.c.bf16 %v5130, %v5126
        %v5235 = vpack.c.bf16 %v5131, %v5127
        %v5236 = vpack.c.bf16 %v5136, %v5132
        %v5237 = vpack.c.bf16 %v5137, %v5133
        %v5238 = vpack.c.bf16 %v5138, %v5134
        %v5239 = vpack.c.bf16 %v5139, %v5135
        %v5240 = vpack.c.bf16 %v5144, %v5140
        %v5241 = vpack.c.bf16 %v5145, %v5141
        %v5242 = vpack.c.bf16 %v5146, %v5142
        %v5243 = vpack.c.bf16 %v5147, %v5143
        %v5244 = vpack.c.bf16 %v5152, %v5148
        %v5245 = vpack.c.bf16 %v5153, %v5149
        %v5246 = vpack.c.bf16 %v5154, %v5150
        %v5247 = vpack.c.bf16 %v5155, %v5151
        %v5248 = vpack.c.bf16 %v5160, %v5156
        %v5249 = vpack.c.bf16 %v5161, %v5157
        %v5250 = vpack.c.bf16 %v5162, %v5158
        %v5251 = vpack.c.bf16 %v5163, %v5159
        %v5252 = vpack.c.bf16 %v5168, %v5164
        %v5253 = vpack.c.bf16 %v5169, %v5165
        %v5254 = vpack.c.bf16 %v5170, %v5166
        %v5255 = vpack.c.bf16 %v5171, %v5167
        %v5256 = vpack.c.bf16 %v5176, %v5172
        %v5257 = vpack.c.bf16 %v5177, %v5173
        %v5258 = vpack.c.bf16 %v5178, %v5174
        %v5259 = vpack.c.bf16 %v5179, %v5175
        %v5260 = vpack.c.bf16 %v5184, %v5180
        %v5261 = vpack.c.bf16 %v5185, %v5181
        %v5262 = vpack.c.bf16 %v5186, %v5182
        %v5263 = vpack.c.bf16 %v5187, %v5183
        %v5264 = vpack.c.bf16 %v5192, %v5188
        %v5265 = vpack.c.bf16 %v5193, %v5189
        %v5266 = vpack.c.bf16 %v5194, %v5190
        %v5267 = vpack.c.bf16 %v5195, %v5191
        %v5268 = vpack.c.bf16 %v5200, %v5196
        %v5269 = vpack.c.bf16 %v5201, %v5197
        %v5270 = vpack.c.bf16 %v5202, %v5198
        %v5271 = vpack.c.bf16 %v5203, %v5199
        %v5272 = vpack.c.bf16 %v5208, %v5204
        %v5273 = vpack.c.bf16 %v5209, %v5205
        %v5274 = vpack.c.bf16 %v5210, %v5206
        %v5275 = vpack.c.bf16 %v5211, %v5207
        %v5276 = vld [vmem:[#allocation10] sm:$0xf]
        %v5277 = vld [vmem:[#allocation10 + $0x4] sm:$0xf]
        %v5278 = vld [vmem:[#allocation10 + $0x8] sm:$0xf]
        %v5279 = vld [vmem:[#allocation10 + $0xc] sm:$0xf]
        %v5280 = vld [vmem:[#allocation10 + $0x10] sm:$0xf]
        %v5281 = vld [vmem:[#allocation10 + $0x14] sm:$0xf]
        %v5282 = vld [vmem:[#allocation10 + $0x18] sm:$0xf]
        %v5283 = vld [vmem:[#allocation10 + $0x1c] sm:$0xf]
        %v5284 = vld [vmem:[#allocation10 + $0x20] sm:$0xf]
        %v5285 = vld [vmem:[#allocation10 + $0x24] sm:$0xf]
        %v5286 = vld [vmem:[#allocation10 + $0x28] sm:$0xf]
        %v5287 = vld [vmem:[#allocation10 + $0x2c] sm:$0xf]
        %v5288 = vld [vmem:[#allocation10 + $0x30] sm:$0xf]
        %v5289 = vld [vmem:[#allocation10 + $0x34] sm:$0xf]
        %v5290 = vld [vmem:[#allocation10 + $0x38] sm:$0xf]
        %v5291 = vld [vmem:[#allocation10 + $0x3c] sm:$0xf]
        %v5292 = vld [vmem:[#allocation10 + $0x40] sm:$0xf]
        %v5293 = vld [vmem:[#allocation10 + $0x44] sm:$0xf]
        %v5294 = vld [vmem:[#allocation10 + $0x48] sm:$0xf]
        %v5295 = vld [vmem:[#allocation10 + $0x4c] sm:$0xf]
        %v5296 = vld [vmem:[#allocation10 + $0x50] sm:$0xf]
        %v5297 = vld [vmem:[#allocation10 + $0x54] sm:$0xf]
        %v5298 = vld [vmem:[#allocation10 + $0x58] sm:$0xf]
        %v5299 = vld [vmem:[#allocation10 + $0x5c] sm:$0xf]
        %v5300 = vld [vmem:[#allocation10 + $0x60] sm:$0xf]
        %v5301 = vld [vmem:[#allocation10 + $0x64] sm:$0xf]
        %v5302 = vld [vmem:[#allocation10 + $0x68] sm:$0xf]
        %v5303 = vld [vmem:[#allocation10 + $0x6c] sm:$0xf]
        %v5304 = vld [vmem:[#allocation10 + $0x70] sm:$0xf]
        %v5305 = vld [vmem:[#allocation10 + $0x74] sm:$0xf]
        %v5306 = vld [vmem:[#allocation10 + $0x78] sm:$0xf]
        %v5307 = vld [vmem:[#allocation10 + $0x7c] sm:$0xf]
        %v5308 = vld [vmem:[#allocation10 + $0x80] sm:$0xf]
        %v5309 = vld [vmem:[#allocation10 + $0x84] sm:$0xf]
        %v5310 = vld [vmem:[#allocation10 + $0x88] sm:$0xf]
        %v5311 = vld [vmem:[#allocation10 + $0x8c] sm:$0xf]
        %v5312 = vld [vmem:[#allocation10 + $0x90] sm:$0xf]
        %v5313 = vld [vmem:[#allocation10 + $0x94] sm:$0xf]
        %v5314 = vld [vmem:[#allocation10 + $0x98] sm:$0xf]
        %v5315 = vld [vmem:[#allocation10 + $0x9c] sm:$0xf]
        %v5316 = vld [vmem:[#allocation10 + $0xa0] sm:$0xf]
        %v5317 = vld [vmem:[#allocation10 + $0xa4] sm:$0xf]
        %v5318 = vld [vmem:[#allocation10 + $0xa8] sm:$0xf]
        %v5319 = vld [vmem:[#allocation10 + $0xac] sm:$0xf]
        %v5320 = vld [vmem:[#allocation10 + $0xb0] sm:$0xf]
        %v5321 = vld [vmem:[#allocation10 + $0xb4] sm:$0xf]
        %v5322 = vld [vmem:[#allocation10 + $0xb8] sm:$0xf]
        %v5323 = vld [vmem:[#allocation10 + $0xbc] sm:$0xf]
        %v5324 = vld [vmem:[#allocation10 + $0xc0] sm:$0xf]
        %v5325 = vld [vmem:[#allocation10 + $0xc4] sm:$0xf]
        %v5326 = vld [vmem:[#allocation10 + $0xc8] sm:$0xf]
        %v5327 = vld [vmem:[#allocation10 + $0xcc] sm:$0xf]
        %v5328 = vld [vmem:[#allocation10 + $0xd0] sm:$0xf]
        %v5329 = vld [vmem:[#allocation10 + $0xd4] sm:$0xf]
        %v5330 = vld [vmem:[#allocation10 + $0xd8] sm:$0xf]
        %v5331 = vld [vmem:[#allocation10 + $0xdc] sm:$0xf]
        %v5332 = vld [vmem:[#allocation10 + $0xe0] sm:$0xf]
        %v5333 = vld [vmem:[#allocation10 + $0xe4] sm:$0xf]
        %v5334 = vld [vmem:[#allocation10 + $0xe8] sm:$0xf]
        %v5335 = vld [vmem:[#allocation10 + $0xec] sm:$0xf]
        %v5336 = vld [vmem:[#allocation10 + $0xf0] sm:$0xf]
        %v5337 = vld [vmem:[#allocation10 + $0xf4] sm:$0xf]
        %v5338 = vld [vmem:[#allocation10 + $0xf8] sm:$0xf]
        %v5339 = vld [vmem:[#allocation10 + $0xfc] sm:$0xf]
        %v5340 = vld [vmem:[%s9] sm:$0x1]
        %v5342 = vlaneseq
        %v5343 = vshrl.u32 %v5342, 7
        %v5344 = vsub.s32 0, %v5343
        %v5345 = vrot.slane %v5340, %v5344
        %v5411 = vunpack.c.l.b16 %v5276
        %v5412 = vunpack.c.l.b16 %v5277
        %v5413 = vunpack.c.l.b16 %v5278
        %v5414 = vunpack.c.l.b16 %v5279
        %v5415 = vunpack.c.l.b16 %v5280
        %v5416 = vunpack.c.l.b16 %v5281
        %v5417 = vunpack.c.l.b16 %v5282
        %v5418 = vunpack.c.l.b16 %v5283
        %v5419 = vunpack.c.l.b16 %v5284
        %v5420 = vunpack.c.l.b16 %v5285
        %v5421 = vunpack.c.l.b16 %v5286
        %v5422 = vunpack.c.l.b16 %v5287
        %v5423 = vunpack.c.l.b16 %v5288
        %v5424 = vunpack.c.l.b16 %v5289
        %v5425 = vunpack.c.l.b16 %v5290
        %v5426 = vunpack.c.l.b16 %v5291
        %v5427 = vunpack.c.l.b16 %v5292
        %v5428 = vunpack.c.l.b16 %v5293
        %v5429 = vunpack.c.l.b16 %v5294
        %v5430 = vunpack.c.l.b16 %v5295
        %v5431 = vunpack.c.l.b16 %v5296
        %v5432 = vunpack.c.l.b16 %v5297
        %v5433 = vunpack.c.l.b16 %v5298
        %v5434 = vunpack.c.l.b16 %v5299
        %v5435 = vunpack.c.l.b16 %v5300
        %v5436 = vunpack.c.l.b16 %v5301
        %v5437 = vunpack.c.l.b16 %v5302
        %v5438 = vunpack.c.l.b16 %v5303
        %v5439 = vunpack.c.l.b16 %v5304
        %v5440 = vunpack.c.l.b16 %v5305
        %v5441 = vunpack.c.l.b16 %v5306
        %v5442 = vunpack.c.l.b16 %v5307
        %v5443 = vunpack.c.l.b16 %v5308
        %v5444 = vunpack.c.l.b16 %v5309
        %v5445 = vunpack.c.l.b16 %v5310
        %v5446 = vunpack.c.l.b16 %v5311
        %v5447 = vunpack.c.l.b16 %v5312
        %v5448 = vunpack.c.l.b16 %v5313
        %v5449 = vunpack.c.l.b16 %v5314
        %v5450 = vunpack.c.l.b16 %v5315
        %v5451 = vunpack.c.l.b16 %v5316
        %v5452 = vunpack.c.l.b16 %v5317
        %v5453 = vunpack.c.l.b16 %v5318
        %v5454 = vunpack.c.l.b16 %v5319
        %v5455 = vunpack.c.l.b16 %v5320
        %v5456 = vunpack.c.l.b16 %v5321
        %v5457 = vunpack.c.l.b16 %v5322
        %v5458 = vunpack.c.l.b16 %v5323
        %v5459 = vunpack.c.l.b16 %v5324
        %v5460 = vunpack.c.l.b16 %v5325
        %v5461 = vunpack.c.l.b16 %v5326
        %v5462 = vunpack.c.l.b16 %v5327
        %v5463 = vunpack.c.l.b16 %v5328
        %v5464 = vunpack.c.l.b16 %v5329
        %v5465 = vunpack.c.l.b16 %v5330
        %v5466 = vunpack.c.l.b16 %v5331
        %v5467 = vunpack.c.l.b16 %v5332
        %v5468 = vunpack.c.l.b16 %v5333
        %v5469 = vunpack.c.l.b16 %v5334
        %v5470 = vunpack.c.l.b16 %v5335
        %v5471 = vunpack.c.l.b16 %v5336
        %v5472 = vunpack.c.l.b16 %v5337
        %v5473 = vunpack.c.l.b16 %v5338
        %v5474 = vunpack.c.l.b16 %v5339
        %v5475 = vpack.c.b16 %v5412, %v5411
        %v5476 = vpack.c.b16 %v5414, %v5413
        %v5477 = vpack.c.b16 %v5416, %v5415
        %v5478 = vpack.c.b16 %v5418, %v5417
        %v5479 = vpack.c.b16 %v5420, %v5419
        %v5480 = vpack.c.b16 %v5422, %v5421
        %v5481 = vpack.c.b16 %v5424, %v5423
        %v5482 = vpack.c.b16 %v5426, %v5425
        %v5483 = vpack.c.b16 %v5428, %v5427
        %v5484 = vpack.c.b16 %v5430, %v5429
        %v5485 = vpack.c.b16 %v5432, %v5431
        %v5486 = vpack.c.b16 %v5434, %v5433
        %v5487 = vpack.c.b16 %v5436, %v5435
        %v5488 = vpack.c.b16 %v5438, %v5437
        %v5489 = vpack.c.b16 %v5440, %v5439
        %v5490 = vpack.c.b16 %v5442, %v5441
        %v5491 = vpack.c.b16 %v5444, %v5443
        %v5492 = vpack.c.b16 %v5446, %v5445
        %v5493 = vpack.c.b16 %v5448, %v5447
        %v5494 = vpack.c.b16 %v5450, %v5449
        %v5495 = vpack.c.b16 %v5452, %v5451
        %v5496 = vpack.c.b16 %v5454, %v5453
        %v5497 = vpack.c.b16 %v5456, %v5455
        %v5498 = vpack.c.b16 %v5458, %v5457
        %v5499 = vpack.c.b16 %v5460, %v5459
        %v5500 = vpack.c.b16 %v5462, %v5461
        %v5501 = vpack.c.b16 %v5464, %v5463
        %v5502 = vpack.c.b16 %v5466, %v5465
        %v5503 = vpack.c.b16 %v5468, %v5467
        %v5504 = vpack.c.b16 %v5470, %v5469
        %v5505 = vpack.c.b16 %v5472, %v5471
        %v5506 = vpack.c.b16 %v5474, %v5473
        %5539 = vmatprep.subr.bf16.mxu0 0
        %5540 = vmatpush1.bf16.msra.mxu0 %v5475
        %5541 = vmatprep.subr.bf16.mxu0 0
        %5542 = vmatpush1.bf16.msra.mxu0 %v5476
        %5543 = vmatprep.subr.bf16.mxu0 0
        %5544 = vmatpush1.bf16.msra.mxu0 %v5477
        %5545 = vmatprep.subr.bf16.mxu0 0
        %5546 = vmatpush1.bf16.msra.mxu0 %v5478
        %5547 = vmatprep.subr.bf16.mxu0 0
        %5548 = vmatpush1.bf16.msra.mxu0 %v5479
        %5549 = vmatprep.subr.bf16.mxu0 0
        %5550 = vmatpush1.bf16.msra.mxu0 %v5480
        %5551 = vmatprep.subr.bf16.mxu0 0
        %5552 = vmatpush1.bf16.msra.mxu0 %v5481
        %5553 = vmatprep.subr.bf16.mxu0 0
        %5554 = vmatpush1.bf16.msra.mxu0 %v5482
        %5555 = vmatprep.subr.bf16.mxu0 0
        %5556 = vmatpush1.bf16.msra.mxu0 %v5483
        %5557 = vmatprep.subr.bf16.mxu0 0
        %5558 = vmatpush1.bf16.msra.mxu0 %v5484
        %5559 = vmatprep.subr.bf16.mxu0 0
        %5560 = vmatpush1.bf16.msra.mxu0 %v5485
        %5561 = vmatprep.subr.bf16.mxu0 0
        %5562 = vmatpush1.bf16.msra.mxu0 %v5486
        %5563 = vmatprep.subr.bf16.mxu0 0
        %5564 = vmatpush1.bf16.msra.mxu0 %v5487
        %5565 = vmatprep.subr.bf16.mxu0 0
        %5566 = vmatpush1.bf16.msra.mxu0 %v5488
        %5567 = vmatprep.subr.bf16.mxu0 0
        %5568 = vmatpush1.bf16.msra.mxu0 %v5489
        %5569 = vmatprep.subr.bf16.mxu0 0
        %5570 = vmatpush1.bf16.msra.mxu0 %v5490
        %5571 = vmatprep.mubr.bf16.mxu0 %v5213
        %5572 = vmatmul.mubr.bf16.gmra.mrb[0].mxu0 %v5212
        %v5573 = vpop.f32.mrb[0].mxu0
        %v5574 = vadd.f32 %v5345, %v5573
        %v5575 = vpop.f32.mrb[0].mxu0
        %v5576 = vpop.f32.mrb[0].mxu0
        %v5577 = vadd.f32 %v5345, %v5576
        %v5578 = vpop.f32.mrb[0].mxu0
        %5579 = vmatprep.mubr.bf16.mxu0 %v5217
        %5580 = vmatmul.mubr.bf16.gmra.mrb[0].mxu0 %v5216
        %v5581 = vpop.f32.mrb[0].mxu0
        %v5582 = vadd.f32 %v5345, %v5581
        %v5583 = vpop.f32.mrb[0].mxu0
        %v5584 = vpop.f32.mrb[0].mxu0
        %v5585 = vadd.f32 %v5345, %v5584
        %v5586 = vpop.f32.mrb[0].mxu0
        %5587 = vmatprep.mubr.bf16.mxu0 %v5221
        %5588 = vmatmul.mubr.bf16.gmra.mrb[0].mxu0 %v5220
        %v5589 = vpop.f32.mrb[0].mxu0
        %v5590 = vadd.f32 %v5345, %v5589
        %v5591 = vpop.f32.mrb[0].mxu0
        %v5592 = vpop.f32.mrb[0].mxu0
        %v5593 = vadd.f32 %v5345, %v5592
        %v5594 = vpop.f32.mrb[0].mxu0
        %5595 = vmatprep.mubr.bf16.mxu0 %v5225
        %5596 = vmatmul.mubr.bf16.gmra.mrb[0].mxu0 %v5224
        %v5597 = vpop.f32.mrb[0].mxu0
        %v5598 = vadd.f32 %v5345, %v5597
        %v5599 = vpop.f32.mrb[0].mxu0
        %v5600 = vpop.f32.mrb[0].mxu0
        %v5601 = vadd.f32 %v5345, %v5600
        %v5602 = vpop.f32.mrb[0].mxu0
        %5603 = vmatprep.mubr.bf16.mxu0 %v5229
        %5604 = vmatmul.mubr.bf16.gmra.mrb[0].mxu0 %v5228
        %v5605 = vpop.f32.mrb[0].mxu0
        %v5606 = vadd.f32 %v5345, %v5605
        %v5607 = vpop.f32.mrb[0].mxu0
        %v5608 = vpop.f32.mrb[0].mxu0
        %v5609 = vadd.f32 %v5345, %v5608
        %v5610 = vpop.f32.mrb[0].mxu0
        %5611 = vmatprep.mubr.bf16.mxu0 %v5233
        %5612 = vmatmul.mubr.bf16.gmra.mrb[0].mxu0 %v5232
        %v5613 = vpop.f32.mrb[0].mxu0
        %v5614 = vadd.f32 %v5345, %v5613
        %v5615 = vpop.f32.mrb[0].mxu0
        %v5616 = vpop.f32.mrb[0].mxu0
        %v5617 = vadd.f32 %v5345, %v5616
        %v5618 = vpop.f32.mrb[0].mxu0
        %5619 = vmatprep.mubr.bf16.mxu0 %v5237
        %5620 = vmatmul.mubr.bf16.gmra.mrb[0].mxu0 %v5236
        %v5621 = vpop.f32.mrb[0].mxu0
        %v5622 = vadd.f32 %v5345, %v5621
        %v5623 = vpop.f32.mrb[0].mxu0
        %v5624 = vpop.f32.mrb[0].mxu0
        %v5625 = vadd.f32 %v5345, %v5624
        %v5626 = vpop.f32.mrb[0].mxu0
        %5627 = vmatprep.mubr.bf16.mxu0 %v5241
        %5628 = vmatmul.mubr.bf16.gmra.mrb[0].mxu0 %v5240
        %v5629 = vpop.f32.mrb[0].mxu0
        %v5630 = vadd.f32 %v5345, %v5629
        %v5631 = vpop.f32.mrb[0].mxu0
        %v5632 = vpop.f32.mrb[0].mxu0
        %v5633 = vadd.f32 %v5345, %v5632
        %v5634 = vpop.f32.mrb[0].mxu0
        %5635 = vmatprep.mubr.bf16.mxu0 %v5245
        %5636 = vmatmul.mubr.bf16.gmra.mrb[0].mxu0 %v5244
        %v5637 = vpop.f32.mrb[0].mxu0
        %v5638 = vadd.f32 %v5345, %v5637
        %v5639 = vpop.f32.mrb[0].mxu0
        %v5640 = vpop.f32.mrb[0].mxu0
        %v5641 = vadd.f32 %v5345, %v5640
        %v5642 = vpop.f32.mrb[0].mxu0
        %5643 = vmatprep.mubr.bf16.mxu0 %v5249
        %5644 = vmatmul.mubr.bf16.gmra.mrb[0].mxu0 %v5248
        %v5645 = vpop.f32.mrb[0].mxu0
        %v5646 = vadd.f32 %v5345, %v5645
        %v5647 = vpop.f32.mrb[0].mxu0
        %v5648 = vpop.f32.mrb[0].mxu0
        %v5649 = vadd.f32 %v5345, %v5648
        %v5650 = vpop.f32.mrb[0].mxu0
        %5651 = vmatprep.mubr.bf16.mxu0 %v5253
        %5652 = vmatmul.mubr.bf16.gmra.mrb[0].mxu0 %v5252
        %v5653 = vpop.f32.mrb[0].mxu0
        %v5654 = vadd.f32 %v5345, %v5653
        %v5655 = vpop.f32.mrb[0].mxu0
        %v5656 = vpop.f32.mrb[0].mxu0
        %v5657 = vadd.f32 %v5345, %v5656
        %v5658 = vpop.f32.mrb[0].mxu0
        %5659 = vmatprep.mubr.bf16.mxu0 %v5257
        %5660 = vmatmul.mubr.bf16.gmra.mrb[0].mxu0 %v5256
        %v5661 = vpop.f32.mrb[0].mxu0
        %v5662 = vadd.f32 %v5345, %v5661
        %v5663 = vpop.f32.mrb[0].mxu0
        %v5664 = vpop.f32.mrb[0].mxu0
        %v5665 = vadd.f32 %v5345, %v5664
        %v5666 = vpop.f32.mrb[0].mxu0
        %5667 = vmatprep.mubr.bf16.mxu0 %v5261
        %5668 = vmatmul.mubr.bf16.gmra.mrb[0].mxu0 %v5260
        %v5669 = vpop.f32.mrb[0].mxu0
        %v5670 = vadd.f32 %v5345, %v5669
        %v5671 = vpop.f32.mrb[0].mxu0
        %v5672 = vpop.f32.mrb[0].mxu0
        %v5673 = vadd.f32 %v5345, %v5672
        %v5674 = vpop.f32.mrb[0].mxu0
        %5675 = vmatprep.mubr.bf16.mxu0 %v5265
        %5676 = vmatmul.mubr.bf16.gmra.mrb[0].mxu0 %v5264
        %v5677 = vpop.f32.mrb[0].mxu0
        %v5678 = vadd.f32 %v5345, %v5677
        %v5679 = vpop.f32.mrb[0].mxu0
        %v5680 = vpop.f32.mrb[0].mxu0
        %v5681 = vadd.f32 %v5345, %v5680
        %v5682 = vpop.f32.mrb[0].mxu0
        %5683 = vmatprep.mubr.bf16.mxu0 %v5269
        %5684 = vmatmul.mubr.bf16.gmra.mrb[0].mxu0 %v5268
        %v5685 = vpop.f32.mrb[0].mxu0
        %v5686 = vadd.f32 %v5345, %v5685
        %v5687 = vpop.f32.mrb[0].mxu0
        %v5688 = vpop.f32.mrb[0].mxu0
        %v5689 = vadd.f32 %v5345, %v5688
        %v5690 = vpop.f32.mrb[0].mxu0
        %5691 = vmatprep.mubr.bf16.mxu0 %v5273
        %5692 = vmatmul.mubr.bf16.gmra.mrb[0].mxu0 %v5272
        %v5693 = vpop.f32.mrb[0].mxu0
        %v5694 = vadd.f32 %v5345, %v5693
        %v5695 = vpop.f32.mrb[0].mxu0
        %v5696 = vpop.f32.mrb[0].mxu0
        %v5697 = vadd.f32 %v5345, %v5696
        %v5698 = vpop.f32.mrb[0].mxu0
        %5699 = vdwg.mxu0
        %5700 = vmatprep.subr.bf16.mxu0 0
        %5701 = vmatpush1.bf16.msra.mxu0 %v5491
        %5702 = vmatprep.subr.bf16.mxu0 0
        %5703 = vmatpush1.bf16.msra.mxu0 %v5492
        %5704 = vmatprep.subr.bf16.mxu0 0
        %5705 = vmatpush1.bf16.msra.mxu0 %v5493
        %5706 = vmatprep.subr.bf16.mxu0 0
        %5707 = vmatpush1.bf16.msra.mxu0 %v5494
        %5708 = vmatprep.subr.bf16.mxu0 0
        %5709 = vmatpush1.bf16.msra.mxu0 %v5495
        %5710 = vmatprep.subr.bf16.mxu0 0
        %5711 = vmatpush1.bf16.msra.mxu0 %v5496
        %5712 = vmatprep.subr.bf16.mxu0 0
        %5713 = vmatpush1.bf16.msra.mxu0 %v5497
        %5714 = vmatprep.subr.bf16.mxu0 0
        %5715 = vmatpush1.bf16.msra.mxu0 %v5498
        %5716 = vmatprep.subr.bf16.mxu0 0
        %5717 = vmatpush1.bf16.msra.mxu0 %v5499
        %5718 = vmatprep.subr.bf16.mxu0 0
        %5719 = vmatpush1.bf16.msra.mxu0 %v5500
        %5720 = vmatprep.subr.bf16.mxu0 0
        %5721 = vmatpush1.bf16.msra.mxu0 %v5501
        %5722 = vmatprep.subr.bf16.mxu0 0
        %5723 = vmatpush1.bf16.msra.mxu0 %v5502
        %5724 = vmatprep.subr.bf16.mxu0 0
        %5725 = vmatpush1.bf16.msra.mxu0 %v5503
        %5726 = vmatprep.subr.bf16.mxu0 0
        %5727 = vmatpush1.bf16.msra.mxu0 %v5504
        %5728 = vmatprep.subr.bf16.mxu0 0
        %5729 = vmatpush1.bf16.msra.mxu0 %v5505
        %5730 = vmatprep.subr.bf16.mxu0 0
        %5731 = vmatpush1.bf16.msra.mxu0 %v5506
        %5732 = vmatprep.mubr.bf16.mxu0 %v5215
        %5733 = vmatmul.mubr.bf16.gmra.mrb[0].mxu0 %v5214
        %v5734 = vpop.f32.mrb[0].mxu0
        %v5735 = vadd.f32 %v5574, %v5734
        %v5736 = vpop.f32.mrb[0].mxu0
        %v5737 = vpop.f32.mrb[0].mxu0
        %v5738 = vadd.f32 %v5577, %v5737
        %v5739 = vpop.f32.mrb[0].mxu0
        %5740 = vmatprep.mubr.bf16.mxu0 %v5219
        %5741 = vmatmul.mubr.bf16.gmra.mrb[0].mxu0 %v5218
        %v5742 = vpop.f32.mrb[0].mxu0
        %v5743 = vadd.f32 %v5582, %v5742
        %v5744 = vpop.f32.mrb[0].mxu0
        %v5745 = vpop.f32.mrb[0].mxu0
        %v5746 = vadd.f32 %v5585, %v5745
        %v5747 = vpop.f32.mrb[0].mxu0
        %5748 = vmatprep.mubr.bf16.mxu0 %v5223
        %5749 = vmatmul.mubr.bf16.gmra.mrb[0].mxu0 %v5222
        %v5750 = vpop.f32.mrb[0].mxu0
        %v5751 = vadd.f32 %v5590, %v5750
        %v5752 = vpop.f32.mrb[0].mxu0
        %v5753 = vpop.f32.mrb[0].mxu0
        %v5754 = vadd.f32 %v5593, %v5753
        %v5755 = vpop.f32.mrb[0].mxu0
        %5756 = vmatprep.mubr.bf16.mxu0 %v5227
        %5757 = vmatmul.mubr.bf16.gmra.mrb[0].mxu0 %v5226
        %v5758 = vpop.f32.mrb[0].mxu0
        %v5759 = vadd.f32 %v5598, %v5758
        %v5760 = vpop.f32.mrb[0].mxu0
        %v5761 = vpop.f32.mrb[0].mxu0
        %v5762 = vadd.f32 %v5601, %v5761
        %v5763 = vpop.f32.mrb[0].mxu0
        %5764 = vmatprep.mubr.bf16.mxu0 %v5231
        %5765 = vmatmul.mubr.bf16.gmra.mrb[0].mxu0 %v5230
        %v5766 = vpop.f32.mrb[0].mxu0
        %v5767 = vadd.f32 %v5606, %v5766
        %v5768 = vpop.f32.mrb[0].mxu0
        %v5769 = vpop.f32.mrb[0].mxu0
        %v5770 = vadd.f32 %v5609, %v5769
        %v5771 = vpop.f32.mrb[0].mxu0
        %5772 = vmatprep.mubr.bf16.mxu0 %v5235
        %5773 = vmatmul.mubr.bf16.gmra.mrb[0].mxu0 %v5234
        %v5774 = vpop.f32.mrb[0].mxu0
        %v5775 = vadd.f32 %v5614, %v5774
        %v5776 = vpop.f32.mrb[0].mxu0
        %v5777 = vpop.f32.mrb[0].mxu0
        %v5778 = vadd.f32 %v5617, %v5777
        %v5779 = vpop.f32.mrb[0].mxu0
        %5780 = vmatprep.mubr.bf16.mxu0 %v5239
        %5781 = vmatmul.mubr.bf16.gmra.mrb[0].mxu0 %v5238
        %v5782 = vpop.f32.mrb[0].mxu0
        %v5783 = vadd.f32 %v5622, %v5782
        %v5784 = vpop.f32.mrb[0].mxu0
        %v5785 = vpop.f32.mrb[0].mxu0
        %v5786 = vadd.f32 %v5625, %v5785
        %v5787 = vpop.f32.mrb[0].mxu0
        %5788 = vmatprep.mubr.bf16.mxu0 %v5243
        %5789 = vmatmul.mubr.bf16.gmra.mrb[0].mxu0 %v5242
        %v5790 = vpop.f32.mrb[0].mxu0
        %v5791 = vadd.f32 %v5630, %v5790
        %v5792 = vpop.f32.mrb[0].mxu0
        %v5793 = vpop.f32.mrb[0].mxu0
        %v5794 = vadd.f32 %v5633, %v5793
        %v5795 = vpop.f32.mrb[0].mxu0
        %5796 = vmatprep.mubr.bf16.mxu0 %v5247
        %5797 = vmatmul.mubr.bf16.gmra.mrb[0].mxu0 %v5246
        %v5798 = vpop.f32.mrb[0].mxu0
        %v5799 = vadd.f32 %v5638, %v5798
        %v5800 = vpop.f32.mrb[0].mxu0
        %v5801 = vpop.f32.mrb[0].mxu0
        %v5802 = vadd.f32 %v5641, %v5801
        %v5803 = vpop.f32.mrb[0].mxu0
        %5804 = vmatprep.mubr.bf16.mxu0 %v5251
        %5805 = vmatmul.mubr.bf16.gmra.mrb[0].mxu0 %v5250
        %v5806 = vpop.f32.mrb[0].mxu0
        %v5807 = vadd.f32 %v5646, %v5806
        %v5808 = vpop.f32.mrb[0].mxu0
        %v5809 = vpop.f32.mrb[0].mxu0
        %v5810 = vadd.f32 %v5649, %v5809
        %v5811 = vpop.f32.mrb[0].mxu0
        %5812 = vmatprep.mubr.bf16.mxu0 %v5255
        %5813 = vmatmul.mubr.bf16.gmra.mrb[0].mxu0 %v5254
        %v5814 = vpop.f32.mrb[0].mxu0
        %v5815 = vadd.f32 %v5654, %v5814
        %v5816 = vpop.f32.mrb[0].mxu0
        %v5817 = vpop.f32.mrb[0].mxu0
        %v5818 = vadd.f32 %v5657, %v5817
        %v5819 = vpop.f32.mrb[0].mxu0
        %5820 = vmatprep.mubr.bf16.mxu0 %v5259
        %5821 = vmatmul.mubr.bf16.gmra.mrb[0].mxu0 %v5258
        %v5822 = vpop.f32.mrb[0].mxu0
        %v5823 = vadd.f32 %v5662, %v5822
        %v5824 = vpop.f32.mrb[0].mxu0
        %v5825 = vpop.f32.mrb[0].mxu0
        %v5826 = vadd.f32 %v5665, %v5825
        %v5827 = vpop.f32.mrb[0].mxu0
        %5828 = vmatprep.mubr.bf16.mxu0 %v5263
        %5829 = vmatmul.mubr.bf16.gmra.mrb[0].mxu0 %v5262
        %v5830 = vpop.f32.mrb[0].mxu0
        %v5831 = vadd.f32 %v5670, %v5830
        %v5832 = vpop.f32.mrb[0].mxu0
        %v5833 = vpop.f32.mrb[0].mxu0
        %v5834 = vadd.f32 %v5673, %v5833
        %v5835 = vpop.f32.mrb[0].mxu0
        %5836 = vmatprep.mubr.bf16.mxu0 %v5267
        %5837 = vmatmul.mubr.bf16.gmra.mrb[0].mxu0 %v5266
        %v5838 = vpop.f32.mrb[0].mxu0
        %v5839 = vadd.f32 %v5678, %v5838
        %v5840 = vpop.f32.mrb[0].mxu0
        %v5841 = vpop.f32.mrb[0].mxu0
        %v5842 = vadd.f32 %v5681, %v5841
        %v5843 = vpop.f32.mrb[0].mxu0
        %5844 = vmatprep.mubr.bf16.mxu0 %v5271
        %5845 = vmatmul.mubr.bf16.gmra.mrb[0].mxu0 %v5270
        %v5846 = vpop.f32.mrb[0].mxu0
        %v5847 = vadd.f32 %v5686, %v5846
        %v5848 = vpop.f32.mrb[0].mxu0
        %v5849 = vpop.f32.mrb[0].mxu0
        %v5850 = vadd.f32 %v5689, %v5849
        %v5851 = vpop.f32.mrb[0].mxu0
        %5852 = vmatprep.mubr.bf16.mxu0 %v5275
        %5853 = vmatmul.mubr.bf16.gmra.mrb[0].mxu0 %v5274
        %v5854 = vpop.f32.mrb[0].mxu0
        %v5855 = vadd.f32 %v5694, %v5854
        %v5856 = vpop.f32.mrb[0].mxu0
        %v5857 = vpop.f32.mrb[0].mxu0
        %v5858 = vadd.f32 %v5697, %v5857
        %v5859 = vpop.f32.mrb[0].mxu0
        %5860 = vdwg.mxu0
        %v5861 = vld [vmem:[%s10] sm:$0x1]
        %v5863 = vlaneseq
        %v5864 = vshrl.u32 %v5863, 7
        %v5865 = vsub.s32 0, %v5864
        %v5866 = vrot.slane %v5861, %v5865
        %v5868 = vmul.f32 %v5735, %v5866
        %v5869 = vmul.f32 %v5738, %v5866
        %v5870 = vmul.f32 %v5743, %v5866
        %v5871 = vmul.f32 %v5746, %v5866
        %v5872 = vmul.f32 %v5751, %v5866
        %v5873 = vmul.f32 %v5754, %v5866
        %v5874 = vmul.f32 %v5759, %v5866
        %v5875 = vmul.f32 %v5762, %v5866
        %v5876 = vmul.f32 %v5767, %v5866
        %v5877 = vmul.f32 %v5770, %v5866
        %v5878 = vmul.f32 %v5775, %v5866
        %v5879 = vmul.f32 %v5778, %v5866
        %v5880 = vmul.f32 %v5783, %v5866
        %v5881 = vmul.f32 %v5786, %v5866
        %v5882 = vmul.f32 %v5791, %v5866
        %v5883 = vmul.f32 %v5794, %v5866
        %v5884 = vmul.f32 %v5799, %v5866
        %v5885 = vmul.f32 %v5802, %v5866
        %v5886 = vmul.f32 %v5807, %v5866
        %v5887 = vmul.f32 %v5810, %v5866
        %v5888 = vmul.f32 %v5815, %v5866
        %v5889 = vmul.f32 %v5818, %v5866
        %v5890 = vmul.f32 %v5823, %v5866
        %v5891 = vmul.f32 %v5826, %v5866
        %v5892 = vmul.f32 %v5831, %v5866
        %v5893 = vmul.f32 %v5834, %v5866
        %v5894 = vmul.f32 %v5839, %v5866
        %v5895 = vmul.f32 %v5842, %v5866
        %v5896 = vmul.f32 %v5847, %v5866
        %v5897 = vmul.f32 %v5850, %v5866
        %v5898 = vmul.f32 %v5855, %v5866
        %v5899 = vmul.f32 %v5858, %v5866
        %v5900 = vld [vmem:[%s398] sm:$0xff]
        %v5901 = vld [vmem:[%s398 + $0x8] sm:$0xff]
        %v5902 = vld [vmem:[%s398 + $0x10] sm:$0xff]
        %v5903 = vld [vmem:[%s398 + $0x18] sm:$0xff]
        %v5904 = vld [vmem:[%s398 + $0x20] sm:$0xff]
        %v5905 = vld [vmem:[%s398 + $0x28] sm:$0xff]
        %v5906 = vld [vmem:[%s398 + $0x30] sm:$0xff]
        %v5907 = vld [vmem:[%s398 + $0x38] sm:$0xff]
        %v5908 = vld [vmem:[%s398 + $0x40] sm:$0xff]
        %v5909 = vld [vmem:[%s398 + $0x48] sm:$0xff]
        %v5910 = vld [vmem:[%s398 + $0x50] sm:$0xff]
        %v5911 = vld [vmem:[%s398 + $0x58] sm:$0xff]
        %v5912 = vld [vmem:[%s398 + $0x60] sm:$0xff]
        %v5913 = vld [vmem:[%s398 + $0x68] sm:$0xff]
        %v5914 = vld [vmem:[%s398 + $0x70] sm:$0xff]
        %v5915 = vld [vmem:[%s398 + $0x78] sm:$0xff]
        %v5916 = vld [vmem:[%s398 + $0x80] sm:$0xff]
        %v5917 = vld [vmem:[%s398 + $0x88] sm:$0xff]
        %v5918 = vld [vmem:[%s398 + $0x90] sm:$0xff]
        %v5919 = vld [vmem:[%s398 + $0x98] sm:$0xff]
        %v5920 = vld [vmem:[%s398 + $0xa0] sm:$0xff]
        %v5921 = vld [vmem:[%s398 + $0xa8] sm:$0xff]
        %v5922 = vld [vmem:[%s398 + $0xb0] sm:$0xff]
        %v5923 = vld [vmem:[%s398 + $0xb8] sm:$0xff]
        %v5924 = vld [vmem:[%s398 + $0xc0] sm:$0xff]
        %v5925 = vld [vmem:[%s398 + $0xc8] sm:$0xff]
        %v5926 = vld [vmem:[%s398 + $0xd0] sm:$0xff]
        %v5927 = vld [vmem:[%s398 + $0xd8] sm:$0xff]
        %v5928 = vld [vmem:[%s398 + $0xe0] sm:$0xff]
        %v5929 = vld [vmem:[%s398 + $0xe8] sm:$0xff]
        %v5930 = vld [vmem:[%s398 + $0xf0] sm:$0xff]
        %v5931 = vld [vmem:[%s398 + $0xf8] sm:$0xff]
        %v5932 = vadd.f32 %v5900, %v5868
        %v5933 = vadd.f32 %v5901, %v5869
        %v5934 = vadd.f32 %v5902, %v5870
        %v5935 = vadd.f32 %v5903, %v5871
        %v5936 = vadd.f32 %v5904, %v5872
        %v5937 = vadd.f32 %v5905, %v5873
        %v5938 = vadd.f32 %v5906, %v5874
        %v5939 = vadd.f32 %v5907, %v5875
        %v5940 = vadd.f32 %v5908, %v5876
        %v5941 = vadd.f32 %v5909, %v5877
        %v5942 = vadd.f32 %v5910, %v5878
        %v5943 = vadd.f32 %v5911, %v5879
        %v5944 = vadd.f32 %v5912, %v5880
        %v5945 = vadd.f32 %v5913, %v5881
        %v5946 = vadd.f32 %v5914, %v5882
        %v5947 = vadd.f32 %v5915, %v5883
        %v5948 = vadd.f32 %v5916, %v5884
        %v5949 = vadd.f32 %v5917, %v5885
        %v5950 = vadd.f32 %v5918, %v5886
        %v5951 = vadd.f32 %v5919, %v5887
        %v5952 = vadd.f32 %v5920, %v5888
        %v5953 = vadd.f32 %v5921, %v5889
        %v5954 = vadd.f32 %v5922, %v5890
        %v5955 = vadd.f32 %v5923, %v5891
        %v5956 = vadd.f32 %v5924, %v5892
        %v5957 = vadd.f32 %v5925, %v5893
        %v5958 = vadd.f32 %v5926, %v5894
        %v5959 = vadd.f32 %v5927, %v5895
        %v5960 = vadd.f32 %v5928, %v5896
        %v5961 = vadd.f32 %v5929, %v5897
        %v5962 = vadd.f32 %v5930, %v5898
        %v5963 = vadd.f32 %v5931, %v5899
        %5964 = vst [vmem:[%s448] sm:$0xff] %v5932
        %5965 = vst [vmem:[%s448 + $0x8] sm:$0xff] %v5933
        %5966 = vst [vmem:[%s448 + $0x10] sm:$0xff] %v5934
        %5967 = vst [vmem:[%s448 + $0x18] sm:$0xff] %v5935
        %5968 = vst [vmem:[%s448 + $0x20] sm:$0xff] %v5936
        %5969 = vst [vmem:[%s448 + $0x28] sm:$0xff] %v5937
        %5970 = vst [vmem:[%s448 + $0x30] sm:$0xff] %v5938
        %5971 = vst [vmem:[%s448 + $0x38] sm:$0xff] %v5939
        %5972 = vst [vmem:[%s448 + $0x40] sm:$0xff] %v5940
        %5973 = vst [vmem:[%s448 + $0x48] sm:$0xff] %v5941
        %5974 = vst [vmem:[%s448 + $0x50] sm:$0xff] %v5942
        %5975 = vst [vmem:[%s448 + $0x58] sm:$0xff] %v5943
        %5976 = vst [vmem:[%s448 + $0x60] sm:$0xff] %v5944
        %5977 = vst [vmem:[%s448 + $0x68] sm:$0xff] %v5945
        %5978 = vst [vmem:[%s448 + $0x70] sm:$0xff] %v5946
        %5979 = vst [vmem:[%s448 + $0x78] sm:$0xff] %v5947
        %5980 = vst [vmem:[%s448 + $0x80] sm:$0xff] %v5948
        %5981 = vst [vmem:[%s448 + $0x88] sm:$0xff] %v5949
        %5982 = vst [vmem:[%s448 + $0x90] sm:$0xff] %v5950
        %5983 = vst [vmem:[%s448 + $0x98] sm:$0xff] %v5951
        %5984 = vst [vmem:[%s448 + $0xa0] sm:$0xff] %v5952
        %5985 = vst [vmem:[%s448 + $0xa8] sm:$0xff] %v5953
        %5986 = vst [vmem:[%s448 + $0xb0] sm:$0xff] %v5954
        %5987 = vst [vmem:[%s448 + $0xb8] sm:$0xff] %v5955
        %5988 = vst [vmem:[%s448 + $0xc0] sm:$0xff] %v5956
        %5989 = vst [vmem:[%s448 + $0xc8] sm:$0xff] %v5957
        %5990 = vst [vmem:[%s448 + $0xd0] sm:$0xff] %v5958
        %5991 = vst [vmem:[%s448 + $0xd8] sm:$0xff] %v5959
        %5992 = vst [vmem:[%s448 + $0xe0] sm:$0xff] %v5960
        %5993 = vst [vmem:[%s448 + $0xe8] sm:$0xff] %v5961
        %5994 = vst [vmem:[%s448 + $0xf0] sm:$0xff] %v5962
        %5995 = vst [vmem:[%s448 + $0xf8] sm:$0xff] %v5963
        %s5996 = sand.u32 %s274, 1
        %s5997 = scalar_lea.sflag [#allocation6], %s5996
        %s5998 = sand.u32 %s274, 1
        %s5999 = smul.addr %s5998, 256
        %s6000 = scalar_lea.vmem [#allocation12], %s5999
        // Predicated region
        $region88: #{tpu_custom_call.1} parent=63 // pred_check
          %p6001 = pneg %p284
        $region89: #{tpu_custom_call.1} parent=63 // pred_check_branch
          %6003 = sbr.rel (%p6001) target = $region91
        $region90: #{tpu_custom_call.1} parent=63 // pred_region
          %s6005 = ssub.s32 4096, 4096
          %6006 = vsyncadd %s5997, %s6005
          %s6007 = smul.addr %s30, 32
          %s6008 = smul.addr %s6007, 128
          %s6009 = scalar_lea.hbm %s11, %s6008
          %s6010 = sshll.u32 %s6000, 4
          %s6011 = int_to_ptr.vmem [resolvable:$true] %s6010
          %6016 = dma.vmem_to_hbm [thread:$0]  %s6011, 4096, %s6009, %s5997, 128, 128, 8
        $region91: #{tpu_custom_call.1} parent=63 // pred_fallthru
          _
      $region64: #{tpu_custom_call.1} parent=5 // pred_fallthru
        _
      %p6017 = scmp.le.s32.totalorder 2, %s25
      // Predicated region
      $region92: #{tpu_custom_call.1} parent=5 // pred_check
        %p6018 = pneg %p6017
      $region93: #{tpu_custom_call.1} parent=5 // pred_check_branch
        %6020 = sbr.rel (%p6018) target = $region95
      $region94: #{tpu_custom_call.1} parent=5 // pred_region
        %s6021 = ssub.s32 %s25, 2
        // Predicated region
        $region96: #{tpu_custom_call.1} parent=94 // pred_check
          %p6022 = pneg %p290
        $region97: #{tpu_custom_call.1} parent=94 // pred_check_branch
          %6024 = sbr.rel (%p6022) target = $region99
        $region98: #{tpu_custom_call.1} parent=94 // pred_region
          %s6025 = sand.u32 %s275, 1
          %s6026 = scalar_lea.sflag [#allocation6], %s6025
          %s6027 = sand.u32 %s275, 1
          %s6028 = smul.addr %s6027, 256
          %s6029 = scalar_lea.vmem [#allocation12], %s6028
          %6030 = dma.done %s6026, 4096
        $region99: #{tpu_custom_call.1} parent=94 // pred_fallthru
          _
      $region95: #{tpu_custom_call.1} parent=5 // pred_fallthru
        _
    $region6: #{tpu_custom_call.1} parent=1 // loop_footer
      %s29 = sadd.s32 1, %s25
    $region7: #{tpu_custom_call.1} parent=1 // loop_footer_branch
      %24 = sbr.rel target = $region3
    $region8: #{tpu_custom_call.1} parent=1 // loop_exit
      _
    %6031 = vsyncpa [#allocation5], 1
    %s6032 = scalar_lea.sflag [#allocation5], 1
    %6033 = vsyncpa %s6032, 1
    %6034 = vsyncpa [#allocation8], 1
    %6035 = vsyncpa [#allocation11], 1
    %6036 = vsyncpa [#allocation6], 1
    %s6037 = scalar_lea.sflag [#allocation6], 1
    %6038 = vsyncpa %s6037, 1

</llo_original>
